<compile_context>
chip_gen: v5e
topology: v5e:2x2
jax: 0.10.0
libtpu: 0.0.40
codegen_flags: <defaults>
</compile_context>

<pallas_src>
import functools
import numpy as np
import jax
import jax.numpy as jnp
from jax.experimental import pallas as pl
from jax.experimental.pallas import tpu as pltpu

# ----------------------------- small, consistent config -----------------------------
IMG, PATCH, CHANS = 16, 4, 3
GRID = IMG // PATCH                 # 4
LP = GRID * GRID                    # 16 patches per image
T = 2                               # timesteps
EMBED, DEPTH, HEADS = 64, 2, 4
DEC_EMBED, DEC_DEPTH, DEC_HEADS = 48, 2, 4
MLP_RATIO = 4.0
TS_ENC = 16                         # per-timestamp sincos dim (encoder, analog of 128)
TS_DEC = 8                          # per-timestamp sincos dim (decoder, analog of 64)
POS_ENC = EMBED - T * TS_ENC        # 32
POS_DEC = DEC_EMBED - T * TS_DEC    # 32
MASK_RATIO = 0.9
LN_EPS = 1e-5                       # torch nn.LayerNorm default

_BLOCK_KEYS = ("n1_g", "n1_b", "qkv_w", "qkv_b", "proj_w", "proj_b",
               "n2_g", "n2_b", "fc1_w", "fc1_b", "fc2_w", "fc2_b")


# --------------------------- in-kernel helpers (traced inline) ------------------------
def _ln(x, g, b):
    # f32 LayerNorm (biased variance, matches torch)
    mu = jnp.mean(x, axis=-1, keepdims=True)
    var = jnp.mean((x - mu) ** 2, axis=-1, keepdims=True)
    return (x - mu) * jax.lax.rsqrt(var + LN_EPS) * g + b


def _mm(a, w):
    # bf16 MXU operands (weights are pre-cast to bf16 in params), f32 accumulation
    return jnp.dot(a.astype(jnp.bfloat16), w, preferred_element_type=jnp.float32)


def _gelu_tanh(x):
    # tanh-approximate GELU (transcendental goes to the EUP slot)
    c = 0.7978845608028654  # sqrt(2/pi)
    return 0.5 * x * (1.0 + jnp.tanh(c * (x + 0.044715 * x * x * x)))


# ----------------------------------- Pallas kernels ----------------------------------
def _embed_kernel(x_ref, w_ref, b_ref, e_ref, o_ref):
    # y = x @ W + b + emb   (patch embed + fused pos/timestamp embedding add)
    o_ref[...] = _mm(x_ref[...], w_ref[...]) + b_ref[...] + e_ref[...]


def patch_embed_add(x2d, w, b, emb2d):
    M, K = x2d.shape
    Nout = w.shape[1]
    return pl.pallas_call(
        _embed_kernel,
        out_shape=jax.ShapeDtypeStruct((M, Nout), jnp.float32),
        grid=(1,),
        in_specs=[
            pl.BlockSpec((M, K), lambda i: (0, 0)),
            pl.BlockSpec((K, Nout), lambda i: (0, 0)),
            pl.BlockSpec((1, Nout), lambda i: (0, 0)),
            pl.BlockSpec((M, Nout), lambda i: (0, 0)),
        ],
        out_specs=pl.BlockSpec((M, Nout), lambda i: (0, 0)),
    )(x2d, w, b, emb2d)


def _ln_linear_kernel(x_ref, g_ref, b_ref, w_ref, wb_ref, o_ref):
    # y = LayerNorm(x) @ W + b   (fused encoder final norm + decoder_embed)
    h = _ln(x_ref[...], g_ref[...], b_ref[...])
    o_ref[...] = _mm(h, w_ref[...]) + wb_ref[...]


def ln_linear(x2d, g, b, w, wb):
    M, K = x2d.shape
    N = w.shape[1]
    return pl.pallas_call(
        _ln_linear_kernel,
        out_shape=jax.ShapeDtypeStruct((M, N), jnp.float32),
        grid=(1,),
        in_specs=[
            pl.BlockSpec((M, K), lambda i: (0, 0)),
            pl.BlockSpec((1, K), lambda i: (0, 0)),
            pl.BlockSpec((1, K), lambda i: (0, 0)),
            pl.BlockSpec((K, N), lambda i: (0, 0)),
            pl.BlockSpec((1, N), lambda i: (0, 0)),
        ],
        out_specs=pl.BlockSpec((M, N), lambda i: (0, 0)),
    )(x2d, g, b, w, wb)


def _stack_kernel(x_ref, n1g, n1b, qkvw, qkvb, projw, projb,
                  n2g, n2b, fc1w, fc1b, fc2w, fc2b, o_ref, *, num_heads):
    """One transformer layer per grid step; residual stream carried in o_ref (VMEM)."""
    Nb, S, D = x_ref.shape
    H = num_heads
    hd = D // H
    scale = hd ** -0.5

    @pl.when(pl.program_id(1) == 0)
    def _():
        o_ref[...] = x_ref[...]            # load residual stream once per batch block

    x = o_ref[...].reshape(Nb * S, D)      # [M, D] f32, batch folded into matmul M

    # ---------------- attention branch ----------------
    h = _ln(x, n1g[0], n1b[0])
    q = _mm(h, qkvw[0, 0]) + qkvb[0, 0]    # [M, D]
    k = _mm(h, qkvw[0, 1]) + qkvb[0, 1]
    v = _mm(h, qkvw[0, 2]) + qkvb[0, 2]

    def to_heads(t):                        # [M, H*hd] -> [H*Nb, S, hd] (no transposes)
        return jnp.concatenate(
            [t[:, i * hd:(i + 1) * hd].reshape(Nb, S, hd) for i in range(H)], axis=0)

    qh, kh, vh = to_heads(q), to_heads(k), to_heads(v)
    # one batched MXU dot over all (head, sample) pairs
    s = jnp.einsum('bqd,bkd->bqk', qh.astype(jnp.bfloat16), kh.astype(jnp.bfloat16),
                   preferred_element_type=jnp.float32) * scale          # [H*Nb, S, S]
    s = s - jnp.max(s, axis=-1, keepdims=True)
    e = jnp.exp(s)
    p = e * pl.reciprocal(jnp.sum(e, axis=-1, keepdims=True), approx=True)
    oh = jnp.einsum('bqk,bkd->bqd', p.astype(jnp.bfloat16), vh.astype(jnp.bfloat16),
                    preferred_element_type=jnp.float32)                 # [H*Nb, S, hd]
    attn = jnp.concatenate(
        [oh[i * Nb:(i + 1) * Nb].reshape(Nb * S, hd) for i in range(H)], axis=-1)
    x = x + _mm(attn, projw[0]) + projb[0]

    # ------------------- MLP branch --------------------
    h = _ln(x, n2g[0], n2b[0])
    h = _mm(h, fc1w[0]) + fc1b[0]          # [M, 4D]
    h = _gelu_tanh(h)
    x = x + _mm(h, fc2w[0]) + fc2b[0]

    o_ref[...] = x.reshape(Nb, S, D)       # stays resident in VMEM across depth steps


def _widx(nd):
    zeros = (0,) * (nd - 1)

    def idx(b, d):
        return (d,) + zeros
    return idx


def vit_stack(x, p, num_heads, batch_blocks=None):
    """All DEPTH layers in a single pallas_call; grid=(batch_blocks, depth)."""
    N, S, D = x.shape
    depth = p["qkv_w"].shape[0]
    if batch_blocks is None:
        # leading "parallel" axis of size 2 feeds v7x's 2 TensorCores; on
        # single-TC chips (v5e/v6e) the extra grid step costs ~0.35 us.
        batch_blocks = 2 if (N % 2 == 0 and N >= 2) else 1
    NB = batch_blocks
    Nb = N // NB

    def wspec(arr):
        return pl.BlockSpec((1,) + arr.shape[1:], _widx(arr.ndim))

    return pl.pallas_call(
        functools.partial(_stack_kernel, num_heads=num_heads),
        out_shape=jax.ShapeDtypeStruct((N, S, D), jnp.float32),
        grid=(NB, depth),
        in_specs=[pl.BlockSpec((Nb, S, D), lambda b, d: (b, 0, 0))]
                 + [wspec(p[k]) for k in _BLOCK_KEYS],
        out_specs=pl.BlockSpec((Nb, S, D), lambda b, d: (b, 0, 0)),
        compiler_params=pltpu.CompilerParams(
            dimension_semantics=("parallel", "arbitrary")),
    )(x, *[p[k] for k in _BLOCK_KEYS])


def _dec_head_kernel(x_ref, g_ref, b_ref, w_ref, wb_ref, tgt_ref, m_ref,
                     pred_ref, loss_ref):
    # fused: decoder LayerNorm + decoder_pred + masked MSE loss
    N, S1, D = x_ref.shape
    h = _ln(x_ref[...].reshape(N * S1, D), g_ref[...], b_ref[...])
    y = (_mm(h, w_ref[...]) + wb_ref[...]).reshape(N, S1, -1)
    pred = y[:, 1:, :]                                  # drop cls token
    pred_ref[...] = pred
    d = pred - tgt_ref[...]
    per_tok = jnp.mean(d * d, axis=-1)                  # [N, L]
    m = m_ref[...]                                      # lane-dense [N, L]
    num = jnp.sum(per_tok * m)
    den = jnp.maximum(jnp.sum(m), 1.0)                  # guard (not reachable at 0.9)
    loss_ref[...] = (num / den) * jnp.ones((1, 1), jnp.float32)


def decoder_head_loss(x, g, b, w, wb, target, mask):
    N, S1, D = x.shape
    L2 = S1 - 1
    Dp = w.shape[1]
    pred, loss = pl.pallas_call(
        _dec_head_kernel,
        out_shape=(jax.ShapeDtypeStruct((N, L2, Dp), jnp.float32),
                   jax.ShapeDtypeStruct((1, 1), jnp.float32)),
        grid=(1,),
        in_specs=[
            pl.BlockSpec((N, S1, D), lambda i: (0, 0, 0)),
            pl.BlockSpec((1, D), lambda i: (0, 0)),
            pl.BlockSpec((1, D), lambda i: (0, 0)),
            pl.BlockSpec((D, Dp), lambda i: (0, 0)),
            pl.BlockSpec((1, Dp), lambda i: (0, 0)),
            pl.BlockSpec((N, L2, Dp), lambda i: (0, 0, 0)),
            pl.BlockSpec((N, L2), lambda i: (0, 0)),
        ],
        out_specs=(pl.BlockSpec((N, L2, Dp), lambda i: (0, 0, 0)),
                   pl.BlockSpec((1, 1), lambda i: (0, 0))),
    )(x, g, b, w, wb, target, mask)
    return pred, loss[0, 0]


# ------------------------------------- glue: model ------------------------------------
def sincos_1d(embed_dim, pos):
    omega = jnp.arange(embed_dim // 2, dtype=jnp.float32) / (embed_dim / 2.0)
    omega = 1.0 / (10000.0 ** omega)
    out = pos.astype(jnp.float32)[:, None] * omega[None, :]
    return jnp.concatenate([jnp.sin(out), jnp.cos(out)], axis=1)


def get_2d_sincos_pos_embed(embed_dim, grid_size, cls_token=True):
    def emb1d(dim, p):
        omega = np.arange(dim // 2, dtype=np.float64) / (dim / 2.0)
        omega = 1.0 / 10000.0 ** omega
        out = np.einsum("m,d->md", p, omega)
        return np.concatenate([np.sin(out), np.cos(out)], axis=1)

    gh = np.arange(grid_size, dtype=np.float64)
    gw = np.arange(grid_size, dtype=np.float64)
    grid = np.stack(np.meshgrid(gw, gh), axis=0).reshape(2, -1)
    emb = np.concatenate([emb1d(embed_dim // 2, grid[0]),
                          emb1d(embed_dim // 2, grid[1])], axis=1)
    if cls_token:
        emb = np.concatenate([np.zeros((1, embed_dim)), emb], axis=0)
    return jnp.asarray(emb, dtype=jnp.float32)


def patchify_conv(img):
    # conv(stride=patch) equivalent flattening: (c, ph, pw) order == conv weight flatten
    N = img.shape[0]
    x = img.reshape(N, CHANS, GRID, PATCH, GRID, PATCH)
    x = x.transpose(0, 2, 4, 1, 3, 5)
    return x.reshape(N, LP, CHANS * PATCH * PATCH)


def patchify_target(img):
    # reference patchify: 'nchpwq->nhwpqc' -> (ph, pw, c) flatten
    N = img.shape[0]
    x = img.reshape(N, CHANS, GRID, PATCH, GRID, PATCH)
    x = x.transpose(0, 2, 4, 3, 5, 1)
    return x.reshape(N, LP, PATCH * PATCH * CHANS)


def forward_encoder(params, imgs, timestamps, mask_key, mask_ratio):
    N = imgs.shape[0]
    L2 = T * LP
    patches = jnp.concatenate([patchify_conv(imgs[:, 0]), patchify_conv(imgs[:, 1])], axis=1)

    # additive embedding (pos + per-sample timestamp sincos), tiny, built in glue,
    # then fused into the patch-embed matmul kernel as an epilogue add.
    ts = timestamps.reshape(-1, 2).astype(jnp.float32)
    ts_embed = jnp.concatenate([sincos_1d(TS_ENC, ts[:, 0]), sincos_1d(TS_ENC, ts[:, 1])], axis=1)
    ts_embed = jnp.broadcast_to(ts_embed[:, None, :], (N, L2, T * TS_ENC))
    pos = jnp.tile(params["pos_embed"][:, 1:, :], (1, T, 1))            # [1, 2*LP, POS_ENC]
    pos = jnp.broadcast_to(pos, (N, L2, POS_ENC))
    add_embed = jnp.concatenate([pos, ts_embed], axis=-1)               # [N, L2, EMBED]

    x = patch_embed_add(patches.reshape(N * L2, -1),
                        params["patch_w"], params["patch_b"],
                        add_embed.reshape(N * L2, EMBED)).reshape(N, L2, EMBED)

    # random masking (glue: rand + argsort + gather, like the PyTorch random_masking)
    len_keep = int(L2 * (1 - mask_ratio))
    noise = jax.random.uniform(mask_key, (N, L2))
    ids_shuffle = jnp.argsort(noise, axis=1)
    ids_restore = jnp.argsort(ids_shuffle, axis=1)
    ids_keep = ids_shuffle[:, :len_keep]
    x_masked = jnp.take_along_axis(
        x, jnp.broadcast_to(ids_keep[:, :, None], (N, len_keep, EMBED)), axis=1)
    mask = jnp.ones((N, L2), jnp.float32).at[:, :len_keep].set(0.0)
    mask = jnp.take_along_axis(mask, ids_restore, axis=1)

    cls = jnp.broadcast_to(params["cls_token"], (N, 1, EMBED))
    x = jnp.concatenate([cls, x_masked], axis=1)
    x = vit_stack(x, params["blocks"], HEADS)          # all encoder layers, one call
    # NOTE: final encoder LayerNorm is fused with decoder_embed (ln_linear) below.
    return x, mask, ids_restore


def forward_decoder(params, latent, timestamps, ids_restore):
    N, S, _ = latent.shape
    # fused: encoder final LayerNorm + decoder_embed projection in one kernel
    x = ln_linear(latent.reshape(N * S, EMBED),
                  params["norm_g"], params["norm_b"],
                  params["dec_embed_w"], params["dec_embed_b"]).reshape(N, S, DEC_EMBED)

    L2 = ids_restore.shape[1]
    n_mask = L2 + 1 - S
    mask_tokens = jnp.broadcast_to(params["mask_token"], (N, n_mask, DEC_EMBED))
    x_ = jnp.concatenate([x[:, 1:, :], mask_tokens], axis=1)
    x_ = jnp.take_along_axis(
        x_, jnp.broadcast_to(ids_restore[:, :, None], (N, L2, DEC_EMBED)), axis=1)
    x = jnp.concatenate([x[:, :1, :], x_], axis=1)                      # [N, L2+1, DEC]

    ts = timestamps.reshape(-1, 2).astype(jnp.float32)
    ts_embed = jnp.concatenate([sincos_1d(TS_DEC, ts[:, 0]), sincos_1d(TS_DEC, ts[:, 1])], axis=1)
    ts_embed = jnp.broadcast_to(ts_embed[:, None, :], (N, L2, T * TS_DEC))
    ts_embed = jnp.concatenate([jnp.zeros((N, 1, T * TS_DEC), jnp.float32), ts_embed], axis=1)
    pos = jnp.concatenate(
        [params["dec_pos_embed"][:, :1, :],
         jnp.tile(params["dec_pos_embed"][:, 1:, :], (1, T, 1))], axis=1)
    pos = jnp.broadcast_to(pos, (N, L2 + 1, POS_DEC))
    x = x + jnp.concatenate([pos, ts_embed], axis=-1)

    x = vit_stack(x, params["dec_blocks"], DEC_HEADS)   # all decoder layers, one call
    return x                                            # norm+pred+loss fused downstream


def mae_forward(params, imgs, timestamps, mask_key):
    latent, mask, ids_restore = forward_encoder(params, imgs, timestamps, mask_key, MASK_RATIO)
    x_dec = forward_decoder(params, latent, timestamps, ids_restore)
    target = jnp.concatenate([patchify_target(imgs[:, 0]), patchify_target(imgs[:, 1])], axis=1)
    pred, loss = decoder_head_loss(
        x_dec, params["dec_norm_g"], params["dec_norm_b"],
        params["dec_pred_w"], params["dec_pred_b"], target, mask)
    return loss, pred, mask


# ---------------------------------- parameter init -----------------------------------
def init_params(key):
    keys = iter(jax.random.split(key, 64))

    def xavier(shape, dtype=jnp.bfloat16):
        lim = float(np.sqrt(6.0 / (shape[0] + shape[-1])))
        return jax.random.uniform(next(keys), shape, jnp.float32, -lim, lim).astype(dtype)

    def block_params(dim):
        hid = int(dim * MLP_RATIO)
        # qkv initialized with the torch-equivalent fan (dim, 3*dim), stored [3, dim, dim]
        w_qkv = xavier((dim, 3 * dim), jnp.float32).reshape(dim, 3, dim)
        w_qkv = w_qkv.transpose(1, 0, 2).astype(jnp.bfloat16)
        return dict(
            n1_g=jnp.ones((1, dim), jnp.float32), n1_b=jnp.zeros((1, dim), jnp.float32),
            qkv_w=w_qkv, qkv_b=jnp.zeros((3, 1, dim), jnp.float32),
            proj_w=xavier((dim, dim)), proj_b=jnp.zeros((1, dim), jnp.float32),
            n2_g=jnp.ones((1, dim), jnp.float32), n2_b=jnp.zeros((1, dim), jnp.float32),
            fc1_w=xavier((dim, hid)), fc1_b=jnp.zeros((1, hid), jnp.float32),
            fc2_w=xavier((hid, dim)), fc2_b=jnp.zeros((1, dim), jnp.float32),
        )

    def stack_blocks(depth, dim):
        blks = [block_params(dim) for _ in range(depth)]
        return {k: jnp.stack([b[k] for b in blks], axis=0) for k in blks[0]}

    return dict(
        patch_w=xavier((CHANS * PATCH * PATCH, EMBED)),
        patch_b=jnp.zeros((1, EMBED), jnp.float32),
        cls_token=0.02 * jax.random.normal(next(keys), (1, 1, EMBED), jnp.float32),
        pos_embed=get_2d_sincos_pos_embed(POS_ENC, GRID, cls_token=True)[None],
        blocks=stack_blocks(DEPTH, EMBED),
        norm_g=jnp.ones((1, EMBED), jnp.float32), norm_b=jnp.zeros((1, EMBED), jnp.float32),
        dec_embed_w=xavier((EMBED, DEC_EMBED)),
        dec_embed_b=jnp.zeros((1, DEC_EMBED), jnp.float32),
        mask_token=0.02 * jax.random.normal(next(keys), (1, 1, DEC_EMBED), jnp.float32),
        dec_pos_embed=get_2d_sincos_pos_embed(POS_DEC, GRID, cls_token=True)[None],
        dec_blocks=stack_blocks(DEC_DEPTH, DEC_EMBED),
        dec_norm_g=jnp.ones((1, DEC_EMBED), jnp.float32),
        dec_norm_b=jnp.zeros((1, DEC_EMBED), jnp.float32),
        dec_pred_w=xavier((DEC_EMBED, PATCH * PATCH * CHANS)),
        dec_pred_b=jnp.zeros((1, PATCH * PATCH * CHANS), jnp.float32),
    )


# --------------------------------------- main ----------------------------------------
if __name__ == "__main__":
    root = jax.random.PRNGKey(0)
    pkey, ikey, mkey = jax.random.split(root, 3)

    params = init_params(pkey)
    N = 2
    imgs = jax.random.normal(ikey, (N, T, CHANS, IMG, IMG), jnp.float32)
    timestamps = jnp.array([[0.0, 1.0], [3.0, 7.0]], jnp.float32)

    fwd = jax.jit(mae_forward)
    loss, pred, mask = fwd(params, imgs, timestamps, mkey)
    jax.block_until_ready((loss, pred, mask))

    assert pred.shape == (N, T * LP, PATCH * PATCH * CHANS)
    assert mask.shape == (N, T * LP)
    assert jnp.isfinite(loss)
    print("KERNEL_OK")
</pallas_src>

<mosaic_0001>
module attributes {stable_mosaic.version = 11 : i64} {
  func.func @_embed_kernel(%arg0: i32, %arg1: memref<64x48xf32, #tpu.memory_space<vmem>>, %arg2: memref<48x64xbf16, #tpu.memory_space<vmem>>, %arg3: memref<1x64xf32, #tpu.memory_space<vmem>>, %arg4: memref<64x64xf32, #tpu.memory_space<vmem>>, %arg5: memref<64x64xf32, #tpu.memory_space<vmem>>) attributes {dimension_semantics = [#tpu.dimension_semantics<arbitrary>], iteration_bounds = array<i64: 1>, scalar_prefetch = 0 : i64, scratch_operands = 0 : i64, tpu.core_type = #tpu.core_type<tc>, window_params = [{pipeline_mode = #tpu.pipeline_mode<synchronous>, transform_indices = @transform_0, window_bounds = array<i64: 64, 48>}, {pipeline_mode = #tpu.pipeline_mode<synchronous>, transform_indices = @transform_1, window_bounds = array<i64: 48, 64>}, {pipeline_mode = #tpu.pipeline_mode<synchronous>, transform_indices = @transform_2, window_bounds = array<i64: 1, 64>}, {pipeline_mode = #tpu.pipeline_mode<synchronous>, transform_indices = @transform_3, window_bounds = array<i64: 64, 64>}, {pipeline_mode = #tpu.pipeline_mode<synchronous>, transform_indices = @transform_4, window_bounds = array<i64: 64, 64>}]} {
    %c0 = arith.constant 0 : index
    %c0_0 = arith.constant 0 : index
    %0 = vector.load %arg1[%c0, %c0_0] : memref<64x48xf32, #tpu.memory_space<vmem>>, vector<64x48xf32>
    %c0_1 = arith.constant 0 : index
    %c0_2 = arith.constant 0 : index
    %1 = vector.load %arg2[%c0_1, %c0_2] : memref<48x64xbf16, #tpu.memory_space<vmem>>, vector<48x64xbf16>
    %2 = arith.truncf %0 : vector<64x48xf32> to vector<64x48xbf16>
    %cst = arith.constant dense<0.000000e+00> : vector<64x64xf32>
    %3 = tpu.matmul %2, %1, %cst {dimension_numbers = #tpu.dot_dimension_numbers<[1], [0], [0], [1], [0, 0, 1, 1], [], []>} : vector<64x48xbf16>, vector<48x64xbf16>, vector<64x64xf32> -> vector<64x64xf32>
    %c0_3 = arith.constant 0 : index
    %c0_4 = arith.constant 0 : index
    %4 = vector.load %arg3[%c0_3, %c0_4] : memref<1x64xf32, #tpu.memory_space<vmem>>, vector<1x64xf32>
    %5 = vector.broadcast %4 : vector<1x64xf32> to vector<64x64xf32>
    %6 = arith.addf %3, %5 : vector<64x64xf32>
    %c0_5 = arith.constant 0 : index
    %c0_6 = arith.constant 0 : index
    %7 = vector.load %arg4[%c0_5, %c0_6] : memref<64x64xf32, #tpu.memory_space<vmem>>, vector<64x64xf32>
    %8 = arith.addf %6, %7 : vector<64x64xf32>
    %c0_7 = arith.constant 0 : index
    %c0_8 = arith.constant 0 : index
    %9 = vector.load %arg5[%c0_7, %c0_8] : memref<64x64xf32, #tpu.memory_space<vmem>>, vector<64x64xf32>
    tpu.vector_store %arg5[%c0_7, %c0_8], %8 {strides = array<i32>} : memref<64x64xf32, #tpu.memory_space<vmem>>, vector<64x64xf32>,
    return
  }
  func.func @transform_0(%arg0: i32) -> (i32, i32) {
    %c0_i32 = arith.constant 0 : i32
    %c0_i32_0 = arith.constant 0 : i32
    %c0_i32_1 = arith.constant 0 : i32
    return %c0_i32, %c0_i32_0 : i32, i32
  }
  func.func @transform_1(%arg0: i32) -> (i32, i32) {
    %c0_i32 = arith.constant 0 : i32
    %c0_i32_0 = arith.constant 0 : i32
    %c0_i32_1 = arith.constant 0 : i32
    return %c0_i32, %c0_i32_0 : i32, i32
  }
  func.func @transform_2(%arg0: i32) -> (i32, i32) {
    %c0_i32 = arith.constant 0 : i32
    %c0_i32_0 = arith.constant 0 : i32
    %c0_i32_1 = arith.constant 0 : i32
    return %c0_i32, %c0_i32_0 : i32, i32
  }
  func.func @transform_3(%arg0: i32) -> (i32, i32) {
    %c0_i32 = arith.constant 0 : i32
    %c0_i32_0 = arith.constant 0 : i32
    %c0_i32_1 = arith.constant 0 : i32
    return %c0_i32, %c0_i32_0 : i32, i32
  }
  func.func @transform_4(%arg0: i32) -> (i32, i32) {
    %c0_i32 = arith.constant 0 : i32
    %c0_i32_0 = arith.constant 0 : i32
    %c0_i32_1 = arith.constant 0 : i32
    return %c0_i32, %c0_i32_0 : i32, i32
  }
}

module attributes {stable_mosaic.version = 11 : i64} {
  func.func @_stack_kernel(%arg0: i32, %arg1: i32, %arg2: memref<1x4x64xf32, #tpu.memory_space<vmem>>, %arg3: memref<1x1x64xf32, #tpu.memory_space<vmem>>, %arg4: memref<1x1x64xf32, #tpu.memory_space<vmem>>, %arg5: memref<1x3x64x64xbf16, #tpu.memory_space<vmem>>, %arg6: memref<1x3x1x64xf32, #tpu.memory_space<vmem>>, %arg7: memref<1x64x64xbf16, #tpu.memory_space<vmem>>, %arg8: memref<1x1x64xf32, #tpu.memory_space<vmem>>, %arg9: memref<1x1x64xf32, #tpu.memory_space<vmem>>, %arg10: memref<1x1x64xf32, #tpu.memory_space<vmem>>, %arg11: memref<1x64x256xbf16, #tpu.memory_space<vmem>>, %arg12: memref<1x1x256xf32, #tpu.memory_space<vmem>>, %arg13: memref<1x256x64xbf16, #tpu.memory_space<vmem>>, %arg14: memref<1x1x64xf32, #tpu.memory_space<vmem>>, %arg15: memref<1x4x64xf32, #tpu.memory_space<vmem>>) attributes {dimension_semantics = [#tpu.dimension_semantics<parallel>, #tpu.dimension_semantics<arbitrary>], iteration_bounds = array<i64: 2, 2>, scalar_prefetch = 0 : i64, scratch_operands = 0 : i64, tpu.core_type = #tpu.core_type<tc>, window_params = [{transform_indices = @transform_0, window_bounds = array<i64: 1, 4, 64>}, {transform_indices = @transform_1, window_bounds = array<i64: 1, 1, 64>}, {transform_indices = @transform_2, window_bounds = array<i64: 1, 1, 64>}, {transform_indices = @transform_3, window_bounds = array<i64: 1, 3, 64, 64>}, {transform_indices = @transform_4, window_bounds = array<i64: 1, 3, 1, 64>}, {transform_indices = @transform_5, window_bounds = array<i64: 1, 64, 64>}, {transform_indices = @transform_6, window_bounds = array<i64: 1, 1, 64>}, {transform_indices = @transform_7, window_bounds = array<i64: 1, 1, 64>}, {transform_indices = @transform_8, window_bounds = array<i64: 1, 1, 64>}, {transform_indices = @transform_9, window_bounds = array<i64: 1, 64, 256>}, {transform_indices = @transform_10, window_bounds = array<i64: 1, 1, 256>}, {transform_indices = @transform_11, window_bounds = array<i64: 1, 256, 64>}, {transform_indices = @transform_12, window_bounds = array<i64: 1, 1, 64>}, {transform_indices = @transform_13, window_bounds = array<i64: 1, 4, 64>}]} {
    %c0_i32 = arith.constant 0 : i32
    %0 = arith.cmpi eq, %arg1, %c0_i32 : i32
    %1 = arith.extui %0 : i1 to i32
    %c0_i32_0 = arith.constant 0 : i32
    %2 = arith.cmpi ne, %1, %c0_i32_0 : i32
    scf.if %2 {
      %c0_82 = arith.constant 0 : index
      %c0_83 = arith.constant 0 : index
      %c0_84 = arith.constant 0 : index
      %176 = vector.load %arg2[%c0_82, %c0_83, %c0_84] : memref<1x4x64xf32, #tpu.memory_space<vmem>>, vector<1x4x64xf32>
      %c0_85 = arith.constant 0 : index
      %c0_86 = arith.constant 0 : index
      %c0_87 = arith.constant 0 : index
      %177 = vector.load %arg15[%c0_85, %c0_86, %c0_87] : memref<1x4x64xf32, #tpu.memory_space<vmem>>, vector<1x4x64xf32>
      tpu.vector_store %arg15[%c0_85, %c0_86, %c0_87], %176 {strides = array<i32>} : memref<1x4x64xf32, #tpu.memory_space<vmem>>, vector<1x4x64xf32>,
    } else {
    }
    %c0 = arith.constant 0 : index
    %c0_1 = arith.constant 0 : index
    %c0_2 = arith.constant 0 : index
    %3 = vector.load %arg15[%c0, %c0_1, %c0_2] : memref<1x4x64xf32, #tpu.memory_space<vmem>>, vector<1x4x64xf32>
    %4 = vector.shape_cast %3 : vector<1x4x64xf32> to vector<4x64xf32>
    %c0_3 = arith.constant 0 : index
    %c0_4 = arith.constant 0 : index
    %c0_5 = arith.constant 0 : index
    %5 = vector.load %arg3[%c0_3, %c0_4, %c0_5] : memref<1x1x64xf32, #tpu.memory_space<vmem>>, vector<1x1x64xf32>
    %6 = vector.shape_cast %5 : vector<1x1x64xf32> to vector<1x64xf32>
    %c0_6 = arith.constant 0 : index
    %c0_7 = arith.constant 0 : index
    %c0_8 = arith.constant 0 : index
    %7 = vector.load %arg4[%c0_6, %c0_7, %c0_8] : memref<1x1x64xf32, #tpu.memory_space<vmem>>, vector<1x1x64xf32>
    %8 = vector.shape_cast %7 : vector<1x1x64xf32> to vector<1x64xf32>
    %cst = arith.constant dense<0.000000e+00> : vector<4xf32>
    %9 = vector.multi_reduction <add>, %4, %cst [1] : vector<4x64xf32> to vector<4xf32>
    %10 = vector.shape_cast %9 : vector<4xf32> to vector<4x1xf32>
    %cst_9 = arith.constant 6.400000e+01 : f32
    %11 = vector.broadcast %cst_9 : f32 to vector<4x1xf32>
    %12 = arith.divf %10, %11 : vector<4x1xf32>
    %13 = vector.broadcast %12 : vector<4x1xf32> to vector<4x64xf32>
    %14 = arith.subf %4, %13 : vector<4x64xf32>
    %15 = arith.mulf %14, %14 : vector<4x64xf32>
    %cst_10 = arith.constant dense<0.000000e+00> : vector<4xf32>
    %16 = vector.multi_reduction <add>, %15, %cst_10 [1] : vector<4x64xf32> to vector<4xf32>
    %17 = vector.shape_cast %16 : vector<4xf32> to vector<4x1xf32>
    %cst_11 = arith.constant 6.400000e+01 : f32
    %18 = vector.broadcast %cst_11 : f32 to vector<4x1xf32>
    %19 = arith.divf %17, %18 : vector<4x1xf32>
    %20 = vector.broadcast %12 : vector<4x1xf32> to vector<4x64xf32>
    %21 = arith.subf %4, %20 : vector<4x64xf32>
    %cst_12 = arith.constant 9.99999974E-6 : f32
    %22 = vector.broadcast %cst_12 : f32 to vector<4x1xf32>
    %23 = arith.addf %19, %22 : vector<4x1xf32>
    %24 = math.rsqrt %23 : vector<4x1xf32>
    %25 = vector.broadcast %24 : vector<4x1xf32> to vector<4x64xf32>
    %26 = arith.mulf %21, %25 : vector<4x64xf32>
    %27 = vector.broadcast %6 : vector<1x64xf32> to vector<4x64xf32>
    %28 = arith.mulf %26, %27 : vector<4x64xf32>
    %29 = vector.broadcast %8 : vector<1x64xf32> to vector<4x64xf32>
    %30 = arith.addf %28, %29 : vector<4x64xf32>
    %c0_13 = arith.constant 0 : index
    %c0_14 = arith.constant 0 : index
    %c0_15 = arith.constant 0 : index
    %c0_16 = arith.constant 0 : index
    %31 = vector.load %arg5[%c0_13, %c0_14, %c0_15, %c0_16] : memref<1x3x64x64xbf16, #tpu.memory_space<vmem>>, vector<1x1x64x64xbf16>
    %32 = vector.shape_cast %31 : vector<1x1x64x64xbf16> to vector<64x64xbf16>
    %33 = arith.truncf %30 : vector<4x64xf32> to vector<4x64xbf16>
    %cst_17 = arith.constant dense<0.000000e+00> : vector<4x64xf32>
    %34 = tpu.matmul %33, %32, %cst_17 {dimension_numbers = #tpu.dot_dimension_numbers<[1], [0], [0], [1], [0, 0, 1, 1], [], []>} : vector<4x64xbf16>, vector<64x64xbf16>, vector<4x64xf32> -> vector<4x64xf32>
    %c0_18 = arith.constant 0 : index
    %c0_19 = arith.constant 0 : index
    %c0_20 = arith.constant 0 : index
    %c0_21 = arith.constant 0 : index
    %35 = vector.load %arg6[%c0_18, %c0_19, %c0_20, %c0_21] : memref<1x3x1x64xf32, #tpu.memory_space<vmem>>, vector<1x1x1x64xf32>
    %36 = vector.shape_cast %35 : vector<1x1x1x64xf32> to vector<1x64xf32>
    %37 = vector.broadcast %36 : vector<1x64xf32> to vector<4x64xf32>
    %38 = arith.addf %34, %37 : vector<4x64xf32>
    %c0_22 = arith.constant 0 : index
    %c1 = arith.constant 1 : index
    %c0_23 = arith.constant 0 : index
    %c0_24 = arith.constant 0 : index
    %39 = vector.load %arg5[%c0_22, %c1, %c0_23, %c0_24] : memref<1x3x64x64xbf16, #tpu.memory_space<vmem>>, vector<1x1x64x64xbf16>
    %40 = vector.shape_cast %39 : vector<1x1x64x64xbf16> to vector<64x64xbf16>
    %41 = arith.truncf %30 : vector<4x64xf32> to vector<4x64xbf16>
    %cst_25 = arith.constant dense<0.000000e+00> : vector<4x64xf32>
    %42 = tpu.matmul %41, %40, %cst_25 {dimension_numbers = #tpu.dot_dimension_numbers<[1], [0], [0], [1], [0, 0, 1, 1], [], []>} : vector<4x64xbf16>, vector<64x64xbf16>, vector<4x64xf32> -> vector<4x64xf32>
    %c0_26 = arith.constant 0 : index
    %c1_27 = arith.constant 1 : index
    %c0_28 = arith.constant 0 : index
    %c0_29 = arith.constant 0 : index
    %43 = vector.load %arg6[%c0_26, %c1_27, %c0_28, %c0_29] : memref<1x3x1x64xf32, #tpu.memory_space<vmem>>, vector<1x1x1x64xf32>
    %44 = vector.shape_cast %43 : vector<1x1x1x64xf32> to vector<1x64xf32>
    %45 = vector.broadcast %44 : vector<1x64xf32> to vector<4x64xf32>
    %46 = arith.addf %42, %45 : vector<4x64xf32>
    %c0_30 = arith.constant 0 : index
    %c2 = arith.constant 2 : index
    %c0_31 = arith.constant 0 : index
    %c0_32 = arith.constant 0 : index
    %47 = vector.load %arg5[%c0_30, %c2, %c0_31, %c0_32] : memref<1x3x64x64xbf16, #tpu.memory_space<vmem>>, vector<1x1x64x64xbf16>
    %48 = vector.shape_cast %47 : vector<1x1x64x64xbf16> to vector<64x64xbf16>
    %49 = arith.truncf %30 : vector<4x64xf32> to vector<4x64xbf16>
    %cst_33 = arith.constant dense<0.000000e+00> : vector<4x64xf32>
    %50 = tpu.matmul %49, %48, %cst_33 {dimension_numbers = #tpu.dot_dimension_numbers<[1], [0], [0], [1], [0, 0, 1, 1], [], []>} : vector<4x64xbf16>, vector<64x64xbf16>, vector<4x64xf32> -> vector<4x64xf32>
    %c0_34 = arith.constant 0 : index
    %c2_35 = arith.constant 2 : index
    %c0_36 = arith.constant 0 : index
    %c0_37 = arith.constant 0 : index
    %51 = vector.load %arg6[%c0_34, %c2_35, %c0_36, %c0_37] : memref<1x3x1x64xf32, #tpu.memory_space<vmem>>, vector<1x1x1x64xf32>
    %52 = vector.shape_cast %51 : vector<1x1x1x64xf32> to vector<1x64xf32>
    %53 = vector.broadcast %52 : vector<1x64xf32> to vector<4x64xf32>
    %54 = arith.addf %50, %53 : vector<4x64xf32>
    %55 = vector.extract_strided_slice %38 {offsets = [0, 0], sizes = [4, 16], strides = [1, 1]} : vector<4x64xf32> to vector<4x16xf32>
    %56 = vector.shape_cast %55 : vector<4x16xf32> to vector<1x4x16xf32>
    %57 = vector.extract_strided_slice %38 {offsets = [0, 16], sizes = [4, 16], strides = [1, 1]} : vector<4x64xf32> to vector<4x16xf32>
    %58 = vector.shape_cast %57 : vector<4x16xf32> to vector<1x4x16xf32>
    %59 = vector.extract_strided_slice %38 {offsets = [0, 32], sizes = [4, 16], strides = [1, 1]} : vector<4x64xf32> to vector<4x16xf32>
    %60 = vector.shape_cast %59 : vector<4x16xf32> to vector<1x4x16xf32>
    %61 = vector.extract_strided_slice %38 {offsets = [0, 48], sizes = [4, 16], strides = [1, 1]} : vector<4x64xf32> to vector<4x16xf32>
    %62 = vector.shape_cast %61 : vector<4x16xf32> to vector<1x4x16xf32>
    %63 = tpu.concatenate %56, %58, %60, %62 in 0 : vector<1x4x16xf32>, vector<1x4x16xf32>, vector<1x4x16xf32>, vector<1x4x16xf32> -> vector<4x4x16xf32>
    %64 = vector.extract_strided_slice %46 {offsets = [0, 0], sizes = [4, 16], strides = [1, 1]} : vector<4x64xf32> to vector<4x16xf32>
    %65 = vector.shape_cast %64 : vector<4x16xf32> to vector<1x4x16xf32>
    %66 = vector.extract_strided_slice %46 {offsets = [0, 16], sizes = [4, 16], strides = [1, 1]} : vector<4x64xf32> to vector<4x16xf32>
    %67 = vector.shape_cast %66 : vector<4x16xf32> to vector<1x4x16xf32>
    %68 = vector.extract_strided_slice %46 {offsets = [0, 32], sizes = [4, 16], strides = [1, 1]} : vector<4x64xf32> to vector<4x16xf32>
    %69 = vector.shape_cast %68 : vector<4x16xf32> to vector<1x4x16xf32>
    %70 = vector.extract_strided_slice %46 {offsets = [0, 48], sizes = [4, 16], strides = [1, 1]} : vector<4x64xf32> to vector<4x16xf32>
    %71 = vector.shape_cast %70 : vector<4x16xf32> to vector<1x4x16xf32>
    %72 = tpu.concatenate %65, %67, %69, %71 in 0 : vector<1x4x16xf32>, vector<1x4x16xf32>, vector<1x4x16xf32>, vector<1x4x16xf32> -> vector<4x4x16xf32>
    %73 = vector.extract_strided_slice %54 {offsets = [0, 0], sizes = [4, 16], strides = [1, 1]} : vector<4x64xf32> to vector<4x16xf32>
    %74 = vector.shape_cast %73 : vector<4x16xf32> to vector<1x4x16xf32>
    %75 = vector.extract_strided_slice %54 {offsets = [0, 16], sizes = [4, 16], strides = [1, 1]} : vector<4x64xf32> to vector<4x16xf32>
    %76 = vector.shape_cast %75 : vector<4x16xf32> to vector<1x4x16xf32>
    %77 = vector.extract_strided_slice %54 {offsets = [0, 32], sizes = [4, 16], strides = [1, 1]} : vector<4x64xf32> to vector<4x16xf32>
    %78 = vector.shape_cast %77 : vector<4x16xf32> to vector<1x4x16xf32>
    %79 = vector.extract_strided_slice %54 {offsets = [0, 48], sizes = [4, 16], strides = [1, 1]} : vector<4x64xf32> to vector<4x16xf32>
    %80 = vector.shape_cast %79 : vector<4x16xf32> to vector<1x4x16xf32>
    %81 = tpu.concatenate %74, %76, %78, %80 in 0 : vector<1x4x16xf32>, vector<1x4x16xf32>, vector<1x4x16xf32>, vector<1x4x16xf32> -> vector<4x4x16xf32>
    %82 = arith.truncf %63 : vector<4x4x16xf32> to vector<4x4x16xbf16>
    %83 = arith.truncf %72 : vector<4x4x16xf32> to vector<4x4x16xbf16>
    "tpu.trace_start"() <{level = 10 : i32, message = "bqd,bkd->bqk"}> : () -> ()
    %cst_38 = arith.constant dense<0.000000e+00> : vector<4x4x4xf32>
    %84 = tpu.matmul %82, %83, %cst_38 {dimension_numbers = #tpu.dot_dimension_numbers<[2], [2], [1], [1], [0, 0, 0, 1, 1, 1], [0], [0]>} : vector<4x4x16xbf16>, vector<4x4x16xbf16>, vector<4x4x4xf32> -> vector<4x4x4xf32>
    "tpu.trace_stop"() : () -> ()
    %cst_39 = arith.constant 2.500000e-01 : f32
    %85 = vector.broadcast %cst_39 : f32 to vector<4x4x4xf32>
    %86 = arith.mulf %84, %85 : vector<4x4x4xf32>
    %cst_40 = arith.constant dense<0xFF800000> : vector<4x4xf32>
    %87 = vector.multi_reduction <maximumf>, %86, %cst_40 [2] : vector<4x4x4xf32> to vector<4x4xf32>
    %88 = vector.shape_cast %87 : vector<4x4xf32> to vector<4x4x1xf32>
    %89 = vector.broadcast %88 : vector<4x4x1xf32> to vector<4x4x4xf32>
    %90 = arith.subf %86, %89 : vector<4x4x4xf32>
    %91 = math.exp %90 : vector<4x4x4xf32>
    %cst_41 = arith.constant dense<0.000000e+00> : vector<4x4xf32>
    %92 = vector.multi_reduction <add>, %91, %cst_41 [2] : vector<4x4x4xf32> to vector<4x4xf32>
    %93 = vector.shape_cast %92 : vector<4x4xf32> to vector<4x4x1xf32>
    %94 = tpu.reciprocal %93 {approx = true} : vector<4x4x1xf32> -> vector<4x4x1xf32>
    %95 = vector.broadcast %94 : vector<4x4x1xf32> to vector<4x4x4xf32>
    %96 = arith.mulf %91, %95 : vector<4x4x4xf32>
    %97 = arith.truncf %96 : vector<4x4x4xf32> to vector<4x4x4xbf16>
    %98 = arith.truncf %81 : vector<4x4x16xf32> to vector<4x4x16xbf16>
    "tpu.trace_start"() <{level = 10 : i32, message = "bqk,bkd->bqd"}> : () -> ()
    %cst_42 = arith.constant dense<0.000000e+00> : vector<4x4x16xf32>
    %99 = tpu.matmul %97, %98, %cst_42 {dimension_numbers = #tpu.dot_dimension_numbers<[2], [1], [1], [2], [0, 0, 0, 1, 1, 2], [0], [0]>} : vector<4x4x4xbf16>, vector<4x4x16xbf16>, vector<4x4x16xf32> -> vector<4x4x16xf32>
    "tpu.trace_stop"() : () -> ()
    %100 = vector.extract_strided_slice %99 {offsets = [0, 0, 0], sizes = [1, 4, 16], strides = [1, 1, 1]} : vector<4x4x16xf32> to vector<1x4x16xf32>
    %101 = vector.shape_cast %100 : vector<1x4x16xf32> to vector<4x16xf32>
    %102 = vector.extract_strided_slice %99 {offsets = [1, 0, 0], sizes = [1, 4, 16], strides = [1, 1, 1]} : vector<4x4x16xf32> to vector<1x4x16xf32>
    %103 = vector.shape_cast %102 : vector<1x4x16xf32> to vector<4x16xf32>
    %104 = vector.extract_strided_slice %99 {offsets = [2, 0, 0], sizes = [1, 4, 16], strides = [1, 1, 1]} : vector<4x4x16xf32> to vector<1x4x16xf32>
    %105 = vector.shape_cast %104 : vector<1x4x16xf32> to vector<4x16xf32>
    %106 = vector.extract_strided_slice %99 {offsets = [3, 0, 0], sizes = [1, 4, 16], strides = [1, 1, 1]} : vector<4x4x16xf32> to vector<1x4x16xf32>
    %107 = vector.shape_cast %106 : vector<1x4x16xf32> to vector<4x16xf32>
    %108 = tpu.concatenate %101, %103, %105, %107 in 1 : vector<4x16xf32>, vector<4x16xf32>, vector<4x16xf32>, vector<4x16xf32> -> vector<4x64xf32>
    %c0_43 = arith.constant 0 : index
    %c0_44 = arith.constant 0 : index
    %c0_45 = arith.constant 0 : index
    %109 = vector.load %arg7[%c0_43, %c0_44, %c0_45] : memref<1x64x64xbf16, #tpu.memory_space<vmem>>, vector<1x64x64xbf16>
    %110 = vector.shape_cast %109 : vector<1x64x64xbf16> to vector<64x64xbf16>
    %111 = arith.truncf %108 : vector<4x64xf32> to vector<4x64xbf16>
    %cst_46 = arith.constant dense<0.000000e+00> : vector<4x64xf32>
    %112 = tpu.matmul %111, %110, %cst_46 {dimension_numbers = #tpu.dot_dimension_numbers<[1], [0], [0], [1], [0, 0, 1, 1], [], []>} : vector<4x64xbf16>, vector<64x64xbf16>, vector<4x64xf32> -> vector<4x64xf32>
    %113 = arith.addf %4, %112 : vector<4x64xf32>
    %c0_47 = arith.constant 0 : index
    %c0_48 = arith.constant 0 : index
    %c0_49 = arith.constant 0 : index
    %114 = vector.load %arg8[%c0_47, %c0_48, %c0_49] : memref<1x1x64xf32, #tpu.memory_space<vmem>>, vector<1x1x64xf32>
    %115 = vector.shape_cast %114 : vector<1x1x64xf32> to vector<1x64xf32>
    %116 = vector.broadcast %115 : vector<1x64xf32> to vector<4x64xf32>
    %117 = arith.addf %113, %116 : vector<4x64xf32>
    %c0_50 = arith.constant 0 : index
    %c0_51 = arith.constant 0 : index
    %c0_52 = arith.constant 0 : index
    %118 = vector.load %arg9[%c0_50, %c0_51, %c0_52] : memref<1x1x64xf32, #tpu.memory_space<vmem>>, vector<1x1x64xf32>
    %119 = vector.shape_cast %118 : vector<1x1x64xf32> to vector<1x64xf32>
    %c0_53 = arith.constant 0 : index
    %c0_54 = arith.constant 0 : index
    %c0_55 = arith.constant 0 : index
    %120 = vector.load %arg10[%c0_53, %c0_54, %c0_55] : memref<1x1x64xf32, #tpu.memory_space<vmem>>, vector<1x1x64xf32>
    %121 = vector.shape_cast %120 : vector<1x1x64xf32> to vector<1x64xf32>
    %cst_56 = arith.constant dense<0.000000e+00> : vector<4xf32>
    %122 = vector.multi_reduction <add>, %117, %cst_56 [1] : vector<4x64xf32> to vector<4xf32>
    %123 = vector.shape_cast %122 : vector<4xf32> to vector<4x1xf32>
    %cst_57 = arith.constant 6.400000e+01 : f32
    %124 = vector.broadcast %cst_57 : f32 to vector<4x1xf32>
    %125 = arith.divf %123, %124 : vector<4x1xf32>
    %126 = vector.broadcast %125 : vector<4x1xf32> to vector<4x64xf32>
    %127 = arith.subf %117, %126 : vector<4x64xf32>
    %128 = arith.mulf %127, %127 : vector<4x64xf32>
    %cst_58 = arith.constant dense<0.000000e+00> : vector<4xf32>
    %129 = vector.multi_reduction <add>, %128, %cst_58 [1] : vector<4x64xf32> to vector<4xf32>
    %130 = vector.shape_cast %129 : vector<4xf32> to vector<4x1xf32>
    %cst_59 = arith.constant 6.400000e+01 : f32
    %131 = vector.broadcast %cst_59 : f32 to vector<4x1xf32>
    %132 = arith.divf %130, %131 : vector<4x1xf32>
    %133 = vector.broadcast %125 : vector<4x1xf32> to vector<4x64xf32>
    %134 = arith.subf %117, %133 : vector<4x64xf32>
    %cst_60 = arith.constant 9.99999974E-6 : f32
    %135 = vector.broadcast %cst_60 : f32 to vector<4x1xf32>
    %136 = arith.addf %132, %135 : vector<4x1xf32>
    %137 = math.rsqrt %136 : vector<4x1xf32>
    %138 = vector.broadcast %137 : vector<4x1xf32> to vector<4x64xf32>
    %139 = arith.mulf %134, %138 : vector<4x64xf32>
    %140 = vector.broadcast %119 : vector<1x64xf32> to vector<4x64xf32>
    %141 = arith.mulf %139, %140 : vector<4x64xf32>
    %142 = vector.broadcast %121 : vector<1x64xf32> to vector<4x64xf32>
    %143 = arith.addf %141, %142 : vector<4x64xf32>
    %c0_61 = arith.constant 0 : index
    %c0_62 = arith.constant 0 : index
    %c0_63 = arith.constant 0 : index
    %144 = vector.load %arg11[%c0_61, %c0_62, %c0_63] : memref<1x64x256xbf16, #tpu.memory_space<vmem>>, vector<1x64x256xbf16>
    %145 = vector.shape_cast %144 : vector<1x64x256xbf16> to vector<64x256xbf16>
    %146 = arith.truncf %143 : vector<4x64xf32> to vector<4x64xbf16>
    %cst_64 = arith.constant dense<0.000000e+00> : vector<4x256xf32>
    %147 = tpu.matmul %146, %145, %cst_64 {dimension_numbers = #tpu.dot_dimension_numbers<[1], [0], [0], [1], [0, 0, 1, 1], [], []>} : vector<4x64xbf16>, vector<64x256xbf16>, vector<4x256xf32> -> vector<4x256xf32>
    %c0_65 = arith.constant 0 : index
    %c0_66 = arith.constant 0 : index
    %c0_67 = arith.constant 0 : index
    %148 = vector.load %arg12[%c0_65, %c0_66, %c0_67] : memref<1x1x256xf32, #tpu.memory_space<vmem>>, vector<1x1x256xf32>
    %149 = vector.shape_cast %148 : vector<1x1x256xf32> to vector<1x256xf32>
    %150 = vector.broadcast %149 : vector<1x256xf32> to vector<4x256xf32>
    %151 = arith.addf %147, %150 : vector<4x256xf32>
    %cst_68 = arith.constant 5.000000e-01 : f32
    %152 = vector.broadcast %cst_68 : f32 to vector<4x256xf32>
    %153 = arith.mulf %152, %151 : vector<4x256xf32>
    %cst_69 = arith.constant 4.471500e-02 : f32
    %154 = vector.broadcast %cst_69 : f32 to vector<4x256xf32>
    %155 = arith.mulf %154, %151 : vector<4x256xf32>
    %156 = arith.mulf %155, %151 : vector<4x256xf32>
    %157 = arith.mulf %156, %151 : vector<4x256xf32>
    %158 = arith.addf %151, %157 : vector<4x256xf32>
    %cst_70 = arith.constant 0.797884583 : f32
    %159 = vector.broadcast %cst_70 : f32 to vector<4x256xf32>
    %160 = arith.mulf %159, %158 : vector<4x256xf32>
    %161 = math.tanh %160 : vector<4x256xf32>
    %cst_71 = arith.constant 1.000000e+00 : f32
    %162 = vector.broadcast %cst_71 : f32 to vector<4x256xf32>
    %163 = arith.addf %162, %161 : vector<4x256xf32>
    %164 = arith.mulf %153, %163 : vector<4x256xf32>
    %c0_72 = arith.constant 0 : index
    %c0_73 = arith.constant 0 : index
    %c0_74 = arith.constant 0 : index
    %165 = vector.load %arg13[%c0_72, %c0_73, %c0_74] : memref<1x256x64xbf16, #tpu.memory_space<vmem>>, vector<1x256x64xbf16>
    %166 = vector.shape_cast %165 : vector<1x256x64xbf16> to vector<256x64xbf16>
    %167 = arith.truncf %164 : vector<4x256xf32> to vector<4x256xbf16>
    %cst_75 = arith.constant dense<0.000000e+00> : vector<4x64xf32>
    %168 = tpu.matmul %167, %166, %cst_75 {dimension_numbers = #tpu.dot_dimension_numbers<[1], [0], [0], [1], [0, 0, 1, 1], [], []>} : vector<4x256xbf16>, vector<256x64xbf16>, vector<4x64xf32> -> vector<4x64xf32>
    %169 = arith.addf %117, %168 : vector<4x64xf32>
    %c0_76 = arith.constant 0 : index
    %c0_77 = arith.constant 0 : index
    %c0_78 = arith.constant 0 : index
    %170 = vector.load %arg14[%c0_76, %c0_77, %c0_78] : memref<1x1x64xf32, #tpu.memory_space<vmem>>, vector<1x1x64xf32>
    %171 = vector.shape_cast %170 : vector<1x1x64xf32> to vector<1x64xf32>
    %172 = vector.broadcast %171 : vector<1x64xf32> to vector<4x64xf32>
    %173 = arith.addf %169, %172 : vector<4x64xf32>
    %174 = vector.shape_cast %173 : vector<4x64xf32> to vector<1x4x64xf32>
    %c0_79 = arith.constant 0 : index
    %c0_80 = arith.constant 0 : index
    %c0_81 = arith.constant 0 : index
    %175 = vector.load %arg15[%c0_79, %c0_80, %c0_81] : memref<1x4x64xf32, #tpu.memory_space<vmem>>, vector<1x4x64xf32>
    tpu.vector_store %arg15[%c0_79, %c0_80, %c0_81], %174 {strides = array<i32>} : memref<1x4x64xf32, #tpu.memory_space<vmem>>, vector<1x4x64xf32>,
    return
  }
  func.func @transform_0(%arg0: i32, %arg1: i32) -> (i32, i32, i32) {
    %c0_i32 = arith.constant 0 : i32
    %c0_i32_0 = arith.constant 0 : i32
    %c0_i32_1 = arith.constant 0 : i32
    return %arg0, %c0_i32, %c0_i32_0 : i32, i32, i32
  }
  func.func @transform_1(%arg0: i32, %arg1: i32) -> (i32, i32, i32) {
    %c0_i32 = arith.constant 0 : i32
    %c0_i32_0 = arith.constant 0 : i32
    %c0_i32_1 = arith.constant 0 : i32
    return %arg1, %c0_i32, %c0_i32_0 : i32, i32, i32
  }
  func.func @transform_2(%arg0: i32, %arg1: i32) -> (i32, i32, i32) {
    %c0_i32 = arith.constant 0 : i32
    %c0_i32_0 = arith.constant 0 : i32
    %c0_i32_1 = arith.constant 0 : i32
    return %arg1, %c0_i32, %c0_i32_0 : i32, i32, i32
  }
  func.func @transform_3(%arg0: i32, %arg1: i32) -> (i32, i32, i32, i32) {
    %c0_i32 = arith.constant 0 : i32
    %c0_i32_0 = arith.constant 0 : i32
    %c0_i32_1 = arith.constant 0 : i32
    %c0_i32_2 = arith.constant 0 : i32
    return %arg1, %c0_i32, %c0_i32_0, %c0_i32_1 : i32, i32, i32, i32
  }
  func.func @transform_4(%arg0: i32, %arg1: i32) -> (i32, i32, i32, i32) {
    %c0_i32 = arith.constant 0 : i32
    %c0_i32_0 = arith.constant 0 : i32
    %c0_i32_1 = arith.constant 0 : i32
    %c0_i32_2 = arith.constant 0 : i32
    return %arg1, %c0_i32, %c0_i32_0, %c0_i32_1 : i32, i32, i32, i32
  }
  func.func @transform_5(%arg0: i32, %arg1: i32) -> (i32, i32, i32) {
    %c0_i32 = arith.constant 0 : i32
    %c0_i32_0 = arith.constant 0 : i32
    %c0_i32_1 = arith.constant 0 : i32
    return %arg1, %c0_i32, %c0_i32_0 : i32, i32, i32
  }
  func.func @transform_6(%arg0: i32, %arg1: i32) -> (i32, i32, i32) {
    %c0_i32 = arith.constant 0 : i32
    %c0_i32_0 = arith.constant 0 : i32
    %c0_i32_1 = arith.constant 0 : i32
    return %arg1, %c0_i32, %c0_i32_0 : i32, i32, i32
  }
  func.func @transform_7(%arg0: i32, %arg1: i32) -> (i32, i32, i32) {
    %c0_i32 = arith.constant 0 : i32
    %c0_i32_0 = arith.constant 0 : i32
    %c0_i32_1 = arith.constant 0 : i32
    return %arg1, %c0_i32, %c0_i32_0 : i32, i32, i32
  }
  func.func @transform_8(%arg0: i32, %arg1: i32) -> (i32, i32, i32) {
    %c0_i32 = arith.constant 0 : i32
    %c0_i32_0 = arith.constant 0 : i32
    %c0_i32_1 = arith.constant 0 : i32
    return %arg1, %c0_i32, %c0_i32_0 : i32, i32, i32
  }
  func.func @transform_9(%arg0: i32, %arg1: i32) -> (i32, i32, i32) {
    %c0_i32 = arith.constant 0 : i32
    %c0_i32_0 = arith.constant 0 : i32
    %c0_i32_1 = arith.constant 0 : i32
    return %arg1, %c0_i32, %c0_i32_0 : i32, i32, i32
  }
  func.func @transform_10(%arg0: i32, %arg1: i32) -> (i32, i32, i32) {
    %c0_i32 = arith.constant 0 : i32
    %c0_i32_0 = arith.constant 0 : i32
    %c0_i32_1 = arith.constant 0 : i32
    return %arg1, %c0_i32, %c0_i32_0 : i32, i32, i32
  }
  func.func @transform_11(%arg0: i32, %arg1: i32) -> (i32, i32, i32) {
    %c0_i32 = arith.constant 0 : i32
    %c0_i32_0 = arith.constant 0 : i32
    %c0_i32_1 = arith.constant 0 : i32
    return %arg1, %c0_i32, %c0_i32_0 : i32, i32, i32
  }
  func.func @transform_12(%arg0: i32, %arg1: i32) -> (i32, i32, i32) {
    %c0_i32 = arith.constant 0 : i32
    %c0_i32_0 = arith.constant 0 : i32
    %c0_i32_1 = arith.constant 0 : i32
    return %arg1, %c0_i32, %c0_i32_0 : i32, i32, i32
  }
  func.func @transform_13(%arg0: i32, %arg1: i32) -> (i32, i32, i32) {
    %c0_i32 = arith.constant 0 : i32
    %c0_i32_0 = arith.constant 0 : i32
    %c0_i32_1 = arith.constant 0 : i32
    return %arg0, %c0_i32, %c0_i32_0 : i32, i32, i32
  }
}

module attributes {stable_mosaic.version = 11 : i64} {
  func.func @_ln_linear_kernel(%arg0: i32, %arg1: memref<8x64xf32, #tpu.memory_space<vmem>>, %arg2: memref<1x64xf32, #tpu.memory_space<vmem>>, %arg3: memref<1x64xf32, #tpu.memory_space<vmem>>, %arg4: memref<64x48xbf16, #tpu.memory_space<vmem>>, %arg5: memref<1x48xf32, #tpu.memory_space<vmem>>, %arg6: memref<8x48xf32, #tpu.memory_space<vmem>>) attributes {dimension_semantics = [#tpu.dimension_semantics<arbitrary>], iteration_bounds = array<i64: 1>, scalar_prefetch = 0 : i64, scratch_operands = 0 : i64, tpu.core_type = #tpu.core_type<tc>, window_params = [{pipeline_mode = #tpu.pipeline_mode<synchronous>, transform_indices = @transform_0, window_bounds = array<i64: 8, 64>}, {pipeline_mode = #tpu.pipeline_mode<synchronous>, transform_indices = @transform_1, window_bounds = array<i64: 1, 64>}, {pipeline_mode = #tpu.pipeline_mode<synchronous>, transform_indices = @transform_2, window_bounds = array<i64: 1, 64>}, {pipeline_mode = #tpu.pipeline_mode<synchronous>, transform_indices = @transform_3, window_bounds = array<i64: 64, 48>}, {pipeline_mode = #tpu.pipeline_mode<synchronous>, transform_indices = @transform_4, window_bounds = array<i64: 1, 48>}, {pipeline_mode = #tpu.pipeline_mode<synchronous>, transform_indices = @transform_5, window_bounds = array<i64: 8, 48>}]} {
    %c0 = arith.constant 0 : index
    %c0_0 = arith.constant 0 : index
    %0 = vector.load %arg1[%c0, %c0_0] : memref<8x64xf32, #tpu.memory_space<vmem>>, vector<8x64xf32>
    %c0_1 = arith.constant 0 : index
    %c0_2 = arith.constant 0 : index
    %1 = vector.load %arg2[%c0_1, %c0_2] : memref<1x64xf32, #tpu.memory_space<vmem>>, vector<1x64xf32>
    %c0_3 = arith.constant 0 : index
    %c0_4 = arith.constant 0 : index
    %2 = vector.load %arg3[%c0_3, %c0_4] : memref<1x64xf32, #tpu.memory_space<vmem>>, vector<1x64xf32>
    %cst = arith.constant dense<0.000000e+00> : vector<8xf32>
    %3 = vector.multi_reduction <add>, %0, %cst [1] : vector<8x64xf32> to vector<8xf32>
    %4 = vector.shape_cast %3 : vector<8xf32> to vector<8x1xf32>
    %cst_5 = arith.constant 6.400000e+01 : f32
    %5 = vector.broadcast %cst_5 : f32 to vector<8x1xf32>
    %6 = arith.divf %4, %5 : vector<8x1xf32>
    %7 = vector.broadcast %6 : vector<8x1xf32> to vector<8x64xf32>
    %8 = arith.subf %0, %7 : vector<8x64xf32>
    %9 = arith.mulf %8, %8 : vector<8x64xf32>
    %cst_6 = arith.constant dense<0.000000e+00> : vector<8xf32>
    %10 = vector.multi_reduction <add>, %9, %cst_6 [1] : vector<8x64xf32> to vector<8xf32>
    %11 = vector.shape_cast %10 : vector<8xf32> to vector<8x1xf32>
    %cst_7 = arith.constant 6.400000e+01 : f32
    %12 = vector.broadcast %cst_7 : f32 to vector<8x1xf32>
    %13 = arith.divf %11, %12 : vector<8x1xf32>
    %14 = vector.broadcast %6 : vector<8x1xf32> to vector<8x64xf32>
    %15 = arith.subf %0, %14 : vector<8x64xf32>
    %cst_8 = arith.constant 9.99999974E-6 : f32
    %16 = vector.broadcast %cst_8 : f32 to vector<8x1xf32>
    %17 = arith.addf %13, %16 : vector<8x1xf32>
    %18 = math.rsqrt %17 : vector<8x1xf32>
    %19 = vector.broadcast %18 : vector<8x1xf32> to vector<8x64xf32>
    %20 = arith.mulf %15, %19 : vector<8x64xf32>
    %21 = vector.broadcast %1 : vector<1x64xf32> to vector<8x64xf32>
    %22 = arith.mulf %20, %21 : vector<8x64xf32>
    %23 = vector.broadcast %2 : vector<1x64xf32> to vector<8x64xf32>
    %24 = arith.addf %22, %23 : vector<8x64xf32>
    %c0_9 = arith.constant 0 : index
    %c0_10 = arith.constant 0 : index
    %25 = vector.load %arg4[%c0_9, %c0_10] : memref<64x48xbf16, #tpu.memory_space<vmem>>, vector<64x48xbf16>
    %26 = arith.truncf %24 : vector<8x64xf32> to vector<8x64xbf16>
    %cst_11 = arith.constant dense<0.000000e+00> : vector<8x48xf32>
    %27 = tpu.matmul %26, %25, %cst_11 {dimension_numbers = #tpu.dot_dimension_numbers<[1], [0], [0], [1], [0, 0, 1, 1], [], []>} : vector<8x64xbf16>, vector<64x48xbf16>, vector<8x48xf32> -> vector<8x48xf32>
    %c0_12 = arith.constant 0 : index
    %c0_13 = arith.constant 0 : index
    %28 = vector.load %arg5[%c0_12, %c0_13] : memref<1x48xf32, #tpu.memory_space<vmem>>, vector<1x48xf32>
    %29 = vector.broadcast %28 : vector<1x48xf32> to vector<8x48xf32>
    %30 = arith.addf %27, %29 : vector<8x48xf32>
    %c0_14 = arith.constant 0 : index
    %c0_15 = arith.constant 0 : index
    %31 = vector.load %arg6[%c0_14, %c0_15] : memref<8x48xf32, #tpu.memory_space<vmem>>, vector<8x48xf32>
    tpu.vector_store %arg6[%c0_14, %c0_15], %30 {strides = array<i32>} : memref<8x48xf32, #tpu.memory_space<vmem>>, vector<8x48xf32>,
    return
  }
  func.func @transform_0(%arg0: i32) -> (i32, i32) {
    %c0_i32 = arith.constant 0 : i32
    %c0_i32_0 = arith.constant 0 : i32
    %c0_i32_1 = arith.constant 0 : i32
    return %c0_i32, %c0_i32_0 : i32, i32
  }
  func.func @transform_1(%arg0: i32) -> (i32, i32) {
    %c0_i32 = arith.constant 0 : i32
    %c0_i32_0 = arith.constant 0 : i32
    %c0_i32_1 = arith.constant 0 : i32
    return %c0_i32, %c0_i32_0 : i32, i32
  }
  func.func @transform_2(%arg0: i32) -> (i32, i32) {
    %c0_i32 = arith.constant 0 : i32
    %c0_i32_0 = arith.constant 0 : i32
    %c0_i32_1 = arith.constant 0 : i32
    return %c0_i32, %c0_i32_0 : i32, i32
  }
  func.func @transform_3(%arg0: i32) -> (i32, i32) {
    %c0_i32 = arith.constant 0 : i32
    %c0_i32_0 = arith.constant 0 : i32
    %c0_i32_1 = arith.constant 0 : i32
    return %c0_i32, %c0_i32_0 : i32, i32
  }
  func.func @transform_4(%arg0: i32) -> (i32, i32) {
    %c0_i32 = arith.constant 0 : i32
    %c0_i32_0 = arith.constant 0 : i32
    %c0_i32_1 = arith.constant 0 : i32
    return %c0_i32, %c0_i32_0 : i32, i32
  }
  func.func @transform_5(%arg0: i32) -> (i32, i32) {
    %c0_i32 = arith.constant 0 : i32
    %c0_i32_0 = arith.constant 0 : i32
    %c0_i32_1 = arith.constant 0 : i32
    return %c0_i32, %c0_i32_0 : i32, i32
  }
}

module attributes {stable_mosaic.version = 11 : i64} {
  func.func @_stack_kernel(%arg0: i32, %arg1: i32, %arg2: memref<1x33x48xf32, #tpu.memory_space<vmem>>, %arg3: memref<1x1x48xf32, #tpu.memory_space<vmem>>, %arg4: memref<1x1x48xf32, #tpu.memory_space<vmem>>, %arg5: memref<1x3x48x48xbf16, #tpu.memory_space<vmem>>, %arg6: memref<1x3x1x48xf32, #tpu.memory_space<vmem>>, %arg7: memref<1x48x48xbf16, #tpu.memory_space<vmem>>, %arg8: memref<1x1x48xf32, #tpu.memory_space<vmem>>, %arg9: memref<1x1x48xf32, #tpu.memory_space<vmem>>, %arg10: memref<1x1x48xf32, #tpu.memory_space<vmem>>, %arg11: memref<1x48x192xbf16, #tpu.memory_space<vmem>>, %arg12: memref<1x1x192xf32, #tpu.memory_space<vmem>>, %arg13: memref<1x192x48xbf16, #tpu.memory_space<vmem>>, %arg14: memref<1x1x48xf32, #tpu.memory_space<vmem>>, %arg15: memref<1x33x48xf32, #tpu.memory_space<vmem>>) attributes {dimension_semantics = [#tpu.dimension_semantics<parallel>, #tpu.dimension_semantics<arbitrary>], iteration_bounds = array<i64: 2, 2>, scalar_prefetch = 0 : i64, scratch_operands = 0 : i64, tpu.core_type = #tpu.core_type<tc>, window_params = [{transform_indices = @transform_0, window_bounds = array<i64: 1, 33, 48>}, {transform_indices = @transform_1, window_bounds = array<i64: 1, 1, 48>}, {transform_indices = @transform_2, window_bounds = array<i64: 1, 1, 48>}, {transform_indices = @transform_3, window_bounds = array<i64: 1, 3, 48, 48>}, {transform_indices = @transform_4, window_bounds = array<i64: 1, 3, 1, 48>}, {transform_indices = @transform_5, window_bounds = array<i64: 1, 48, 48>}, {transform_indices = @transform_6, window_bounds = array<i64: 1, 1, 48>}, {transform_indices = @transform_7, window_bounds = array<i64: 1, 1, 48>}, {transform_indices = @transform_8, window_bounds = array<i64: 1, 1, 48>}, {transform_indices = @transform_9, window_bounds = array<i64: 1, 48, 192>}, {transform_indices = @transform_10, window_bounds = array<i64: 1, 1, 192>}, {transform_indices = @transform_11, window_bounds = array<i64: 1, 192, 48>}, {transform_indices = @transform_12, window_bounds = array<i64: 1, 1, 48>}, {transform_indices = @transform_13, window_bounds = array<i64: 1, 33, 48>}]} {
    %c0_i32 = arith.constant 0 : i32
    %0 = arith.cmpi eq, %arg1, %c0_i32 : i32
    %1 = arith.extui %0 : i1 to i32
    %c0_i32_0 = arith.constant 0 : i32
    %2 = arith.cmpi ne, %1, %c0_i32_0 : i32
    scf.if %2 {
      %c0_82 = arith.constant 0 : index
      %c0_83 = arith.constant 0 : index
      %c0_84 = arith.constant 0 : index
      %176 = vector.load %arg2[%c0_82, %c0_83, %c0_84] : memref<1x33x48xf32, #tpu.memory_space<vmem>>, vector<1x33x48xf32>
      %c0_85 = arith.constant 0 : index
      %c0_86 = arith.constant 0 : index
      %c0_87 = arith.constant 0 : index
      %177 = vector.load %arg15[%c0_85, %c0_86, %c0_87] : memref<1x33x48xf32, #tpu.memory_space<vmem>>, vector<1x33x48xf32>
      tpu.vector_store %arg15[%c0_85, %c0_86, %c0_87], %176 {strides = array<i32>} : memref<1x33x48xf32, #tpu.memory_space<vmem>>, vector<1x33x48xf32>,
    } else {
    }
    %c0 = arith.constant 0 : index
    %c0_1 = arith.constant 0 : index
    %c0_2 = arith.constant 0 : index
    %3 = vector.load %arg15[%c0, %c0_1, %c0_2] : memref<1x33x48xf32, #tpu.memory_space<vmem>>, vector<1x33x48xf32>
    %4 = vector.shape_cast %3 : vector<1x33x48xf32> to vector<33x48xf32>
    %c0_3 = arith.constant 0 : index
    %c0_4 = arith.constant 0 : index
    %c0_5 = arith.constant 0 : index
    %5 = vector.load %arg3[%c0_3, %c0_4, %c0_5] : memref<1x1x48xf32, #tpu.memory_space<vmem>>, vector<1x1x48xf32>
    %6 = vector.shape_cast %5 : vector<1x1x48xf32> to vector<1x48xf32>
    %c0_6 = arith.constant 0 : index
    %c0_7 = arith.constant 0 : index
    %c0_8 = arith.constant 0 : index
    %7 = vector.load %arg4[%c0_6, %c0_7, %c0_8] : memref<1x1x48xf32, #tpu.memory_space<vmem>>, vector<1x1x48xf32>
    %8 = vector.shape_cast %7 : vector<1x1x48xf32> to vector<1x48xf32>
    %cst = arith.constant dense<0.000000e+00> : vector<33xf32>
    %9 = vector.multi_reduction <add>, %4, %cst [1] : vector<33x48xf32> to vector<33xf32>
    %10 = vector.shape_cast %9 : vector<33xf32> to vector<33x1xf32>
    %cst_9 = arith.constant 4.800000e+01 : f32
    %11 = vector.broadcast %cst_9 : f32 to vector<33x1xf32>
    %12 = arith.divf %10, %11 : vector<33x1xf32>
    %13 = vector.broadcast %12 : vector<33x1xf32> to vector<33x48xf32>
    %14 = arith.subf %4, %13 : vector<33x48xf32>
    %15 = arith.mulf %14, %14 : vector<33x48xf32>
    %cst_10 = arith.constant dense<0.000000e+00> : vector<33xf32>
    %16 = vector.multi_reduction <add>, %15, %cst_10 [1] : vector<33x48xf32> to vector<33xf32>
    %17 = vector.shape_cast %16 : vector<33xf32> to vector<33x1xf32>
    %cst_11 = arith.constant 4.800000e+01 : f32
    %18 = vector.broadcast %cst_11 : f32 to vector<33x1xf32>
    %19 = arith.divf %17, %18 : vector<33x1xf32>
    %20 = vector.broadcast %12 : vector<33x1xf32> to vector<33x48xf32>
    %21 = arith.subf %4, %20 : vector<33x48xf32>
    %cst_12 = arith.constant 9.99999974E-6 : f32
    %22 = vector.broadcast %cst_12 : f32 to vector<33x1xf32>
    %23 = arith.addf %19, %22 : vector<33x1xf32>
    %24 = math.rsqrt %23 : vector<33x1xf32>
    %25 = vector.broadcast %24 : vector<33x1xf32> to vector<33x48xf32>
    %26 = arith.mulf %21, %25 : vector<33x48xf32>
    %27 = vector.broadcast %6 : vector<1x48xf32> to vector<33x48xf32>
    %28 = arith.mulf %26, %27 : vector<33x48xf32>
    %29 = vector.broadcast %8 : vector<1x48xf32> to vector<33x48xf32>
    %30 = arith.addf %28, %29 : vector<33x48xf32>
    %c0_13 = arith.constant 0 : index
    %c0_14 = arith.constant 0 : index
    %c0_15 = arith.constant 0 : index
    %c0_16 = arith.constant 0 : index
    %31 = vector.load %arg5[%c0_13, %c0_14, %c0_15, %c0_16] : memref<1x3x48x48xbf16, #tpu.memory_space<vmem>>, vector<1x1x48x48xbf16>
    %32 = vector.shape_cast %31 : vector<1x1x48x48xbf16> to vector<48x48xbf16>
    %33 = arith.truncf %30 : vector<33x48xf32> to vector<33x48xbf16>
    %cst_17 = arith.constant dense<0.000000e+00> : vector<33x48xf32>
    %34 = tpu.matmul %33, %32, %cst_17 {dimension_numbers = #tpu.dot_dimension_numbers<[1], [0], [0], [1], [0, 0, 1, 1], [], []>} : vector<33x48xbf16>, vector<48x48xbf16>, vector<33x48xf32> -> vector<33x48xf32>
    %c0_18 = arith.constant 0 : index
    %c0_19 = arith.constant 0 : index
    %c0_20 = arith.constant 0 : index
    %c0_21 = arith.constant 0 : index
    %35 = vector.load %arg6[%c0_18, %c0_19, %c0_20, %c0_21] : memref<1x3x1x48xf32, #tpu.memory_space<vmem>>, vector<1x1x1x48xf32>
    %36 = vector.shape_cast %35 : vector<1x1x1x48xf32> to vector<1x48xf32>
    %37 = vector.broadcast %36 : vector<1x48xf32> to vector<33x48xf32>
    %38 = arith.addf %34, %37 : vector<33x48xf32>
    %c0_22 = arith.constant 0 : index
    %c1 = arith.constant 1 : index
    %c0_23 = arith.constant 0 : index
    %c0_24 = arith.constant 0 : index
    %39 = vector.load %arg5[%c0_22, %c1, %c0_23, %c0_24] : memref<1x3x48x48xbf16, #tpu.memory_space<vmem>>, vector<1x1x48x48xbf16>
    %40 = vector.shape_cast %39 : vector<1x1x48x48xbf16> to vector<48x48xbf16>
    %41 = arith.truncf %30 : vector<33x48xf32> to vector<33x48xbf16>
    %cst_25 = arith.constant dense<0.000000e+00> : vector<33x48xf32>
    %42 = tpu.matmul %41, %40, %cst_25 {dimension_numbers = #tpu.dot_dimension_numbers<[1], [0], [0], [1], [0, 0, 1, 1], [], []>} : vector<33x48xbf16>, vector<48x48xbf16>, vector<33x48xf32> -> vector<33x48xf32>
    %c0_26 = arith.constant 0 : index
    %c1_27 = arith.constant 1 : index
    %c0_28 = arith.constant 0 : index
    %c0_29 = arith.constant 0 : index
    %43 = vector.load %arg6[%c0_26, %c1_27, %c0_28, %c0_29] : memref<1x3x1x48xf32, #tpu.memory_space<vmem>>, vector<1x1x1x48xf32>
    %44 = vector.shape_cast %43 : vector<1x1x1x48xf32> to vector<1x48xf32>
    %45 = vector.broadcast %44 : vector<1x48xf32> to vector<33x48xf32>
    %46 = arith.addf %42, %45 : vector<33x48xf32>
    %c0_30 = arith.constant 0 : index
    %c2 = arith.constant 2 : index
    %c0_31 = arith.constant 0 : index
    %c0_32 = arith.constant 0 : index
    %47 = vector.load %arg5[%c0_30, %c2, %c0_31, %c0_32] : memref<1x3x48x48xbf16, #tpu.memory_space<vmem>>, vector<1x1x48x48xbf16>
    %48 = vector.shape_cast %47 : vector<1x1x48x48xbf16> to vector<48x48xbf16>
    %49 = arith.truncf %30 : vector<33x48xf32> to vector<33x48xbf16>
    %cst_33 = arith.constant dense<0.000000e+00> : vector<33x48xf32>
    %50 = tpu.matmul %49, %48, %cst_33 {dimension_numbers = #tpu.dot_dimension_numbers<[1], [0], [0], [1], [0, 0, 1, 1], [], []>} : vector<33x48xbf16>, vector<48x48xbf16>, vector<33x48xf32> -> vector<33x48xf32>
    %c0_34 = arith.constant 0 : index
    %c2_35 = arith.constant 2 : index
    %c0_36 = arith.constant 0 : index
    %c0_37 = arith.constant 0 : index
    %51 = vector.load %arg6[%c0_34, %c2_35, %c0_36, %c0_37] : memref<1x3x1x48xf32, #tpu.memory_space<vmem>>, vector<1x1x1x48xf32>
    %52 = vector.shape_cast %51 : vector<1x1x1x48xf32> to vector<1x48xf32>
    %53 = vector.broadcast %52 : vector<1x48xf32> to vector<33x48xf32>
    %54 = arith.addf %50, %53 : vector<33x48xf32>
    %55 = vector.extract_strided_slice %38 {offsets = [0, 0], sizes = [33, 12], strides = [1, 1]} : vector<33x48xf32> to vector<33x12xf32>
    %56 = vector.shape_cast %55 : vector<33x12xf32> to vector<1x33x12xf32>
    %57 = vector.extract_strided_slice %38 {offsets = [0, 12], sizes = [33, 12], strides = [1, 1]} : vector<33x48xf32> to vector<33x12xf32>
    %58 = vector.shape_cast %57 : vector<33x12xf32> to vector<1x33x12xf32>
    %59 = vector.extract_strided_slice %38 {offsets = [0, 24], sizes = [33, 12], strides = [1, 1]} : vector<33x48xf32> to vector<33x12xf32>
    %60 = vector.shape_cast %59 : vector<33x12xf32> to vector<1x33x12xf32>
    %61 = vector.extract_strided_slice %38 {offsets = [0, 36], sizes = [33, 12], strides = [1, 1]} : vector<33x48xf32> to vector<33x12xf32>
    %62 = vector.shape_cast %61 : vector<33x12xf32> to vector<1x33x12xf32>
    %63 = tpu.concatenate %56, %58, %60, %62 in 0 : vector<1x33x12xf32>, vector<1x33x12xf32>, vector<1x33x12xf32>, vector<1x33x12xf32> -> vector<4x33x12xf32>
    %64 = vector.extract_strided_slice %46 {offsets = [0, 0], sizes = [33, 12], strides = [1, 1]} : vector<33x48xf32> to vector<33x12xf32>
    %65 = vector.shape_cast %64 : vector<33x12xf32> to vector<1x33x12xf32>
    %66 = vector.extract_strided_slice %46 {offsets = [0, 12], sizes = [33, 12], strides = [1, 1]} : vector<33x48xf32> to vector<33x12xf32>
    %67 = vector.shape_cast %66 : vector<33x12xf32> to vector<1x33x12xf32>
    %68 = vector.extract_strided_slice %46 {offsets = [0, 24], sizes = [33, 12], strides = [1, 1]} : vector<33x48xf32> to vector<33x12xf32>
    %69 = vector.shape_cast %68 : vector<33x12xf32> to vector<1x33x12xf32>
    %70 = vector.extract_strided_slice %46 {offsets = [0, 36], sizes = [33, 12], strides = [1, 1]} : vector<33x48xf32> to vector<33x12xf32>
    %71 = vector.shape_cast %70 : vector<33x12xf32> to vector<1x33x12xf32>
    %72 = tpu.concatenate %65, %67, %69, %71 in 0 : vector<1x33x12xf32>, vector<1x33x12xf32>, vector<1x33x12xf32>, vector<1x33x12xf32> -> vector<4x33x12xf32>
    %73 = vector.extract_strided_slice %54 {offsets = [0, 0], sizes = [33, 12], strides = [1, 1]} : vector<33x48xf32> to vector<33x12xf32>
    %74 = vector.shape_cast %73 : vector<33x12xf32> to vector<1x33x12xf32>
    %75 = vector.extract_strided_slice %54 {offsets = [0, 12], sizes = [33, 12], strides = [1, 1]} : vector<33x48xf32> to vector<33x12xf32>
    %76 = vector.shape_cast %75 : vector<33x12xf32> to vector<1x33x12xf32>
    %77 = vector.extract_strided_slice %54 {offsets = [0, 24], sizes = [33, 12], strides = [1, 1]} : vector<33x48xf32> to vector<33x12xf32>
    %78 = vector.shape_cast %77 : vector<33x12xf32> to vector<1x33x12xf32>
    %79 = vector.extract_strided_slice %54 {offsets = [0, 36], sizes = [33, 12], strides = [1, 1]} : vector<33x48xf32> to vector<33x12xf32>
    %80 = vector.shape_cast %79 : vector<33x12xf32> to vector<1x33x12xf32>
    %81 = tpu.concatenate %74, %76, %78, %80 in 0 : vector<1x33x12xf32>, vector<1x33x12xf32>, vector<1x33x12xf32>, vector<1x33x12xf32> -> vector<4x33x12xf32>
    %82 = arith.truncf %63 : vector<4x33x12xf32> to vector<4x33x12xbf16>
    %83 = arith.truncf %72 : vector<4x33x12xf32> to vector<4x33x12xbf16>
    "tpu.trace_start"() <{level = 10 : i32, message = "bqd,bkd->bqk"}> : () -> ()
    %cst_38 = arith.constant dense<0.000000e+00> : vector<4x33x33xf32>
    %84 = tpu.matmul %82, %83, %cst_38 {dimension_numbers = #tpu.dot_dimension_numbers<[2], [2], [1], [1], [0, 0, 0, 1, 1, 1], [0], [0]>} : vector<4x33x12xbf16>, vector<4x33x12xbf16>, vector<4x33x33xf32> -> vector<4x33x33xf32>
    "tpu.trace_stop"() : () -> ()
    %cst_39 = arith.constant 0.288675129 : f32
    %85 = vector.broadcast %cst_39 : f32 to vector<4x33x33xf32>
    %86 = arith.mulf %84, %85 : vector<4x33x33xf32>
    %cst_40 = arith.constant dense<0xFF800000> : vector<4x33xf32>
    %87 = vector.multi_reduction <maximumf>, %86, %cst_40 [2] : vector<4x33x33xf32> to vector<4x33xf32>
    %88 = vector.shape_cast %87 : vector<4x33xf32> to vector<4x33x1xf32>
    %89 = vector.broadcast %88 : vector<4x33x1xf32> to vector<4x33x33xf32>
    %90 = arith.subf %86, %89 : vector<4x33x33xf32>
    %91 = math.exp %90 : vector<4x33x33xf32>
    %cst_41 = arith.constant dense<0.000000e+00> : vector<4x33xf32>
    %92 = vector.multi_reduction <add>, %91, %cst_41 [2] : vector<4x33x33xf32> to vector<4x33xf32>
    %93 = vector.shape_cast %92 : vector<4x33xf32> to vector<4x33x1xf32>
    %94 = tpu.reciprocal %93 {approx = true} : vector<4x33x1xf32> -> vector<4x33x1xf32>
    %95 = vector.broadcast %94 : vector<4x33x1xf32> to vector<4x33x33xf32>
    %96 = arith.mulf %91, %95 : vector<4x33x33xf32>
    %97 = arith.truncf %96 : vector<4x33x33xf32> to vector<4x33x33xbf16>
    %98 = arith.truncf %81 : vector<4x33x12xf32> to vector<4x33x12xbf16>
    "tpu.trace_start"() <{level = 10 : i32, message = "bqk,bkd->bqd"}> : () -> ()
    %cst_42 = arith.constant dense<0.000000e+00> : vector<4x33x12xf32>
    %99 = tpu.matmul %97, %98, %cst_42 {dimension_numbers = #tpu.dot_dimension_numbers<[2], [1], [1], [2], [0, 0, 0, 1, 1, 2], [0], [0]>} : vector<4x33x33xbf16>, vector<4x33x12xbf16>, vector<4x33x12xf32> -> vector<4x33x12xf32>
    "tpu.trace_stop"() : () -> ()
    %100 = vector.extract_strided_slice %99 {offsets = [0, 0, 0], sizes = [1, 33, 12], strides = [1, 1, 1]} : vector<4x33x12xf32> to vector<1x33x12xf32>
    %101 = vector.shape_cast %100 : vector<1x33x12xf32> to vector<33x12xf32>
    %102 = vector.extract_strided_slice %99 {offsets = [1, 0, 0], sizes = [1, 33, 12], strides = [1, 1, 1]} : vector<4x33x12xf32> to vector<1x33x12xf32>
    %103 = vector.shape_cast %102 : vector<1x33x12xf32> to vector<33x12xf32>
    %104 = vector.extract_strided_slice %99 {offsets = [2, 0, 0], sizes = [1, 33, 12], strides = [1, 1, 1]} : vector<4x33x12xf32> to vector<1x33x12xf32>
    %105 = vector.shape_cast %104 : vector<1x33x12xf32> to vector<33x12xf32>
    %106 = vector.extract_strided_slice %99 {offsets = [3, 0, 0], sizes = [1, 33, 12], strides = [1, 1, 1]} : vector<4x33x12xf32> to vector<1x33x12xf32>
    %107 = vector.shape_cast %106 : vector<1x33x12xf32> to vector<33x12xf32>
    %108 = tpu.concatenate %101, %103, %105, %107 in 1 : vector<33x12xf32>, vector<33x12xf32>, vector<33x12xf32>, vector<33x12xf32> -> vector<33x48xf32>
    %c0_43 = arith.constant 0 : index
    %c0_44 = arith.constant 0 : index
    %c0_45 = arith.constant 0 : index
    %109 = vector.load %arg7[%c0_43, %c0_44, %c0_45] : memref<1x48x48xbf16, #tpu.memory_space<vmem>>, vector<1x48x48xbf16>
    %110 = vector.shape_cast %109 : vector<1x48x48xbf16> to vector<48x48xbf16>
    %111 = arith.truncf %108 : vector<33x48xf32> to vector<33x48xbf16>
    %cst_46 = arith.constant dense<0.000000e+00> : vector<33x48xf32>
    %112 = tpu.matmul %111, %110, %cst_46 {dimension_numbers = #tpu.dot_dimension_numbers<[1], [0], [0], [1], [0, 0, 1, 1], [], []>} : vector<33x48xbf16>, vector<48x48xbf16>, vector<33x48xf32> -> vector<33x48xf32>
    %113 = arith.addf %4, %112 : vector<33x48xf32>
    %c0_47 = arith.constant 0 : index
    %c0_48 = arith.constant 0 : index
    %c0_49 = arith.constant 0 : index
    %114 = vector.load %arg8[%c0_47, %c0_48, %c0_49] : memref<1x1x48xf32, #tpu.memory_space<vmem>>, vector<1x1x48xf32>
    %115 = vector.shape_cast %114 : vector<1x1x48xf32> to vector<1x48xf32>
    %116 = vector.broadcast %115 : vector<1x48xf32> to vector<33x48xf32>
    %117 = arith.addf %113, %116 : vector<33x48xf32>
    %c0_50 = arith.constant 0 : index
    %c0_51 = arith.constant 0 : index
    %c0_52 = arith.constant 0 : index
    %118 = vector.load %arg9[%c0_50, %c0_51, %c0_52] : memref<1x1x48xf32, #tpu.memory_space<vmem>>, vector<1x1x48xf32>
    %119 = vector.shape_cast %118 : vector<1x1x48xf32> to vector<1x48xf32>
    %c0_53 = arith.constant 0 : index
    %c0_54 = arith.constant 0 : index
    %c0_55 = arith.constant 0 : index
    %120 = vector.load %arg10[%c0_53, %c0_54, %c0_55] : memref<1x1x48xf32, #tpu.memory_space<vmem>>, vector<1x1x48xf32>
    %121 = vector.shape_cast %120 : vector<1x1x48xf32> to vector<1x48xf32>
    %cst_56 = arith.constant dense<0.000000e+00> : vector<33xf32>
    %122 = vector.multi_reduction <add>, %117, %cst_56 [1] : vector<33x48xf32> to vector<33xf32>
    %123 = vector.shape_cast %122 : vector<33xf32> to vector<33x1xf32>
    %cst_57 = arith.constant 4.800000e+01 : f32
    %124 = vector.broadcast %cst_57 : f32 to vector<33x1xf32>
    %125 = arith.divf %123, %124 : vector<33x1xf32>
    %126 = vector.broadcast %125 : vector<33x1xf32> to vector<33x48xf32>
    %127 = arith.subf %117, %126 : vector<33x48xf32>
    %128 = arith.mulf %127, %127 : vector<33x48xf32>
    %cst_58 = arith.constant dense<0.000000e+00> : vector<33xf32>
    %129 = vector.multi_reduction <add>, %128, %cst_58 [1] : vector<33x48xf32> to vector<33xf32>
    %130 = vector.shape_cast %129 : vector<33xf32> to vector<33x1xf32>
    %cst_59 = arith.constant 4.800000e+01 : f32
    %131 = vector.broadcast %cst_59 : f32 to vector<33x1xf32>
    %132 = arith.divf %130, %131 : vector<33x1xf32>
    %133 = vector.broadcast %125 : vector<33x1xf32> to vector<33x48xf32>
    %134 = arith.subf %117, %133 : vector<33x48xf32>
    %cst_60 = arith.constant 9.99999974E-6 : f32
    %135 = vector.broadcast %cst_60 : f32 to vector<33x1xf32>
    %136 = arith.addf %132, %135 : vector<33x1xf32>
    %137 = math.rsqrt %136 : vector<33x1xf32>
    %138 = vector.broadcast %137 : vector<33x1xf32> to vector<33x48xf32>
    %139 = arith.mulf %134, %138 : vector<33x48xf32>
    %140 = vector.broadcast %119 : vector<1x48xf32> to vector<33x48xf32>
    %141 = arith.mulf %139, %140 : vector<33x48xf32>
    %142 = vector.broadcast %121 : vector<1x48xf32> to vector<33x48xf32>
    %143 = arith.addf %141, %142 : vector<33x48xf32>
    %c0_61 = arith.constant 0 : index
    %c0_62 = arith.constant 0 : index
    %c0_63 = arith.constant 0 : index
    %144 = vector.load %arg11[%c0_61, %c0_62, %c0_63] : memref<1x48x192xbf16, #tpu.memory_space<vmem>>, vector<1x48x192xbf16>
    %145 = vector.shape_cast %144 : vector<1x48x192xbf16> to vector<48x192xbf16>
    %146 = arith.truncf %143 : vector<33x48xf32> to vector<33x48xbf16>
    %cst_64 = arith.constant dense<0.000000e+00> : vector<33x192xf32>
    %147 = tpu.matmul %146, %145, %cst_64 {dimension_numbers = #tpu.dot_dimension_numbers<[1], [0], [0], [1], [0, 0, 1, 1], [], []>} : vector<33x48xbf16>, vector<48x192xbf16>, vector<33x192xf32> -> vector<33x192xf32>
    %c0_65 = arith.constant 0 : index
    %c0_66 = arith.constant 0 : index
    %c0_67 = arith.constant 0 : index
    %148 = vector.load %arg12[%c0_65, %c0_66, %c0_67] : memref<1x1x192xf32, #tpu.memory_space<vmem>>, vector<1x1x192xf32>
    %149 = vector.shape_cast %148 : vector<1x1x192xf32> to vector<1x192xf32>
    %150 = vector.broadcast %149 : vector<1x192xf32> to vector<33x192xf32>
    %151 = arith.addf %147, %150 : vector<33x192xf32>
    %cst_68 = arith.constant 5.000000e-01 : f32
    %152 = vector.broadcast %cst_68 : f32 to vector<33x192xf32>
    %153 = arith.mulf %152, %151 : vector<33x192xf32>
    %cst_69 = arith.constant 4.471500e-02 : f32
    %154 = vector.broadcast %cst_69 : f32 to vector<33x192xf32>
    %155 = arith.mulf %154, %151 : vector<33x192xf32>
    %156 = arith.mulf %155, %151 : vector<33x192xf32>
    %157 = arith.mulf %156, %151 : vector<33x192xf32>
    %158 = arith.addf %151, %157 : vector<33x192xf32>
    %cst_70 = arith.constant 0.797884583 : f32
    %159 = vector.broadcast %cst_70 : f32 to vector<33x192xf32>
    %160 = arith.mulf %159, %158 : vector<33x192xf32>
    %161 = math.tanh %160 : vector<33x192xf32>
    %cst_71 = arith.constant 1.000000e+00 : f32
    %162 = vector.broadcast %cst_71 : f32 to vector<33x192xf32>
    %163 = arith.addf %162, %161 : vector<33x192xf32>
    %164 = arith.mulf %153, %163 : vector<33x192xf32>
    %c0_72 = arith.constant 0 : index
    %c0_73 = arith.constant 0 : index
    %c0_74 = arith.constant 0 : index
    %165 = vector.load %arg13[%c0_72, %c0_73, %c0_74] : memref<1x192x48xbf16, #tpu.memory_space<vmem>>, vector<1x192x48xbf16>
    %166 = vector.shape_cast %165 : vector<1x192x48xbf16> to vector<192x48xbf16>
    %167 = arith.truncf %164 : vector<33x192xf32> to vector<33x192xbf16>
    %cst_75 = arith.constant dense<0.000000e+00> : vector<33x48xf32>
    %168 = tpu.matmul %167, %166, %cst_75 {dimension_numbers = #tpu.dot_dimension_numbers<[1], [0], [0], [1], [0, 0, 1, 1], [], []>} : vector<33x192xbf16>, vector<192x48xbf16>, vector<33x48xf32> -> vector<33x48xf32>
    %169 = arith.addf %117, %168 : vector<33x48xf32>
    %c0_76 = arith.constant 0 : index
    %c0_77 = arith.constant 0 : index
    %c0_78 = arith.constant 0 : index
    %170 = vector.load %arg14[%c0_76, %c0_77, %c0_78] : memref<1x1x48xf32, #tpu.memory_space<vmem>>, vector<1x1x48xf32>
    %171 = vector.shape_cast %170 : vector<1x1x48xf32> to vector<1x48xf32>
    %172 = vector.broadcast %171 : vector<1x48xf32> to vector<33x48xf32>
    %173 = arith.addf %169, %172 : vector<33x48xf32>
    %174 = vector.shape_cast %173 : vector<33x48xf32> to vector<1x33x48xf32>
    %c0_79 = arith.constant 0 : index
    %c0_80 = arith.constant 0 : index
    %c0_81 = arith.constant 0 : index
    %175 = vector.load %arg15[%c0_79, %c0_80, %c0_81] : memref<1x33x48xf32, #tpu.memory_space<vmem>>, vector<1x33x48xf32>
    tpu.vector_store %arg15[%c0_79, %c0_80, %c0_81], %174 {strides = array<i32>} : memref<1x33x48xf32, #tpu.memory_space<vmem>>, vector<1x33x48xf32>,
    return
  }
  func.func @transform_0(%arg0: i32, %arg1: i32) -> (i32, i32, i32) {
    %c0_i32 = arith.constant 0 : i32
    %c0_i32_0 = arith.constant 0 : i32
    %c0_i32_1 = arith.constant 0 : i32
    return %arg0, %c0_i32, %c0_i32_0 : i32, i32, i32
  }
  func.func @transform_1(%arg0: i32, %arg1: i32) -> (i32, i32, i32) {
    %c0_i32 = arith.constant 0 : i32
    %c0_i32_0 = arith.constant 0 : i32
    %c0_i32_1 = arith.constant 0 : i32
    return %arg1, %c0_i32, %c0_i32_0 : i32, i32, i32
  }
  func.func @transform_2(%arg0: i32, %arg1: i32) -> (i32, i32, i32) {
    %c0_i32 = arith.constant 0 : i32
    %c0_i32_0 = arith.constant 0 : i32
    %c0_i32_1 = arith.constant 0 : i32
    return %arg1, %c0_i32, %c0_i32_0 : i32, i32, i32
  }
  func.func @transform_3(%arg0: i32, %arg1: i32) -> (i32, i32, i32, i32) {
    %c0_i32 = arith.constant 0 : i32
    %c0_i32_0 = arith.constant 0 : i32
    %c0_i32_1 = arith.constant 0 : i32
    %c0_i32_2 = arith.constant 0 : i32
    return %arg1, %c0_i32, %c0_i32_0, %c0_i32_1 : i32, i32, i32, i32
  }
  func.func @transform_4(%arg0: i32, %arg1: i32) -> (i32, i32, i32, i32) {
    %c0_i32 = arith.constant 0 : i32
    %c0_i32_0 = arith.constant 0 : i32
    %c0_i32_1 = arith.constant 0 : i32
    %c0_i32_2 = arith.constant 0 : i32
    return %arg1, %c0_i32, %c0_i32_0, %c0_i32_1 : i32, i32, i32, i32
  }
  func.func @transform_5(%arg0: i32, %arg1: i32) -> (i32, i32, i32) {
    %c0_i32 = arith.constant 0 : i32
    %c0_i32_0 = arith.constant 0 : i32
    %c0_i32_1 = arith.constant 0 : i32
    return %arg1, %c0_i32, %c0_i32_0 : i32, i32, i32
  }
  func.func @transform_6(%arg0: i32, %arg1: i32) -> (i32, i32, i32) {
    %c0_i32 = arith.constant 0 : i32
    %c0_i32_0 = arith.constant 0 : i32
    %c0_i32_1 = arith.constant 0 : i32
    return %arg1, %c0_i32, %c0_i32_0 : i32, i32, i32
  }
  func.func @transform_7(%arg0: i32, %arg1: i32) -> (i32, i32, i32) {
    %c0_i32 = arith.constant 0 : i32
    %c0_i32_0 = arith.constant 0 : i32
    %c0_i32_1 = arith.constant 0 : i32
    return %arg1, %c0_i32, %c0_i32_0 : i32, i32, i32
  }
  func.func @transform_8(%arg0: i32, %arg1: i32) -> (i32, i32, i32) {
    %c0_i32 = arith.constant 0 : i32
    %c0_i32_0 = arith.constant 0 : i32
    %c0_i32_1 = arith.constant 0 : i32
    return %arg1, %c0_i32, %c0_i32_0 : i32, i32, i32
  }
  func.func @transform_9(%arg0: i32, %arg1: i32) -> (i32, i32, i32) {
    %c0_i32 = arith.constant 0 : i32
    %c0_i32_0 = arith.constant 0 : i32
    %c0_i32_1 = arith.constant 0 : i32
    return %arg1, %c0_i32, %c0_i32_0 : i32, i32, i32
  }
  func.func @transform_10(%arg0: i32, %arg1: i32) -> (i32, i32, i32) {
    %c0_i32 = arith.constant 0 : i32
    %c0_i32_0 = arith.constant 0 : i32
    %c0_i32_1 = arith.constant 0 : i32
    return %arg1, %c0_i32, %c0_i32_0 : i32, i32, i32
  }
  func.func @transform_11(%arg0: i32, %arg1: i32) -> (i32, i32, i32) {
    %c0_i32 = arith.constant 0 : i32
    %c0_i32_0 = arith.constant 0 : i32
    %c0_i32_1 = arith.constant 0 : i32
    return %arg1, %c0_i32, %c0_i32_0 : i32, i32, i32
  }
  func.func @transform_12(%arg0: i32, %arg1: i32) -> (i32, i32, i32) {
    %c0_i32 = arith.constant 0 : i32
    %c0_i32_0 = arith.constant 0 : i32
    %c0_i32_1 = arith.constant 0 : i32
    return %arg1, %c0_i32, %c0_i32_0 : i32, i32, i32
  }
  func.func @transform_13(%arg0: i32, %arg1: i32) -> (i32, i32, i32) {
    %c0_i32 = arith.constant 0 : i32
    %c0_i32_0 = arith.constant 0 : i32
    %c0_i32_1 = arith.constant 0 : i32
    return %arg0, %c0_i32, %c0_i32_0 : i32, i32, i32
  }
}

module attributes {stable_mosaic.version = 11 : i64} {
  func.func @_dec_head_kernel(%arg0: i32, %arg1: memref<2x33x48xf32, #tpu.memory_space<vmem>>, %arg2: memref<1x48xf32, #tpu.memory_space<vmem>>, %arg3: memref<1x48xf32, #tpu.memory_space<vmem>>, %arg4: memref<48x48xbf16, #tpu.memory_space<vmem>>, %arg5: memref<1x48xf32, #tpu.memory_space<vmem>>, %arg6: memref<2x32x48xf32, #tpu.memory_space<vmem>>, %arg7: memref<2x32xf32, #tpu.memory_space<vmem>>, %arg8: memref<2x32x48xf32, #tpu.memory_space<vmem>>, %arg9: memref<1x1xf32, #tpu.memory_space<vmem>>) attributes {dimension_semantics = [#tpu.dimension_semantics<arbitrary>], iteration_bounds = array<i64: 1>, scalar_prefetch = 0 : i64, scratch_operands = 0 : i64, tpu.core_type = #tpu.core_type<tc>, window_params = [{pipeline_mode = #tpu.pipeline_mode<synchronous>, transform_indices = @transform_0, window_bounds = array<i64: 2, 33, 48>}, {pipeline_mode = #tpu.pipeline_mode<synchronous>, transform_indices = @transform_1, window_bounds = array<i64: 1, 48>}, {pipeline_mode = #tpu.pipeline_mode<synchronous>, transform_indices = @transform_2, window_bounds = array<i64: 1, 48>}, {pipeline_mode = #tpu.pipeline_mode<synchronous>, transform_indices = @transform_3, window_bounds = array<i64: 48, 48>}, {pipeline_mode = #tpu.pipeline_mode<synchronous>, transform_indices = @transform_4, window_bounds = array<i64: 1, 48>}, {pipeline_mode = #tpu.pipeline_mode<synchronous>, transform_indices = @transform_5, window_bounds = array<i64: 2, 32, 48>}, {pipeline_mode = #tpu.pipeline_mode<synchronous>, transform_indices = @transform_6, window_bounds = array<i64: 2, 32>}, {pipeline_mode = #tpu.pipeline_mode<synchronous>, transform_indices = @transform_7, window_bounds = array<i64: 2, 32, 48>}, {pipeline_mode = #tpu.pipeline_mode<synchronous>, transform_indices = @transform_8, window_bounds = array<i64: 1, 1>}]} {
    %c0 = arith.constant 0 : index
    %c0_0 = arith.constant 0 : index
    %c0_1 = arith.constant 0 : index
    %0 = vector.load %arg1[%c0, %c0_0, %c0_1] : memref<2x33x48xf32, #tpu.memory_space<vmem>>, vector<2x33x48xf32>
    %1 = vector.shape_cast %0 : vector<2x33x48xf32> to vector<66x48xf32>
    %c0_2 = arith.constant 0 : index
    %c0_3 = arith.constant 0 : index
    %2 = vector.load %arg2[%c0_2, %c0_3] : memref<1x48xf32, #tpu.memory_space<vmem>>, vector<1x48xf32>
    %c0_4 = arith.constant 0 : index
    %c0_5 = arith.constant 0 : index
    %3 = vector.load %arg3[%c0_4, %c0_5] : memref<1x48xf32, #tpu.memory_space<vmem>>, vector<1x48xf32>
    %cst = arith.constant dense<0.000000e+00> : vector<66xf32>
    %4 = vector.multi_reduction <add>, %1, %cst [1] : vector<66x48xf32> to vector<66xf32>
    %5 = vector.shape_cast %4 : vector<66xf32> to vector<66x1xf32>
    %cst_6 = arith.constant 4.800000e+01 : f32
    %6 = vector.broadcast %cst_6 : f32 to vector<66x1xf32>
    %7 = arith.divf %5, %6 : vector<66x1xf32>
    %8 = vector.broadcast %7 : vector<66x1xf32> to vector<66x48xf32>
    %9 = arith.subf %1, %8 : vector<66x48xf32>
    %10 = arith.mulf %9, %9 : vector<66x48xf32>
    %cst_7 = arith.constant dense<0.000000e+00> : vector<66xf32>
    %11 = vector.multi_reduction <add>, %10, %cst_7 [1] : vector<66x48xf32> to vector<66xf32>
    %12 = vector.shape_cast %11 : vector<66xf32> to vector<66x1xf32>
    %cst_8 = arith.constant 4.800000e+01 : f32
    %13 = vector.broadcast %cst_8 : f32 to vector<66x1xf32>
    %14 = arith.divf %12, %13 : vector<66x1xf32>
    %15 = vector.broadcast %7 : vector<66x1xf32> to vector<66x48xf32>
    %16 = arith.subf %1, %15 : vector<66x48xf32>
    %cst_9 = arith.constant 9.99999974E-6 : f32
    %17 = vector.broadcast %cst_9 : f32 to vector<66x1xf32>
    %18 = arith.addf %14, %17 : vector<66x1xf32>
    %19 = math.rsqrt %18 : vector<66x1xf32>
    %20 = vector.broadcast %19 : vector<66x1xf32> to vector<66x48xf32>
    %21 = arith.mulf %16, %20 : vector<66x48xf32>
    %22 = vector.broadcast %2 : vector<1x48xf32> to vector<66x48xf32>
    %23 = arith.mulf %21, %22 : vector<66x48xf32>
    %24 = vector.broadcast %3 : vector<1x48xf32> to vector<66x48xf32>
    %25 = arith.addf %23, %24 : vector<66x48xf32>
    %c0_10 = arith.constant 0 : index
    %c0_11 = arith.constant 0 : index
    %26 = vector.load %arg4[%c0_10, %c0_11] : memref<48x48xbf16, #tpu.memory_space<vmem>>, vector<48x48xbf16>
    %27 = arith.truncf %25 : vector<66x48xf32> to vector<66x48xbf16>
    %cst_12 = arith.constant dense<0.000000e+00> : vector<66x48xf32>
    %28 = tpu.matmul %27, %26, %cst_12 {dimension_numbers = #tpu.dot_dimension_numbers<[1], [0], [0], [1], [0, 0, 1, 1], [], []>} : vector<66x48xbf16>, vector<48x48xbf16>, vector<66x48xf32> -> vector<66x48xf32>
    %c0_13 = arith.constant 0 : index
    %c0_14 = arith.constant 0 : index
    %29 = vector.load %arg5[%c0_13, %c0_14] : memref<1x48xf32, #tpu.memory_space<vmem>>, vector<1x48xf32>
    %30 = vector.broadcast %29 : vector<1x48xf32> to vector<66x48xf32>
    %31 = arith.addf %28, %30 : vector<66x48xf32>
    %32 = vector.shape_cast %31 : vector<66x48xf32> to vector<2x33x48xf32>
    %33 = vector.extract_strided_slice %32 {offsets = [0, 1, 0], sizes = [2, 32, 48], strides = [1, 1, 1]} : vector<2x33x48xf32> to vector<2x32x48xf32>
    %c0_15 = arith.constant 0 : index
    %c0_16 = arith.constant 0 : index
    %c0_17 = arith.constant 0 : index
    %34 = vector.load %arg8[%c0_15, %c0_16, %c0_17] : memref<2x32x48xf32, #tpu.memory_space<vmem>>, vector<2x32x48xf32>
    tpu.vector_store %arg8[%c0_15, %c0_16, %c0_17], %33 {strides = array<i32>} : memref<2x32x48xf32, #tpu.memory_space<vmem>>, vector<2x32x48xf32>,
    %c0_18 = arith.constant 0 : index
    %c0_19 = arith.constant 0 : index
    %c0_20 = arith.constant 0 : index
    %35 = vector.load %arg6[%c0_18, %c0_19, %c0_20] : memref<2x32x48xf32, #tpu.memory_space<vmem>>, vector<2x32x48xf32>
    %36 = arith.subf %33, %35 : vector<2x32x48xf32>
    %37 = arith.mulf %36, %36 : vector<2x32x48xf32>
    %cst_21 = arith.constant dense<0.000000e+00> : vector<2x32xf32>
    %38 = vector.multi_reduction <add>, %37, %cst_21 [2] : vector<2x32x48xf32> to vector<2x32xf32>
    %cst_22 = arith.constant 4.800000e+01 : f32
    %39 = vector.broadcast %cst_22 : f32 to vector<2x32xf32>
    %40 = arith.divf %38, %39 : vector<2x32xf32>
    %c0_23 = arith.constant 0 : index
    %c0_24 = arith.constant 0 : index
    %41 = vector.load %arg7[%c0_23, %c0_24] : memref<2x32xf32, #tpu.memory_space<vmem>>, vector<2x32xf32>
    %42 = arith.mulf %40, %41 : vector<2x32xf32>
    %43 = vector.shape_cast %42 : vector<2x32xf32> to vector<1x2x32xf32>
    %cst_25 = arith.constant dense<0.000000e+00> : vector<1xf32>
    %44 = vector.multi_reduction <add>, %43, %cst_25 [1, 2] : vector<1x2x32xf32> to vector<1xf32>
    %45 = vector.shape_cast %44 : vector<1xf32> to vector<1x1x1xf32>
    %46 = vector.extract %45[0, 0, 0] : f32 from vector<1x1x1xf32>
    %47 = vector.shape_cast %41 : vector<2x32xf32> to vector<1x2x32xf32>
    %cst_26 = arith.constant dense<0.000000e+00> : vector<1xf32>
    %48 = vector.multi_reduction <add>, %47, %cst_26 [1, 2] : vector<1x2x32xf32> to vector<1xf32>
    %49 = vector.shape_cast %48 : vector<1xf32> to vector<1x1x1xf32>
    %50 = vector.extract %49[0, 0, 0] : f32 from vector<1x1x1xf32>
    %cst_27 = arith.constant 1.000000e+00 : f32
    %51 = arith.maximumf %50, %cst_27 : f32
    %52 = arith.divf %46, %51 : f32
    %cst_28 = arith.constant 1.000000e+00 : f32
    %53 = vector.broadcast %cst_28 : f32 to vector<1x1xf32>
    %54 = vector.broadcast %52 : f32 to vector<1x1xf32>
    %55 = arith.mulf %54, %53 : vector<1x1xf32>
    %c0_29 = arith.constant 0 : index
    %c0_30 = arith.constant 0 : index
    %56 = vector.load %arg9[%c0_29, %c0_30] : memref<1x1xf32, #tpu.memory_space<vmem>>, vector<1x1xf32>
    tpu.vector_store %arg9[%c0_29, %c0_30], %55 {strides = array<i32>} : memref<1x1xf32, #tpu.memory_space<vmem>>, vector<1x1xf32>,
    return
  }
  func.func @transform_0(%arg0: i32) -> (i32, i32, i32) {
    %c0_i32 = arith.constant 0 : i32
    %c0_i32_0 = arith.constant 0 : i32
    %c0_i32_1 = arith.constant 0 : i32
    %c0_i32_2 = arith.constant 0 : i32
    return %c0_i32, %c0_i32_0, %c0_i32_1 : i32, i32, i32
  }
  func.func @transform_1(%arg0: i32) -> (i32, i32) {
    %c0_i32 = arith.constant 0 : i32
    %c0_i32_0 = arith.constant 0 : i32
    %c0_i32_1 = arith.constant 0 : i32
    return %c0_i32, %c0_i32_0 : i32, i32
  }
  func.func @transform_2(%arg0: i32) -> (i32, i32) {
    %c0_i32 = arith.constant 0 : i32
    %c0_i32_0 = arith.constant 0 : i32
    %c0_i32_1 = arith.constant 0 : i32
    return %c0_i32, %c0_i32_0 : i32, i32
  }
  func.func @transform_3(%arg0: i32) -> (i32, i32) {
    %c0_i32 = arith.constant 0 : i32
    %c0_i32_0 = arith.constant 0 : i32
    %c0_i32_1 = arith.constant 0 : i32
    return %c0_i32, %c0_i32_0 : i32, i32
  }
  func.func @transform_4(%arg0: i32) -> (i32, i32) {
    %c0_i32 = arith.constant 0 : i32
    %c0_i32_0 = arith.constant 0 : i32
    %c0_i32_1 = arith.constant 0 : i32
    return %c0_i32, %c0_i32_0 : i32, i32
  }
  func.func @transform_5(%arg0: i32) -> (i32, i32, i32) {
    %c0_i32 = arith.constant 0 : i32
    %c0_i32_0 = arith.constant 0 : i32
    %c0_i32_1 = arith.constant 0 : i32
    %c0_i32_2 = arith.constant 0 : i32
    return %c0_i32, %c0_i32_0, %c0_i32_1 : i32, i32, i32
  }
  func.func @transform_6(%arg0: i32) -> (i32, i32) {
    %c0_i32 = arith.constant 0 : i32
    %c0_i32_0 = arith.constant 0 : i32
    %c0_i32_1 = arith.constant 0 : i32
    return %c0_i32, %c0_i32_0 : i32, i32
  }
  func.func @transform_7(%arg0: i32) -> (i32, i32, i32) {
    %c0_i32 = arith.constant 0 : i32
    %c0_i32_0 = arith.constant 0 : i32
    %c0_i32_1 = arith.constant 0 : i32
    %c0_i32_2 = arith.constant 0 : i32
    return %c0_i32, %c0_i32_0, %c0_i32_1 : i32, i32, i32
  }
  func.func @transform_8(%arg0: i32) -> (i32, i32) {
    %c0_i32 = arith.constant 0 : i32
    %c0_i32_0 = arith.constant 0 : i32
    %c0_i32_1 = arith.constant 0 : i32
    return %c0_i32, %c0_i32_0 : i32, i32
  }
}

</mosaic_0001>

<llo_original>
// kernel: squeeze.10
$region0: #{squeeze.10}
  %s0 = inlined_call_operand.vmem [shape: f32[2,1,3,16,16], index: 0, kind: input, shape index: {}]
  %s1 = inlined_call_operand.vmem [shape: f32[2,3,4,4,4,4], index: 1, kind: output, shape index: {}]
  $region1: #{squeeze.10} parent=0
    #allocation0 [shape = 'u8[393216]{0}', space=vmem, size = 0x60000, scoped, tag = 'scoped mem for output reshape']
    %v2 = vld [vmem:[%s0] sm:$0xff]
    %vm3 = vcmask 31744
    %4 = vst.msk [vmem:[#allocation0] ss:$8 sm:$0xf] %vm3, %v2
    %5 = vst.msk [vmem:[#allocation0] ss:$8 sm:$0xf0] %vm3, %v2
    %s6 = scalar_lea.vmem %s0, 8
    %v7 = vld [vmem:[%s6] sm:$0xff]
    %vm8 = vcmask 31744
    %s9 = scalar_lea.vmem [#allocation0], 64
    %10 = vst.msk [vmem:[%s9] ss:$8 sm:$0xf] %vm8, %v7
    %s11 = scalar_lea.vmem [#allocation0], 64
    %12 = vst.msk [vmem:[%s11] ss:$8 sm:$0xf0] %vm8, %v7
    %s13 = scalar_lea.vmem %s0, 16
    %v14 = vld [vmem:[%s13] sm:$0xff]
    %vm15 = vcmask 31744
    %s16 = scalar_lea.vmem [#allocation0], 128
    %17 = vst.msk [vmem:[%s16] ss:$8 sm:$0xf] %vm15, %v14
    %s18 = scalar_lea.vmem [#allocation0], 128
    %19 = vst.msk [vmem:[%s18] ss:$8 sm:$0xf0] %vm15, %v14
    %s20 = scalar_lea.vmem %s0, 24
    %v21 = vld [vmem:[%s20] sm:$0xff]
    %vm22 = vcmask 31744
    %s23 = scalar_lea.vmem [#allocation0], 192
    %24 = vst.msk [vmem:[%s23] ss:$8 sm:$0xf] %vm22, %v21
    %s25 = scalar_lea.vmem [#allocation0], 192
    %26 = vst.msk [vmem:[%s25] ss:$8 sm:$0xf0] %vm22, %v21
    %s27 = scalar_lea.vmem %s0, 32
    %v28 = vld [vmem:[%s27] sm:$0xff]
    %vm29 = vcmask 31744
    %s30 = scalar_lea.vmem [#allocation0], 256
    %31 = vst.msk [vmem:[%s30] ss:$8 sm:$0xf] %vm29, %v28
    %s32 = scalar_lea.vmem [#allocation0], 256
    %33 = vst.msk [vmem:[%s32] ss:$8 sm:$0xf0] %vm29, %v28
    %s34 = scalar_lea.vmem %s0, 40
    %v35 = vld [vmem:[%s34] sm:$0xff]
    %vm36 = vcmask 31744
    %s37 = scalar_lea.vmem [#allocation0], 320
    %38 = vst.msk [vmem:[%s37] ss:$8 sm:$0xf] %vm36, %v35
    %s39 = scalar_lea.vmem [#allocation0], 320
    %40 = vst.msk [vmem:[%s39] ss:$8 sm:$0xf0] %vm36, %v35
    %s41 = scalar_lea.vmem %s0, 48
    %v42 = vld [vmem:[%s41] sm:$0xff]
    %vm43 = vcmask 31744
    %s44 = scalar_lea.vmem [#allocation0], 384
    %45 = vst.msk [vmem:[%s44] ss:$8 sm:$0xf] %vm43, %v42
    %s46 = scalar_lea.vmem [#allocation0], 384
    %47 = vst.msk [vmem:[%s46] ss:$8 sm:$0xf0] %vm43, %v42
    %s48 = scalar_lea.vmem %s0, 56
    %v49 = vld [vmem:[%s48] sm:$0xff]
    %vm50 = vcmask 31744
    %s51 = scalar_lea.vmem [#allocation0], 448
    %52 = vst.msk [vmem:[%s51] ss:$8 sm:$0xf] %vm50, %v49
    %s53 = scalar_lea.vmem [#allocation0], 448
    %54 = vst.msk [vmem:[%s53] ss:$8 sm:$0xf0] %vm50, %v49
    %s55 = scalar_lea.vmem %s0, 64
    %v56 = vld [vmem:[%s55] sm:$0xff]
    %vm57 = vcmask 31744
    %s58 = scalar_lea.vmem [#allocation0], 512
    %59 = vst.msk [vmem:[%s58] ss:$8 sm:$0xf] %vm57, %v56
    %s60 = scalar_lea.vmem [#allocation0], 512
    %61 = vst.msk [vmem:[%s60] ss:$8 sm:$0xf0] %vm57, %v56
    %s62 = scalar_lea.vmem %s0, 72
    %v63 = vld [vmem:[%s62] sm:$0xff]
    %vm64 = vcmask 31744
    %s65 = scalar_lea.vmem [#allocation0], 576
    %66 = vst.msk [vmem:[%s65] ss:$8 sm:$0xf] %vm64, %v63
    %s67 = scalar_lea.vmem [#allocation0], 576
    %68 = vst.msk [vmem:[%s67] ss:$8 sm:$0xf0] %vm64, %v63
    %s69 = scalar_lea.vmem %s0, 80
    %v70 = vld [vmem:[%s69] sm:$0xff]
    %vm71 = vcmask 31744
    %s72 = scalar_lea.vmem [#allocation0], 640
    %73 = vst.msk [vmem:[%s72] ss:$8 sm:$0xf] %vm71, %v70
    %s74 = scalar_lea.vmem [#allocation0], 640
    %75 = vst.msk [vmem:[%s74] ss:$8 sm:$0xf0] %vm71, %v70
    %s76 = scalar_lea.vmem %s0, 88
    %v77 = vld [vmem:[%s76] sm:$0xff]
    %vm78 = vcmask 31744
    %s79 = scalar_lea.vmem [#allocation0], 704
    %80 = vst.msk [vmem:[%s79] ss:$8 sm:$0xf] %vm78, %v77
    %s81 = scalar_lea.vmem [#allocation0], 704
    %82 = vst.msk [vmem:[%s81] ss:$8 sm:$0xf0] %vm78, %v77
    %v83 = vld [vmem:[%s0] sm:$0xff]
    %84 = vrot.lane.b32.xlu0 %v83, 124
    %v85 = vpop.permute.xlu0 %84
    %vm86 = vcmask 31744
    %s87 = scalar_lea.vmem [#allocation0], 1
    %88 = vst.msk [vmem:[%s87] ss:$8 sm:$0xf] %vm86, %v85
    %s89 = scalar_lea.vmem [#allocation0], 1
    %90 = vst.msk [vmem:[%s89] ss:$8 sm:$0xf0] %vm86, %v85
    %s91 = scalar_lea.vmem %s0, 8
    %v92 = vld [vmem:[%s91] sm:$0xff]
    %93 = vrot.lane.b32.xlu0 %v92, 124
    %v94 = vpop.permute.xlu0 %93
    %vm95 = vcmask 31744
    %s96 = scalar_lea.vmem [#allocation0], 65
    %97 = vst.msk [vmem:[%s96] ss:$8 sm:$0xf] %vm95, %v94
    %s98 = scalar_lea.vmem [#allocation0], 65
    %99 = vst.msk [vmem:[%s98] ss:$8 sm:$0xf0] %vm95, %v94
    %s100 = scalar_lea.vmem %s0, 16
    %v101 = vld [vmem:[%s100] sm:$0xff]
    %102 = vrot.lane.b32.xlu0 %v101, 124
    %v103 = vpop.permute.xlu0 %102
    %vm104 = vcmask 31744
    %s105 = scalar_lea.vmem [#allocation0], 129
    %106 = vst.msk [vmem:[%s105] ss:$8 sm:$0xf] %vm104, %v103
    %s107 = scalar_lea.vmem [#allocation0], 129
    %108 = vst.msk [vmem:[%s107] ss:$8 sm:$0xf0] %vm104, %v103
    %s109 = scalar_lea.vmem %s0, 24
    %v110 = vld [vmem:[%s109] sm:$0xff]
    %111 = vrot.lane.b32.xlu0 %v110, 124
    %v112 = vpop.permute.xlu0 %111
    %vm113 = vcmask 31744
    %s114 = scalar_lea.vmem [#allocation0], 193
    %115 = vst.msk [vmem:[%s114] ss:$8 sm:$0xf] %vm113, %v112
    %s116 = scalar_lea.vmem [#allocation0], 193
    %117 = vst.msk [vmem:[%s116] ss:$8 sm:$0xf0] %vm113, %v112
    %s118 = scalar_lea.vmem %s0, 32
    %v119 = vld [vmem:[%s118] sm:$0xff]
    %120 = vrot.lane.b32.xlu0 %v119, 124
    %v121 = vpop.permute.xlu0 %120
    %vm122 = vcmask 31744
    %s123 = scalar_lea.vmem [#allocation0], 257
    %124 = vst.msk [vmem:[%s123] ss:$8 sm:$0xf] %vm122, %v121
    %s125 = scalar_lea.vmem [#allocation0], 257
    %126 = vst.msk [vmem:[%s125] ss:$8 sm:$0xf0] %vm122, %v121
    %s127 = scalar_lea.vmem %s0, 40
    %v128 = vld [vmem:[%s127] sm:$0xff]
    %129 = vrot.lane.b32.xlu0 %v128, 124
    %v130 = vpop.permute.xlu0 %129
    %vm131 = vcmask 31744
    %s132 = scalar_lea.vmem [#allocation0], 321
    %133 = vst.msk [vmem:[%s132] ss:$8 sm:$0xf] %vm131, %v130
    %s134 = scalar_lea.vmem [#allocation0], 321
    %135 = vst.msk [vmem:[%s134] ss:$8 sm:$0xf0] %vm131, %v130
    %s136 = scalar_lea.vmem %s0, 48
    %v137 = vld [vmem:[%s136] sm:$0xff]
    %138 = vrot.lane.b32.xlu0 %v137, 124
    %v139 = vpop.permute.xlu0 %138
    %vm140 = vcmask 31744
    %s141 = scalar_lea.vmem [#allocation0], 385
    %142 = vst.msk [vmem:[%s141] ss:$8 sm:$0xf] %vm140, %v139
    %s143 = scalar_lea.vmem [#allocation0], 385
    %144 = vst.msk [vmem:[%s143] ss:$8 sm:$0xf0] %vm140, %v139
    %s145 = scalar_lea.vmem %s0, 56
    %v146 = vld [vmem:[%s145] sm:$0xff]
    %147 = vrot.lane.b32.xlu0 %v146, 124
    %v148 = vpop.permute.xlu0 %147
    %vm149 = vcmask 31744
    %s150 = scalar_lea.vmem [#allocation0], 449
    %151 = vst.msk [vmem:[%s150] ss:$8 sm:$0xf] %vm149, %v148
    %s152 = scalar_lea.vmem [#allocation0], 449
    %153 = vst.msk [vmem:[%s152] ss:$8 sm:$0xf0] %vm149, %v148
    %s154 = scalar_lea.vmem %s0, 64
    %v155 = vld [vmem:[%s154] sm:$0xff]
    %156 = vrot.lane.b32.xlu0 %v155, 124
    %v157 = vpop.permute.xlu0 %156
    %vm158 = vcmask 31744
    %s159 = scalar_lea.vmem [#allocation0], 513
    %160 = vst.msk [vmem:[%s159] ss:$8 sm:$0xf] %vm158, %v157
    %s161 = scalar_lea.vmem [#allocation0], 513
    %162 = vst.msk [vmem:[%s161] ss:$8 sm:$0xf0] %vm158, %v157
    %s163 = scalar_lea.vmem %s0, 72
    %v164 = vld [vmem:[%s163] sm:$0xff]
    %165 = vrot.lane.b32.xlu0 %v164, 124
    %v166 = vpop.permute.xlu0 %165
    %vm167 = vcmask 31744
    %s168 = scalar_lea.vmem [#allocation0], 577
    %169 = vst.msk [vmem:[%s168] ss:$8 sm:$0xf] %vm167, %v166
    %s170 = scalar_lea.vmem [#allocation0], 577
    %171 = vst.msk [vmem:[%s170] ss:$8 sm:$0xf0] %vm167, %v166
    %s172 = scalar_lea.vmem %s0, 80
    %v173 = vld [vmem:[%s172] sm:$0xff]
    %174 = vrot.lane.b32.xlu0 %v173, 124
    %v175 = vpop.permute.xlu0 %174
    %vm176 = vcmask 31744
    %s177 = scalar_lea.vmem [#allocation0], 641
    %178 = vst.msk [vmem:[%s177] ss:$8 sm:$0xf] %vm176, %v175
    %s179 = scalar_lea.vmem [#allocation0], 641
    %180 = vst.msk [vmem:[%s179] ss:$8 sm:$0xf0] %vm176, %v175
    %s181 = scalar_lea.vmem %s0, 88
    %v182 = vld [vmem:[%s181] sm:$0xff]
    %183 = vrot.lane.b32.xlu0 %v182, 124
    %v184 = vpop.permute.xlu0 %183
    %vm185 = vcmask 31744
    %s186 = scalar_lea.vmem [#allocation0], 705
    %187 = vst.msk [vmem:[%s186] ss:$8 sm:$0xf] %vm185, %v184
    %s188 = scalar_lea.vmem [#allocation0], 705
    %189 = vst.msk [vmem:[%s188] ss:$8 sm:$0xf0] %vm185, %v184
    %v190 = vld [vmem:[%s0] sm:$0xff]
    %191 = vrot.lane.b32.xlu0 %v190, 120
    %v192 = vpop.permute.xlu0 %191
    %vm193 = vcmask 31744
    %s194 = scalar_lea.vmem [#allocation0], 2
    %195 = vst.msk [vmem:[%s194] ss:$8 sm:$0xf] %vm193, %v192
    %s196 = scalar_lea.vmem [#allocation0], 2
    %197 = vst.msk [vmem:[%s196] ss:$8 sm:$0xf0] %vm193, %v192
    %s198 = scalar_lea.vmem %s0, 8
    %v199 = vld [vmem:[%s198] sm:$0xff]
    %200 = vrot.lane.b32.xlu0 %v199, 120
    %v201 = vpop.permute.xlu0 %200
    %vm202 = vcmask 31744
    %s203 = scalar_lea.vmem [#allocation0], 66
    %204 = vst.msk [vmem:[%s203] ss:$8 sm:$0xf] %vm202, %v201
    %s205 = scalar_lea.vmem [#allocation0], 66
    %206 = vst.msk [vmem:[%s205] ss:$8 sm:$0xf0] %vm202, %v201
    %s207 = scalar_lea.vmem %s0, 16
    %v208 = vld [vmem:[%s207] sm:$0xff]
    %209 = vrot.lane.b32.xlu0 %v208, 120
    %v210 = vpop.permute.xlu0 %209
    %vm211 = vcmask 31744
    %s212 = scalar_lea.vmem [#allocation0], 130
    %213 = vst.msk [vmem:[%s212] ss:$8 sm:$0xf] %vm211, %v210
    %s214 = scalar_lea.vmem [#allocation0], 130
    %215 = vst.msk [vmem:[%s214] ss:$8 sm:$0xf0] %vm211, %v210
    %s216 = scalar_lea.vmem %s0, 24
    %v217 = vld [vmem:[%s216] sm:$0xff]
    %218 = vrot.lane.b32.xlu0 %v217, 120
    %v219 = vpop.permute.xlu0 %218
    %vm220 = vcmask 31744
    %s221 = scalar_lea.vmem [#allocation0], 194
    %222 = vst.msk [vmem:[%s221] ss:$8 sm:$0xf] %vm220, %v219
    %s223 = scalar_lea.vmem [#allocation0], 194
    %224 = vst.msk [vmem:[%s223] ss:$8 sm:$0xf0] %vm220, %v219
    %s225 = scalar_lea.vmem %s0, 32
    %v226 = vld [vmem:[%s225] sm:$0xff]
    %227 = vrot.lane.b32.xlu0 %v226, 120
    %v228 = vpop.permute.xlu0 %227
    %vm229 = vcmask 31744
    %s230 = scalar_lea.vmem [#allocation0], 258
    %231 = vst.msk [vmem:[%s230] ss:$8 sm:$0xf] %vm229, %v228
    %s232 = scalar_lea.vmem [#allocation0], 258
    %233 = vst.msk [vmem:[%s232] ss:$8 sm:$0xf0] %vm229, %v228
    %s234 = scalar_lea.vmem %s0, 40
    %v235 = vld [vmem:[%s234] sm:$0xff]
    %236 = vrot.lane.b32.xlu0 %v235, 120
    %v237 = vpop.permute.xlu0 %236
    %vm238 = vcmask 31744
    %s239 = scalar_lea.vmem [#allocation0], 322
    %240 = vst.msk [vmem:[%s239] ss:$8 sm:$0xf] %vm238, %v237
    %s241 = scalar_lea.vmem [#allocation0], 322
    %242 = vst.msk [vmem:[%s241] ss:$8 sm:$0xf0] %vm238, %v237
    %s243 = scalar_lea.vmem %s0, 48
    %v244 = vld [vmem:[%s243] sm:$0xff]
    %245 = vrot.lane.b32.xlu0 %v244, 120
    %v246 = vpop.permute.xlu0 %245
    %vm247 = vcmask 31744
    %s248 = scalar_lea.vmem [#allocation0], 386
    %249 = vst.msk [vmem:[%s248] ss:$8 sm:$0xf] %vm247, %v246
    %s250 = scalar_lea.vmem [#allocation0], 386
    %251 = vst.msk [vmem:[%s250] ss:$8 sm:$0xf0] %vm247, %v246
    %s252 = scalar_lea.vmem %s0, 56
    %v253 = vld [vmem:[%s252] sm:$0xff]
    %254 = vrot.lane.b32.xlu0 %v253, 120
    %v255 = vpop.permute.xlu0 %254
    %vm256 = vcmask 31744
    %s257 = scalar_lea.vmem [#allocation0], 450
    %258 = vst.msk [vmem:[%s257] ss:$8 sm:$0xf] %vm256, %v255
    %s259 = scalar_lea.vmem [#allocation0], 450
    %260 = vst.msk [vmem:[%s259] ss:$8 sm:$0xf0] %vm256, %v255
    %s261 = scalar_lea.vmem %s0, 64
    %v262 = vld [vmem:[%s261] sm:$0xff]
    %263 = vrot.lane.b32.xlu0 %v262, 120
    %v264 = vpop.permute.xlu0 %263
    %vm265 = vcmask 31744
    %s266 = scalar_lea.vmem [#allocation0], 514
    %267 = vst.msk [vmem:[%s266] ss:$8 sm:$0xf] %vm265, %v264
    %s268 = scalar_lea.vmem [#allocation0], 514
    %269 = vst.msk [vmem:[%s268] ss:$8 sm:$0xf0] %vm265, %v264
    %s270 = scalar_lea.vmem %s0, 72
    %v271 = vld [vmem:[%s270] sm:$0xff]
    %272 = vrot.lane.b32.xlu0 %v271, 120
    %v273 = vpop.permute.xlu0 %272
    %vm274 = vcmask 31744
    %s275 = scalar_lea.vmem [#allocation0], 578
    %276 = vst.msk [vmem:[%s275] ss:$8 sm:$0xf] %vm274, %v273
    %s277 = scalar_lea.vmem [#allocation0], 578
    %278 = vst.msk [vmem:[%s277] ss:$8 sm:$0xf0] %vm274, %v273
    %s279 = scalar_lea.vmem %s0, 80
    %v280 = vld [vmem:[%s279] sm:$0xff]
    %281 = vrot.lane.b32.xlu0 %v280, 120
    %v282 = vpop.permute.xlu0 %281
    %vm283 = vcmask 31744
    %s284 = scalar_lea.vmem [#allocation0], 642
    %285 = vst.msk [vmem:[%s284] ss:$8 sm:$0xf] %vm283, %v282
    %s286 = scalar_lea.vmem [#allocation0], 642
    %287 = vst.msk [vmem:[%s286] ss:$8 sm:$0xf0] %vm283, %v282
    %s288 = scalar_lea.vmem %s0, 88
    %v289 = vld [vmem:[%s288] sm:$0xff]
    %290 = vrot.lane.b32.xlu0 %v289, 120
    %v291 = vpop.permute.xlu0 %290
    %vm292 = vcmask 31744
    %s293 = scalar_lea.vmem [#allocation0], 706
    %294 = vst.msk [vmem:[%s293] ss:$8 sm:$0xf] %vm292, %v291
    %s295 = scalar_lea.vmem [#allocation0], 706
    %296 = vst.msk [vmem:[%s295] ss:$8 sm:$0xf0] %vm292, %v291
    %v297 = vld [vmem:[%s0] sm:$0xff]
    %298 = vrot.lane.b32.xlu0 %v297, 116
    %v299 = vpop.permute.xlu0 %298
    %vm300 = vcmask 31744
    %s301 = scalar_lea.vmem [#allocation0], 3
    %302 = vst.msk [vmem:[%s301] ss:$8 sm:$0xf] %vm300, %v299
    %s303 = scalar_lea.vmem [#allocation0], 3
    %304 = vst.msk [vmem:[%s303] ss:$8 sm:$0xf0] %vm300, %v299
    %s305 = scalar_lea.vmem %s0, 8
    %v306 = vld [vmem:[%s305] sm:$0xff]
    %307 = vrot.lane.b32.xlu0 %v306, 116
    %v308 = vpop.permute.xlu0 %307
    %vm309 = vcmask 31744
    %s310 = scalar_lea.vmem [#allocation0], 67
    %311 = vst.msk [vmem:[%s310] ss:$8 sm:$0xf] %vm309, %v308
    %s312 = scalar_lea.vmem [#allocation0], 67
    %313 = vst.msk [vmem:[%s312] ss:$8 sm:$0xf0] %vm309, %v308
    %s314 = scalar_lea.vmem %s0, 16
    %v315 = vld [vmem:[%s314] sm:$0xff]
    %316 = vrot.lane.b32.xlu0 %v315, 116
    %v317 = vpop.permute.xlu0 %316
    %vm318 = vcmask 31744
    %s319 = scalar_lea.vmem [#allocation0], 131
    %320 = vst.msk [vmem:[%s319] ss:$8 sm:$0xf] %vm318, %v317
    %s321 = scalar_lea.vmem [#allocation0], 131
    %322 = vst.msk [vmem:[%s321] ss:$8 sm:$0xf0] %vm318, %v317
    %s323 = scalar_lea.vmem %s0, 24
    %v324 = vld [vmem:[%s323] sm:$0xff]
    %325 = vrot.lane.b32.xlu0 %v324, 116
    %v326 = vpop.permute.xlu0 %325
    %vm327 = vcmask 31744
    %s328 = scalar_lea.vmem [#allocation0], 195
    %329 = vst.msk [vmem:[%s328] ss:$8 sm:$0xf] %vm327, %v326
    %s330 = scalar_lea.vmem [#allocation0], 195
    %331 = vst.msk [vmem:[%s330] ss:$8 sm:$0xf0] %vm327, %v326
    %s332 = scalar_lea.vmem %s0, 32
    %v333 = vld [vmem:[%s332] sm:$0xff]
    %334 = vrot.lane.b32.xlu0 %v333, 116
    %v335 = vpop.permute.xlu0 %334
    %vm336 = vcmask 31744
    %s337 = scalar_lea.vmem [#allocation0], 259
    %338 = vst.msk [vmem:[%s337] ss:$8 sm:$0xf] %vm336, %v335
    %s339 = scalar_lea.vmem [#allocation0], 259
    %340 = vst.msk [vmem:[%s339] ss:$8 sm:$0xf0] %vm336, %v335
    %s341 = scalar_lea.vmem %s0, 40
    %v342 = vld [vmem:[%s341] sm:$0xff]
    %343 = vrot.lane.b32.xlu0 %v342, 116
    %v344 = vpop.permute.xlu0 %343
    %vm345 = vcmask 31744
    %s346 = scalar_lea.vmem [#allocation0], 323
    %347 = vst.msk [vmem:[%s346] ss:$8 sm:$0xf] %vm345, %v344
    %s348 = scalar_lea.vmem [#allocation0], 323
    %349 = vst.msk [vmem:[%s348] ss:$8 sm:$0xf0] %vm345, %v344
    %s350 = scalar_lea.vmem %s0, 48
    %v351 = vld [vmem:[%s350] sm:$0xff]
    %352 = vrot.lane.b32.xlu0 %v351, 116
    %v353 = vpop.permute.xlu0 %352
    %vm354 = vcmask 31744
    %s355 = scalar_lea.vmem [#allocation0], 387
    %356 = vst.msk [vmem:[%s355] ss:$8 sm:$0xf] %vm354, %v353
    %s357 = scalar_lea.vmem [#allocation0], 387
    %358 = vst.msk [vmem:[%s357] ss:$8 sm:$0xf0] %vm354, %v353
    %s359 = scalar_lea.vmem %s0, 56
    %v360 = vld [vmem:[%s359] sm:$0xff]
    %361 = vrot.lane.b32.xlu0 %v360, 116
    %v362 = vpop.permute.xlu0 %361
    %vm363 = vcmask 31744
    %s364 = scalar_lea.vmem [#allocation0], 451
    %365 = vst.msk [vmem:[%s364] ss:$8 sm:$0xf] %vm363, %v362
    %s366 = scalar_lea.vmem [#allocation0], 451
    %367 = vst.msk [vmem:[%s366] ss:$8 sm:$0xf0] %vm363, %v362
    %s368 = scalar_lea.vmem %s0, 64
    %v369 = vld [vmem:[%s368] sm:$0xff]
    %370 = vrot.lane.b32.xlu0 %v369, 116
    %v371 = vpop.permute.xlu0 %370
    %vm372 = vcmask 31744
    %s373 = scalar_lea.vmem [#allocation0], 515
    %374 = vst.msk [vmem:[%s373] ss:$8 sm:$0xf] %vm372, %v371
    %s375 = scalar_lea.vmem [#allocation0], 515
    %376 = vst.msk [vmem:[%s375] ss:$8 sm:$0xf0] %vm372, %v371
    %s377 = scalar_lea.vmem %s0, 72
    %v378 = vld [vmem:[%s377] sm:$0xff]
    %379 = vrot.lane.b32.xlu0 %v378, 116
    %v380 = vpop.permute.xlu0 %379
    %vm381 = vcmask 31744
    %s382 = scalar_lea.vmem [#allocation0], 579
    %383 = vst.msk [vmem:[%s382] ss:$8 sm:$0xf] %vm381, %v380
    %s384 = scalar_lea.vmem [#allocation0], 579
    %385 = vst.msk [vmem:[%s384] ss:$8 sm:$0xf0] %vm381, %v380
    %s386 = scalar_lea.vmem %s0, 80
    %v387 = vld [vmem:[%s386] sm:$0xff]
    %388 = vrot.lane.b32.xlu0 %v387, 116
    %v389 = vpop.permute.xlu0 %388
    %vm390 = vcmask 31744
    %s391 = scalar_lea.vmem [#allocation0], 643
    %392 = vst.msk [vmem:[%s391] ss:$8 sm:$0xf] %vm390, %v389
    %s393 = scalar_lea.vmem [#allocation0], 643
    %394 = vst.msk [vmem:[%s393] ss:$8 sm:$0xf0] %vm390, %v389
    %s395 = scalar_lea.vmem %s0, 88
    %v396 = vld [vmem:[%s395] sm:$0xff]
    %397 = vrot.lane.b32.xlu0 %v396, 116
    %v398 = vpop.permute.xlu0 %397
    %vm399 = vcmask 31744
    %s400 = scalar_lea.vmem [#allocation0], 707
    %401 = vst.msk [vmem:[%s400] ss:$8 sm:$0xf] %vm399, %v398
    %s402 = scalar_lea.vmem [#allocation0], 707
    %403 = vst.msk [vmem:[%s402] ss:$8 sm:$0xf0] %vm399, %v398
    %s405 = ssub.s32 16, 1
    %v406 = vld [vmem:[#allocation0] sm:%s405]
    %s408 = ssub.s32 16, 1
    %409 = vst [vmem:[%s1] sm:%s408] %v406
    %s410 = scalar_lea.vmem [#allocation0], 8
    %v411 = vld [vmem:[%s410] sm:%s405]
    %s413 = ssub.s32 16, 1
    %s414 = scalar_lea.vmem %s1, 4
    %415 = vst [vmem:[%s414] sm:%s413] %v411
    %s416 = scalar_lea.vmem [#allocation0], 16
    %v417 = vld [vmem:[%s416] sm:%s405]
    %s419 = ssub.s32 16, 1
    %s420 = scalar_lea.vmem %s1, 8
    %421 = vst [vmem:[%s420] sm:%s419] %v417
    %s422 = scalar_lea.vmem [#allocation0], 24
    %v423 = vld [vmem:[%s422] sm:%s405]
    %s425 = ssub.s32 16, 1
    %s426 = scalar_lea.vmem %s1, 12
    %427 = vst [vmem:[%s426] sm:%s425] %v423
    %s428 = scalar_lea.vmem [#allocation0], 32
    %v429 = vld [vmem:[%s428] sm:%s405]
    %s431 = ssub.s32 16, 1
    %s432 = scalar_lea.vmem %s1, 16
    %433 = vst [vmem:[%s432] sm:%s431] %v429
    %s434 = scalar_lea.vmem [#allocation0], 40
    %v435 = vld [vmem:[%s434] sm:%s405]
    %s437 = ssub.s32 16, 1
    %s438 = scalar_lea.vmem %s1, 20
    %439 = vst [vmem:[%s438] sm:%s437] %v435
    %s440 = scalar_lea.vmem [#allocation0], 48
    %v441 = vld [vmem:[%s440] sm:%s405]
    %s443 = ssub.s32 16, 1
    %s444 = scalar_lea.vmem %s1, 24
    %445 = vst [vmem:[%s444] sm:%s443] %v441
    %s446 = scalar_lea.vmem [#allocation0], 56
    %v447 = vld [vmem:[%s446] sm:%s405]
    %s449 = ssub.s32 16, 1
    %s450 = scalar_lea.vmem %s1, 28
    %451 = vst [vmem:[%s450] sm:%s449] %v447
    %s452 = scalar_lea.vmem [#allocation0], 64
    %v453 = vld [vmem:[%s452] sm:%s405]
    %s455 = ssub.s32 16, 1
    %s456 = scalar_lea.vmem %s1, 32
    %457 = vst [vmem:[%s456] sm:%s455] %v453
    %s458 = scalar_lea.vmem [#allocation0], 72
    %v459 = vld [vmem:[%s458] sm:%s405]
    %s461 = ssub.s32 16, 1
    %s462 = scalar_lea.vmem %s1, 36
    %463 = vst [vmem:[%s462] sm:%s461] %v459
    %s464 = scalar_lea.vmem [#allocation0], 80
    %v465 = vld [vmem:[%s464] sm:%s405]
    %s467 = ssub.s32 16, 1
    %s468 = scalar_lea.vmem %s1, 40
    %469 = vst [vmem:[%s468] sm:%s467] %v465
    %s470 = scalar_lea.vmem [#allocation0], 88
    %v471 = vld [vmem:[%s470] sm:%s405]
    %s473 = ssub.s32 16, 1
    %s474 = scalar_lea.vmem %s1, 44
    %475 = vst [vmem:[%s474] sm:%s473] %v471
    %s476 = scalar_lea.vmem [#allocation0], 96
    %v477 = vld [vmem:[%s476] sm:%s405]
    %s479 = ssub.s32 16, 1
    %s480 = scalar_lea.vmem %s1, 48
    %481 = vst [vmem:[%s480] sm:%s479] %v477
    %s482 = scalar_lea.vmem [#allocation0], 104
    %v483 = vld [vmem:[%s482] sm:%s405]
    %s485 = ssub.s32 16, 1
    %s486 = scalar_lea.vmem %s1, 52
    %487 = vst [vmem:[%s486] sm:%s485] %v483
    %s488 = scalar_lea.vmem [#allocation0], 112
    %v489 = vld [vmem:[%s488] sm:%s405]
    %s491 = ssub.s32 16, 1
    %s492 = scalar_lea.vmem %s1, 56
    %493 = vst [vmem:[%s492] sm:%s491] %v489
    %s494 = scalar_lea.vmem [#allocation0], 120
    %v495 = vld [vmem:[%s494] sm:%s405]
    %s497 = ssub.s32 16, 1
    %s498 = scalar_lea.vmem %s1, 60
    %499 = vst [vmem:[%s498] sm:%s497] %v495
    %s500 = scalar_lea.vmem [#allocation0], 128
    %v501 = vld [vmem:[%s500] sm:%s405]
    %s503 = ssub.s32 16, 1
    %s504 = scalar_lea.vmem %s1, 64
    %505 = vst [vmem:[%s504] sm:%s503] %v501
    %s506 = scalar_lea.vmem [#allocation0], 136
    %v507 = vld [vmem:[%s506] sm:%s405]
    %s509 = ssub.s32 16, 1
    %s510 = scalar_lea.vmem %s1, 68
    %511 = vst [vmem:[%s510] sm:%s509] %v507
    %s512 = scalar_lea.vmem [#allocation0], 144
    %v513 = vld [vmem:[%s512] sm:%s405]
    %s515 = ssub.s32 16, 1
    %s516 = scalar_lea.vmem %s1, 72
    %517 = vst [vmem:[%s516] sm:%s515] %v513
    %s518 = scalar_lea.vmem [#allocation0], 152
    %v519 = vld [vmem:[%s518] sm:%s405]
    %s521 = ssub.s32 16, 1
    %s522 = scalar_lea.vmem %s1, 76
    %523 = vst [vmem:[%s522] sm:%s521] %v519
    %s524 = scalar_lea.vmem [#allocation0], 160
    %v525 = vld [vmem:[%s524] sm:%s405]
    %s527 = ssub.s32 16, 1
    %s528 = scalar_lea.vmem %s1, 80
    %529 = vst [vmem:[%s528] sm:%s527] %v525
    %s530 = scalar_lea.vmem [#allocation0], 168
    %v531 = vld [vmem:[%s530] sm:%s405]
    %s533 = ssub.s32 16, 1
    %s534 = scalar_lea.vmem %s1, 84
    %535 = vst [vmem:[%s534] sm:%s533] %v531
    %s536 = scalar_lea.vmem [#allocation0], 176
    %v537 = vld [vmem:[%s536] sm:%s405]
    %s539 = ssub.s32 16, 1
    %s540 = scalar_lea.vmem %s1, 88
    %541 = vst [vmem:[%s540] sm:%s539] %v537
    %s542 = scalar_lea.vmem [#allocation0], 184
    %v543 = vld [vmem:[%s542] sm:%s405]
    %s545 = ssub.s32 16, 1
    %s546 = scalar_lea.vmem %s1, 92
    %547 = vst [vmem:[%s546] sm:%s545] %v543
    %s548 = scalar_lea.vmem [#allocation0], 192
    %v549 = vld [vmem:[%s548] sm:%s405]
    %s551 = ssub.s32 16, 1
    %s552 = scalar_lea.vmem %s1, 96
    %553 = vst [vmem:[%s552] sm:%s551] %v549
    %s554 = scalar_lea.vmem [#allocation0], 200
    %v555 = vld [vmem:[%s554] sm:%s405]
    %s557 = ssub.s32 16, 1
    %s558 = scalar_lea.vmem %s1, 100
    %559 = vst [vmem:[%s558] sm:%s557] %v555
    %s560 = scalar_lea.vmem [#allocation0], 208
    %v561 = vld [vmem:[%s560] sm:%s405]
    %s563 = ssub.s32 16, 1
    %s564 = scalar_lea.vmem %s1, 104
    %565 = vst [vmem:[%s564] sm:%s563] %v561
    %s566 = scalar_lea.vmem [#allocation0], 216
    %v567 = vld [vmem:[%s566] sm:%s405]
    %s569 = ssub.s32 16, 1
    %s570 = scalar_lea.vmem %s1, 108
    %571 = vst [vmem:[%s570] sm:%s569] %v567
    %s572 = scalar_lea.vmem [#allocation0], 224
    %v573 = vld [vmem:[%s572] sm:%s405]
    %s575 = ssub.s32 16, 1
    %s576 = scalar_lea.vmem %s1, 112
    %577 = vst [vmem:[%s576] sm:%s575] %v573
    %s578 = scalar_lea.vmem [#allocation0], 232
    %v579 = vld [vmem:[%s578] sm:%s405]
    %s581 = ssub.s32 16, 1
    %s582 = scalar_lea.vmem %s1, 116
    %583 = vst [vmem:[%s582] sm:%s581] %v579
    %s584 = scalar_lea.vmem [#allocation0], 240
    %v585 = vld [vmem:[%s584] sm:%s405]
    %s587 = ssub.s32 16, 1
    %s588 = scalar_lea.vmem %s1, 120
    %589 = vst [vmem:[%s588] sm:%s587] %v585
    %s590 = scalar_lea.vmem [#allocation0], 248
    %v591 = vld [vmem:[%s590] sm:%s405]
    %s593 = ssub.s32 16, 1
    %s594 = scalar_lea.vmem %s1, 124
    %595 = vst [vmem:[%s594] sm:%s593] %v591
    %s596 = scalar_lea.vmem [#allocation0], 256
    %v597 = vld [vmem:[%s596] sm:%s405]
    %s599 = ssub.s32 16, 1
    %s600 = scalar_lea.vmem %s1, 128
    %601 = vst [vmem:[%s600] sm:%s599] %v597
    %s602 = scalar_lea.vmem [#allocation0], 264
    %v603 = vld [vmem:[%s602] sm:%s405]
    %s605 = ssub.s32 16, 1
    %s606 = scalar_lea.vmem %s1, 132
    %607 = vst [vmem:[%s606] sm:%s605] %v603
    %s608 = scalar_lea.vmem [#allocation0], 272
    %v609 = vld [vmem:[%s608] sm:%s405]
    %s611 = ssub.s32 16, 1
    %s612 = scalar_lea.vmem %s1, 136
    %613 = vst [vmem:[%s612] sm:%s611] %v609
    %s614 = scalar_lea.vmem [#allocation0], 280
    %v615 = vld [vmem:[%s614] sm:%s405]
    %s617 = ssub.s32 16, 1
    %s618 = scalar_lea.vmem %s1, 140
    %619 = vst [vmem:[%s618] sm:%s617] %v615
    %s620 = scalar_lea.vmem [#allocation0], 288
    %v621 = vld [vmem:[%s620] sm:%s405]
    %s623 = ssub.s32 16, 1
    %s624 = scalar_lea.vmem %s1, 144
    %625 = vst [vmem:[%s624] sm:%s623] %v621
    %s626 = scalar_lea.vmem [#allocation0], 296
    %v627 = vld [vmem:[%s626] sm:%s405]
    %s629 = ssub.s32 16, 1
    %s630 = scalar_lea.vmem %s1, 148
    %631 = vst [vmem:[%s630] sm:%s629] %v627
    %s632 = scalar_lea.vmem [#allocation0], 304
    %v633 = vld [vmem:[%s632] sm:%s405]
    %s635 = ssub.s32 16, 1
    %s636 = scalar_lea.vmem %s1, 152
    %637 = vst [vmem:[%s636] sm:%s635] %v633
    %s638 = scalar_lea.vmem [#allocation0], 312
    %v639 = vld [vmem:[%s638] sm:%s405]
    %s641 = ssub.s32 16, 1
    %s642 = scalar_lea.vmem %s1, 156
    %643 = vst [vmem:[%s642] sm:%s641] %v639
    %s644 = scalar_lea.vmem [#allocation0], 320
    %v645 = vld [vmem:[%s644] sm:%s405]
    %s647 = ssub.s32 16, 1
    %s648 = scalar_lea.vmem %s1, 160
    %649 = vst [vmem:[%s648] sm:%s647] %v645
    %s650 = scalar_lea.vmem [#allocation0], 328
    %v651 = vld [vmem:[%s650] sm:%s405]
    %s653 = ssub.s32 16, 1
    %s654 = scalar_lea.vmem %s1, 164
    %655 = vst [vmem:[%s654] sm:%s653] %v651
    %s656 = scalar_lea.vmem [#allocation0], 336
    %v657 = vld [vmem:[%s656] sm:%s405]
    %s659 = ssub.s32 16, 1
    %s660 = scalar_lea.vmem %s1, 168
    %661 = vst [vmem:[%s660] sm:%s659] %v657
    %s662 = scalar_lea.vmem [#allocation0], 344
    %v663 = vld [vmem:[%s662] sm:%s405]
    %s665 = ssub.s32 16, 1
    %s666 = scalar_lea.vmem %s1, 172
    %667 = vst [vmem:[%s666] sm:%s665] %v663
    %s668 = scalar_lea.vmem [#allocation0], 352
    %v669 = vld [vmem:[%s668] sm:%s405]
    %s671 = ssub.s32 16, 1
    %s672 = scalar_lea.vmem %s1, 176
    %673 = vst [vmem:[%s672] sm:%s671] %v669
    %s674 = scalar_lea.vmem [#allocation0], 360
    %v675 = vld [vmem:[%s674] sm:%s405]
    %s677 = ssub.s32 16, 1
    %s678 = scalar_lea.vmem %s1, 180
    %679 = vst [vmem:[%s678] sm:%s677] %v675
    %s680 = scalar_lea.vmem [#allocation0], 368
    %v681 = vld [vmem:[%s680] sm:%s405]
    %s683 = ssub.s32 16, 1
    %s684 = scalar_lea.vmem %s1, 184
    %685 = vst [vmem:[%s684] sm:%s683] %v681
    %s686 = scalar_lea.vmem [#allocation0], 376
    %v687 = vld [vmem:[%s686] sm:%s405]
    %s689 = ssub.s32 16, 1
    %s690 = scalar_lea.vmem %s1, 188
    %691 = vst [vmem:[%s690] sm:%s689] %v687
    %s692 = scalar_lea.vmem [#allocation0], 384
    %v693 = vld [vmem:[%s692] sm:%s405]
    %s695 = ssub.s32 16, 1
    %s696 = scalar_lea.vmem %s1, 192
    %697 = vst [vmem:[%s696] sm:%s695] %v693
    %s698 = scalar_lea.vmem [#allocation0], 392
    %v699 = vld [vmem:[%s698] sm:%s405]
    %s701 = ssub.s32 16, 1
    %s702 = scalar_lea.vmem %s1, 196
    %703 = vst [vmem:[%s702] sm:%s701] %v699
    %s704 = scalar_lea.vmem [#allocation0], 400
    %v705 = vld [vmem:[%s704] sm:%s405]
    %s707 = ssub.s32 16, 1
    %s708 = scalar_lea.vmem %s1, 200
    %709 = vst [vmem:[%s708] sm:%s707] %v705
    %s710 = scalar_lea.vmem [#allocation0], 408
    %v711 = vld [vmem:[%s710] sm:%s405]
    %s713 = ssub.s32 16, 1
    %s714 = scalar_lea.vmem %s1, 204
    %715 = vst [vmem:[%s714] sm:%s713] %v711
    %s716 = scalar_lea.vmem [#allocation0], 416
    %v717 = vld [vmem:[%s716] sm:%s405]
    %s719 = ssub.s32 16, 1
    %s720 = scalar_lea.vmem %s1, 208
    %721 = vst [vmem:[%s720] sm:%s719] %v717
    %s722 = scalar_lea.vmem [#allocation0], 424
    %v723 = vld [vmem:[%s722] sm:%s405]
    %s725 = ssub.s32 16, 1
    %s726 = scalar_lea.vmem %s1, 212
    %727 = vst [vmem:[%s726] sm:%s725] %v723
    %s728 = scalar_lea.vmem [#allocation0], 432
    %v729 = vld [vmem:[%s728] sm:%s405]
    %s731 = ssub.s32 16, 1
    %s732 = scalar_lea.vmem %s1, 216
    %733 = vst [vmem:[%s732] sm:%s731] %v729
    %s734 = scalar_lea.vmem [#allocation0], 440
    %v735 = vld [vmem:[%s734] sm:%s405]
    %s737 = ssub.s32 16, 1
    %s738 = scalar_lea.vmem %s1, 220
    %739 = vst [vmem:[%s738] sm:%s737] %v735
    %s740 = scalar_lea.vmem [#allocation0], 448
    %v741 = vld [vmem:[%s740] sm:%s405]
    %s743 = ssub.s32 16, 1
    %s744 = scalar_lea.vmem %s1, 224
    %745 = vst [vmem:[%s744] sm:%s743] %v741
    %s746 = scalar_lea.vmem [#allocation0], 456
    %v747 = vld [vmem:[%s746] sm:%s405]
    %s749 = ssub.s32 16, 1
    %s750 = scalar_lea.vmem %s1, 228
    %751 = vst [vmem:[%s750] sm:%s749] %v747
    %s752 = scalar_lea.vmem [#allocation0], 464
    %v753 = vld [vmem:[%s752] sm:%s405]
    %s755 = ssub.s32 16, 1
    %s756 = scalar_lea.vmem %s1, 232
    %757 = vst [vmem:[%s756] sm:%s755] %v753
    %s758 = scalar_lea.vmem [#allocation0], 472
    %v759 = vld [vmem:[%s758] sm:%s405]
    %s761 = ssub.s32 16, 1
    %s762 = scalar_lea.vmem %s1, 236
    %763 = vst [vmem:[%s762] sm:%s761] %v759
    %s764 = scalar_lea.vmem [#allocation0], 480
    %v765 = vld [vmem:[%s764] sm:%s405]
    %s767 = ssub.s32 16, 1
    %s768 = scalar_lea.vmem %s1, 240
    %769 = vst [vmem:[%s768] sm:%s767] %v765
    %s770 = scalar_lea.vmem [#allocation0], 488
    %v771 = vld [vmem:[%s770] sm:%s405]
    %s773 = ssub.s32 16, 1
    %s774 = scalar_lea.vmem %s1, 244
    %775 = vst [vmem:[%s774] sm:%s773] %v771
    %s776 = scalar_lea.vmem [#allocation0], 496
    %v777 = vld [vmem:[%s776] sm:%s405]
    %s779 = ssub.s32 16, 1
    %s780 = scalar_lea.vmem %s1, 248
    %781 = vst [vmem:[%s780] sm:%s779] %v777
    %s782 = scalar_lea.vmem [#allocation0], 504
    %v783 = vld [vmem:[%s782] sm:%s405]
    %s785 = ssub.s32 16, 1
    %s786 = scalar_lea.vmem %s1, 252
    %787 = vst [vmem:[%s786] sm:%s785] %v783
    %s788 = scalar_lea.vmem [#allocation0], 512
    %v789 = vld [vmem:[%s788] sm:%s405]
    %s791 = ssub.s32 16, 1
    %s792 = scalar_lea.vmem %s1, 256
    %793 = vst [vmem:[%s792] sm:%s791] %v789
    %s794 = scalar_lea.vmem [#allocation0], 520
    %v795 = vld [vmem:[%s794] sm:%s405]
    %s797 = ssub.s32 16, 1
    %s798 = scalar_lea.vmem %s1, 260
    %799 = vst [vmem:[%s798] sm:%s797] %v795
    %s800 = scalar_lea.vmem [#allocation0], 528
    %v801 = vld [vmem:[%s800] sm:%s405]
    %s803 = ssub.s32 16, 1
    %s804 = scalar_lea.vmem %s1, 264
    %805 = vst [vmem:[%s804] sm:%s803] %v801
    %s806 = scalar_lea.vmem [#allocation0], 536
    %v807 = vld [vmem:[%s806] sm:%s405]
    %s809 = ssub.s32 16, 1
    %s810 = scalar_lea.vmem %s1, 268
    %811 = vst [vmem:[%s810] sm:%s809] %v807
    %s812 = scalar_lea.vmem [#allocation0], 544
    %v813 = vld [vmem:[%s812] sm:%s405]
    %s815 = ssub.s32 16, 1
    %s816 = scalar_lea.vmem %s1, 272
    %817 = vst [vmem:[%s816] sm:%s815] %v813
    %s818 = scalar_lea.vmem [#allocation0], 552
    %v819 = vld [vmem:[%s818] sm:%s405]
    %s821 = ssub.s32 16, 1
    %s822 = scalar_lea.vmem %s1, 276
    %823 = vst [vmem:[%s822] sm:%s821] %v819
    %s824 = scalar_lea.vmem [#allocation0], 560
    %v825 = vld [vmem:[%s824] sm:%s405]
    %s827 = ssub.s32 16, 1
    %s828 = scalar_lea.vmem %s1, 280
    %829 = vst [vmem:[%s828] sm:%s827] %v825
    %s830 = scalar_lea.vmem [#allocation0], 568
    %v831 = vld [vmem:[%s830] sm:%s405]
    %s833 = ssub.s32 16, 1
    %s834 = scalar_lea.vmem %s1, 284
    %835 = vst [vmem:[%s834] sm:%s833] %v831
    %s836 = scalar_lea.vmem [#allocation0], 576
    %v837 = vld [vmem:[%s836] sm:%s405]
    %s839 = ssub.s32 16, 1
    %s840 = scalar_lea.vmem %s1, 288
    %841 = vst [vmem:[%s840] sm:%s839] %v837
    %s842 = scalar_lea.vmem [#allocation0], 584
    %v843 = vld [vmem:[%s842] sm:%s405]
    %s845 = ssub.s32 16, 1
    %s846 = scalar_lea.vmem %s1, 292
    %847 = vst [vmem:[%s846] sm:%s845] %v843
    %s848 = scalar_lea.vmem [#allocation0], 592
    %v849 = vld [vmem:[%s848] sm:%s405]
    %s851 = ssub.s32 16, 1
    %s852 = scalar_lea.vmem %s1, 296
    %853 = vst [vmem:[%s852] sm:%s851] %v849
    %s854 = scalar_lea.vmem [#allocation0], 600
    %v855 = vld [vmem:[%s854] sm:%s405]
    %s857 = ssub.s32 16, 1
    %s858 = scalar_lea.vmem %s1, 300
    %859 = vst [vmem:[%s858] sm:%s857] %v855
    %s860 = scalar_lea.vmem [#allocation0], 608
    %v861 = vld [vmem:[%s860] sm:%s405]
    %s863 = ssub.s32 16, 1
    %s864 = scalar_lea.vmem %s1, 304
    %865 = vst [vmem:[%s864] sm:%s863] %v861
    %s866 = scalar_lea.vmem [#allocation0], 616
    %v867 = vld [vmem:[%s866] sm:%s405]
    %s869 = ssub.s32 16, 1
    %s870 = scalar_lea.vmem %s1, 308
    %871 = vst [vmem:[%s870] sm:%s869] %v867
    %s872 = scalar_lea.vmem [#allocation0], 624
    %v873 = vld [vmem:[%s872] sm:%s405]
    %s875 = ssub.s32 16, 1
    %s876 = scalar_lea.vmem %s1, 312
    %877 = vst [vmem:[%s876] sm:%s875] %v873
    %s878 = scalar_lea.vmem [#allocation0], 632
    %v879 = vld [vmem:[%s878] sm:%s405]
    %s881 = ssub.s32 16, 1
    %s882 = scalar_lea.vmem %s1, 316
    %883 = vst [vmem:[%s882] sm:%s881] %v879
    %s884 = scalar_lea.vmem [#allocation0], 640
    %v885 = vld [vmem:[%s884] sm:%s405]
    %s887 = ssub.s32 16, 1
    %s888 = scalar_lea.vmem %s1, 320
    %889 = vst [vmem:[%s888] sm:%s887] %v885
    %s890 = scalar_lea.vmem [#allocation0], 648
    %v891 = vld [vmem:[%s890] sm:%s405]
    %s893 = ssub.s32 16, 1
    %s894 = scalar_lea.vmem %s1, 324
    %895 = vst [vmem:[%s894] sm:%s893] %v891
    %s896 = scalar_lea.vmem [#allocation0], 656
    %v897 = vld [vmem:[%s896] sm:%s405]
    %s899 = ssub.s32 16, 1
    %s900 = scalar_lea.vmem %s1, 328
    %901 = vst [vmem:[%s900] sm:%s899] %v897
    %s902 = scalar_lea.vmem [#allocation0], 664
    %v903 = vld [vmem:[%s902] sm:%s405]
    %s905 = ssub.s32 16, 1
    %s906 = scalar_lea.vmem %s1, 332
    %907 = vst [vmem:[%s906] sm:%s905] %v903
    %s908 = scalar_lea.vmem [#allocation0], 672
    %v909 = vld [vmem:[%s908] sm:%s405]
    %s911 = ssub.s32 16, 1
    %s912 = scalar_lea.vmem %s1, 336
    %913 = vst [vmem:[%s912] sm:%s911] %v909
    %s914 = scalar_lea.vmem [#allocation0], 680
    %v915 = vld [vmem:[%s914] sm:%s405]
    %s917 = ssub.s32 16, 1
    %s918 = scalar_lea.vmem %s1, 340
    %919 = vst [vmem:[%s918] sm:%s917] %v915
    %s920 = scalar_lea.vmem [#allocation0], 688
    %v921 = vld [vmem:[%s920] sm:%s405]
    %s923 = ssub.s32 16, 1
    %s924 = scalar_lea.vmem %s1, 344
    %925 = vst [vmem:[%s924] sm:%s923] %v921
    %s926 = scalar_lea.vmem [#allocation0], 696
    %v927 = vld [vmem:[%s926] sm:%s405]
    %s929 = ssub.s32 16, 1
    %s930 = scalar_lea.vmem %s1, 348
    %931 = vst [vmem:[%s930] sm:%s929] %v927
    %s932 = scalar_lea.vmem [#allocation0], 704
    %v933 = vld [vmem:[%s932] sm:%s405]
    %s935 = ssub.s32 16, 1
    %s936 = scalar_lea.vmem %s1, 352
    %937 = vst [vmem:[%s936] sm:%s935] %v933
    %s938 = scalar_lea.vmem [#allocation0], 712
    %v939 = vld [vmem:[%s938] sm:%s405]
    %s941 = ssub.s32 16, 1
    %s942 = scalar_lea.vmem %s1, 356
    %943 = vst [vmem:[%s942] sm:%s941] %v939
    %s944 = scalar_lea.vmem [#allocation0], 720
    %v945 = vld [vmem:[%s944] sm:%s405]
    %s947 = ssub.s32 16, 1
    %s948 = scalar_lea.vmem %s1, 360
    %949 = vst [vmem:[%s948] sm:%s947] %v945
    %s950 = scalar_lea.vmem [#allocation0], 728
    %v951 = vld [vmem:[%s950] sm:%s405]
    %s953 = ssub.s32 16, 1
    %s954 = scalar_lea.vmem %s1, 364
    %955 = vst [vmem:[%s954] sm:%s953] %v951
    %s956 = scalar_lea.vmem [#allocation0], 736
    %v957 = vld [vmem:[%s956] sm:%s405]
    %s959 = ssub.s32 16, 1
    %s960 = scalar_lea.vmem %s1, 368
    %961 = vst [vmem:[%s960] sm:%s959] %v957
    %s962 = scalar_lea.vmem [#allocation0], 744
    %v963 = vld [vmem:[%s962] sm:%s405]
    %s965 = ssub.s32 16, 1
    %s966 = scalar_lea.vmem %s1, 372
    %967 = vst [vmem:[%s966] sm:%s965] %v963
    %s968 = scalar_lea.vmem [#allocation0], 752
    %v969 = vld [vmem:[%s968] sm:%s405]
    %s971 = ssub.s32 16, 1
    %s972 = scalar_lea.vmem %s1, 376
    %973 = vst [vmem:[%s972] sm:%s971] %v969
    %s974 = scalar_lea.vmem [#allocation0], 760
    %v975 = vld [vmem:[%s974] sm:%s405]
    %s977 = ssub.s32 16, 1
    %s978 = scalar_lea.vmem %s1, 380
    %979 = vst [vmem:[%s978] sm:%s977] %v975

// kernel: mae_forward.5
$region0: #{mae_forward.5}
  #allocation0 [shape = 'u32[]', space=smem, size = 0x4, offset = 0x4, fixed_abs, tag = 'smem constant byte address 0x4 - core index']
  #allocation1 [shape = 'u32[72,128]{1,0:T(1,128)}', space=vmem, size = 0x9000, scoped, tag = 'internal scratch']
  %s0 = inlined_call_operand.vmem [shape: f32[64,48], index: 0, kind: input, shape index: {}]
  %s1 = inlined_call_operand.vmem [shape: bf16[48,64], index: 1, kind: input, shape index: {}]
  %s2 = inlined_call_operand.vmem [shape: f32[1,64], index: 2, kind: input, shape index: {}]
  %s3 = inlined_call_operand.vmem [shape: f32[64,64], index: 3, kind: input, shape index: {}]
  %s4 = inlined_call_operand.vmem [shape: f32[64,64], index: 4, kind: output, shape index: {}]
  %s5 = sld [smem:[#allocation0]]
  $region26: #{mae_forward.5} parent=0
    _
  %s7 = ssub.s32 1, %s5
  %s8 = scalar_select 0, %s7, %s5
  // Predicated region
  $region2: #{mae_forward.5} parent=0 // pred_check
    _
  $region3: #{mae_forward.5} parent=0 // pred_check_branch
    %10 = sbr.rel (0) target = $region5
  $region4: #{mae_forward.5} parent=0 // pred_region
    _
  $region5: #{mae_forward.5} parent=0 // pred_fallthru
    _
  // Predicated region
  $region6: #{mae_forward.5} parent=0 // pred_check
    _
  $region7: #{mae_forward.5} parent=0 // pred_check_branch
    %12 = sbr.rel (0) target = $region9
  $region8: #{mae_forward.5} parent=0 // pred_region
    _
  $region9: #{mae_forward.5} parent=0 // pred_fallthru
    _
  // Predicated region
  $region10: #{mae_forward.5} parent=0 // pred_check
    _
  $region11: #{mae_forward.5} parent=0 // pred_check_branch
    %14 = sbr.rel (0) target = $region13
  $region12: #{mae_forward.5} parent=0 // pred_region
    _
  $region13: #{mae_forward.5} parent=0 // pred_fallthru
    _
  // Predicated region
  $region14: #{mae_forward.5} parent=0 // pred_check
    _
  $region15: #{mae_forward.5} parent=0 // pred_check_branch
    %16 = sbr.rel (0) target = $region17
  $region16: #{mae_forward.5} parent=0 // pred_region
    _
  $region17: #{mae_forward.5} parent=0 // pred_fallthru
    _
  %v18 = vld [vmem:[%s0] sm:$0xff]
  %v19 = vld [vmem:[%s0 + $0x8] sm:$0xff]
  %v20 = vld [vmem:[%s0 + $0x10] sm:$0xff]
  %v21 = vld [vmem:[%s0 + $0x18] sm:$0xff]
  %v22 = vld [vmem:[%s0 + $0x20] sm:$0xff]
  %v23 = vld [vmem:[%s0 + $0x28] sm:$0xff]
  %v24 = vld [vmem:[%s0 + $0x30] sm:$0xff]
  %v25 = vld [vmem:[%s0 + $0x38] sm:$0xff]
  %v26 = vld [vmem:[%s1] sm:$0xf]
  %v27 = vld [vmem:[%s1 + $0x4] sm:$0xf]
  %v28 = vld [vmem:[%s1 + $0x8] sm:$0xf]
  %v29 = vld [vmem:[%s1 + $0xc] sm:$0xf]
  %v30 = vld [vmem:[%s1 + $0x10] sm:$0xf]
  %v31 = vld [vmem:[%s1 + $0x14] sm:$0xf]
  %v32 = vpack.c.bf16 %v19, %v18
  %v33 = vpack.c.bf16 %v21, %v20
  %v34 = vpack.c.bf16 %v23, %v22
  %v35 = vpack.c.bf16 %v25, %v24
  %v36 = vld [vmem:[%s2] sm:$0x1]
  %v38 = vperm.slane %v36, 0
  %v46 = vunpack.c.l.b16 %v26
  %v47 = vunpack.c.l.b16 %v27
  %v48 = vunpack.c.l.b16 %v28
  %v49 = vunpack.c.l.b16 %v29
  %v50 = vunpack.c.l.b16 %v30
  %v51 = vunpack.c.l.b16 %v31
  %v52 = vpack.c.b16 %v47, %v46
  %v53 = vpack.c.b16 %v49, %v48
  %v54 = vpack.c.b16 %v51, %v50
  %vm58 = vcmask 392192
  %v60 = vsel %vm58, %v32, 0
  %v63 = vsel %vm58, %v33, 0
  %v66 = vsel %vm58, %v34, 0
  %v69 = vsel %vm58, %v35, 0
  %71 = vmatpush.bf16.msra.mxu0 0
  %72 = vmatpush.bf16.msra.mxu0 0
  %73 = vmatpush.bf16.msra.mxu0 0
  %74 = vmatpush.bf16.msra.mxu0 0
  %75 = vmatpush.bf16.msra.mxu0 0
  %76 = vmatpush.bf16.msra.mxu0 %v54
  %77 = vmatpush.bf16.msra.mxu0 %v53
  %78 = vmatpush.bf16.msra.mxu0 %v52
  %79 = vmatmul.bf16.gmra.mxu0 %v60
  %v80 = vpop.f32.mrf.mxu0
  %v81 = vadd.f32 %v38, %v80
  %v82 = vpop.f32.mrf.mxu0
  %v83 = vadd.f32 %v38, %v82
  %84 = vmatmul.bf16.gmra.mxu0 %v63
  %v85 = vpop.f32.mrf.mxu0
  %v86 = vadd.f32 %v38, %v85
  %v87 = vpop.f32.mrf.mxu0
  %v88 = vadd.f32 %v38, %v87
  %89 = vmatmul.bf16.gmra.mxu0 %v66
  %v90 = vpop.f32.mrf.mxu0
  %v91 = vadd.f32 %v38, %v90
  %v92 = vpop.f32.mrf.mxu0
  %v93 = vadd.f32 %v38, %v92
  %94 = vmatmul.bf16.gmra.mxu0 %v69
  %v95 = vpop.f32.mrf.mxu0
  %v96 = vadd.f32 %v38, %v95
  %v97 = vpop.f32.mrf.mxu0
  %v98 = vadd.f32 %v38, %v97
  %99 = vdwg.mxu0
  %v100 = vld [vmem:[%s3] sm:$0xff]
  %v101 = vld [vmem:[%s3 + $0x8] sm:$0xff]
  %v102 = vld [vmem:[%s3 + $0x10] sm:$0xff]
  %v103 = vld [vmem:[%s3 + $0x18] sm:$0xff]
  %v104 = vld [vmem:[%s3 + $0x20] sm:$0xff]
  %v105 = vld [vmem:[%s3 + $0x28] sm:$0xff]
  %v106 = vld [vmem:[%s3 + $0x30] sm:$0xff]
  %v107 = vld [vmem:[%s3 + $0x38] sm:$0xff]
  %v108 = vadd.f32 %v81, %v100
  %v109 = vadd.f32 %v83, %v101
  %v110 = vadd.f32 %v86, %v102
  %v111 = vadd.f32 %v88, %v103
  %v112 = vadd.f32 %v91, %v104
  %v113 = vadd.f32 %v93, %v105
  %v114 = vadd.f32 %v96, %v106
  %v115 = vadd.f32 %v98, %v107
  %vm116 = vcmask 523264
  %117 = vst.msk [vmem:[%s4] sm:$0xff] %vm116, %v108
  %118 = vst.msk [vmem:[%s4 + $0x8] sm:$0xff] %vm116, %v109
  %119 = vst.msk [vmem:[%s4 + $0x10] sm:$0xff] %vm116, %v110
  %120 = vst.msk [vmem:[%s4 + $0x18] sm:$0xff] %vm116, %v111
  %121 = vst.msk [vmem:[%s4 + $0x20] sm:$0xff] %vm116, %v112
  %122 = vst.msk [vmem:[%s4 + $0x28] sm:$0xff] %vm116, %v113
  %123 = vst.msk [vmem:[%s4 + $0x30] sm:$0xff] %vm116, %v114
  %124 = vst.msk [vmem:[%s4 + $0x38] sm:$0xff] %vm116, %v115
  // Predicated region
  $region18: #{mae_forward.5} parent=0 // pred_check
    _
  $region19: #{mae_forward.5} parent=0 // pred_check_branch
    %126 = sbr.rel (0) target = $region21
  $region20: #{mae_forward.5} parent=0 // pred_region
    _
  $region21: #{mae_forward.5} parent=0 // pred_fallthru
    _
  // Predicated region
  $region22: #{mae_forward.5} parent=0 // pred_check
    _
  $region23: #{mae_forward.5} parent=0 // pred_check_branch
    %128 = sbr.rel (0) target = $region25
  $region24: #{mae_forward.5} parent=0 // pred_region
    _
  $region25: #{mae_forward.5} parent=0 // pred_fallthru
    _

// kernel: mae_forward.7
$region0: #{mae_forward.7}
  #allocation0 [shape = 'u32[]', space=smem, size = 0x4, offset = 0x4, fixed_abs, tag = 'smem constant byte address 0x4 - core index']
  #allocation1 [shape = 'u32[72,128]{1,0:T(1,128)}', space=vmem, size = 0x9000, scoped, tag = 'internal scratch']
  %s0 = inlined_call_operand.vmem [shape: f32[8,64], index: 0, kind: input, shape index: {}]
  %s1 = inlined_call_operand.vmem [shape: f32[1,64], index: 1, kind: input, shape index: {}]
  %s2 = inlined_call_operand.vmem [shape: f32[1,64], index: 2, kind: input, shape index: {}]
  %s3 = inlined_call_operand.vmem [shape: bf16[64,48], index: 3, kind: input, shape index: {}]
  %s4 = inlined_call_operand.vmem [shape: f32[1,48], index: 4, kind: input, shape index: {}]
  %s5 = inlined_call_operand.vmem [shape: f32[8,48], index: 5, kind: output, shape index: {}]
  %s6 = sld [smem:[#allocation0]]
  $region30: #{mae_forward.7} parent=0
    _
  %s8 = ssub.s32 1, %s6
  %s9 = scalar_select 0, %s8, %s6
  // Predicated region
  $region2: #{mae_forward.7} parent=0 // pred_check
    _
  $region3: #{mae_forward.7} parent=0 // pred_check_branch
    %11 = sbr.rel (0) target = $region5
  $region4: #{mae_forward.7} parent=0 // pred_region
    _
  $region5: #{mae_forward.7} parent=0 // pred_fallthru
    _
  // Predicated region
  $region6: #{mae_forward.7} parent=0 // pred_check
    _
  $region7: #{mae_forward.7} parent=0 // pred_check_branch
    %13 = sbr.rel (0) target = $region9
  $region8: #{mae_forward.7} parent=0 // pred_region
    _
  $region9: #{mae_forward.7} parent=0 // pred_fallthru
    _
  // Predicated region
  $region10: #{mae_forward.7} parent=0 // pred_check
    _
  $region11: #{mae_forward.7} parent=0 // pred_check_branch
    %15 = sbr.rel (0) target = $region13
  $region12: #{mae_forward.7} parent=0 // pred_region
    _
  $region13: #{mae_forward.7} parent=0 // pred_fallthru
    _
  // Predicated region
  $region14: #{mae_forward.7} parent=0 // pred_check
    _
  $region15: #{mae_forward.7} parent=0 // pred_check_branch
    %17 = sbr.rel (0) target = $region17
  $region16: #{mae_forward.7} parent=0 // pred_region
    _
  $region17: #{mae_forward.7} parent=0 // pred_fallthru
    _
  // Predicated region
  $region18: #{mae_forward.7} parent=0 // pred_check
    _
  $region19: #{mae_forward.7} parent=0 // pred_check_branch
    %19 = sbr.rel (0) target = $region21
  $region20: #{mae_forward.7} parent=0 // pred_region
    _
  $region21: #{mae_forward.7} parent=0 // pred_fallthru
    _
  %v21 = vld [vmem:[%s0] sm:$0xff]
  %v22 = vld [vmem:[%s1] sm:$0x1]
  %v23 = vld [vmem:[%s2] sm:$0x1]
  %vm24 = vcmask 523264
  %v25 = vsel %vm24, %v21, 0.0
  %26 = vadd.xlane.f32.xlu0 %v25
  %v27 = vpop.xlane.xlu0 %26
  %v28 = vrcp.pop 64.0
  %v29 = vmul.f32 64.0, %v28
  %v30 = vsub.f32 1.0, %v29
  %v31 = vmul.f32 %v28, %v30
  %v32 = vadd.f32 %v28, %v31
  %vm33 = vweird.f32 %v28
  %v34 = vsel %vm33, %v28, %v32
  %v35 = vmul.f32 %v27, %v34
  %v36 = vsub.f32 %v21, %v35
  %v37 = vmul.f32 %v36, %v36
  %v38 = vsel %vm24, %v37, 0.0
  %39 = vadd.xlane.f32.xlu0 %v38
  %v40 = vpop.xlane.xlu0 %39
  %v41 = vmul.f32 %v40, %v34
  %v42 = vadd.f32 %v41, 1e-05
  %v43 = vrsqrt.pop %v42
  %v44 = vmul.f32 %v43, %v42
  %v45 = vmul.f32 %v44, %v43
  %v46 = vmul.f32 0.5, %v45
  %v47 = vsub.f32 1.5, %v46
  %v48 = vmul.f32 %v43, %v47
  %vm49 = vweird.f32 %v42
  %vm50 = vweird.f32 %v43
  %vm51 = vmor %vm49, %vm50
  %v52 = vsel %vm51, %v43, %v48
  %v53 = vmul.f32 %v36, %v52
  %v55 = vperm.slane %v22, 0
  %v57 = vmul.f32 %v53, %v55
  %v59 = vperm.slane %v23, 0
  %v61 = vadd.f32 %v57, %v59
  %v62 = vld [vmem:[%s3] sm:$0xf]
  %v63 = vld [vmem:[%s3 + $0x4] sm:$0xf]
  %v64 = vld [vmem:[%s3 + $0x8] sm:$0xf]
  %v65 = vld [vmem:[%s3 + $0xc] sm:$0xf]
  %v66 = vld [vmem:[%s3 + $0x10] sm:$0xf]
  %v67 = vld [vmem:[%s3 + $0x14] sm:$0xf]
  %v68 = vld [vmem:[%s3 + $0x18] sm:$0xf]
  %v69 = vld [vmem:[%s3 + $0x1c] sm:$0xf]
  %v70 = vpack.c.bf16 %v61, %v61
  %v71 = vld [vmem:[%s4] sm:$0x1]
  %v73 = vperm.slane %v71, 0
  %v83 = vunpack.c.l.b16 %v62
  %v84 = vunpack.c.l.b16 %v63
  %v85 = vunpack.c.l.b16 %v64
  %v86 = vunpack.c.l.b16 %v65
  %v87 = vunpack.c.l.b16 %v66
  %v88 = vunpack.c.l.b16 %v67
  %v89 = vunpack.c.l.b16 %v68
  %v90 = vunpack.c.l.b16 %v69
  %v91 = vpack.c.b16 %v84, %v83
  %v92 = vpack.c.b16 %v86, %v85
  %v93 = vpack.c.b16 %v88, %v87
  %v94 = vpack.c.b16 %v90, %v89
  %v100 = vsel %vm24, %v70, 0
  %102 = vmatpush.bf16.msra.mxu0 0
  %103 = vmatpush.bf16.msra.mxu0 0
  %104 = vmatpush.bf16.msra.mxu0 0
  %105 = vmatpush.bf16.msra.mxu0 0
  %106 = vmatpush.bf16.msra.mxu0 %v94
  %107 = vmatpush.bf16.msra.mxu0 %v93
  %108 = vmatpush.bf16.msra.mxu0 %v92
  %109 = vmatpush.bf16.msra.mxu0 %v91
  %110 = vmatmul.bf16.gmra.mxu0 %v100
  %v111 = vpop.f32.mrf.mxu0
  %v112 = vadd.f32 %v73, %v111
  %v113 = vpop.f32.mrf.mxu0
  %114 = vdwg.mxu0
  %vm115 = vcmask 392192
  %116 = vst.msk [vmem:[%s5] sm:$0xff] %vm115, %v112
  // Predicated region
  $region22: #{mae_forward.7} parent=0 // pred_check
    _
  $region23: #{mae_forward.7} parent=0 // pred_check_branch
    %118 = sbr.rel (0) target = $region25
  $region24: #{mae_forward.7} parent=0 // pred_region
    _
  $region25: #{mae_forward.7} parent=0 // pred_fallthru
    _
  // Predicated region
  $region26: #{mae_forward.7} parent=0 // pred_check
    _
  $region27: #{mae_forward.7} parent=0 // pred_check_branch
    %120 = sbr.rel (0) target = $region29
  $region28: #{mae_forward.7} parent=0 // pred_region
    _
  $region29: #{mae_forward.7} parent=0 // pred_fallthru
    _

// kernel: mae_forward.6
$region0: #{mae_forward.6}
  #allocation0 [shape = 'u32[]', space=smem, size = 0x4, offset = 0x4, fixed_abs, tag = 'smem constant byte address 0x4 - core index']
  #allocation1 [shape = 'u32[72,128]{1,0:T(1,128)}', space=vmem, size = 0x9000, scoped, tag = 'internal scratch']
  %s0 = inlined_call_operand.vmem [shape: f32[2,4,64], index: 0, kind: input, shape index: {}]
  %s1 = inlined_call_operand.vmem [shape: f32[2,1,64], index: 1, kind: input, shape index: {}]
  %s2 = inlined_call_operand.vmem [shape: f32[2,1,64], index: 2, kind: input, shape index: {}]
  %s3 = inlined_call_operand.vmem [shape: bf16[2,3,64,64], index: 3, kind: input, shape index: {}]
  %s4 = inlined_call_operand.vmem [shape: f32[2,3,1,64], index: 4, kind: input, shape index: {}]
  %s5 = inlined_call_operand.vmem [shape: bf16[2,64,64], index: 5, kind: input, shape index: {}]
  %s6 = inlined_call_operand.vmem [shape: f32[2,1,64], index: 6, kind: input, shape index: {}]
  %s7 = inlined_call_operand.vmem [shape: f32[2,1,64], index: 7, kind: input, shape index: {}]
  %s8 = inlined_call_operand.vmem [shape: f32[2,1,64], index: 8, kind: input, shape index: {}]
  %s9 = inlined_call_operand.vmem [shape: bf16[2,64,256], index: 9, kind: input, shape index: {}]
  %s10 = inlined_call_operand.vmem [shape: f32[2,1,256], index: 10, kind: input, shape index: {}]
  %s11 = inlined_call_operand.vmem [shape: bf16[2,256,64], index: 11, kind: input, shape index: {}]
  %s12 = inlined_call_operand.vmem [shape: f32[2,1,64], index: 12, kind: input, shape index: {}]
  %s13 = inlined_call_operand.vmem [shape: f32[2,4,64], index: 13, kind: output, shape index: {}]
  %s14 = sld [smem:[#allocation0]]
  $region89: #{mae_forward.6} parent=0
    _
  %s16 = ssub.s32 1, %s14
  %s17 = scalar_select 0, %s16, %s14
  loop: start=0, step=1, limit=6
  $region2: #{mae_forward.6} parent=0 // loop_pre_header
    _
  $region3: #{mae_forward.6} parent=0 // loop_header
    %s19 = sphi 0, %s23
    %p20 = scmp.ge.s32.totalorder %s19, 6
    %s26 = sphi 0, %s38
    %s27 = sphi 0, %s34
    %s28 = sphi 0, %s26
    %s29 = sphi 0, %s27
    %s30 = sphi 0, %s28
    %s31 = sphi 0, %s29
    %s41 = sphi 0, %s43
    %s44 = sphi 0, %s41
    %s45 = sphi 0, %s44
    %s61 = sphi 0, %s45
    %s67 = sphi 0, %s69
    %s70 = sphi 0, %s67
    %s71 = sphi 0, %s70
    %s87 = sphi 0, %s71
    %s93 = sphi 0, %s95
    %s96 = sphi 0, %s93
    %s97 = sphi 0, %s96
    %s113 = sphi 0, %s97
    %s119 = sphi 0, %s121
    %s122 = sphi 0, %s119
    %s123 = sphi 0, %s122
    %s139 = sphi 0, %s123
    %s145 = sphi 0, %s147
    %s148 = sphi 0, %s145
    %s149 = sphi 0, %s148
    %s165 = sphi 0, %s149
    %s171 = sphi 0, %s173
    %s174 = sphi 0, %s171
    %s175 = sphi 0, %s174
    %s191 = sphi 0, %s175
    %s197 = sphi 0, %s199
    %s200 = sphi 0, %s197
    %s201 = sphi 0, %s200
    %s217 = sphi 0, %s201
    %s223 = sphi 0, %s225
    %s226 = sphi 0, %s223
    %s227 = sphi 0, %s226
    %s243 = sphi 0, %s227
    %s249 = sphi 0, %s251
    %s252 = sphi 0, %s249
    %s253 = sphi 0, %s252
    %s269 = sphi 0, %s253
    %s275 = sphi 0, %s277
    %s278 = sphi 0, %s275
    %s279 = sphi 0, %s278
    %s295 = sphi 0, %s279
    %s301 = sphi 0, %s303
    %s304 = sphi 0, %s301
    %s305 = sphi 0, %s304
    %s321 = sphi 0, %s305
    %s327 = sphi 0, %s329
    %s330 = sphi 0, %s327
    %s331 = sphi 0, %s330
    %s347 = sphi 0, %s331
    %s353 = sphi 0, %s355
    %s356 = sphi 0, %s353
    %s357 = sphi 0, %s356
    %s373 = sphi 0, %s357
    %s379 = sphi 0, %s381
    %s382 = sphi 0, %s379
    %s383 = sphi 0, %s382
    %s399 = sphi 0, %s383
  $region4: #{mae_forward.6} parent=0 // loop_header_branch
    %22 = sbr.rel (%p20) target = $region8
  $region5: #{mae_forward.6} parent=0 // loop_body
    %s24 = ssub.s32 %s19, 1
    %s25 = ssub.s32 %s19, 2
    %s32 = sadd.s32 1, %s27
    %p33 = scmp.ge.s32.totalorder %s32, 2
    %s34 = scalar_select %p33, 0, %s32
    %s35 = sadd.s32 1, %s26
    %s36 = scalar_select %p33, %s35, %s26
    %p37 = scmp.ge.s32.totalorder %s36, 2
    %s38 = scalar_select %p37, 0, %s36
    %s39 = ssub.s32 %s26, %s38
    %p40 = scmp.eq.s32.totalorder %s39, 0
    %s42 = sadd.s32 %s41, 1
    %s43 = scalar_select %p40, %s41, %s42
    %p46 = pneg %p40
    %p47 = scmp.eq.s32.totalorder %s19, 3
    %p48 = por %p46, %p47
    %p49 = scmp.ne.s32.totalorder %s41, %s44
    %p50 = scmp.eq.s32.totalorder %s19, 0
    %p51 = por %p49, %p50
    %p52 = scmp.ne.s32.totalorder %s41, %s44
    %p53 = scmp.eq.s32.totalorder %s24, 3
    %p54 = por %p52, %p53
    %p55 = scmp.ne.s32.totalorder %s44, %s45
    %p56 = scmp.eq.s32.totalorder %s24, 0
    %p57 = por %p55, %p56
    %p58 = scmp.ne.s32.totalorder %s44, %s45
    %p59 = scmp.eq.s32.totalorder %s25, 3
    %p60 = por %p58, %p59
    %p62 = scmp.ne.s32.totalorder %s45, %s61
    %p63 = scmp.eq.s32.totalorder %s25, 0
    %p64 = por %p62, %p63
    %s65 = ssub.s32 %s27, %s34
    %p66 = scmp.eq.s32.totalorder %s65, 0
    %s68 = sadd.s32 %s67, 1
    %s69 = scalar_select %p66, %s67, %s68
    %p72 = pneg %p66
    %p73 = scmp.eq.s32.totalorder %s19, 3
    %p74 = por %p72, %p73
    %p75 = scmp.ne.s32.totalorder %s67, %s70
    %p76 = scmp.eq.s32.totalorder %s19, 0
    %p77 = por %p75, %p76
    %p78 = scmp.ne.s32.totalorder %s67, %s70
    %p79 = scmp.eq.s32.totalorder %s24, 3
    %p80 = por %p78, %p79
    %p81 = scmp.ne.s32.totalorder %s70, %s71
    %p82 = scmp.eq.s32.totalorder %s24, 0
    %p83 = por %p81, %p82
    %p84 = scmp.ne.s32.totalorder %s70, %s71
    %p85 = scmp.eq.s32.totalorder %s25, 3
    %p86 = por %p84, %p85
    %p88 = scmp.ne.s32.totalorder %s71, %s87
    %p89 = scmp.eq.s32.totalorder %s25, 0
    %p90 = por %p88, %p89
    %s91 = ssub.s32 %s27, %s34
    %p92 = scmp.eq.s32.totalorder %s91, 0
    %s94 = sadd.s32 %s93, 1
    %s95 = scalar_select %p92, %s93, %s94
    %p98 = pneg %p92
    %p99 = scmp.eq.s32.totalorder %s19, 3
    %p100 = por %p98, %p99
    %p101 = scmp.ne.s32.totalorder %s93, %s96
    %p102 = scmp.eq.s32.totalorder %s19, 0
    %p103 = por %p101, %p102
    %p104 = scmp.ne.s32.totalorder %s93, %s96
    %p105 = scmp.eq.s32.totalorder %s24, 3
    %p106 = por %p104, %p105
    %p107 = scmp.ne.s32.totalorder %s96, %s97
    %p108 = scmp.eq.s32.totalorder %s24, 0
    %p109 = por %p107, %p108
    %p110 = scmp.ne.s32.totalorder %s96, %s97
    %p111 = scmp.eq.s32.totalorder %s25, 3
    %p112 = por %p110, %p111
    %p114 = scmp.ne.s32.totalorder %s97, %s113
    %p115 = scmp.eq.s32.totalorder %s25, 0
    %p116 = por %p114, %p115
    %s117 = ssub.s32 %s27, %s34
    %p118 = scmp.eq.s32.totalorder %s117, 0
    %s120 = sadd.s32 %s119, 1
    %s121 = scalar_select %p118, %s119, %s120
    %p124 = pneg %p118
    %p125 = scmp.eq.s32.totalorder %s19, 3
    %p126 = por %p124, %p125
    %p127 = scmp.ne.s32.totalorder %s119, %s122
    %p128 = scmp.eq.s32.totalorder %s19, 0
    %p129 = por %p127, %p128
    %p130 = scmp.ne.s32.totalorder %s119, %s122
    %p131 = scmp.eq.s32.totalorder %s24, 3
    %p132 = por %p130, %p131
    %p133 = scmp.ne.s32.totalorder %s122, %s123
    %p134 = scmp.eq.s32.totalorder %s24, 0
    %p135 = por %p133, %p134
    %p136 = scmp.ne.s32.totalorder %s122, %s123
    %p137 = scmp.eq.s32.totalorder %s25, 3
    %p138 = por %p136, %p137
    %p140 = scmp.ne.s32.totalorder %s123, %s139
    %p141 = scmp.eq.s32.totalorder %s25, 0
    %p142 = por %p140, %p141
    %s143 = ssub.s32 %s27, %s34
    %p144 = scmp.eq.s32.totalorder %s143, 0
    %s146 = sadd.s32 %s145, 1
    %s147 = scalar_select %p144, %s145, %s146
    %p150 = pneg %p144
    %p151 = scmp.eq.s32.totalorder %s19, 3
    %p152 = por %p150, %p151
    %p153 = scmp.ne.s32.totalorder %s145, %s148
    %p154 = scmp.eq.s32.totalorder %s19, 0
    %p155 = por %p153, %p154
    %p156 = scmp.ne.s32.totalorder %s145, %s148
    %p157 = scmp.eq.s32.totalorder %s24, 3
    %p158 = por %p156, %p157
    %p159 = scmp.ne.s32.totalorder %s148, %s149
    %p160 = scmp.eq.s32.totalorder %s24, 0
    %p161 = por %p159, %p160
    %p162 = scmp.ne.s32.totalorder %s148, %s149
    %p163 = scmp.eq.s32.totalorder %s25, 3
    %p164 = por %p162, %p163
    %p166 = scmp.ne.s32.totalorder %s149, %s165
    %p167 = scmp.eq.s32.totalorder %s25, 0
    %p168 = por %p166, %p167
    %s169 = ssub.s32 %s27, %s34
    %p170 = scmp.eq.s32.totalorder %s169, 0
    %s172 = sadd.s32 %s171, 1
    %s173 = scalar_select %p170, %s171, %s172
    %p176 = pneg %p170
    %p177 = scmp.eq.s32.totalorder %s19, 3
    %p178 = por %p176, %p177
    %p179 = scmp.ne.s32.totalorder %s171, %s174
    %p180 = scmp.eq.s32.totalorder %s19, 0
    %p181 = por %p179, %p180
    %p182 = scmp.ne.s32.totalorder %s171, %s174
    %p183 = scmp.eq.s32.totalorder %s24, 3
    %p184 = por %p182, %p183
    %p185 = scmp.ne.s32.totalorder %s174, %s175
    %p186 = scmp.eq.s32.totalorder %s24, 0
    %p187 = por %p185, %p186
    %p188 = scmp.ne.s32.totalorder %s174, %s175
    %p189 = scmp.eq.s32.totalorder %s25, 3
    %p190 = por %p188, %p189
    %p192 = scmp.ne.s32.totalorder %s175, %s191
    %p193 = scmp.eq.s32.totalorder %s25, 0
    %p194 = por %p192, %p193
    %s195 = ssub.s32 %s27, %s34
    %p196 = scmp.eq.s32.totalorder %s195, 0
    %s198 = sadd.s32 %s197, 1
    %s199 = scalar_select %p196, %s197, %s198
    %p202 = pneg %p196
    %p203 = scmp.eq.s32.totalorder %s19, 3
    %p204 = por %p202, %p203
    %p205 = scmp.ne.s32.totalorder %s197, %s200
    %p206 = scmp.eq.s32.totalorder %s19, 0
    %p207 = por %p205, %p206
    %p208 = scmp.ne.s32.totalorder %s197, %s200
    %p209 = scmp.eq.s32.totalorder %s24, 3
    %p210 = por %p208, %p209
    %p211 = scmp.ne.s32.totalorder %s200, %s201
    %p212 = scmp.eq.s32.totalorder %s24, 0
    %p213 = por %p211, %p212
    %p214 = scmp.ne.s32.totalorder %s200, %s201
    %p215 = scmp.eq.s32.totalorder %s25, 3
    %p216 = por %p214, %p215
    %p218 = scmp.ne.s32.totalorder %s201, %s217
    %p219 = scmp.eq.s32.totalorder %s25, 0
    %p220 = por %p218, %p219
    %s221 = ssub.s32 %s27, %s34
    %p222 = scmp.eq.s32.totalorder %s221, 0
    %s224 = sadd.s32 %s223, 1
    %s225 = scalar_select %p222, %s223, %s224
    %p228 = pneg %p222
    %p229 = scmp.eq.s32.totalorder %s19, 3
    %p230 = por %p228, %p229
    %p231 = scmp.ne.s32.totalorder %s223, %s226
    %p232 = scmp.eq.s32.totalorder %s19, 0
    %p233 = por %p231, %p232
    %p234 = scmp.ne.s32.totalorder %s223, %s226
    %p235 = scmp.eq.s32.totalorder %s24, 3
    %p236 = por %p234, %p235
    %p237 = scmp.ne.s32.totalorder %s226, %s227
    %p238 = scmp.eq.s32.totalorder %s24, 0
    %p239 = por %p237, %p238
    %p240 = scmp.ne.s32.totalorder %s226, %s227
    %p241 = scmp.eq.s32.totalorder %s25, 3
    %p242 = por %p240, %p241
    %p244 = scmp.ne.s32.totalorder %s227, %s243
    %p245 = scmp.eq.s32.totalorder %s25, 0
    %p246 = por %p244, %p245
    %s247 = ssub.s32 %s27, %s34
    %p248 = scmp.eq.s32.totalorder %s247, 0
    %s250 = sadd.s32 %s249, 1
    %s251 = scalar_select %p248, %s249, %s250
    %p254 = pneg %p248
    %p255 = scmp.eq.s32.totalorder %s19, 3
    %p256 = por %p254, %p255
    %p257 = scmp.ne.s32.totalorder %s249, %s252
    %p258 = scmp.eq.s32.totalorder %s19, 0
    %p259 = por %p257, %p258
    %p260 = scmp.ne.s32.totalorder %s249, %s252
    %p261 = scmp.eq.s32.totalorder %s24, 3
    %p262 = por %p260, %p261
    %p263 = scmp.ne.s32.totalorder %s252, %s253
    %p264 = scmp.eq.s32.totalorder %s24, 0
    %p265 = por %p263, %p264
    %p266 = scmp.ne.s32.totalorder %s252, %s253
    %p267 = scmp.eq.s32.totalorder %s25, 3
    %p268 = por %p266, %p267
    %p270 = scmp.ne.s32.totalorder %s253, %s269
    %p271 = scmp.eq.s32.totalorder %s25, 0
    %p272 = por %p270, %p271
    %s273 = ssub.s32 %s27, %s34
    %p274 = scmp.eq.s32.totalorder %s273, 0
    %s276 = sadd.s32 %s275, 1
    %s277 = scalar_select %p274, %s275, %s276
    %p280 = pneg %p274
    %p281 = scmp.eq.s32.totalorder %s19, 3
    %p282 = por %p280, %p281
    %p283 = scmp.ne.s32.totalorder %s275, %s278
    %p284 = scmp.eq.s32.totalorder %s19, 0
    %p285 = por %p283, %p284
    %p286 = scmp.ne.s32.totalorder %s275, %s278
    %p287 = scmp.eq.s32.totalorder %s24, 3
    %p288 = por %p286, %p287
    %p289 = scmp.ne.s32.totalorder %s278, %s279
    %p290 = scmp.eq.s32.totalorder %s24, 0
    %p291 = por %p289, %p290
    %p292 = scmp.ne.s32.totalorder %s278, %s279
    %p293 = scmp.eq.s32.totalorder %s25, 3
    %p294 = por %p292, %p293
    %p296 = scmp.ne.s32.totalorder %s279, %s295
    %p297 = scmp.eq.s32.totalorder %s25, 0
    %p298 = por %p296, %p297
    %s299 = ssub.s32 %s27, %s34
    %p300 = scmp.eq.s32.totalorder %s299, 0
    %s302 = sadd.s32 %s301, 1
    %s303 = scalar_select %p300, %s301, %s302
    %p306 = pneg %p300
    %p307 = scmp.eq.s32.totalorder %s19, 3
    %p308 = por %p306, %p307
    %p309 = scmp.ne.s32.totalorder %s301, %s304
    %p310 = scmp.eq.s32.totalorder %s19, 0
    %p311 = por %p309, %p310
    %p312 = scmp.ne.s32.totalorder %s301, %s304
    %p313 = scmp.eq.s32.totalorder %s24, 3
    %p314 = por %p312, %p313
    %p315 = scmp.ne.s32.totalorder %s304, %s305
    %p316 = scmp.eq.s32.totalorder %s24, 0
    %p317 = por %p315, %p316
    %p318 = scmp.ne.s32.totalorder %s304, %s305
    %p319 = scmp.eq.s32.totalorder %s25, 3
    %p320 = por %p318, %p319
    %p322 = scmp.ne.s32.totalorder %s305, %s321
    %p323 = scmp.eq.s32.totalorder %s25, 0
    %p324 = por %p322, %p323
    %s325 = ssub.s32 %s27, %s34
    %p326 = scmp.eq.s32.totalorder %s325, 0
    %s328 = sadd.s32 %s327, 1
    %s329 = scalar_select %p326, %s327, %s328
    %p332 = pneg %p326
    %p333 = scmp.eq.s32.totalorder %s19, 3
    %p334 = por %p332, %p333
    %p335 = scmp.ne.s32.totalorder %s327, %s330
    %p336 = scmp.eq.s32.totalorder %s19, 0
    %p337 = por %p335, %p336
    %p338 = scmp.ne.s32.totalorder %s327, %s330
    %p339 = scmp.eq.s32.totalorder %s24, 3
    %p340 = por %p338, %p339
    %p341 = scmp.ne.s32.totalorder %s330, %s331
    %p342 = scmp.eq.s32.totalorder %s24, 0
    %p343 = por %p341, %p342
    %p344 = scmp.ne.s32.totalorder %s330, %s331
    %p345 = scmp.eq.s32.totalorder %s25, 3
    %p346 = por %p344, %p345
    %p348 = scmp.ne.s32.totalorder %s331, %s347
    %p349 = scmp.eq.s32.totalorder %s25, 0
    %p350 = por %p348, %p349
    %s351 = ssub.s32 %s27, %s34
    %p352 = scmp.eq.s32.totalorder %s351, 0
    %s354 = sadd.s32 %s353, 1
    %s355 = scalar_select %p352, %s353, %s354
    %p358 = pneg %p352
    %p359 = scmp.eq.s32.totalorder %s19, 3
    %p360 = por %p358, %p359
    %p361 = scmp.ne.s32.totalorder %s353, %s356
    %p362 = scmp.eq.s32.totalorder %s19, 0
    %p363 = por %p361, %p362
    %p364 = scmp.ne.s32.totalorder %s353, %s356
    %p365 = scmp.eq.s32.totalorder %s24, 3
    %p366 = por %p364, %p365
    %p367 = scmp.ne.s32.totalorder %s356, %s357
    %p368 = scmp.eq.s32.totalorder %s24, 0
    %p369 = por %p367, %p368
    %p370 = scmp.ne.s32.totalorder %s356, %s357
    %p371 = scmp.eq.s32.totalorder %s25, 3
    %p372 = por %p370, %p371
    %p374 = scmp.ne.s32.totalorder %s357, %s373
    %p375 = scmp.eq.s32.totalorder %s25, 0
    %p376 = por %p374, %p375
    %s377 = ssub.s32 %s26, %s38
    %p378 = scmp.eq.s32.totalorder %s377, 0
    %s380 = sadd.s32 %s379, 1
    %s381 = scalar_select %p378, %s379, %s380
    %p384 = pneg %p378
    %p385 = scmp.eq.s32.totalorder %s19, 3
    %p386 = por %p384, %p385
    %p387 = scmp.ne.s32.totalorder %s379, %s382
    %p388 = scmp.eq.s32.totalorder %s19, 0
    %p389 = por %p387, %p388
    %p390 = scmp.ne.s32.totalorder %s379, %s382
    %p391 = scmp.eq.s32.totalorder %s24, 3
    %p392 = por %p390, %p391
    %p393 = scmp.ne.s32.totalorder %s382, %s383
    %p394 = scmp.eq.s32.totalorder %s24, 0
    %p395 = por %p393, %p394
    %p396 = scmp.ne.s32.totalorder %s382, %s383
    %p397 = scmp.eq.s32.totalorder %s25, 3
    %p398 = por %p396, %p397
    %p400 = scmp.ne.s32.totalorder %s383, %s399
    %p401 = scmp.eq.s32.totalorder %s25, 0
    %p402 = por %p400, %p401
    %p403 = scmp.le.s32.totalorder 1, %s19
    %p404 = scmp.lt.s32.totalorder %s19, 5
    %p405 = pnand %p403, %p404
    %p406 = pneg %p405
    // Predicated region
    $region9: #{mae_forward.6} parent=5 // pred_check
      _
    $region10: #{mae_forward.6} parent=5 // pred_check_branch
      %408 = sbr.rel (%p405) target = $region12
    $region11: #{mae_forward.6} parent=5 // pred_region
      %s409 = ssub.s32 %s19, 1
    $region12: #{mae_forward.6} parent=5 // pred_fallthru
      _
    %p410 = scmp.lt.s32.totalorder %s19, 4
    // Predicated region
    $region13: #{mae_forward.6} parent=5 // pred_check
      %p411 = pneg %p410
    $region14: #{mae_forward.6} parent=5 // pred_check_branch
      %413 = sbr.rel (%p411) target = $region16
    $region15: #{mae_forward.6} parent=5 // pred_region
      // Predicated region
      $region17: #{mae_forward.6} parent=15 // pred_check
        %p414 = pneg %p51
      $region18: #{mae_forward.6} parent=15 // pred_check_branch
        %416 = sbr.rel (%p414) target = $region20
      $region19: #{mae_forward.6} parent=15 // pred_region
        %p417 = scmp.lt.s32.totalorder %s26, 1
        %s418 = scalar_select %p417, %s26, 1
        %s419 = smul.addr %s418, 4
        %s420 = scalar_lea.vmem %s0, %s419
      $region20: #{mae_forward.6} parent=15 // pred_fallthru
        _
      // Predicated region
      $region21: #{mae_forward.6} parent=15 // pred_check
        %p421 = pneg %p77
      $region22: #{mae_forward.6} parent=15 // pred_check_branch
        %423 = sbr.rel (%p421) target = $region24
      $region23: #{mae_forward.6} parent=15 // pred_region
        %p424 = scmp.lt.s32.totalorder %s27, 1
        %s425 = scalar_select %p424, %s27, 1
        %s426 = scalar_lea.vmem %s1, %s425
      $region24: #{mae_forward.6} parent=15 // pred_fallthru
        _
      // Predicated region
      $region25: #{mae_forward.6} parent=15 // pred_check
        %p427 = pneg %p103
      $region26: #{mae_forward.6} parent=15 // pred_check_branch
        %429 = sbr.rel (%p427) target = $region28
      $region27: #{mae_forward.6} parent=15 // pred_region
        %p430 = scmp.lt.s32.totalorder %s27, 1
        %s431 = scalar_select %p430, %s27, 1
        %s432 = scalar_lea.vmem %s2, %s431
      $region28: #{mae_forward.6} parent=15 // pred_fallthru
        _
      // Predicated region
      $region29: #{mae_forward.6} parent=15 // pred_check
        %p433 = pneg %p129
      $region30: #{mae_forward.6} parent=15 // pred_check_branch
        %435 = sbr.rel (%p433) target = $region32
      $region31: #{mae_forward.6} parent=15 // pred_region
        %p436 = scmp.lt.s32.totalorder %s27, 1
        %s437 = scalar_select %p436, %s27, 1
        %s438 = smul.addr %s437, 24
        %s439 = smul.addr %s438, 4
        %s440 = scalar_lea.vmem %s3, %s439
      $region32: #{mae_forward.6} parent=15 // pred_fallthru
        _
      // Predicated region
      $region33: #{mae_forward.6} parent=15 // pred_check
        %p441 = pneg %p155
      $region34: #{mae_forward.6} parent=15 // pred_check_branch
        %443 = sbr.rel (%p441) target = $region36
      $region35: #{mae_forward.6} parent=15 // pred_region
        %p444 = scmp.lt.s32.totalorder %s27, 1
        %s445 = scalar_select %p444, %s27, 1
        %s446 = smul.addr %s445, 3
        %s447 = scalar_lea.vmem %s4, %s446
      $region36: #{mae_forward.6} parent=15 // pred_fallthru
        _
      // Predicated region
      $region37: #{mae_forward.6} parent=15 // pred_check
        %p448 = pneg %p181
      $region38: #{mae_forward.6} parent=15 // pred_check_branch
        %450 = sbr.rel (%p448) target = $region40
      $region39: #{mae_forward.6} parent=15 // pred_region
        %p451 = scmp.lt.s32.totalorder %s27, 1
        %s452 = scalar_select %p451, %s27, 1
        %s453 = smul.addr %s452, 8
        %s454 = smul.addr %s453, 4
        %s455 = scalar_lea.vmem %s5, %s454
      $region40: #{mae_forward.6} parent=15 // pred_fallthru
        _
      // Predicated region
      $region41: #{mae_forward.6} parent=15 // pred_check
        %p456 = pneg %p207
      $region42: #{mae_forward.6} parent=15 // pred_check_branch
        %458 = sbr.rel (%p456) target = $region44
      $region43: #{mae_forward.6} parent=15 // pred_region
        %p459 = scmp.lt.s32.totalorder %s27, 1
        %s460 = scalar_select %p459, %s27, 1
        %s461 = scalar_lea.vmem %s6, %s460
      $region44: #{mae_forward.6} parent=15 // pred_fallthru
        _
      // Predicated region
      $region45: #{mae_forward.6} parent=15 // pred_check
        %p462 = pneg %p233
      $region46: #{mae_forward.6} parent=15 // pred_check_branch
        %464 = sbr.rel (%p462) target = $region48
      $region47: #{mae_forward.6} parent=15 // pred_region
        %p465 = scmp.lt.s32.totalorder %s27, 1
        %s466 = scalar_select %p465, %s27, 1
        %s467 = scalar_lea.vmem %s7, %s466
      $region48: #{mae_forward.6} parent=15 // pred_fallthru
        _
      // Predicated region
      $region49: #{mae_forward.6} parent=15 // pred_check
        %p468 = pneg %p259
      $region50: #{mae_forward.6} parent=15 // pred_check_branch
        %470 = sbr.rel (%p468) target = $region52
      $region51: #{mae_forward.6} parent=15 // pred_region
        %p471 = scmp.lt.s32.totalorder %s27, 1
        %s472 = scalar_select %p471, %s27, 1
        %s473 = scalar_lea.vmem %s8, %s472
      $region52: #{mae_forward.6} parent=15 // pred_fallthru
        _
      // Predicated region
      $region53: #{mae_forward.6} parent=15 // pred_check
        %p474 = pneg %p285
      $region54: #{mae_forward.6} parent=15 // pred_check_branch
        %476 = sbr.rel (%p474) target = $region56
      $region55: #{mae_forward.6} parent=15 // pred_region
        %p477 = scmp.lt.s32.totalorder %s27, 1
        %s478 = scalar_select %p477, %s27, 1
        %s479 = smul.addr %s478, 16
        %s480 = smul.addr %s479, 4
        %s481 = scalar_lea.vmem %s9, %s480
      $region56: #{mae_forward.6} parent=15 // pred_fallthru
        _
      // Predicated region
      $region57: #{mae_forward.6} parent=15 // pred_check
        %p482 = pneg %p311
      $region58: #{mae_forward.6} parent=15 // pred_check_branch
        %484 = sbr.rel (%p482) target = $region60
      $region59: #{mae_forward.6} parent=15 // pred_region
        %p485 = scmp.lt.s32.totalorder %s27, 1
        %s486 = scalar_select %p485, %s27, 1
        %s487 = smul.addr %s486, 2
        %s488 = scalar_lea.vmem %s10, %s487
      $region60: #{mae_forward.6} parent=15 // pred_fallthru
        _
      // Predicated region
      $region61: #{mae_forward.6} parent=15 // pred_check
        %p489 = pneg %p337
      $region62: #{mae_forward.6} parent=15 // pred_check_branch
        %491 = sbr.rel (%p489) target = $region64
      $region63: #{mae_forward.6} parent=15 // pred_region
        %p492 = scmp.lt.s32.totalorder %s27, 1
        %s493 = scalar_select %p492, %s27, 1
        %s494 = smul.addr %s493, 32
        %s495 = smul.addr %s494, 4
        %s496 = scalar_lea.vmem %s11, %s495
      $region64: #{mae_forward.6} parent=15 // pred_fallthru
        _
      // Predicated region
      $region65: #{mae_forward.6} parent=15 // pred_check
        %p497 = pneg %p363
      $region66: #{mae_forward.6} parent=15 // pred_check_branch
        %499 = sbr.rel (%p497) target = $region68
      $region67: #{mae_forward.6} parent=15 // pred_region
        %p500 = scmp.lt.s32.totalorder %s27, 1
        %s501 = scalar_select %p500, %s27, 1
        %s502 = scalar_lea.vmem %s12, %s501
      $region68: #{mae_forward.6} parent=15 // pred_fallthru
        _
    $region16: #{mae_forward.6} parent=5 // pred_fallthru
      _
    %p503 = scmp.le.s32.totalorder 1, %s19
    %p504 = scmp.lt.s32.totalorder %s19, 5
    %p505 = pnand %p503, %p504
    %p506 = pneg %p505
    // Predicated region
    $region69: #{mae_forward.6} parent=5 // pred_check
      _
    $region70: #{mae_forward.6} parent=5 // pred_check_branch
      %508 = sbr.rel (%p505) target = $region72
    $region71: #{mae_forward.6} parent=5 // pred_region
      %s509 = ssub.s32 %s19, 1
      %p510 = scmp.lt.s32.totalorder %s28, 1
      %s511 = scalar_select %p510, %s28, 1
      %s512 = smul.addr %s511, 4
      %s513 = scalar_lea.vmem %s0, %s512
      %p514 = pneg %p57
      %p515 = pneg %p54
      %p516 = scmp.lt.s32.totalorder %s29, 1
      %s517 = scalar_select %p516, %s29, 1
      %s518 = scalar_lea.vmem %s1, %s517
      %p519 = pneg %p83
      %p520 = pneg %p80
      %p521 = scmp.lt.s32.totalorder %s29, 1
      %s522 = scalar_select %p521, %s29, 1
      %s523 = scalar_lea.vmem %s2, %s522
      %p524 = pneg %p109
      %p525 = pneg %p106
      %p526 = scmp.lt.s32.totalorder %s29, 1
      %s527 = scalar_select %p526, %s29, 1
      %s528 = smul.addr %s527, 24
      %s529 = smul.addr %s528, 4
      %s530 = scalar_lea.vmem %s3, %s529
      %p531 = pneg %p135
      %p532 = pneg %p132
      %p533 = scmp.lt.s32.totalorder %s29, 1
      %s534 = scalar_select %p533, %s29, 1
      %s535 = smul.addr %s534, 3
      %s536 = scalar_lea.vmem %s4, %s535
      %p537 = pneg %p161
      %p538 = pneg %p158
      %p539 = scmp.lt.s32.totalorder %s29, 1
      %s540 = scalar_select %p539, %s29, 1
      %s541 = smul.addr %s540, 8
      %s542 = smul.addr %s541, 4
      %s543 = scalar_lea.vmem %s5, %s542
      %p544 = pneg %p187
      %p545 = pneg %p184
      %p546 = scmp.lt.s32.totalorder %s29, 1
      %s547 = scalar_select %p546, %s29, 1
      %s548 = scalar_lea.vmem %s6, %s547
      %p549 = pneg %p213
      %p550 = pneg %p210
      %p551 = scmp.lt.s32.totalorder %s29, 1
      %s552 = scalar_select %p551, %s29, 1
      %s553 = scalar_lea.vmem %s7, %s552
      %p554 = pneg %p239
      %p555 = pneg %p236
      %p556 = scmp.lt.s32.totalorder %s29, 1
      %s557 = scalar_select %p556, %s29, 1
      %s558 = scalar_lea.vmem %s8, %s557
      %p559 = pneg %p265
      %p560 = pneg %p262
      %p561 = scmp.lt.s32.totalorder %s29, 1
      %s562 = scalar_select %p561, %s29, 1
      %s563 = smul.addr %s562, 16
      %s564 = smul.addr %s563, 4
      %s565 = scalar_lea.vmem %s9, %s564
      %p566 = pneg %p291
      %p567 = pneg %p288
      %p568 = scmp.lt.s32.totalorder %s29, 1
      %s569 = scalar_select %p568, %s29, 1
      %s570 = smul.addr %s569, 2
      %s571 = scalar_lea.vmem %s10, %s570
      %p572 = pneg %p317
      %p573 = pneg %p314
      %p574 = scmp.lt.s32.totalorder %s29, 1
      %s575 = scalar_select %p574, %s29, 1
      %s576 = smul.addr %s575, 32
      %s577 = smul.addr %s576, 4
      %s578 = scalar_lea.vmem %s11, %s577
      %p579 = pneg %p343
      %p580 = pneg %p340
      %p581 = scmp.lt.s32.totalorder %s29, 1
      %s582 = scalar_select %p581, %s29, 1
      %s583 = scalar_lea.vmem %s12, %s582
      %p584 = pneg %p369
      %p585 = pneg %p366
      %p586 = pneg %p395
      %p587 = pneg %p392
      %p588 = scmp.lt.s32.totalorder %s28, 1
      %s589 = scalar_select %p588, %s28, 1
      %s590 = smul.addr %s589, 4
      %s591 = scalar_lea.vmem %s13, %s590
      %p592 = scmp.lt.s32.totalorder %s28, 1
      %s593 = scalar_select %p592, %s28, 1
      %s594 = smul.addr %s593, 4
      %s595 = scalar_lea.vmem %s0, %s594
      %p596 = scmp.lt.s32.totalorder %s29, 1
      %s597 = scalar_select %p596, %s29, 1
      %s598 = scalar_lea.vmem %s1, %s597
      %p599 = scmp.lt.s32.totalorder %s29, 1
      %s600 = scalar_select %p599, %s29, 1
      %s601 = scalar_lea.vmem %s2, %s600
      %p602 = scmp.lt.s32.totalorder %s29, 1
      %s603 = scalar_select %p602, %s29, 1
      %s604 = smul.addr %s603, 24
      %s605 = smul.addr %s604, 4
      %s606 = scalar_lea.vmem %s3, %s605
      %p607 = scmp.lt.s32.totalorder %s29, 1
      %s608 = scalar_select %p607, %s29, 1
      %s609 = smul.addr %s608, 3
      %s610 = scalar_lea.vmem %s4, %s609
      %p611 = scmp.lt.s32.totalorder %s29, 1
      %s612 = scalar_select %p611, %s29, 1
      %s613 = smul.addr %s612, 8
      %s614 = smul.addr %s613, 4
      %s615 = scalar_lea.vmem %s5, %s614
      %p616 = scmp.lt.s32.totalorder %s29, 1
      %s617 = scalar_select %p616, %s29, 1
      %s618 = scalar_lea.vmem %s6, %s617
      %p619 = scmp.lt.s32.totalorder %s29, 1
      %s620 = scalar_select %p619, %s29, 1
      %s621 = scalar_lea.vmem %s7, %s620
      %p622 = scmp.lt.s32.totalorder %s29, 1
      %s623 = scalar_select %p622, %s29, 1
      %s624 = scalar_lea.vmem %s8, %s623
      %p625 = scmp.lt.s32.totalorder %s29, 1
      %s626 = scalar_select %p625, %s29, 1
      %s627 = smul.addr %s626, 16
      %s628 = smul.addr %s627, 4
      %s629 = scalar_lea.vmem %s9, %s628
      %p630 = scmp.lt.s32.totalorder %s29, 1
      %s631 = scalar_select %p630, %s29, 1
      %s632 = smul.addr %s631, 2
      %s633 = scalar_lea.vmem %s10, %s632
      %p634 = scmp.lt.s32.totalorder %s29, 1
      %s635 = scalar_select %p634, %s29, 1
      %s636 = smul.addr %s635, 32
      %s637 = smul.addr %s636, 4
      %s638 = scalar_lea.vmem %s11, %s637
      %p639 = scmp.lt.s32.totalorder %s29, 1
      %s640 = scalar_select %p639, %s29, 1
      %s641 = scalar_lea.vmem %s12, %s640
      %p642 = scmp.lt.s32.totalorder %s28, 1
      %s643 = scalar_select %p642, %s28, 1
      %s644 = smul.addr %s643, 4
      %s645 = scalar_lea.vmem %s13, %s644
      %p647 = scmp.eq.s32.totalorder %s29, 0
      // Predicated region
      $region73: #{mae_forward.6} parent=71 // pred_check
        %p648 = pneg %p647
      $region74: #{mae_forward.6} parent=71 // pred_check_branch
        %650 = sbr.rel (%p648) target = $region76
      $region75: #{mae_forward.6} parent=71 // pred_region
        %v651 = vld [vmem:[%s595] sm:$0xf]
        %vm652 = vcmask 519168
        %653 = vst.msk [vmem:[%s645] sm:$0xf] %vm652, %v651
      $region76: #{mae_forward.6} parent=71 // pred_fallthru
        _
      %v654 = vld [vmem:[%s645] sm:$0xf]
      %v655 = vld [vmem:[%s598] sm:$0x1]
      %v656 = vld [vmem:[%s601] sm:$0x1]
      %vm657 = vcmask 519168
      %v658 = vsel %vm657, %v654, 0.0
      %659 = vadd.xlane.f32.xlu0 %v658
      %v660 = vpop.xlane.xlu0 %659
      %v661 = vrcp.pop 64.0
      %v662 = vmul.f32 64.0, %v661
      %v663 = vsub.f32 1.0, %v662
      %v664 = vmul.f32 %v661, %v663
      %v665 = vadd.f32 %v661, %v664
      %vm666 = vweird.f32 %v661
      %v667 = vsel %vm666, %v661, %v665
      %v668 = vmul.f32 %v660, %v667
      %v669 = vsub.f32 %v654, %v668
      %v670 = vmul.f32 %v669, %v669
      %v671 = vsel %vm657, %v670, 0.0
      %672 = vadd.xlane.f32.xlu0 %v671
      %v673 = vpop.xlane.xlu0 %672
      %v674 = vmul.f32 %v673, %v667
      %v675 = vadd.f32 %v674, 1e-05
      %v676 = vrsqrt.pop %v675
      %v677 = vmul.f32 %v676, %v675
      %v678 = vmul.f32 %v677, %v676
      %v679 = vmul.f32 0.5, %v678
      %v680 = vsub.f32 1.5, %v679
      %v681 = vmul.f32 %v676, %v680
      %vm682 = vweird.f32 %v675
      %vm683 = vweird.f32 %v676
      %vm684 = vmor %vm682, %vm683
      %v685 = vsel %vm684, %v676, %v681
      %v686 = vmul.f32 %v669, %v685
      %v688 = vperm.slane %v655, 0
      %v690 = vmul.f32 %v686, %v688
      %v692 = vperm.slane %v656, 0
      %v694 = vadd.f32 %v690, %v692
      %v695 = vld [vmem:[%s606] sm:$0xf]
      %v696 = vld [vmem:[%s606 + $0x4] sm:$0xf]
      %v697 = vld [vmem:[%s606 + $0x8] sm:$0xf]
      %v698 = vld [vmem:[%s606 + $0xc] sm:$0xf]
      %v699 = vld [vmem:[%s606 + $0x10] sm:$0xf]
      %v700 = vld [vmem:[%s606 + $0x14] sm:$0xf]
      %v701 = vld [vmem:[%s606 + $0x18] sm:$0xf]
      %v702 = vld [vmem:[%s606 + $0x1c] sm:$0xf]
      %v703 = vpack.c.bf16 %v694, %v694
      %v704 = vld [vmem:[%s610] sm:$0x1]
      %v706 = vperm.slane %v704, 0
      %v716 = vunpack.c.l.b16 %v695
      %v717 = vunpack.c.l.b16 %v696
      %v718 = vunpack.c.l.b16 %v697
      %v719 = vunpack.c.l.b16 %v698
      %v720 = vunpack.c.l.b16 %v699
      %v721 = vunpack.c.l.b16 %v700
      %v722 = vunpack.c.l.b16 %v701
      %v723 = vunpack.c.l.b16 %v702
      %v724 = vpack.c.b16 %v717, %v716
      %v725 = vpack.c.b16 %v719, %v718
      %v726 = vpack.c.b16 %v721, %v720
      %v727 = vpack.c.b16 %v723, %v722
      %vm732 = vcmask 523264
      %v734 = vsel %vm732, %v703, 0
      %736 = vmatpush.bf16.msra.mxu0 0
      %737 = vmatpush.bf16.msra.mxu0 0
      %738 = vmatpush.bf16.msra.mxu0 0
      %739 = vmatpush.bf16.msra.mxu0 0
      %740 = vmatpush.bf16.msra.mxu0 %v727
      %741 = vmatpush.bf16.msra.mxu0 %v726
      %742 = vmatpush.bf16.msra.mxu0 %v725
      %743 = vmatpush.bf16.msra.mxu0 %v724
      %744 = vmatmul.bf16.gmra.mxu0 %v734
      %v745 = vpop.f32.mrf.mxu0
      %v746 = vadd.f32 %v706, %v745
      %v747 = vpop.f32.mrf.mxu0
      %748 = vdwg.mxu0
      %s749 = scalar_lea.vmem %s606, 32
      %v750 = vld [vmem:[%s749] sm:$0xf]
      %v751 = vld [vmem:[%s749 + $0x4] sm:$0xf]
      %v752 = vld [vmem:[%s749 + $0x8] sm:$0xf]
      %v753 = vld [vmem:[%s749 + $0xc] sm:$0xf]
      %v754 = vld [vmem:[%s749 + $0x10] sm:$0xf]
      %v755 = vld [vmem:[%s749 + $0x14] sm:$0xf]
      %v756 = vld [vmem:[%s749 + $0x18] sm:$0xf]
      %v757 = vld [vmem:[%s749 + $0x1c] sm:$0xf]
      %s758 = scalar_lea.vmem %s610, 1
      %v759 = vld [vmem:[%s758] sm:$0x1]
      %v761 = vperm.slane %v759, 0
      %v771 = vunpack.c.l.b16 %v750
      %v772 = vunpack.c.l.b16 %v751
      %v773 = vunpack.c.l.b16 %v752
      %v774 = vunpack.c.l.b16 %v753
      %v775 = vunpack.c.l.b16 %v754
      %v776 = vunpack.c.l.b16 %v755
      %v777 = vunpack.c.l.b16 %v756
      %v778 = vunpack.c.l.b16 %v757
      %v779 = vpack.c.b16 %v772, %v771
      %v780 = vpack.c.b16 %v774, %v773
      %v781 = vpack.c.b16 %v776, %v775
      %v782 = vpack.c.b16 %v778, %v777
      %787 = vmatpush.bf16.msra.mxu0 0
      %788 = vmatpush.bf16.msra.mxu0 0
      %789 = vmatpush.bf16.msra.mxu0 0
      %790 = vmatpush.bf16.msra.mxu0 0
      %791 = vmatpush.bf16.msra.mxu0 %v782
      %792 = vmatpush.bf16.msra.mxu0 %v781
      %793 = vmatpush.bf16.msra.mxu0 %v780
      %794 = vmatpush.bf16.msra.mxu0 %v779
      %795 = vmatmul.bf16.gmra.mxu0 %v734
      %v796 = vpop.f32.mrf.mxu0
      %v797 = vadd.f32 %v761, %v796
      %v798 = vpop.f32.mrf.mxu0
      %799 = vdwg.mxu0
      %s800 = scalar_lea.vmem %s606, 64
      %v801 = vld [vmem:[%s800] sm:$0xf]
      %v802 = vld [vmem:[%s800 + $0x4] sm:$0xf]
      %v803 = vld [vmem:[%s800 + $0x8] sm:$0xf]
      %v804 = vld [vmem:[%s800 + $0xc] sm:$0xf]
      %v805 = vld [vmem:[%s800 + $0x10] sm:$0xf]
      %v806 = vld [vmem:[%s800 + $0x14] sm:$0xf]
      %v807 = vld [vmem:[%s800 + $0x18] sm:$0xf]
      %v808 = vld [vmem:[%s800 + $0x1c] sm:$0xf]
      %s809 = scalar_lea.vmem %s610, 2
      %v810 = vld [vmem:[%s809] sm:$0x1]
      %v812 = vperm.slane %v810, 0
      %v822 = vunpack.c.l.b16 %v801
      %v823 = vunpack.c.l.b16 %v802
      %v824 = vunpack.c.l.b16 %v803
      %v825 = vunpack.c.l.b16 %v804
      %v826 = vunpack.c.l.b16 %v805
      %v827 = vunpack.c.l.b16 %v806
      %v828 = vunpack.c.l.b16 %v807
      %v829 = vunpack.c.l.b16 %v808
      %v830 = vpack.c.b16 %v823, %v822
      %v831 = vpack.c.b16 %v825, %v824
      %v832 = vpack.c.b16 %v827, %v826
      %v833 = vpack.c.b16 %v829, %v828
      %838 = vmatpush.bf16.msra.mxu0 0
      %839 = vmatpush.bf16.msra.mxu0 0
      %840 = vmatpush.bf16.msra.mxu0 0
      %841 = vmatpush.bf16.msra.mxu0 0
      %842 = vmatpush.bf16.msra.mxu0 %v833
      %843 = vmatpush.bf16.msra.mxu0 %v832
      %844 = vmatpush.bf16.msra.mxu0 %v831
      %845 = vmatpush.bf16.msra.mxu0 %v830
      %846 = vmatmul.bf16.gmra.mxu0 %v734
      %v847 = vpop.f32.mrf.mxu0
      %v848 = vadd.f32 %v812, %v847
      %v849 = vpop.f32.mrf.mxu0
      %850 = vdwg.mxu0
      %852 = vrot.lane.b32.xlu0 %v746, 112
      %v853 = vpop.permute.xlu0 %852
      %855 = vrot.lane.b32.xlu0 %v746, 96
      %v856 = vpop.permute.xlu0 %855
      %858 = vrot.lane.b32.xlu0 %v746, 80
      %v859 = vpop.permute.xlu0 %858
      %862 = vrot.lane.b32.xlu0 %v797, 112
      %v863 = vpop.permute.xlu0 %862
      %865 = vrot.lane.b32.xlu0 %v797, 96
      %v866 = vpop.permute.xlu0 %865
      %868 = vrot.lane.b32.xlu0 %v797, 80
      %v869 = vpop.permute.xlu0 %868
      %872 = vrot.lane.b32.xlu0 %v848, 112
      %v873 = vpop.permute.xlu0 %872
      %875 = vrot.lane.b32.xlu0 %v848, 96
      %v876 = vpop.permute.xlu0 %875
      %878 = vrot.lane.b32.xlu0 %v848, 80
      %v879 = vpop.permute.xlu0 %878
      %v881 = vpack.c.bf16 %v746, %v746
      %v882 = vpack.c.bf16 %v853, %v853
      %v883 = vpack.c.bf16 %v856, %v856
      %v884 = vpack.c.bf16 %v859, %v859
      %v885 = vpack.c.bf16 %v797, %v797
      %v886 = vpack.c.bf16 %v863, %v863
      %v887 = vpack.c.bf16 %v866, %v866
      %v888 = vpack.c.bf16 %v869, %v869
      %vm889 = vcmask 130048
      %v891 = vsel %vm889, %v881, 0
      %v894 = vsel %vm889, %v885, 0
      %896 = vmatpush.bf16.xpose.msra.mxu0 0
      %897 = vmatpush.bf16.xpose.msra.mxu0 0
      %898 = vmatpush.bf16.xpose.msra.mxu0 0
      %899 = vmatpush.bf16.xpose.msra.mxu0 0
      %900 = vmatpush.bf16.xpose.msra.mxu0 0
      %901 = vmatpush.bf16.xpose.msra.mxu0 0
      %902 = vmatpush.bf16.xpose.msra.mxu0 0
      %903 = vmatpush.bf16.xpose.msra.mxu0 %v894
      %904 = vmatmul.bf16.gmra.mxu0 %v891
      %v905 = vpop.f32.mrf.mxu0
      %v906 = vadd.f32 0.0, %v905
      %v907 = vpop.f32.mrf.mxu0
      %908 = vdwg.mxu0
      %v910 = vsel %vm889, %v882, 0
      %v913 = vsel %vm889, %v886, 0
      %915 = vmatpush.bf16.xpose.msra.mxu0 0
      %916 = vmatpush.bf16.xpose.msra.mxu0 0
      %917 = vmatpush.bf16.xpose.msra.mxu0 0
      %918 = vmatpush.bf16.xpose.msra.mxu0 0
      %919 = vmatpush.bf16.xpose.msra.mxu0 0
      %920 = vmatpush.bf16.xpose.msra.mxu0 0
      %921 = vmatpush.bf16.xpose.msra.mxu0 0
      %922 = vmatpush.bf16.xpose.msra.mxu0 %v913
      %923 = vmatmul.bf16.gmra.mxu0 %v910
      %v924 = vpop.f32.mrf.mxu0
      %v925 = vadd.f32 0.0, %v924
      %v926 = vpop.f32.mrf.mxu0
      %927 = vdwg.mxu0
      %v929 = vsel %vm889, %v883, 0
      %v932 = vsel %vm889, %v887, 0
      %934 = vmatpush.bf16.xpose.msra.mxu0 0
      %935 = vmatpush.bf16.xpose.msra.mxu0 0
      %936 = vmatpush.bf16.xpose.msra.mxu0 0
      %937 = vmatpush.bf16.xpose.msra.mxu0 0
      %938 = vmatpush.bf16.xpose.msra.mxu0 0
      %939 = vmatpush.bf16.xpose.msra.mxu0 0
      %940 = vmatpush.bf16.xpose.msra.mxu0 0
      %941 = vmatpush.bf16.xpose.msra.mxu0 %v932
      %942 = vmatmul.bf16.gmra.mxu0 %v929
      %v943 = vpop.f32.mrf.mxu0
      %v944 = vadd.f32 0.0, %v943
      %v945 = vpop.f32.mrf.mxu0
      %946 = vdwg.mxu0
      %v948 = vsel %vm889, %v884, 0
      %v951 = vsel %vm889, %v888, 0
      %953 = vmatpush.bf16.xpose.msra.mxu0 0
      %954 = vmatpush.bf16.xpose.msra.mxu0 0
      %955 = vmatpush.bf16.xpose.msra.mxu0 0
      %956 = vmatpush.bf16.xpose.msra.mxu0 0
      %957 = vmatpush.bf16.xpose.msra.mxu0 0
      %958 = vmatpush.bf16.xpose.msra.mxu0 0
      %959 = vmatpush.bf16.xpose.msra.mxu0 0
      %960 = vmatpush.bf16.xpose.msra.mxu0 %v951
      %961 = vmatmul.bf16.gmra.mxu0 %v948
      %v962 = vpop.f32.mrf.mxu0
      %v963 = vadd.f32 0.0, %v962
      %v964 = vpop.f32.mrf.mxu0
      %965 = vdwg.mxu0
      %v966 = vmul.f32 %v906, 0.25
      %v967 = vmul.f32 %v925, 0.25
      %v968 = vmul.f32 %v944, 0.25
      %v969 = vmul.f32 %v963, 0.25
      %vm970 = vcmask 27648
      %v971 = vsel %vm970, %v966, -inf
      %972 = vmax.xlane.f32.xlu0 %v971
      %v973 = vpop.xlane.xlu0 %972
      %v974 = vsel %vm970, %v967, -inf
      %975 = vmax.xlane.f32.xlu0 %v974
      %v976 = vpop.xlane.xlu0 %975
      %v977 = vsel %vm970, %v968, -inf
      %978 = vmax.xlane.f32.xlu0 %v977
      %v979 = vpop.xlane.xlu0 %978
      %v980 = vsel %vm970, %v969, -inf
      %981 = vmax.xlane.f32.xlu0 %v980
      %v982 = vpop.xlane.xlu0 %981
      %v983 = vsub.f32 %v966, %v973
      %v984 = vsub.f32 %v967, %v976
      %v985 = vsub.f32 %v968, %v979
      %v986 = vsub.f32 %v969, %v982
      %v987 = vmul.f32 %v983, 1.442695
      %v988 = vpow.pop %v987
      %v989 = vmul.f32 %v984, 1.442695
      %v990 = vpow.pop %v989
      %v991 = vmul.f32 %v985, 1.442695
      %v992 = vpow.pop %v991
      %v993 = vmul.f32 %v986, 1.442695
      %v994 = vpow.pop %v993
      %v995 = vsel %vm970, %v988, 0.0
      %996 = vadd.xlane.f32.xlu0 %v995
      %v997 = vpop.xlane.xlu0 %996
      %v998 = vsel %vm970, %v990, 0.0
      %999 = vadd.xlane.f32.xlu0 %v998
      %v1000 = vpop.xlane.xlu0 %999
      %v1001 = vsel %vm970, %v992, 0.0
      %1002 = vadd.xlane.f32.xlu0 %v1001
      %v1003 = vpop.xlane.xlu0 %1002
      %v1004 = vsel %vm970, %v994, 0.0
      %1005 = vadd.xlane.f32.xlu0 %v1004
      %v1006 = vpop.xlane.xlu0 %1005
      %v1007 = vrcp.pop %v997
      %v1008 = vrcp.pop %v1000
      %v1009 = vrcp.pop %v1003
      %v1010 = vrcp.pop %v1006
      %v1011 = vmul.f32 %v988, %v1007
      %v1012 = vmul.f32 %v990, %v1008
      %v1013 = vmul.f32 %v992, %v1009
      %v1014 = vmul.f32 %v994, %v1010
      %v1015 = vpack.c.bf16 %v1011, %v1011
      %v1016 = vpack.c.bf16 %v1012, %v1012
      %v1017 = vpack.c.bf16 %v1013, %v1013
      %v1018 = vpack.c.bf16 %v1014, %v1014
      %v1019 = vpack.c.bf16 %v848, %v848
      %v1020 = vpack.c.bf16 %v873, %v873
      %v1021 = vpack.c.bf16 %v876, %v876
      %v1022 = vpack.c.bf16 %v879, %v879
      %vm1023 = vcmask 31744
      %v1025 = vsel %vm1023, %v1015, 0
      %vm1027 = vcmask 1041408
      %v1029 = vsel %vm1027, %v1019, 0
      %1031 = vmatpush.bf16.msra.mxu0 0
      %1032 = vmatpush.bf16.msra.mxu0 0
      %1033 = vmatpush.bf16.msra.mxu0 0
      %1034 = vmatpush.bf16.msra.mxu0 0
      %1035 = vmatpush.bf16.msra.mxu0 0
      %1036 = vmatpush.bf16.msra.mxu0 0
      %1037 = vmatpush.bf16.msra.mxu0 0
      %1038 = vmatpush.bf16.msra.mxu0 %v1029
      %1039 = vmatmul.bf16.gmra.mxu0 %v1025
      %v1040 = vpop.f32.mrf.mxu0
      %v1041 = vadd.f32 0.0, %v1040
      %v1042 = vpop.f32.mrf.mxu0
      %1043 = vdwg.mxu0
      %v1045 = vsel %vm1023, %v1016, 0
      %v1048 = vsel %vm1027, %v1020, 0
      %1050 = vmatpush.bf16.msra.mxu0 0
      %1051 = vmatpush.bf16.msra.mxu0 0
      %1052 = vmatpush.bf16.msra.mxu0 0
      %1053 = vmatpush.bf16.msra.mxu0 0
      %1054 = vmatpush.bf16.msra.mxu0 0
      %1055 = vmatpush.bf16.msra.mxu0 0
      %1056 = vmatpush.bf16.msra.mxu0 0
      %1057 = vmatpush.bf16.msra.mxu0 %v1048
      %1058 = vmatmul.bf16.gmra.mxu0 %v1045
      %v1059 = vpop.f32.mrf.mxu0
      %v1060 = vadd.f32 0.0, %v1059
      %v1061 = vpop.f32.mrf.mxu0
      %1062 = vdwg.mxu0
      %v1064 = vsel %vm1023, %v1017, 0
      %v1067 = vsel %vm1027, %v1021, 0
      %1069 = vmatpush.bf16.msra.mxu0 0
      %1070 = vmatpush.bf16.msra.mxu0 0
      %1071 = vmatpush.bf16.msra.mxu0 0
      %1072 = vmatpush.bf16.msra.mxu0 0
      %1073 = vmatpush.bf16.msra.mxu0 0
      %1074 = vmatpush.bf16.msra.mxu0 0
      %1075 = vmatpush.bf16.msra.mxu0 0
      %1076 = vmatpush.bf16.msra.mxu0 %v1067
      %1077 = vmatmul.bf16.gmra.mxu0 %v1064
      %v1078 = vpop.f32.mrf.mxu0
      %v1079 = vadd.f32 0.0, %v1078
      %v1080 = vpop.f32.mrf.mxu0
      %1081 = vdwg.mxu0
      %v1083 = vsel %vm1023, %v1018, 0
      %v1086 = vsel %vm1027, %v1022, 0
      %1088 = vmatpush.bf16.msra.mxu0 0
      %1089 = vmatpush.bf16.msra.mxu0 0
      %1090 = vmatpush.bf16.msra.mxu0 0
      %1091 = vmatpush.bf16.msra.mxu0 0
      %1092 = vmatpush.bf16.msra.mxu0 0
      %1093 = vmatpush.bf16.msra.mxu0 0
      %1094 = vmatpush.bf16.msra.mxu0 0
      %1095 = vmatpush.bf16.msra.mxu0 %v1086
      %1096 = vmatmul.bf16.gmra.mxu0 %v1083
      %v1097 = vpop.f32.mrf.mxu0
      %v1098 = vadd.f32 0.0, %v1097
      %v1099 = vpop.f32.mrf.mxu0
      %1100 = vdwg.mxu0
      %1102 = vrot.lane.b32.xlu0 %v1060, 16
      %v1103 = vpop.permute.xlu0 %1102
      %1106 = vrot.lane.b32.xlu0 %v1079, 32
      %v1107 = vpop.permute.xlu0 %1106
      %1110 = vrot.lane.b32.xlu0 %v1098, 48
      %v1111 = vpop.permute.xlu0 %1110
      %v1113 = vsel %vm889, %v1041, %v1103
      %vm1114 = vcmask 261120
      %v1115 = vsel %vm1114, %v1113, %v1107
      %vm1116 = vcmask 392192
      %v1117 = vsel %vm1116, %v1115, %v1111
      %v1118 = vld [vmem:[%s615] sm:$0xf]
      %v1119 = vld [vmem:[%s615 + $0x4] sm:$0xf]
      %v1120 = vld [vmem:[%s615 + $0x8] sm:$0xf]
      %v1121 = vld [vmem:[%s615 + $0xc] sm:$0xf]
      %v1122 = vld [vmem:[%s615 + $0x10] sm:$0xf]
      %v1123 = vld [vmem:[%s615 + $0x14] sm:$0xf]
      %v1124 = vld [vmem:[%s615 + $0x18] sm:$0xf]
      %v1125 = vld [vmem:[%s615 + $0x1c] sm:$0xf]
      %v1126 = vpack.c.bf16 %v1117, %v1117
      %v1135 = vunpack.c.l.b16 %v1118
      %v1136 = vunpack.c.l.b16 %v1119
      %v1137 = vunpack.c.l.b16 %v1120
      %v1138 = vunpack.c.l.b16 %v1121
      %v1139 = vunpack.c.l.b16 %v1122
      %v1140 = vunpack.c.l.b16 %v1123
      %v1141 = vunpack.c.l.b16 %v1124
      %v1142 = vunpack.c.l.b16 %v1125
      %v1143 = vpack.c.b16 %v1136, %v1135
      %v1144 = vpack.c.b16 %v1138, %v1137
      %v1145 = vpack.c.b16 %v1140, %v1139
      %v1146 = vpack.c.b16 %v1142, %v1141
      %v1152 = vsel %vm732, %v1126, 0
      %1154 = vmatpush.bf16.msra.mxu0 0
      %1155 = vmatpush.bf16.msra.mxu0 0
      %1156 = vmatpush.bf16.msra.mxu0 0
      %1157 = vmatpush.bf16.msra.mxu0 0
      %1158 = vmatpush.bf16.msra.mxu0 %v1146
      %1159 = vmatpush.bf16.msra.mxu0 %v1145
      %1160 = vmatpush.bf16.msra.mxu0 %v1144
      %1161 = vmatpush.bf16.msra.mxu0 %v1143
      %1162 = vmatmul.bf16.gmra.mxu0 %v1152
      %v1163 = vpop.f32.mrf.mxu0
      %v1164 = vadd.f32 0.0, %v1163
      %v1165 = vpop.f32.mrf.mxu0
      %1166 = vdwg.mxu0
      %v1167 = vadd.f32 %v654, %v1164
      %v1168 = vld [vmem:[%s618] sm:$0x1]
      %v1170 = vperm.slane %v1168, 0
      %v1172 = vadd.f32 %v1167, %v1170
      %v1173 = vld [vmem:[%s621] sm:$0x1]
      %v1174 = vld [vmem:[%s624] sm:$0x1]
      %v1175 = vsel %vm657, %v1172, 0.0
      %1176 = vadd.xlane.f32.xlu0 %v1175
      %v1177 = vpop.xlane.xlu0 %1176
      %v1178 = vmul.f32 %v1177, %v667
      %v1179 = vsub.f32 %v1172, %v1178
      %v1180 = vmul.f32 %v1179, %v1179
      %v1181 = vsel %vm657, %v1180, 0.0
      %1182 = vadd.xlane.f32.xlu0 %v1181
      %v1183 = vpop.xlane.xlu0 %1182
      %v1184 = vmul.f32 %v1183, %v667
      %v1185 = vadd.f32 %v1184, 1e-05
      %v1186 = vrsqrt.pop %v1185
      %v1187 = vmul.f32 %v1186, %v1185
      %v1188 = vmul.f32 %v1187, %v1186
      %v1189 = vmul.f32 0.5, %v1188
      %v1190 = vsub.f32 1.5, %v1189
      %v1191 = vmul.f32 %v1186, %v1190
      %vm1192 = vweird.f32 %v1185
      %vm1193 = vweird.f32 %v1186
      %vm1194 = vmor %vm1192, %vm1193
      %v1195 = vsel %vm1194, %v1186, %v1191
      %v1196 = vmul.f32 %v1179, %v1195
      %v1198 = vperm.slane %v1173, 0
      %v1200 = vmul.f32 %v1196, %v1198
      %v1202 = vperm.slane %v1174, 0
      %v1204 = vadd.f32 %v1200, %v1202
      %v1205 = vld [vmem:[%s629] sm:$0xff]
      %v1206 = vld [vmem:[%s629 + $0x8] sm:$0xff]
      %v1207 = vld [vmem:[%s629 + $0x10] sm:$0xff]
      %v1208 = vld [vmem:[%s629 + $0x18] sm:$0xff]
      %v1209 = vld [vmem:[%s629 + $0x20] sm:$0xff]
      %v1210 = vld [vmem:[%s629 + $0x28] sm:$0xff]
      %v1211 = vld [vmem:[%s629 + $0x30] sm:$0xff]
      %v1212 = vld [vmem:[%s629 + $0x38] sm:$0xff]
      %v1213 = vpack.c.bf16 %v1204, %v1204
      %v1214 = vld [vmem:[%s633] sm:$0x3]
      %v1216 = vperm.slane %v1214, 0
      %v1217 = vperm.slane %v1214, 1
      %v1228 = vunpack.c.l.b16 %v1205
      %v1229 = vunpack.c.h.b16 %v1205
      %v1230 = vunpack.c.l.b16 %v1206
      %v1231 = vunpack.c.h.b16 %v1206
      %v1232 = vunpack.c.l.b16 %v1207
      %v1233 = vunpack.c.h.b16 %v1207
      %v1234 = vunpack.c.l.b16 %v1208
      %v1235 = vunpack.c.h.b16 %v1208
      %v1236 = vunpack.c.l.b16 %v1209
      %v1237 = vunpack.c.h.b16 %v1209
      %v1238 = vunpack.c.l.b16 %v1210
      %v1239 = vunpack.c.h.b16 %v1210
      %v1240 = vunpack.c.l.b16 %v1211
      %v1241 = vunpack.c.h.b16 %v1211
      %v1242 = vunpack.c.l.b16 %v1212
      %v1243 = vunpack.c.h.b16 %v1212
      %v1244 = vpack.c.b16 %v1230, %v1228
      %v1245 = vpack.c.b16 %v1231, %v1229
      %v1246 = vpack.c.b16 %v1234, %v1232
      %v1247 = vpack.c.b16 %v1235, %v1233
      %v1248 = vpack.c.b16 %v1238, %v1236
      %v1249 = vpack.c.b16 %v1239, %v1237
      %v1250 = vpack.c.b16 %v1242, %v1240
      %v1251 = vpack.c.b16 %v1243, %v1241
      %v1261 = vsel %vm732, %v1213, 0
      %1263 = vmatpush.bf16.msra.mxu0 0
      %1264 = vmatpush.bf16.msra.mxu0 0
      %1265 = vmatpush.bf16.msra.mxu0 0
      %1266 = vmatpush.bf16.msra.mxu0 0
      %1267 = vmatpush.bf16.msra.mxu0 %v1250
      %1268 = vmatpush.bf16.msra.mxu0 %v1248
      %1269 = vmatpush.bf16.msra.mxu0 %v1246
      %1270 = vmatpush.bf16.msra.mxu0 %v1244
      %1271 = vmatmul.bf16.gmra.mxu0 %v1261
      %v1272 = vpop.f32.mrf.mxu0
      %v1273 = vadd.f32 %v1216, %v1272
      %v1274 = vpop.f32.mrf.mxu0
      %1275 = vdwg.mxu0
      %1276 = vmatpush.bf16.msra.mxu0 0
      %1277 = vmatpush.bf16.msra.mxu0 0
      %1278 = vmatpush.bf16.msra.mxu0 0
      %1279 = vmatpush.bf16.msra.mxu0 0
      %1280 = vmatpush.bf16.msra.mxu0 %v1251
      %1281 = vmatpush.bf16.msra.mxu0 %v1249
      %1282 = vmatpush.bf16.msra.mxu0 %v1247
      %1283 = vmatpush.bf16.msra.mxu0 %v1245
      %1284 = vmatmul.bf16.gmra.mxu0 %v1261
      %v1285 = vpop.f32.mrf.mxu0
      %v1286 = vadd.f32 %v1217, %v1285
      %v1287 = vpop.f32.mrf.mxu0
      %1288 = vdwg.mxu0
      %v1289 = vmul.f32 %v1273, 0.5
      %v1290 = vmul.f32 %v1286, 0.5
      %v1291 = vmul.f32 %v1273, 0.044715
      %v1292 = vmul.f32 %v1286, 0.044715
      %v1293 = vmul.f32 %v1291, %v1273
      %v1294 = vmul.f32 %v1292, %v1286
      %v1295 = vmul.f32 %v1293, %v1273
      %v1296 = vmul.f32 %v1294, %v1286
      %v1297 = vadd.f32 %v1273, %v1295
      %v1298 = vadd.f32 %v1286, %v1296
      %v1299 = vmul.f32 %v1297, 0.7978846
      %v1300 = vmul.f32 %v1298, 0.7978846
      %v1301 = vtanh.pop %v1299
      %v1302 = vtanh.pop %v1300
      %v1303 = vadd.f32 %v1301, 1.0
      %v1304 = vadd.f32 %v1302, 1.0
      %v1305 = vmul.f32 %v1289, %v1303
      %v1306 = vmul.f32 %v1290, %v1304
      %v1307 = vld [vmem:[%s638] sm:$0xf]
      %v1308 = vld [vmem:[%s638 + $0x4] sm:$0xf]
      %v1309 = vld [vmem:[%s638 + $0x8] sm:$0xf]
      %v1310 = vld [vmem:[%s638 + $0xc] sm:$0xf]
      %v1311 = vld [vmem:[%s638 + $0x10] sm:$0xf]
      %v1312 = vld [vmem:[%s638 + $0x14] sm:$0xf]
      %v1313 = vld [vmem:[%s638 + $0x18] sm:$0xf]
      %v1314 = vld [vmem:[%s638 + $0x1c] sm:$0xf]
      %v1315 = vld [vmem:[%s638 + $0x20] sm:$0xf]
      %v1316 = vld [vmem:[%s638 + $0x24] sm:$0xf]
      %v1317 = vld [vmem:[%s638 + $0x28] sm:$0xf]
      %v1318 = vld [vmem:[%s638 + $0x2c] sm:$0xf]
      %v1319 = vld [vmem:[%s638 + $0x30] sm:$0xf]
      %v1320 = vld [vmem:[%s638 + $0x34] sm:$0xf]
      %v1321 = vld [vmem:[%s638 + $0x38] sm:$0xf]
      %v1322 = vld [vmem:[%s638 + $0x3c] sm:$0xf]
      %v1323 = vld [vmem:[%s638 + $0x40] sm:$0xf]
      %v1324 = vld [vmem:[%s638 + $0x44] sm:$0xf]
      %v1325 = vld [vmem:[%s638 + $0x48] sm:$0xf]
      %v1326 = vld [vmem:[%s638 + $0x4c] sm:$0xf]
      %v1327 = vld [vmem:[%s638 + $0x50] sm:$0xf]
      %v1328 = vld [vmem:[%s638 + $0x54] sm:$0xf]
      %v1329 = vld [vmem:[%s638 + $0x58] sm:$0xf]
      %v1330 = vld [vmem:[%s638 + $0x5c] sm:$0xf]
      %v1331 = vld [vmem:[%s638 + $0x60] sm:$0xf]
      %v1332 = vld [vmem:[%s638 + $0x64] sm:$0xf]
      %v1333 = vld [vmem:[%s638 + $0x68] sm:$0xf]
      %v1334 = vld [vmem:[%s638 + $0x6c] sm:$0xf]
      %v1335 = vld [vmem:[%s638 + $0x70] sm:$0xf]
      %v1336 = vld [vmem:[%s638 + $0x74] sm:$0xf]
      %v1337 = vld [vmem:[%s638 + $0x78] sm:$0xf]
      %v1338 = vld [vmem:[%s638 + $0x7c] sm:$0xf]
      %v1339 = vpack.c.bf16 %v1305, %v1305
      %v1340 = vpack.c.bf16 %v1306, %v1306
      %v1373 = vunpack.c.l.b16 %v1307
      %v1374 = vunpack.c.l.b16 %v1308
      %v1375 = vunpack.c.l.b16 %v1309
      %v1376 = vunpack.c.l.b16 %v1310
      %v1377 = vunpack.c.l.b16 %v1311
      %v1378 = vunpack.c.l.b16 %v1312
      %v1379 = vunpack.c.l.b16 %v1313
      %v1380 = vunpack.c.l.b16 %v1314
      %v1381 = vunpack.c.l.b16 %v1315
      %v1382 = vunpack.c.l.b16 %v1316
      %v1383 = vunpack.c.l.b16 %v1317
      %v1384 = vunpack.c.l.b16 %v1318
      %v1385 = vunpack.c.l.b16 %v1319
      %v1386 = vunpack.c.l.b16 %v1320
      %v1387 = vunpack.c.l.b16 %v1321
      %v1388 = vunpack.c.l.b16 %v1322
      %v1389 = vunpack.c.l.b16 %v1323
      %v1390 = vunpack.c.l.b16 %v1324
      %v1391 = vunpack.c.l.b16 %v1325
      %v1392 = vunpack.c.l.b16 %v1326
      %v1393 = vunpack.c.l.b16 %v1327
      %v1394 = vunpack.c.l.b16 %v1328
      %v1395 = vunpack.c.l.b16 %v1329
      %v1396 = vunpack.c.l.b16 %v1330
      %v1397 = vunpack.c.l.b16 %v1331
      %v1398 = vunpack.c.l.b16 %v1332
      %v1399 = vunpack.c.l.b16 %v1333
      %v1400 = vunpack.c.l.b16 %v1334
      %v1401 = vunpack.c.l.b16 %v1335
      %v1402 = vunpack.c.l.b16 %v1336
      %v1403 = vunpack.c.l.b16 %v1337
      %v1404 = vunpack.c.l.b16 %v1338
      %v1405 = vpack.c.b16 %v1374, %v1373
      %v1406 = vpack.c.b16 %v1376, %v1375
      %v1407 = vpack.c.b16 %v1378, %v1377
      %v1408 = vpack.c.b16 %v1380, %v1379
      %v1409 = vpack.c.b16 %v1382, %v1381
      %v1410 = vpack.c.b16 %v1384, %v1383
      %v1411 = vpack.c.b16 %v1386, %v1385
      %v1412 = vpack.c.b16 %v1388, %v1387
      %v1413 = vpack.c.b16 %v1390, %v1389
      %v1414 = vpack.c.b16 %v1392, %v1391
      %v1415 = vpack.c.b16 %v1394, %v1393
      %v1416 = vpack.c.b16 %v1396, %v1395
      %v1417 = vpack.c.b16 %v1398, %v1397
      %v1418 = vpack.c.b16 %v1400, %v1399
      %v1419 = vpack.c.b16 %v1402, %v1401
      %v1420 = vpack.c.b16 %v1404, %v1403
      %1437 = vmatpush.bf16.msra.mxu0 %v1412
      %1438 = vmatpush.bf16.msra.mxu0 %v1411
      %1439 = vmatpush.bf16.msra.mxu0 %v1410
      %1440 = vmatpush.bf16.msra.mxu0 %v1409
      %1441 = vmatpush.bf16.msra.mxu0 %v1408
      %1442 = vmatpush.bf16.msra.mxu0 %v1407
      %1443 = vmatpush.bf16.msra.mxu0 %v1406
      %1444 = vmatpush.bf16.msra.mxu0 %v1405
      %1445 = vmatmul.bf16.gmra.mxu0 %v1339
      %v1446 = vpop.f32.mrf.mxu0
      %v1447 = vadd.f32 0.0, %v1446
      %v1448 = vpop.f32.mrf.mxu0
      %1449 = vdwg.mxu0
      %1450 = vmatpush.bf16.msra.mxu0 %v1420
      %1451 = vmatpush.bf16.msra.mxu0 %v1419
      %1452 = vmatpush.bf16.msra.mxu0 %v1418
      %1453 = vmatpush.bf16.msra.mxu0 %v1417
      %1454 = vmatpush.bf16.msra.mxu0 %v1416
      %1455 = vmatpush.bf16.msra.mxu0 %v1415
      %1456 = vmatpush.bf16.msra.mxu0 %v1414
      %1457 = vmatpush.bf16.msra.mxu0 %v1413
      %1458 = vmatmul.bf16.gmra.mxu0 %v1340
      %v1459 = vpop.f32.mrf.mxu0
      %v1460 = vadd.f32 %v1447, %v1459
      %v1461 = vpop.f32.mrf.mxu0
      %1462 = vdwg.mxu0
      %v1463 = vadd.f32 %v1172, %v1460
      %v1464 = vld [vmem:[%s641] sm:$0x1]
      %v1466 = vperm.slane %v1464, 0
      %v1468 = vadd.f32 %v1463, %v1466
      %1469 = vst.msk [vmem:[%s645] sm:$0xf] %vm657, %v1468
      %p1470 = scmp.lt.s32.totalorder %s28, 1
      %s1471 = scalar_select %p1470, %s28, 1
      %s1472 = smul.addr %s1471, 4
      %s1473 = scalar_lea.vmem %s13, %s1472
      // Predicated region
      $region77: #{mae_forward.6} parent=71 // pred_check
        %p1474 = pneg %p392
      $region78: #{mae_forward.6} parent=71 // pred_check_branch
        %1476 = sbr.rel (%p1474) target = $region80
      $region79: #{mae_forward.6} parent=71 // pred_region
        _
      $region80: #{mae_forward.6} parent=71 // pred_fallthru
        _
    $region72: #{mae_forward.6} parent=5 // pred_fallthru
      _
    %p1477 = scmp.le.s32.totalorder 2, %s19
    // Predicated region
    $region81: #{mae_forward.6} parent=5 // pred_check
      %p1478 = pneg %p1477
    $region82: #{mae_forward.6} parent=5 // pred_check_branch
      %1480 = sbr.rel (%p1478) target = $region84
    $region83: #{mae_forward.6} parent=5 // pred_region
      %s1481 = ssub.s32 %s19, 2
      // Predicated region
      $region85: #{mae_forward.6} parent=83 // pred_check
        %p1482 = pneg %p398
      $region86: #{mae_forward.6} parent=83 // pred_check_branch
        %1484 = sbr.rel (%p1482) target = $region88
      $region87: #{mae_forward.6} parent=83 // pred_region
        %p1485 = scmp.lt.s32.totalorder %s30, 1
        %s1486 = scalar_select %p1485, %s30, 1
        %s1487 = smul.addr %s1486, 4
        %s1488 = scalar_lea.vmem %s13, %s1487
      $region88: #{mae_forward.6} parent=83 // pred_fallthru
        _
    $region84: #{mae_forward.6} parent=5 // pred_fallthru
      _
  $region6: #{mae_forward.6} parent=0 // loop_footer
    %s23 = sadd.s32 1, %s19
  $region7: #{mae_forward.6} parent=0 // loop_footer_branch
    %18 = sbr.rel target = $region3
  $region8: #{mae_forward.6} parent=0 // loop_exit
    _

// kernel: mae_forward.8
$region0: #{mae_forward.8}
  #allocation0 [shape = 'u32[]', space=smem, size = 0x4, offset = 0x4, fixed_abs, tag = 'smem constant byte address 0x4 - core index']
  #allocation1 [shape = 'u32[72,128]{1,0:T(1,128)}', space=vmem, size = 0x9000, scoped, tag = 'internal scratch']
  %s0 = inlined_call_operand.vmem [shape: f32[2,33,48], index: 0, kind: input, shape index: {}]
  %s1 = inlined_call_operand.vmem [shape: f32[2,1,48], index: 1, kind: input, shape index: {}]
  %s2 = inlined_call_operand.vmem [shape: f32[2,1,48], index: 2, kind: input, shape index: {}]
  %s3 = inlined_call_operand.vmem [shape: bf16[2,3,48,48], index: 3, kind: input, shape index: {}]
  %s4 = inlined_call_operand.vmem [shape: f32[2,3,1,48], index: 4, kind: input, shape index: {}]
  %s5 = inlined_call_operand.vmem [shape: bf16[2,48,48], index: 5, kind: input, shape index: {}]
  %s6 = inlined_call_operand.vmem [shape: f32[2,1,48], index: 6, kind: input, shape index: {}]
  %s7 = inlined_call_operand.vmem [shape: f32[2,1,48], index: 7, kind: input, shape index: {}]
  %s8 = inlined_call_operand.vmem [shape: f32[2,1,48], index: 8, kind: input, shape index: {}]
  %s9 = inlined_call_operand.vmem [shape: bf16[2,48,192], index: 9, kind: input, shape index: {}]
  %s10 = inlined_call_operand.vmem [shape: f32[2,1,192], index: 10, kind: input, shape index: {}]
  %s11 = inlined_call_operand.vmem [shape: bf16[2,192,48], index: 11, kind: input, shape index: {}]
  %s12 = inlined_call_operand.vmem [shape: f32[2,1,48], index: 12, kind: input, shape index: {}]
  %s13 = inlined_call_operand.vmem [shape: f32[2,33,48], index: 13, kind: output, shape index: {}]
  %s14 = sld [smem:[#allocation0]]
  $region89: #{mae_forward.8} parent=0
    _
  %s16 = ssub.s32 1, %s14
  %s17 = scalar_select 0, %s16, %s14
  loop: start=0, step=1, limit=6
  $region2: #{mae_forward.8} parent=0 // loop_pre_header
    _
  $region3: #{mae_forward.8} parent=0 // loop_header
    %s19 = sphi 0, %s23
    %p20 = scmp.ge.s32.totalorder %s19, 6
    %s26 = sphi 0, %s38
    %s27 = sphi 0, %s34
    %s28 = sphi 0, %s26
    %s29 = sphi 0, %s27
    %s30 = sphi 0, %s28
    %s31 = sphi 0, %s29
    %s41 = sphi 0, %s43
    %s44 = sphi 0, %s41
    %s45 = sphi 0, %s44
    %s61 = sphi 0, %s45
    %s67 = sphi 0, %s69
    %s70 = sphi 0, %s67
    %s71 = sphi 0, %s70
    %s87 = sphi 0, %s71
    %s93 = sphi 0, %s95
    %s96 = sphi 0, %s93
    %s97 = sphi 0, %s96
    %s113 = sphi 0, %s97
    %s119 = sphi 0, %s121
    %s122 = sphi 0, %s119
    %s123 = sphi 0, %s122
    %s139 = sphi 0, %s123
    %s145 = sphi 0, %s147
    %s148 = sphi 0, %s145
    %s149 = sphi 0, %s148
    %s165 = sphi 0, %s149
    %s171 = sphi 0, %s173
    %s174 = sphi 0, %s171
    %s175 = sphi 0, %s174
    %s191 = sphi 0, %s175
    %s197 = sphi 0, %s199
    %s200 = sphi 0, %s197
    %s201 = sphi 0, %s200
    %s217 = sphi 0, %s201
    %s223 = sphi 0, %s225
    %s226 = sphi 0, %s223
    %s227 = sphi 0, %s226
    %s243 = sphi 0, %s227
    %s249 = sphi 0, %s251
    %s252 = sphi 0, %s249
    %s253 = sphi 0, %s252
    %s269 = sphi 0, %s253
    %s275 = sphi 0, %s277
    %s278 = sphi 0, %s275
    %s279 = sphi 0, %s278
    %s295 = sphi 0, %s279
    %s301 = sphi 0, %s303
    %s304 = sphi 0, %s301
    %s305 = sphi 0, %s304
    %s321 = sphi 0, %s305
    %s327 = sphi 0, %s329
    %s330 = sphi 0, %s327
    %s331 = sphi 0, %s330
    %s347 = sphi 0, %s331
    %s353 = sphi 0, %s355
    %s356 = sphi 0, %s353
    %s357 = sphi 0, %s356
    %s373 = sphi 0, %s357
    %s379 = sphi 0, %s381
    %s382 = sphi 0, %s379
    %s383 = sphi 0, %s382
    %s399 = sphi 0, %s383
  $region4: #{mae_forward.8} parent=0 // loop_header_branch
    %22 = sbr.rel (%p20) target = $region8
  $region5: #{mae_forward.8} parent=0 // loop_body
    %s24 = ssub.s32 %s19, 1
    %s25 = ssub.s32 %s19, 2
    %s32 = sadd.s32 1, %s27
    %p33 = scmp.ge.s32.totalorder %s32, 2
    %s34 = scalar_select %p33, 0, %s32
    %s35 = sadd.s32 1, %s26
    %s36 = scalar_select %p33, %s35, %s26
    %p37 = scmp.ge.s32.totalorder %s36, 2
    %s38 = scalar_select %p37, 0, %s36
    %s39 = ssub.s32 %s26, %s38
    %p40 = scmp.eq.s32.totalorder %s39, 0
    %s42 = sadd.s32 %s41, 1
    %s43 = scalar_select %p40, %s41, %s42
    %p46 = pneg %p40
    %p47 = scmp.eq.s32.totalorder %s19, 3
    %p48 = por %p46, %p47
    %p49 = scmp.ne.s32.totalorder %s41, %s44
    %p50 = scmp.eq.s32.totalorder %s19, 0
    %p51 = por %p49, %p50
    %p52 = scmp.ne.s32.totalorder %s41, %s44
    %p53 = scmp.eq.s32.totalorder %s24, 3
    %p54 = por %p52, %p53
    %p55 = scmp.ne.s32.totalorder %s44, %s45
    %p56 = scmp.eq.s32.totalorder %s24, 0
    %p57 = por %p55, %p56
    %p58 = scmp.ne.s32.totalorder %s44, %s45
    %p59 = scmp.eq.s32.totalorder %s25, 3
    %p60 = por %p58, %p59
    %p62 = scmp.ne.s32.totalorder %s45, %s61
    %p63 = scmp.eq.s32.totalorder %s25, 0
    %p64 = por %p62, %p63
    %s65 = ssub.s32 %s27, %s34
    %p66 = scmp.eq.s32.totalorder %s65, 0
    %s68 = sadd.s32 %s67, 1
    %s69 = scalar_select %p66, %s67, %s68
    %p72 = pneg %p66
    %p73 = scmp.eq.s32.totalorder %s19, 3
    %p74 = por %p72, %p73
    %p75 = scmp.ne.s32.totalorder %s67, %s70
    %p76 = scmp.eq.s32.totalorder %s19, 0
    %p77 = por %p75, %p76
    %p78 = scmp.ne.s32.totalorder %s67, %s70
    %p79 = scmp.eq.s32.totalorder %s24, 3
    %p80 = por %p78, %p79
    %p81 = scmp.ne.s32.totalorder %s70, %s71
    %p82 = scmp.eq.s32.totalorder %s24, 0
    %p83 = por %p81, %p82
    %p84 = scmp.ne.s32.totalorder %s70, %s71
    %p85 = scmp.eq.s32.totalorder %s25, 3
    %p86 = por %p84, %p85
    %p88 = scmp.ne.s32.totalorder %s71, %s87
    %p89 = scmp.eq.s32.totalorder %s25, 0
    %p90 = por %p88, %p89
    %s91 = ssub.s32 %s27, %s34
    %p92 = scmp.eq.s32.totalorder %s91, 0
    %s94 = sadd.s32 %s93, 1
    %s95 = scalar_select %p92, %s93, %s94
    %p98 = pneg %p92
    %p99 = scmp.eq.s32.totalorder %s19, 3
    %p100 = por %p98, %p99
    %p101 = scmp.ne.s32.totalorder %s93, %s96
    %p102 = scmp.eq.s32.totalorder %s19, 0
    %p103 = por %p101, %p102
    %p104 = scmp.ne.s32.totalorder %s93, %s96
    %p105 = scmp.eq.s32.totalorder %s24, 3
    %p106 = por %p104, %p105
    %p107 = scmp.ne.s32.totalorder %s96, %s97
    %p108 = scmp.eq.s32.totalorder %s24, 0
    %p109 = por %p107, %p108
    %p110 = scmp.ne.s32.totalorder %s96, %s97
    %p111 = scmp.eq.s32.totalorder %s25, 3
    %p112 = por %p110, %p111
    %p114 = scmp.ne.s32.totalorder %s97, %s113
    %p115 = scmp.eq.s32.totalorder %s25, 0
    %p116 = por %p114, %p115
    %s117 = ssub.s32 %s27, %s34
    %p118 = scmp.eq.s32.totalorder %s117, 0
    %s120 = sadd.s32 %s119, 1
    %s121 = scalar_select %p118, %s119, %s120
    %p124 = pneg %p118
    %p125 = scmp.eq.s32.totalorder %s19, 3
    %p126 = por %p124, %p125
    %p127 = scmp.ne.s32.totalorder %s119, %s122
    %p128 = scmp.eq.s32.totalorder %s19, 0
    %p129 = por %p127, %p128
    %p130 = scmp.ne.s32.totalorder %s119, %s122
    %p131 = scmp.eq.s32.totalorder %s24, 3
    %p132 = por %p130, %p131
    %p133 = scmp.ne.s32.totalorder %s122, %s123
    %p134 = scmp.eq.s32.totalorder %s24, 0
    %p135 = por %p133, %p134
    %p136 = scmp.ne.s32.totalorder %s122, %s123
    %p137 = scmp.eq.s32.totalorder %s25, 3
    %p138 = por %p136, %p137
    %p140 = scmp.ne.s32.totalorder %s123, %s139
    %p141 = scmp.eq.s32.totalorder %s25, 0
    %p142 = por %p140, %p141
    %s143 = ssub.s32 %s27, %s34
    %p144 = scmp.eq.s32.totalorder %s143, 0
    %s146 = sadd.s32 %s145, 1
    %s147 = scalar_select %p144, %s145, %s146
    %p150 = pneg %p144
    %p151 = scmp.eq.s32.totalorder %s19, 3
    %p152 = por %p150, %p151
    %p153 = scmp.ne.s32.totalorder %s145, %s148
    %p154 = scmp.eq.s32.totalorder %s19, 0
    %p155 = por %p153, %p154
    %p156 = scmp.ne.s32.totalorder %s145, %s148
    %p157 = scmp.eq.s32.totalorder %s24, 3
    %p158 = por %p156, %p157
    %p159 = scmp.ne.s32.totalorder %s148, %s149
    %p160 = scmp.eq.s32.totalorder %s24, 0
    %p161 = por %p159, %p160
    %p162 = scmp.ne.s32.totalorder %s148, %s149
    %p163 = scmp.eq.s32.totalorder %s25, 3
    %p164 = por %p162, %p163
    %p166 = scmp.ne.s32.totalorder %s149, %s165
    %p167 = scmp.eq.s32.totalorder %s25, 0
    %p168 = por %p166, %p167
    %s169 = ssub.s32 %s27, %s34
    %p170 = scmp.eq.s32.totalorder %s169, 0
    %s172 = sadd.s32 %s171, 1
    %s173 = scalar_select %p170, %s171, %s172
    %p176 = pneg %p170
    %p177 = scmp.eq.s32.totalorder %s19, 3
    %p178 = por %p176, %p177
    %p179 = scmp.ne.s32.totalorder %s171, %s174
    %p180 = scmp.eq.s32.totalorder %s19, 0
    %p181 = por %p179, %p180
    %p182 = scmp.ne.s32.totalorder %s171, %s174
    %p183 = scmp.eq.s32.totalorder %s24, 3
    %p184 = por %p182, %p183
    %p185 = scmp.ne.s32.totalorder %s174, %s175
    %p186 = scmp.eq.s32.totalorder %s24, 0
    %p187 = por %p185, %p186
    %p188 = scmp.ne.s32.totalorder %s174, %s175
    %p189 = scmp.eq.s32.totalorder %s25, 3
    %p190 = por %p188, %p189
    %p192 = scmp.ne.s32.totalorder %s175, %s191
    %p193 = scmp.eq.s32.totalorder %s25, 0
    %p194 = por %p192, %p193
    %s195 = ssub.s32 %s27, %s34
    %p196 = scmp.eq.s32.totalorder %s195, 0
    %s198 = sadd.s32 %s197, 1
    %s199 = scalar_select %p196, %s197, %s198
    %p202 = pneg %p196
    %p203 = scmp.eq.s32.totalorder %s19, 3
    %p204 = por %p202, %p203
    %p205 = scmp.ne.s32.totalorder %s197, %s200
    %p206 = scmp.eq.s32.totalorder %s19, 0
    %p207 = por %p205, %p206
    %p208 = scmp.ne.s32.totalorder %s197, %s200
    %p209 = scmp.eq.s32.totalorder %s24, 3
    %p210 = por %p208, %p209
    %p211 = scmp.ne.s32.totalorder %s200, %s201
    %p212 = scmp.eq.s32.totalorder %s24, 0
    %p213 = por %p211, %p212
    %p214 = scmp.ne.s32.totalorder %s200, %s201
    %p215 = scmp.eq.s32.totalorder %s25, 3
    %p216 = por %p214, %p215
    %p218 = scmp.ne.s32.totalorder %s201, %s217
    %p219 = scmp.eq.s32.totalorder %s25, 0
    %p220 = por %p218, %p219
    %s221 = ssub.s32 %s27, %s34
    %p222 = scmp.eq.s32.totalorder %s221, 0
    %s224 = sadd.s32 %s223, 1
    %s225 = scalar_select %p222, %s223, %s224
    %p228 = pneg %p222
    %p229 = scmp.eq.s32.totalorder %s19, 3
    %p230 = por %p228, %p229
    %p231 = scmp.ne.s32.totalorder %s223, %s226
    %p232 = scmp.eq.s32.totalorder %s19, 0
    %p233 = por %p231, %p232
    %p234 = scmp.ne.s32.totalorder %s223, %s226
    %p235 = scmp.eq.s32.totalorder %s24, 3
    %p236 = por %p234, %p235
    %p237 = scmp.ne.s32.totalorder %s226, %s227
    %p238 = scmp.eq.s32.totalorder %s24, 0
    %p239 = por %p237, %p238
    %p240 = scmp.ne.s32.totalorder %s226, %s227
    %p241 = scmp.eq.s32.totalorder %s25, 3
    %p242 = por %p240, %p241
    %p244 = scmp.ne.s32.totalorder %s227, %s243
    %p245 = scmp.eq.s32.totalorder %s25, 0
    %p246 = por %p244, %p245
    %s247 = ssub.s32 %s27, %s34
    %p248 = scmp.eq.s32.totalorder %s247, 0
    %s250 = sadd.s32 %s249, 1
    %s251 = scalar_select %p248, %s249, %s250
    %p254 = pneg %p248
    %p255 = scmp.eq.s32.totalorder %s19, 3
    %p256 = por %p254, %p255
    %p257 = scmp.ne.s32.totalorder %s249, %s252
    %p258 = scmp.eq.s32.totalorder %s19, 0
    %p259 = por %p257, %p258
    %p260 = scmp.ne.s32.totalorder %s249, %s252
    %p261 = scmp.eq.s32.totalorder %s24, 3
    %p262 = por %p260, %p261
    %p263 = scmp.ne.s32.totalorder %s252, %s253
    %p264 = scmp.eq.s32.totalorder %s24, 0
    %p265 = por %p263, %p264
    %p266 = scmp.ne.s32.totalorder %s252, %s253
    %p267 = scmp.eq.s32.totalorder %s25, 3
    %p268 = por %p266, %p267
    %p270 = scmp.ne.s32.totalorder %s253, %s269
    %p271 = scmp.eq.s32.totalorder %s25, 0
    %p272 = por %p270, %p271
    %s273 = ssub.s32 %s27, %s34
    %p274 = scmp.eq.s32.totalorder %s273, 0
    %s276 = sadd.s32 %s275, 1
    %s277 = scalar_select %p274, %s275, %s276
    %p280 = pneg %p274
    %p281 = scmp.eq.s32.totalorder %s19, 3
    %p282 = por %p280, %p281
    %p283 = scmp.ne.s32.totalorder %s275, %s278
    %p284 = scmp.eq.s32.totalorder %s19, 0
    %p285 = por %p283, %p284
    %p286 = scmp.ne.s32.totalorder %s275, %s278
    %p287 = scmp.eq.s32.totalorder %s24, 3
    %p288 = por %p286, %p287
    %p289 = scmp.ne.s32.totalorder %s278, %s279
    %p290 = scmp.eq.s32.totalorder %s24, 0
    %p291 = por %p289, %p290
    %p292 = scmp.ne.s32.totalorder %s278, %s279
    %p293 = scmp.eq.s32.totalorder %s25, 3
    %p294 = por %p292, %p293
    %p296 = scmp.ne.s32.totalorder %s279, %s295
    %p297 = scmp.eq.s32.totalorder %s25, 0
    %p298 = por %p296, %p297
    %s299 = ssub.s32 %s27, %s34
    %p300 = scmp.eq.s32.totalorder %s299, 0
    %s302 = sadd.s32 %s301, 1
    %s303 = scalar_select %p300, %s301, %s302
    %p306 = pneg %p300
    %p307 = scmp.eq.s32.totalorder %s19, 3
    %p308 = por %p306, %p307
    %p309 = scmp.ne.s32.totalorder %s301, %s304
    %p310 = scmp.eq.s32.totalorder %s19, 0
    %p311 = por %p309, %p310
    %p312 = scmp.ne.s32.totalorder %s301, %s304
    %p313 = scmp.eq.s32.totalorder %s24, 3
    %p314 = por %p312, %p313
    %p315 = scmp.ne.s32.totalorder %s304, %s305
    %p316 = scmp.eq.s32.totalorder %s24, 0
    %p317 = por %p315, %p316
    %p318 = scmp.ne.s32.totalorder %s304, %s305
    %p319 = scmp.eq.s32.totalorder %s25, 3
    %p320 = por %p318, %p319
    %p322 = scmp.ne.s32.totalorder %s305, %s321
    %p323 = scmp.eq.s32.totalorder %s25, 0
    %p324 = por %p322, %p323
    %s325 = ssub.s32 %s27, %s34
    %p326 = scmp.eq.s32.totalorder %s325, 0
    %s328 = sadd.s32 %s327, 1
    %s329 = scalar_select %p326, %s327, %s328
    %p332 = pneg %p326
    %p333 = scmp.eq.s32.totalorder %s19, 3
    %p334 = por %p332, %p333
    %p335 = scmp.ne.s32.totalorder %s327, %s330
    %p336 = scmp.eq.s32.totalorder %s19, 0
    %p337 = por %p335, %p336
    %p338 = scmp.ne.s32.totalorder %s327, %s330
    %p339 = scmp.eq.s32.totalorder %s24, 3
    %p340 = por %p338, %p339
    %p341 = scmp.ne.s32.totalorder %s330, %s331
    %p342 = scmp.eq.s32.totalorder %s24, 0
    %p343 = por %p341, %p342
    %p344 = scmp.ne.s32.totalorder %s330, %s331
    %p345 = scmp.eq.s32.totalorder %s25, 3
    %p346 = por %p344, %p345
    %p348 = scmp.ne.s32.totalorder %s331, %s347
    %p349 = scmp.eq.s32.totalorder %s25, 0
    %p350 = por %p348, %p349
    %s351 = ssub.s32 %s27, %s34
    %p352 = scmp.eq.s32.totalorder %s351, 0
    %s354 = sadd.s32 %s353, 1
    %s355 = scalar_select %p352, %s353, %s354
    %p358 = pneg %p352
    %p359 = scmp.eq.s32.totalorder %s19, 3
    %p360 = por %p358, %p359
    %p361 = scmp.ne.s32.totalorder %s353, %s356
    %p362 = scmp.eq.s32.totalorder %s19, 0
    %p363 = por %p361, %p362
    %p364 = scmp.ne.s32.totalorder %s353, %s356
    %p365 = scmp.eq.s32.totalorder %s24, 3
    %p366 = por %p364, %p365
    %p367 = scmp.ne.s32.totalorder %s356, %s357
    %p368 = scmp.eq.s32.totalorder %s24, 0
    %p369 = por %p367, %p368
    %p370 = scmp.ne.s32.totalorder %s356, %s357
    %p371 = scmp.eq.s32.totalorder %s25, 3
    %p372 = por %p370, %p371
    %p374 = scmp.ne.s32.totalorder %s357, %s373
    %p375 = scmp.eq.s32.totalorder %s25, 0
    %p376 = por %p374, %p375
    %s377 = ssub.s32 %s26, %s38
    %p378 = scmp.eq.s32.totalorder %s377, 0
    %s380 = sadd.s32 %s379, 1
    %s381 = scalar_select %p378, %s379, %s380
    %p384 = pneg %p378
    %p385 = scmp.eq.s32.totalorder %s19, 3
    %p386 = por %p384, %p385
    %p387 = scmp.ne.s32.totalorder %s379, %s382
    %p388 = scmp.eq.s32.totalorder %s19, 0
    %p389 = por %p387, %p388
    %p390 = scmp.ne.s32.totalorder %s379, %s382
    %p391 = scmp.eq.s32.totalorder %s24, 3
    %p392 = por %p390, %p391
    %p393 = scmp.ne.s32.totalorder %s382, %s383
    %p394 = scmp.eq.s32.totalorder %s24, 0
    %p395 = por %p393, %p394
    %p396 = scmp.ne.s32.totalorder %s382, %s383
    %p397 = scmp.eq.s32.totalorder %s25, 3
    %p398 = por %p396, %p397
    %p400 = scmp.ne.s32.totalorder %s383, %s399
    %p401 = scmp.eq.s32.totalorder %s25, 0
    %p402 = por %p400, %p401
    %p403 = scmp.le.s32.totalorder 1, %s19
    %p404 = scmp.lt.s32.totalorder %s19, 5
    %p405 = pnand %p403, %p404
    %p406 = pneg %p405
    // Predicated region
    $region9: #{mae_forward.8} parent=5 // pred_check
      _
    $region10: #{mae_forward.8} parent=5 // pred_check_branch
      %408 = sbr.rel (%p405) target = $region12
    $region11: #{mae_forward.8} parent=5 // pred_region
      %s409 = ssub.s32 %s19, 1
    $region12: #{mae_forward.8} parent=5 // pred_fallthru
      _
    %p410 = scmp.lt.s32.totalorder %s19, 4
    // Predicated region
    $region13: #{mae_forward.8} parent=5 // pred_check
      %p411 = pneg %p410
    $region14: #{mae_forward.8} parent=5 // pred_check_branch
      %413 = sbr.rel (%p411) target = $region16
    $region15: #{mae_forward.8} parent=5 // pred_region
      // Predicated region
      $region17: #{mae_forward.8} parent=15 // pred_check
        %p414 = pneg %p51
      $region18: #{mae_forward.8} parent=15 // pred_check_branch
        %416 = sbr.rel (%p414) target = $region20
      $region19: #{mae_forward.8} parent=15 // pred_region
        %p417 = scmp.lt.s32.totalorder %s26, 1
        %s418 = scalar_select %p417, %s26, 1
        %s419 = smul.addr %s418, 5
        %s420 = smul.addr %s419, 8
        %s421 = scalar_lea.vmem %s0, %s420
      $region20: #{mae_forward.8} parent=15 // pred_fallthru
        _
      // Predicated region
      $region21: #{mae_forward.8} parent=15 // pred_check
        %p422 = pneg %p77
      $region22: #{mae_forward.8} parent=15 // pred_check_branch
        %424 = sbr.rel (%p422) target = $region24
      $region23: #{mae_forward.8} parent=15 // pred_region
        %p425 = scmp.lt.s32.totalorder %s27, 1
        %s426 = scalar_select %p425, %s27, 1
        %s427 = scalar_lea.vmem %s1, %s426
      $region24: #{mae_forward.8} parent=15 // pred_fallthru
        _
      // Predicated region
      $region25: #{mae_forward.8} parent=15 // pred_check
        %p428 = pneg %p103
      $region26: #{mae_forward.8} parent=15 // pred_check_branch
        %430 = sbr.rel (%p428) target = $region28
      $region27: #{mae_forward.8} parent=15 // pred_region
        %p431 = scmp.lt.s32.totalorder %s27, 1
        %s432 = scalar_select %p431, %s27, 1
        %s433 = scalar_lea.vmem %s2, %s432
      $region28: #{mae_forward.8} parent=15 // pred_fallthru
        _
      // Predicated region
      $region29: #{mae_forward.8} parent=15 // pred_check
        %p434 = pneg %p129
      $region30: #{mae_forward.8} parent=15 // pred_check_branch
        %436 = sbr.rel (%p434) target = $region32
      $region31: #{mae_forward.8} parent=15 // pred_region
        %p437 = scmp.lt.s32.totalorder %s27, 1
        %s438 = scalar_select %p437, %s27, 1
        %s439 = smul.addr %s438, 18
        %s440 = smul.addr %s439, 4
        %s441 = scalar_lea.vmem %s3, %s440
      $region32: #{mae_forward.8} parent=15 // pred_fallthru
        _
      // Predicated region
      $region33: #{mae_forward.8} parent=15 // pred_check
        %p442 = pneg %p155
      $region34: #{mae_forward.8} parent=15 // pred_check_branch
        %444 = sbr.rel (%p442) target = $region36
      $region35: #{mae_forward.8} parent=15 // pred_region
        %p445 = scmp.lt.s32.totalorder %s27, 1
        %s446 = scalar_select %p445, %s27, 1
        %s447 = smul.addr %s446, 3
        %s448 = scalar_lea.vmem %s4, %s447
      $region36: #{mae_forward.8} parent=15 // pred_fallthru
        _
      // Predicated region
      $region37: #{mae_forward.8} parent=15 // pred_check
        %p449 = pneg %p181
      $region38: #{mae_forward.8} parent=15 // pred_check_branch
        %451 = sbr.rel (%p449) target = $region40
      $region39: #{mae_forward.8} parent=15 // pred_region
        %p452 = scmp.lt.s32.totalorder %s27, 1
        %s453 = scalar_select %p452, %s27, 1
        %s454 = smul.addr %s453, 6
        %s455 = smul.addr %s454, 4
        %s456 = scalar_lea.vmem %s5, %s455
      $region40: #{mae_forward.8} parent=15 // pred_fallthru
        _
      // Predicated region
      $region41: #{mae_forward.8} parent=15 // pred_check
        %p457 = pneg %p207
      $region42: #{mae_forward.8} parent=15 // pred_check_branch
        %459 = sbr.rel (%p457) target = $region44
      $region43: #{mae_forward.8} parent=15 // pred_region
        %p460 = scmp.lt.s32.totalorder %s27, 1
        %s461 = scalar_select %p460, %s27, 1
        %s462 = scalar_lea.vmem %s6, %s461
      $region44: #{mae_forward.8} parent=15 // pred_fallthru
        _
      // Predicated region
      $region45: #{mae_forward.8} parent=15 // pred_check
        %p463 = pneg %p233
      $region46: #{mae_forward.8} parent=15 // pred_check_branch
        %465 = sbr.rel (%p463) target = $region48
      $region47: #{mae_forward.8} parent=15 // pred_region
        %p466 = scmp.lt.s32.totalorder %s27, 1
        %s467 = scalar_select %p466, %s27, 1
        %s468 = scalar_lea.vmem %s7, %s467
      $region48: #{mae_forward.8} parent=15 // pred_fallthru
        _
      // Predicated region
      $region49: #{mae_forward.8} parent=15 // pred_check
        %p469 = pneg %p259
      $region50: #{mae_forward.8} parent=15 // pred_check_branch
        %471 = sbr.rel (%p469) target = $region52
      $region51: #{mae_forward.8} parent=15 // pred_region
        %p472 = scmp.lt.s32.totalorder %s27, 1
        %s473 = scalar_select %p472, %s27, 1
        %s474 = scalar_lea.vmem %s8, %s473
      $region52: #{mae_forward.8} parent=15 // pred_fallthru
        _
      // Predicated region
      $region53: #{mae_forward.8} parent=15 // pred_check
        %p475 = pneg %p285
      $region54: #{mae_forward.8} parent=15 // pred_check_branch
        %477 = sbr.rel (%p475) target = $region56
      $region55: #{mae_forward.8} parent=15 // pred_region
        %p478 = scmp.lt.s32.totalorder %s27, 1
        %s479 = scalar_select %p478, %s27, 1
        %s480 = smul.addr %s479, 12
        %s481 = smul.addr %s480, 4
        %s482 = scalar_lea.vmem %s9, %s481
      $region56: #{mae_forward.8} parent=15 // pred_fallthru
        _
      // Predicated region
      $region57: #{mae_forward.8} parent=15 // pred_check
        %p483 = pneg %p311
      $region58: #{mae_forward.8} parent=15 // pred_check_branch
        %485 = sbr.rel (%p483) target = $region60
      $region59: #{mae_forward.8} parent=15 // pred_region
        %p486 = scmp.lt.s32.totalorder %s27, 1
        %s487 = scalar_select %p486, %s27, 1
        %s488 = smul.addr %s487, 2
        %s489 = scalar_lea.vmem %s10, %s488
      $region60: #{mae_forward.8} parent=15 // pred_fallthru
        _
      // Predicated region
      $region61: #{mae_forward.8} parent=15 // pred_check
        %p490 = pneg %p337
      $region62: #{mae_forward.8} parent=15 // pred_check_branch
        %492 = sbr.rel (%p490) target = $region64
      $region63: #{mae_forward.8} parent=15 // pred_region
        %p493 = scmp.lt.s32.totalorder %s27, 1
        %s494 = scalar_select %p493, %s27, 1
        %s495 = smul.addr %s494, 24
        %s496 = smul.addr %s495, 4
        %s497 = scalar_lea.vmem %s11, %s496
      $region64: #{mae_forward.8} parent=15 // pred_fallthru
        _
      // Predicated region
      $region65: #{mae_forward.8} parent=15 // pred_check
        %p498 = pneg %p363
      $region66: #{mae_forward.8} parent=15 // pred_check_branch
        %500 = sbr.rel (%p498) target = $region68
      $region67: #{mae_forward.8} parent=15 // pred_region
        %p501 = scmp.lt.s32.totalorder %s27, 1
        %s502 = scalar_select %p501, %s27, 1
        %s503 = scalar_lea.vmem %s12, %s502
      $region68: #{mae_forward.8} parent=15 // pred_fallthru
        _
    $region16: #{mae_forward.8} parent=5 // pred_fallthru
      _
    %p504 = scmp.le.s32.totalorder 1, %s19
    %p505 = scmp.lt.s32.totalorder %s19, 5
    %p506 = pnand %p504, %p505
    %p507 = pneg %p506
    // Predicated region
    $region69: #{mae_forward.8} parent=5 // pred_check
      _
    $region70: #{mae_forward.8} parent=5 // pred_check_branch
      %509 = sbr.rel (%p506) target = $region72
    $region71: #{mae_forward.8} parent=5 // pred_region
      %s510 = ssub.s32 %s19, 1
      %p511 = scmp.lt.s32.totalorder %s28, 1
      %s512 = scalar_select %p511, %s28, 1
      %s513 = smul.addr %s512, 5
      %s514 = smul.addr %s513, 8
      %s515 = scalar_lea.vmem %s0, %s514
      %p516 = pneg %p57
      %p517 = pneg %p54
      %p518 = scmp.lt.s32.totalorder %s29, 1
      %s519 = scalar_select %p518, %s29, 1
      %s520 = scalar_lea.vmem %s1, %s519
      %p521 = pneg %p83
      %p522 = pneg %p80
      %p523 = scmp.lt.s32.totalorder %s29, 1
      %s524 = scalar_select %p523, %s29, 1
      %s525 = scalar_lea.vmem %s2, %s524
      %p526 = pneg %p109
      %p527 = pneg %p106
      %p528 = scmp.lt.s32.totalorder %s29, 1
      %s529 = scalar_select %p528, %s29, 1
      %s530 = smul.addr %s529, 18
      %s531 = smul.addr %s530, 4
      %s532 = scalar_lea.vmem %s3, %s531
      %p533 = pneg %p135
      %p534 = pneg %p132
      %p535 = scmp.lt.s32.totalorder %s29, 1
      %s536 = scalar_select %p535, %s29, 1
      %s537 = smul.addr %s536, 3
      %s538 = scalar_lea.vmem %s4, %s537
      %p539 = pneg %p161
      %p540 = pneg %p158
      %p541 = scmp.lt.s32.totalorder %s29, 1
      %s542 = scalar_select %p541, %s29, 1
      %s543 = smul.addr %s542, 6
      %s544 = smul.addr %s543, 4
      %s545 = scalar_lea.vmem %s5, %s544
      %p546 = pneg %p187
      %p547 = pneg %p184
      %p548 = scmp.lt.s32.totalorder %s29, 1
      %s549 = scalar_select %p548, %s29, 1
      %s550 = scalar_lea.vmem %s6, %s549
      %p551 = pneg %p213
      %p552 = pneg %p210
      %p553 = scmp.lt.s32.totalorder %s29, 1
      %s554 = scalar_select %p553, %s29, 1
      %s555 = scalar_lea.vmem %s7, %s554
      %p556 = pneg %p239
      %p557 = pneg %p236
      %p558 = scmp.lt.s32.totalorder %s29, 1
      %s559 = scalar_select %p558, %s29, 1
      %s560 = scalar_lea.vmem %s8, %s559
      %p561 = pneg %p265
      %p562 = pneg %p262
      %p563 = scmp.lt.s32.totalorder %s29, 1
      %s564 = scalar_select %p563, %s29, 1
      %s565 = smul.addr %s564, 12
      %s566 = smul.addr %s565, 4
      %s567 = scalar_lea.vmem %s9, %s566
      %p568 = pneg %p291
      %p569 = pneg %p288
      %p570 = scmp.lt.s32.totalorder %s29, 1
      %s571 = scalar_select %p570, %s29, 1
      %s572 = smul.addr %s571, 2
      %s573 = scalar_lea.vmem %s10, %s572
      %p574 = pneg %p317
      %p575 = pneg %p314
      %p576 = scmp.lt.s32.totalorder %s29, 1
      %s577 = scalar_select %p576, %s29, 1
      %s578 = smul.addr %s577, 24
      %s579 = smul.addr %s578, 4
      %s580 = scalar_lea.vmem %s11, %s579
      %p581 = pneg %p343
      %p582 = pneg %p340
      %p583 = scmp.lt.s32.totalorder %s29, 1
      %s584 = scalar_select %p583, %s29, 1
      %s585 = scalar_lea.vmem %s12, %s584
      %p586 = pneg %p369
      %p587 = pneg %p366
      %p588 = pneg %p395
      %p589 = pneg %p392
      %p590 = scmp.lt.s32.totalorder %s28, 1
      %s591 = scalar_select %p590, %s28, 1
      %s592 = smul.addr %s591, 5
      %s593 = smul.addr %s592, 8
      %s594 = scalar_lea.vmem %s13, %s593
      %p595 = scmp.lt.s32.totalorder %s28, 1
      %s596 = scalar_select %p595, %s28, 1
      %s597 = smul.addr %s596, 5
      %s598 = smul.addr %s597, 8
      %s599 = scalar_lea.vmem %s0, %s598
      %p600 = scmp.lt.s32.totalorder %s29, 1
      %s601 = scalar_select %p600, %s29, 1
      %s602 = scalar_lea.vmem %s1, %s601
      %p603 = scmp.lt.s32.totalorder %s29, 1
      %s604 = scalar_select %p603, %s29, 1
      %s605 = scalar_lea.vmem %s2, %s604
      %p606 = scmp.lt.s32.totalorder %s29, 1
      %s607 = scalar_select %p606, %s29, 1
      %s608 = smul.addr %s607, 18
      %s609 = smul.addr %s608, 4
      %s610 = scalar_lea.vmem %s3, %s609
      %p611 = scmp.lt.s32.totalorder %s29, 1
      %s612 = scalar_select %p611, %s29, 1
      %s613 = smul.addr %s612, 3
      %s614 = scalar_lea.vmem %s4, %s613
      %p615 = scmp.lt.s32.totalorder %s29, 1
      %s616 = scalar_select %p615, %s29, 1
      %s617 = smul.addr %s616, 6
      %s618 = smul.addr %s617, 4
      %s619 = scalar_lea.vmem %s5, %s618
      %p620 = scmp.lt.s32.totalorder %s29, 1
      %s621 = scalar_select %p620, %s29, 1
      %s622 = scalar_lea.vmem %s6, %s621
      %p623 = scmp.lt.s32.totalorder %s29, 1
      %s624 = scalar_select %p623, %s29, 1
      %s625 = scalar_lea.vmem %s7, %s624
      %p626 = scmp.lt.s32.totalorder %s29, 1
      %s627 = scalar_select %p626, %s29, 1
      %s628 = scalar_lea.vmem %s8, %s627
      %p629 = scmp.lt.s32.totalorder %s29, 1
      %s630 = scalar_select %p629, %s29, 1
      %s631 = smul.addr %s630, 12
      %s632 = smul.addr %s631, 4
      %s633 = scalar_lea.vmem %s9, %s632
      %p634 = scmp.lt.s32.totalorder %s29, 1
      %s635 = scalar_select %p634, %s29, 1
      %s636 = smul.addr %s635, 2
      %s637 = scalar_lea.vmem %s10, %s636
      %p638 = scmp.lt.s32.totalorder %s29, 1
      %s639 = scalar_select %p638, %s29, 1
      %s640 = smul.addr %s639, 24
      %s641 = smul.addr %s640, 4
      %s642 = scalar_lea.vmem %s11, %s641
      %p643 = scmp.lt.s32.totalorder %s29, 1
      %s644 = scalar_select %p643, %s29, 1
      %s645 = scalar_lea.vmem %s12, %s644
      %p646 = scmp.lt.s32.totalorder %s28, 1
      %s647 = scalar_select %p646, %s28, 1
      %s648 = smul.addr %s647, 5
      %s649 = smul.addr %s648, 8
      %s650 = scalar_lea.vmem %s13, %s649
      %p652 = scmp.eq.s32.totalorder %s29, 0
      // Predicated region
      $region73: #{mae_forward.8} parent=71 // pred_check
        %p653 = pneg %p652
      $region74: #{mae_forward.8} parent=71 // pred_check_branch
        %655 = sbr.rel (%p653) target = $region76
      $region75: #{mae_forward.8} parent=71 // pred_region
        %v656 = vld [vmem:[%s599] sm:$0xff]
        %v657 = vld [vmem:[%s599 + $0x8] sm:$0xff]
        %v658 = vld [vmem:[%s599 + $0x10] sm:$0xff]
        %v659 = vld [vmem:[%s599 + $0x18] sm:$0xff]
        %v660 = vld [vmem:[%s599 + $0x20] sm:$0x1]
        %vm661 = vcmask 392192
        %662 = vst.msk [vmem:[%s650] sm:$0xff] %vm661, %v656
        %663 = vst.msk [vmem:[%s650 + $0x8] sm:$0xff] %vm661, %v657
        %664 = vst.msk [vmem:[%s650 + $0x10] sm:$0xff] %vm661, %v658
        %665 = vst.msk [vmem:[%s650 + $0x18] sm:$0xff] %vm661, %v659
        %vm666 = vcmask 385024
        %667 = vst.msk [vmem:[%s650 + $0x20] sm:$0x1] %vm666, %v660
      $region76: #{mae_forward.8} parent=71 // pred_fallthru
        _
      %v668 = vld [vmem:[%s650] sm:$0xff]
      %v669 = vld [vmem:[%s650 + $0x8] sm:$0xff]
      %v670 = vld [vmem:[%s650 + $0x10] sm:$0xff]
      %v671 = vld [vmem:[%s650 + $0x18] sm:$0xff]
      %v672 = vld [vmem:[%s650 + $0x20] sm:$0x1]
      %v673 = vld [vmem:[%s602] sm:$0x1]
      %v674 = vld [vmem:[%s605] sm:$0x1]
      %vm675 = vcmask 392192
      %v676 = vsel %vm675, %v668, 0.0
      %677 = vadd.xlane.f32.xlu0 %v676
      %v678 = vpop.xlane.xlu0 %677
      %v679 = vsel %vm675, %v669, 0.0
      %680 = vadd.xlane.f32.xlu0 %v679
      %v681 = vpop.xlane.xlu0 %680
      %v682 = vsel %vm675, %v670, 0.0
      %683 = vadd.xlane.f32.xlu0 %v682
      %v684 = vpop.xlane.xlu0 %683
      %v685 = vsel %vm675, %v671, 0.0
      %686 = vadd.xlane.f32.xlu0 %v685
      %v687 = vpop.xlane.xlu0 %686
      %vm688 = vcmask 385024
      %v689 = vsel %vm688, %v672, 0.0
      %690 = vadd.xlane.f32.xlu0 %v689
      %v691 = vpop.xlane.xlu0 %690
      %v692 = vrcp.pop 48.0
      %v693 = vmul.f32 48.0, %v692
      %v694 = vsub.f32 1.0, %v693
      %v695 = vmul.f32 %v692, %v694
      %v696 = vadd.f32 %v692, %v695
      %vm697 = vweird.f32 %v692
      %v698 = vsel %vm697, %v692, %v696
      %v699 = vmul.f32 %v678, %v698
      %v700 = vmul.f32 %v681, %v698
      %v701 = vmul.f32 %v684, %v698
      %v702 = vmul.f32 %v687, %v698
      %v703 = vmul.f32 %v691, %v698
      %v704 = vsub.f32 %v668, %v699
      %v705 = vsub.f32 %v669, %v700
      %v706 = vsub.f32 %v670, %v701
      %v707 = vsub.f32 %v671, %v702
      %v708 = vsub.f32 %v672, %v703
      %v709 = vmul.f32 %v704, %v704
      %v710 = vmul.f32 %v705, %v705
      %v711 = vmul.f32 %v706, %v706
      %v712 = vmul.f32 %v707, %v707
      %v713 = vmul.f32 %v708, %v708
      %v714 = vsel %vm675, %v709, 0.0
      %715 = vadd.xlane.f32.xlu0 %v714
      %v716 = vpop.xlane.xlu0 %715
      %v717 = vsel %vm675, %v710, 0.0
      %718 = vadd.xlane.f32.xlu0 %v717
      %v719 = vpop.xlane.xlu0 %718
      %v720 = vsel %vm675, %v711, 0.0
      %721 = vadd.xlane.f32.xlu0 %v720
      %v722 = vpop.xlane.xlu0 %721
      %v723 = vsel %vm675, %v712, 0.0
      %724 = vadd.xlane.f32.xlu0 %v723
      %v725 = vpop.xlane.xlu0 %724
      %v726 = vsel %vm688, %v713, 0.0
      %727 = vadd.xlane.f32.xlu0 %v726
      %v728 = vpop.xlane.xlu0 %727
      %v729 = vmul.f32 %v716, %v698
      %v730 = vmul.f32 %v719, %v698
      %v731 = vmul.f32 %v722, %v698
      %v732 = vmul.f32 %v725, %v698
      %v733 = vmul.f32 %v728, %v698
      %v734 = vadd.f32 %v729, 1e-05
      %v735 = vadd.f32 %v730, 1e-05
      %v736 = vadd.f32 %v731, 1e-05
      %v737 = vadd.f32 %v732, 1e-05
      %v738 = vadd.f32 %v733, 1e-05
      %v739 = vrsqrt.pop %v734
      %v740 = vmul.f32 %v739, %v734
      %v741 = vmul.f32 %v740, %v739
      %v742 = vmul.f32 0.5, %v741
      %v743 = vsub.f32 1.5, %v742
      %v744 = vmul.f32 %v739, %v743
      %vm745 = vweird.f32 %v734
      %vm746 = vweird.f32 %v739
      %vm747 = vmor %vm745, %vm746
      %v748 = vsel %vm747, %v739, %v744
      %v749 = vrsqrt.pop %v735
      %v750 = vmul.f32 %v749, %v735
      %v751 = vmul.f32 %v750, %v749
      %v752 = vmul.f32 0.5, %v751
      %v753 = vsub.f32 1.5, %v752
      %v754 = vmul.f32 %v749, %v753
      %vm755 = vweird.f32 %v735
      %vm756 = vweird.f32 %v749
      %vm757 = vmor %vm755, %vm756
      %v758 = vsel %vm757, %v749, %v754
      %v759 = vrsqrt.pop %v736
      %v760 = vmul.f32 %v759, %v736
      %v761 = vmul.f32 %v760, %v759
      %v762 = vmul.f32 0.5, %v761
      %v763 = vsub.f32 1.5, %v762
      %v764 = vmul.f32 %v759, %v763
      %vm765 = vweird.f32 %v736
      %vm766 = vweird.f32 %v759
      %vm767 = vmor %vm765, %vm766
      %v768 = vsel %vm767, %v759, %v764
      %v769 = vrsqrt.pop %v737
      %v770 = vmul.f32 %v769, %v737
      %v771 = vmul.f32 %v770, %v769
      %v772 = vmul.f32 0.5, %v771
      %v773 = vsub.f32 1.5, %v772
      %v774 = vmul.f32 %v769, %v773
      %vm775 = vweird.f32 %v737
      %vm776 = vweird.f32 %v769
      %vm777 = vmor %vm775, %vm776
      %v778 = vsel %vm777, %v769, %v774
      %v779 = vrsqrt.pop %v738
      %v780 = vmul.f32 %v779, %v738
      %v781 = vmul.f32 %v780, %v779
      %v782 = vmul.f32 0.5, %v781
      %v783 = vsub.f32 1.5, %v782
      %v784 = vmul.f32 %v779, %v783
      %vm785 = vweird.f32 %v738
      %vm786 = vweird.f32 %v779
      %vm787 = vmor %vm785, %vm786
      %v788 = vsel %vm787, %v779, %v784
      %v789 = vmul.f32 %v704, %v748
      %v790 = vmul.f32 %v705, %v758
      %v791 = vmul.f32 %v706, %v768
      %v792 = vmul.f32 %v707, %v778
      %v793 = vmul.f32 %v708, %v788
      %v795 = vperm.slane %v673, 0
      %v797 = vmul.f32 %v789, %v795
      %v798 = vmul.f32 %v790, %v795
      %v799 = vmul.f32 %v791, %v795
      %v800 = vmul.f32 %v792, %v795
      %v801 = vmul.f32 %v793, %v795
      %v803 = vperm.slane %v674, 0
      %v805 = vadd.f32 %v797, %v803
      %v806 = vadd.f32 %v798, %v803
      %v807 = vadd.f32 %v799, %v803
      %v808 = vadd.f32 %v800, %v803
      %v809 = vadd.f32 %v801, %v803
      %v810 = vld [vmem:[%s610] sm:$0xf]
      %v811 = vld [vmem:[%s610 + $0x4] sm:$0xf]
      %v812 = vld [vmem:[%s610 + $0x8] sm:$0xf]
      %v813 = vld [vmem:[%s610 + $0xc] sm:$0xf]
      %v814 = vld [vmem:[%s610 + $0x10] sm:$0xf]
      %v815 = vld [vmem:[%s610 + $0x14] sm:$0xf]
      %v816 = vpack.c.bf16 %v806, %v805
      %v817 = vpack.c.bf16 %v808, %v807
      %v818 = vpack.c.bf16 %v809, %v809
      %v819 = vld [vmem:[%s614] sm:$0x1]
      %v821 = vperm.slane %v819, 0
      %v829 = vunpack.c.l.b16 %v810
      %v830 = vunpack.c.l.b16 %v811
      %v831 = vunpack.c.l.b16 %v812
      %v832 = vunpack.c.l.b16 %v813
      %v833 = vunpack.c.l.b16 %v814
      %v834 = vunpack.c.l.b16 %v815
      %v835 = vpack.c.b16 %v830, %v829
      %v836 = vpack.c.b16 %v832, %v831
      %v837 = vpack.c.b16 %v834, %v833
      %v842 = vsel %vm675, %v816, 0
      %v845 = vsel %vm675, %v817, 0
      %v848 = vsel %vm675, %v818, 0
      %850 = vmatpush.bf16.msra.mxu0 0
      %851 = vmatpush.bf16.msra.mxu0 0
      %852 = vmatpush.bf16.msra.mxu0 0
      %853 = vmatpush.bf16.msra.mxu0 0
      %854 = vmatpush.bf16.msra.mxu0 0
      %855 = vmatpush.bf16.msra.mxu0 %v837
      %856 = vmatpush.bf16.msra.mxu0 %v836
      %857 = vmatpush.bf16.msra.mxu0 %v835
      %858 = vmatmul.bf16.gmra.mxu0 %v842
      %v859 = vpop.f32.mrf.mxu0
      %v860 = vadd.f32 %v821, %v859
      %v861 = vpop.f32.mrf.mxu0
      %v862 = vadd.f32 %v821, %v861
      %863 = vmatmul.bf16.gmra.mxu0 %v845
      %v864 = vpop.f32.mrf.mxu0
      %v865 = vadd.f32 %v821, %v864
      %v866 = vpop.f32.mrf.mxu0
      %v867 = vadd.f32 %v821, %v866
      %868 = vmatmul.bf16.gmra.mxu0 %v848
      %v869 = vpop.f32.mrf.mxu0
      %v870 = vadd.f32 %v821, %v869
      %v871 = vpop.f32.mrf.mxu0
      %872 = vdwg.mxu0
      %s873 = scalar_lea.vmem %s610, 24
      %v874 = vld [vmem:[%s873] sm:$0xf]
      %v875 = vld [vmem:[%s873 + $0x4] sm:$0xf]
      %v876 = vld [vmem:[%s873 + $0x8] sm:$0xf]
      %v877 = vld [vmem:[%s873 + $0xc] sm:$0xf]
      %v878 = vld [vmem:[%s873 + $0x10] sm:$0xf]
      %v879 = vld [vmem:[%s873 + $0x14] sm:$0xf]
      %s880 = scalar_lea.vmem %s614, 1
      %v881 = vld [vmem:[%s880] sm:$0x1]
      %v883 = vperm.slane %v881, 0
      %v891 = vunpack.c.l.b16 %v874
      %v892 = vunpack.c.l.b16 %v875
      %v893 = vunpack.c.l.b16 %v876
      %v894 = vunpack.c.l.b16 %v877
      %v895 = vunpack.c.l.b16 %v878
      %v896 = vunpack.c.l.b16 %v879
      %v897 = vpack.c.b16 %v892, %v891
      %v898 = vpack.c.b16 %v894, %v893
      %v899 = vpack.c.b16 %v896, %v895
      %903 = vmatpush.bf16.msra.mxu0 0
      %904 = vmatpush.bf16.msra.mxu0 0
      %905 = vmatpush.bf16.msra.mxu0 0
      %906 = vmatpush.bf16.msra.mxu0 0
      %907 = vmatpush.bf16.msra.mxu0 0
      %908 = vmatpush.bf16.msra.mxu0 %v899
      %909 = vmatpush.bf16.msra.mxu0 %v898
      %910 = vmatpush.bf16.msra.mxu0 %v897
      %911 = vmatmul.bf16.gmra.mxu0 %v842
      %v912 = vpop.f32.mrf.mxu0
      %v913 = vadd.f32 %v883, %v912
      %v914 = vpop.f32.mrf.mxu0
      %v915 = vadd.f32 %v883, %v914
      %916 = vmatmul.bf16.gmra.mxu0 %v845
      %v917 = vpop.f32.mrf.mxu0
      %v918 = vadd.f32 %v883, %v917
      %v919 = vpop.f32.mrf.mxu0
      %v920 = vadd.f32 %v883, %v919
      %921 = vmatmul.bf16.gmra.mxu0 %v848
      %v922 = vpop.f32.mrf.mxu0
      %v923 = vadd.f32 %v883, %v922
      %v924 = vpop.f32.mrf.mxu0
      %925 = vdwg.mxu0
      %s926 = scalar_lea.vmem %s610, 48
      %v927 = vld [vmem:[%s926] sm:$0xf]
      %v928 = vld [vmem:[%s926 + $0x4] sm:$0xf]
      %v929 = vld [vmem:[%s926 + $0x8] sm:$0xf]
      %v930 = vld [vmem:[%s926 + $0xc] sm:$0xf]
      %v931 = vld [vmem:[%s926 + $0x10] sm:$0xf]
      %v932 = vld [vmem:[%s926 + $0x14] sm:$0xf]
      %s933 = scalar_lea.vmem %s614, 2
      %v934 = vld [vmem:[%s933] sm:$0x1]
      %v936 = vperm.slane %v934, 0
      %v944 = vunpack.c.l.b16 %v927
      %v945 = vunpack.c.l.b16 %v928
      %v946 = vunpack.c.l.b16 %v929
      %v947 = vunpack.c.l.b16 %v930
      %v948 = vunpack.c.l.b16 %v931
      %v949 = vunpack.c.l.b16 %v932
      %v950 = vpack.c.b16 %v945, %v944
      %v951 = vpack.c.b16 %v947, %v946
      %v952 = vpack.c.b16 %v949, %v948
      %956 = vmatpush.bf16.msra.mxu0 0
      %957 = vmatpush.bf16.msra.mxu0 0
      %958 = vmatpush.bf16.msra.mxu0 0
      %959 = vmatpush.bf16.msra.mxu0 0
      %960 = vmatpush.bf16.msra.mxu0 0
      %961 = vmatpush.bf16.msra.mxu0 %v952
      %962 = vmatpush.bf16.msra.mxu0 %v951
      %963 = vmatpush.bf16.msra.mxu0 %v950
      %964 = vmatmul.bf16.gmra.mxu0 %v842
      %v965 = vpop.f32.mrf.mxu0
      %v966 = vadd.f32 %v936, %v965
      %v967 = vpop.f32.mrf.mxu0
      %v968 = vadd.f32 %v936, %v967
      %969 = vmatmul.bf16.gmra.mxu0 %v845
      %v970 = vpop.f32.mrf.mxu0
      %v971 = vadd.f32 %v936, %v970
      %v972 = vpop.f32.mrf.mxu0
      %v973 = vadd.f32 %v936, %v972
      %974 = vmatmul.bf16.gmra.mxu0 %v848
      %v975 = vpop.f32.mrf.mxu0
      %v976 = vadd.f32 %v936, %v975
      %v977 = vpop.f32.mrf.mxu0
      %978 = vdwg.mxu0
      %984 = vrot.lane.b32.xlu0 %v860, 116
      %v985 = vpop.permute.xlu0 %984
      %986 = vrot.lane.b32.xlu0 %v862, 116
      %v987 = vpop.permute.xlu0 %986
      %988 = vrot.lane.b32.xlu0 %v865, 116
      %v989 = vpop.permute.xlu0 %988
      %990 = vrot.lane.b32.xlu0 %v867, 116
      %v991 = vpop.permute.xlu0 %990
      %992 = vrot.lane.b32.xlu0 %v870, 116
      %v993 = vpop.permute.xlu0 %992
      %999 = vrot.lane.b32.xlu0 %v860, 104
      %v1000 = vpop.permute.xlu0 %999
      %1001 = vrot.lane.b32.xlu0 %v862, 104
      %v1002 = vpop.permute.xlu0 %1001
      %1003 = vrot.lane.b32.xlu0 %v865, 104
      %v1004 = vpop.permute.xlu0 %1003
      %1005 = vrot.lane.b32.xlu0 %v867, 104
      %v1006 = vpop.permute.xlu0 %1005
      %1007 = vrot.lane.b32.xlu0 %v870, 104
      %v1008 = vpop.permute.xlu0 %1007
      %1014 = vrot.lane.b32.xlu0 %v860, 92
      %v1015 = vpop.permute.xlu0 %1014
      %1016 = vrot.lane.b32.xlu0 %v862, 92
      %v1017 = vpop.permute.xlu0 %1016
      %1018 = vrot.lane.b32.xlu0 %v865, 92
      %v1019 = vpop.permute.xlu0 %1018
      %1020 = vrot.lane.b32.xlu0 %v867, 92
      %v1021 = vpop.permute.xlu0 %1020
      %1022 = vrot.lane.b32.xlu0 %v870, 92
      %v1023 = vpop.permute.xlu0 %1022
      %1034 = vrot.lane.b32.xlu0 %v913, 116
      %v1035 = vpop.permute.xlu0 %1034
      %1036 = vrot.lane.b32.xlu0 %v915, 116
      %v1037 = vpop.permute.xlu0 %1036
      %1038 = vrot.lane.b32.xlu0 %v918, 116
      %v1039 = vpop.permute.xlu0 %1038
      %1040 = vrot.lane.b32.xlu0 %v920, 116
      %v1041 = vpop.permute.xlu0 %1040
      %1042 = vrot.lane.b32.xlu0 %v923, 116
      %v1043 = vpop.permute.xlu0 %1042
      %1049 = vrot.lane.b32.xlu0 %v913, 104
      %v1050 = vpop.permute.xlu0 %1049
      %1051 = vrot.lane.b32.xlu0 %v915, 104
      %v1052 = vpop.permute.xlu0 %1051
      %1053 = vrot.lane.b32.xlu0 %v918, 104
      %v1054 = vpop.permute.xlu0 %1053
      %1055 = vrot.lane.b32.xlu0 %v920, 104
      %v1056 = vpop.permute.xlu0 %1055
      %1057 = vrot.lane.b32.xlu0 %v923, 104
      %v1058 = vpop.permute.xlu0 %1057
      %1064 = vrot.lane.b32.xlu0 %v913, 92
      %v1065 = vpop.permute.xlu0 %1064
      %1066 = vrot.lane.b32.xlu0 %v915, 92
      %v1067 = vpop.permute.xlu0 %1066
      %1068 = vrot.lane.b32.xlu0 %v918, 92
      %v1069 = vpop.permute.xlu0 %1068
      %1070 = vrot.lane.b32.xlu0 %v920, 92
      %v1071 = vpop.permute.xlu0 %1070
      %1072 = vrot.lane.b32.xlu0 %v923, 92
      %v1073 = vpop.permute.xlu0 %1072
      %1084 = vrot.lane.b32.xlu0 %v966, 116
      %v1085 = vpop.permute.xlu0 %1084
      %1086 = vrot.lane.b32.xlu0 %v968, 116
      %v1087 = vpop.permute.xlu0 %1086
      %1088 = vrot.lane.b32.xlu0 %v971, 116
      %v1089 = vpop.permute.xlu0 %1088
      %1090 = vrot.lane.b32.xlu0 %v973, 116
      %v1091 = vpop.permute.xlu0 %1090
      %1092 = vrot.lane.b32.xlu0 %v976, 116
      %v1093 = vpop.permute.xlu0 %1092
      %1099 = vrot.lane.b32.xlu0 %v966, 104
      %v1100 = vpop.permute.xlu0 %1099
      %1101 = vrot.lane.b32.xlu0 %v968, 104
      %v1102 = vpop.permute.xlu0 %1101
      %1103 = vrot.lane.b32.xlu0 %v971, 104
      %v1104 = vpop.permute.xlu0 %1103
      %1105 = vrot.lane.b32.xlu0 %v973, 104
      %v1106 = vpop.permute.xlu0 %1105
      %1107 = vrot.lane.b32.xlu0 %v976, 104
      %v1108 = vpop.permute.xlu0 %1107
      %1114 = vrot.lane.b32.xlu0 %v966, 92
      %v1115 = vpop.permute.xlu0 %1114
      %1116 = vrot.lane.b32.xlu0 %v968, 92
      %v1117 = vpop.permute.xlu0 %1116
      %1118 = vrot.lane.b32.xlu0 %v971, 92
      %v1119 = vpop.permute.xlu0 %1118
      %1120 = vrot.lane.b32.xlu0 %v973, 92
      %v1121 = vpop.permute.xlu0 %1120
      %1122 = vrot.lane.b32.xlu0 %v976, 92
      %v1123 = vpop.permute.xlu0 %1122
      %v1129 = vpack.c.bf16 %v860, %v860
      %v1130 = vpack.c.bf16 %v862, %v862
      %v1131 = vpack.c.bf16 %v865, %v865
      %v1132 = vpack.c.bf16 %v867, %v867
      %v1133 = vpack.c.bf16 %v870, %v870
      %v1134 = vpack.c.bf16 %v985, %v985
      %v1135 = vpack.c.bf16 %v987, %v987
      %v1136 = vpack.c.bf16 %v989, %v989
      %v1137 = vpack.c.bf16 %v991, %v991
      %v1138 = vpack.c.bf16 %v993, %v993
      %v1139 = vpack.c.bf16 %v1000, %v1000
      %v1140 = vpack.c.bf16 %v1002, %v1002
      %v1141 = vpack.c.bf16 %v1004, %v1004
      %v1142 = vpack.c.bf16 %v1006, %v1006
      %v1143 = vpack.c.bf16 %v1008, %v1008
      %v1144 = vpack.c.bf16 %v1015, %v1015
      %v1145 = vpack.c.bf16 %v1017, %v1017
      %v1146 = vpack.c.bf16 %v1019, %v1019
      %v1147 = vpack.c.bf16 %v1021, %v1021
      %v1148 = vpack.c.bf16 %v1023, %v1023
      %v1149 = vpack.c.bf16 %v913, %v913
      %v1150 = vpack.c.bf16 %v915, %v915
      %v1151 = vpack.c.bf16 %v918, %v918
      %v1152 = vpack.c.bf16 %v920, %v920
      %v1153 = vpack.c.bf16 %v923, %v923
      %v1154 = vpack.c.bf16 %v1035, %v1035
      %v1155 = vpack.c.bf16 %v1037, %v1037
      %v1156 = vpack.c.bf16 %v1039, %v1039
      %v1157 = vpack.c.bf16 %v1041, %v1041
      %v1158 = vpack.c.bf16 %v1043, %v1043
      %v1159 = vpack.c.bf16 %v1050, %v1050
      %v1160 = vpack.c.bf16 %v1052, %v1052
      %v1161 = vpack.c.bf16 %v1054, %v1054
      %v1162 = vpack.c.bf16 %v1056, %v1056
      %v1163 = vpack.c.bf16 %v1058, %v1058
      %v1164 = vpack.c.bf16 %v1065, %v1065
      %v1165 = vpack.c.bf16 %v1067, %v1067
      %v1166 = vpack.c.bf16 %v1069, %v1069
      %v1167 = vpack.c.bf16 %v1071, %v1071
      %v1168 = vpack.c.bf16 %v1073, %v1073
      %v1174 = vunpack.c.l.b16 %v1129
      %v1175 = vunpack.c.l.b16 %v1130
      %v1176 = vunpack.c.l.b16 %v1131
      %v1177 = vunpack.c.l.b16 %v1132
      %v1178 = vunpack.c.l.b16 %v1133
      %v1179 = vpack.c.b16 %v1175, %v1174
      %v1180 = vpack.c.b16 %v1177, %v1176
      %v1181 = vpack.c.b16 %v1178, %v1178
      %v1187 = vunpack.c.l.b16 %v1149
      %v1188 = vunpack.c.l.b16 %v1150
      %v1189 = vunpack.c.l.b16 %v1151
      %v1190 = vunpack.c.l.b16 %v1152
      %v1191 = vunpack.c.l.b16 %v1153
      %v1192 = vpack.c.b16 %v1188, %v1187
      %v1193 = vpack.c.b16 %v1190, %v1189
      %v1194 = vpack.c.b16 %v1191, %v1191
      %vm1195 = vcmask 97280
      %v1197 = vsel %vm1195, %v1179, 0
      %v1200 = vsel %vm1195, %v1180, 0
      %v1203 = vsel %vm1195, %v1181, 0
      %v1206 = vsel %vm1195, %v1192, 0
      %v1209 = vsel %vm1195, %v1193, 0
      %v1212 = vsel %vm1195, %v1194, 0
      %1214 = vmatpush.bf16.xpose.msra.mxu0 0
      %1215 = vmatpush.bf16.xpose.msra.mxu0 0
      %1216 = vmatpush.bf16.xpose.msra.mxu0 0
      %1217 = vmatpush.bf16.xpose.msra.mxu0 0
      %1218 = vmatpush.bf16.xpose.msra.mxu0 0
      %1219 = vmatpush.bf16.xpose.msra.mxu0 %v1212
      %1220 = vmatpush.bf16.xpose.msra.mxu0 %v1209
      %1221 = vmatpush.bf16.xpose.msra.mxu0 %v1206
      %1222 = vmatmul.bf16.gmra.mxu0 %v1197
      %v1223 = vpop.f32.mrf.mxu0
      %v1224 = vadd.f32 0.0, %v1223
      %v1225 = vpop.f32.mrf.mxu0
      %v1226 = vadd.f32 0.0, %v1225
      %1227 = vmatmul.bf16.gmra.mxu0 %v1200
      %v1228 = vpop.f32.mrf.mxu0
      %v1229 = vadd.f32 0.0, %v1228
      %v1230 = vpop.f32.mrf.mxu0
      %v1231 = vadd.f32 0.0, %v1230
      %1232 = vmatmul.bf16.gmra.mxu0 %v1203
      %v1233 = vpop.f32.mrf.mxu0
      %v1234 = vadd.f32 0.0, %v1233
      %v1235 = vpop.f32.mrf.mxu0
      %1236 = vdwg.mxu0
      %v1242 = vunpack.c.l.b16 %v1134
      %v1243 = vunpack.c.l.b16 %v1135
      %v1244 = vunpack.c.l.b16 %v1136
      %v1245 = vunpack.c.l.b16 %v1137
      %v1246 = vunpack.c.l.b16 %v1138
      %v1247 = vpack.c.b16 %v1243, %v1242
      %v1248 = vpack.c.b16 %v1245, %v1244
      %v1249 = vpack.c.b16 %v1246, %v1246
      %v1255 = vunpack.c.l.b16 %v1154
      %v1256 = vunpack.c.l.b16 %v1155
      %v1257 = vunpack.c.l.b16 %v1156
      %v1258 = vunpack.c.l.b16 %v1157
      %v1259 = vunpack.c.l.b16 %v1158
      %v1260 = vpack.c.b16 %v1256, %v1255
      %v1261 = vpack.c.b16 %v1258, %v1257
      %v1262 = vpack.c.b16 %v1259, %v1259
      %v1264 = vsel %vm1195, %v1247, 0
      %v1267 = vsel %vm1195, %v1248, 0
      %v1270 = vsel %vm1195, %v1249, 0
      %v1273 = vsel %vm1195, %v1260, 0
      %v1276 = vsel %vm1195, %v1261, 0
      %v1279 = vsel %vm1195, %v1262, 0
      %1281 = vmatpush.bf16.xpose.msra.mxu0 0
      %1282 = vmatpush.bf16.xpose.msra.mxu0 0
      %1283 = vmatpush.bf16.xpose.msra.mxu0 0
      %1284 = vmatpush.bf16.xpose.msra.mxu0 0
      %1285 = vmatpush.bf16.xpose.msra.mxu0 0
      %1286 = vmatpush.bf16.xpose.msra.mxu0 %v1279
      %1287 = vmatpush.bf16.xpose.msra.mxu0 %v1276
      %1288 = vmatpush.bf16.xpose.msra.mxu0 %v1273
      %1289 = vmatmul.bf16.gmra.mxu0 %v1264
      %v1290 = vpop.f32.mrf.mxu0
      %v1291 = vadd.f32 0.0, %v1290
      %v1292 = vpop.f32.mrf.mxu0
      %v1293 = vadd.f32 0.0, %v1292
      %1294 = vmatmul.bf16.gmra.mxu0 %v1267
      %v1295 = vpop.f32.mrf.mxu0
      %v1296 = vadd.f32 0.0, %v1295
      %v1297 = vpop.f32.mrf.mxu0
      %v1298 = vadd.f32 0.0, %v1297
      %1299 = vmatmul.bf16.gmra.mxu0 %v1270
      %v1300 = vpop.f32.mrf.mxu0
      %v1301 = vadd.f32 0.0, %v1300
      %v1302 = vpop.f32.mrf.mxu0
      %1303 = vdwg.mxu0
      %v1309 = vunpack.c.l.b16 %v1139
      %v1310 = vunpack.c.l.b16 %v1140
      %v1311 = vunpack.c.l.b16 %v1141
      %v1312 = vunpack.c.l.b16 %v1142
      %v1313 = vunpack.c.l.b16 %v1143
      %v1314 = vpack.c.b16 %v1310, %v1309
      %v1315 = vpack.c.b16 %v1312, %v1311
      %v1316 = vpack.c.b16 %v1313, %v1313
      %v1322 = vunpack.c.l.b16 %v1159
      %v1323 = vunpack.c.l.b16 %v1160
      %v1324 = vunpack.c.l.b16 %v1161
      %v1325 = vunpack.c.l.b16 %v1162
      %v1326 = vunpack.c.l.b16 %v1163
      %v1327 = vpack.c.b16 %v1323, %v1322
      %v1328 = vpack.c.b16 %v1325, %v1324
      %v1329 = vpack.c.b16 %v1326, %v1326
      %v1331 = vsel %vm1195, %v1314, 0
      %v1334 = vsel %vm1195, %v1315, 0
      %v1337 = vsel %vm1195, %v1316, 0
      %v1340 = vsel %vm1195, %v1327, 0
      %v1343 = vsel %vm1195, %v1328, 0
      %v1346 = vsel %vm1195, %v1329, 0
      %1348 = vmatpush.bf16.xpose.msra.mxu0 0
      %1349 = vmatpush.bf16.xpose.msra.mxu0 0
      %1350 = vmatpush.bf16.xpose.msra.mxu0 0
      %1351 = vmatpush.bf16.xpose.msra.mxu0 0
      %1352 = vmatpush.bf16.xpose.msra.mxu0 0
      %1353 = vmatpush.bf16.xpose.msra.mxu0 %v1346
      %1354 = vmatpush.bf16.xpose.msra.mxu0 %v1343
      %1355 = vmatpush.bf16.xpose.msra.mxu0 %v1340
      %1356 = vmatmul.bf16.gmra.mxu0 %v1331
      %v1357 = vpop.f32.mrf.mxu0
      %v1358 = vadd.f32 0.0, %v1357
      %v1359 = vpop.f32.mrf.mxu0
      %v1360 = vadd.f32 0.0, %v1359
      %1361 = vmatmul.bf16.gmra.mxu0 %v1334
      %v1362 = vpop.f32.mrf.mxu0
      %v1363 = vadd.f32 0.0, %v1362
      %v1364 = vpop.f32.mrf.mxu0
      %v1365 = vadd.f32 0.0, %v1364
      %1366 = vmatmul.bf16.gmra.mxu0 %v1337
      %v1367 = vpop.f32.mrf.mxu0
      %v1368 = vadd.f32 0.0, %v1367
      %v1369 = vpop.f32.mrf.mxu0
      %1370 = vdwg.mxu0
      %v1376 = vunpack.c.l.b16 %v1144
      %v1377 = vunpack.c.l.b16 %v1145
      %v1378 = vunpack.c.l.b16 %v1146
      %v1379 = vunpack.c.l.b16 %v1147
      %v1380 = vunpack.c.l.b16 %v1148
      %v1381 = vpack.c.b16 %v1377, %v1376
      %v1382 = vpack.c.b16 %v1379, %v1378
      %v1383 = vpack.c.b16 %v1380, %v1380
      %v1389 = vunpack.c.l.b16 %v1164
      %v1390 = vunpack.c.l.b16 %v1165
      %v1391 = vunpack.c.l.b16 %v1166
      %v1392 = vunpack.c.l.b16 %v1167
      %v1393 = vunpack.c.l.b16 %v1168
      %v1394 = vpack.c.b16 %v1390, %v1389
      %v1395 = vpack.c.b16 %v1392, %v1391
      %v1396 = vpack.c.b16 %v1393, %v1393
      %v1398 = vsel %vm1195, %v1381, 0
      %v1401 = vsel %vm1195, %v1382, 0
      %v1404 = vsel %vm1195, %v1383, 0
      %v1407 = vsel %vm1195, %v1394, 0
      %v1410 = vsel %vm1195, %v1395, 0
      %v1413 = vsel %vm1195, %v1396, 0
      %1415 = vmatpush.bf16.xpose.msra.mxu0 0
      %1416 = vmatpush.bf16.xpose.msra.mxu0 0
      %1417 = vmatpush.bf16.xpose.msra.mxu0 0
      %1418 = vmatpush.bf16.xpose.msra.mxu0 0
      %1419 = vmatpush.bf16.xpose.msra.mxu0 0
      %1420 = vmatpush.bf16.xpose.msra.mxu0 %v1413
      %1421 = vmatpush.bf16.xpose.msra.mxu0 %v1410
      %1422 = vmatpush.bf16.xpose.msra.mxu0 %v1407
      %1423 = vmatmul.bf16.gmra.mxu0 %v1398
      %v1424 = vpop.f32.mrf.mxu0
      %v1425 = vadd.f32 0.0, %v1424
      %v1426 = vpop.f32.mrf.mxu0
      %v1427 = vadd.f32 0.0, %v1426
      %1428 = vmatmul.bf16.gmra.mxu0 %v1401
      %v1429 = vpop.f32.mrf.mxu0
      %v1430 = vadd.f32 0.0, %v1429
      %v1431 = vpop.f32.mrf.mxu0
      %v1432 = vadd.f32 0.0, %v1431
      %1433 = vmatmul.bf16.gmra.mxu0 %v1404
      %v1434 = vpop.f32.mrf.mxu0
      %v1435 = vadd.f32 0.0, %v1434
      %v1436 = vpop.f32.mrf.mxu0
      %1437 = vdwg.mxu0
      %v1438 = vmul.f32 %v1224, 0.28867513
      %v1439 = vmul.f32 %v1226, 0.28867513
      %v1440 = vmul.f32 %v1229, 0.28867513
      %v1441 = vmul.f32 %v1231, 0.28867513
      %v1442 = vmul.f32 %v1234, 0.28867513
      %v1443 = vmul.f32 %v1291, 0.28867513
      %v1444 = vmul.f32 %v1293, 0.28867513
      %v1445 = vmul.f32 %v1296, 0.28867513
      %v1446 = vmul.f32 %v1298, 0.28867513
      %v1447 = vmul.f32 %v1301, 0.28867513
      %v1448 = vmul.f32 %v1358, 0.28867513
      %v1449 = vmul.f32 %v1360, 0.28867513
      %v1450 = vmul.f32 %v1363, 0.28867513
      %v1451 = vmul.f32 %v1365, 0.28867513
      %v1452 = vmul.f32 %v1368, 0.28867513
      %v1453 = vmul.f32 %v1425, 0.28867513
      %v1454 = vmul.f32 %v1427, 0.28867513
      %v1455 = vmul.f32 %v1430, 0.28867513
      %v1456 = vmul.f32 %v1432, 0.28867513
      %v1457 = vmul.f32 %v1435, 0.28867513
      %vm1458 = vcmask 269312
      %v1459 = vsel %vm1458, %v1438, -inf
      %1460 = vmax.xlane.f32.xlu0 %v1459
      %v1461 = vpop.xlane.xlu0 %1460
      %v1462 = vsel %vm1458, %v1439, -inf
      %1463 = vmax.xlane.f32.xlu0 %v1462
      %v1464 = vpop.xlane.xlu0 %1463
      %v1465 = vsel %vm1458, %v1440, -inf
      %1466 = vmax.xlane.f32.xlu0 %v1465
      %v1467 = vpop.xlane.xlu0 %1466
      %v1468 = vsel %vm1458, %v1441, -inf
      %1469 = vmax.xlane.f32.xlu0 %v1468
      %v1470 = vpop.xlane.xlu0 %1469
      %vm1471 = vcmask 262144
      %v1472 = vsel %vm1471, %v1442, -inf
      %1473 = vmax.xlane.f32.xlu0 %v1472
      %v1474 = vpop.xlane.xlu0 %1473
      %v1475 = vsel %vm1458, %v1443, -inf
      %1476 = vmax.xlane.f32.xlu0 %v1475
      %v1477 = vpop.xlane.xlu0 %1476
      %v1478 = vsel %vm1458, %v1444, -inf
      %1479 = vmax.xlane.f32.xlu0 %v1478
      %v1480 = vpop.xlane.xlu0 %1479
      %v1481 = vsel %vm1458, %v1445, -inf
      %1482 = vmax.xlane.f32.xlu0 %v1481
      %v1483 = vpop.xlane.xlu0 %1482
      %v1484 = vsel %vm1458, %v1446, -inf
      %1485 = vmax.xlane.f32.xlu0 %v1484
      %v1486 = vpop.xlane.xlu0 %1485
      %v1487 = vsel %vm1471, %v1447, -inf
      %1488 = vmax.xlane.f32.xlu0 %v1487
      %v1489 = vpop.xlane.xlu0 %1488
      %v1490 = vsel %vm1458, %v1448, -inf
      %1491 = vmax.xlane.f32.xlu0 %v1490
      %v1492 = vpop.xlane.xlu0 %1491
      %v1493 = vsel %vm1458, %v1449, -inf
      %1494 = vmax.xlane.f32.xlu0 %v1493
      %v1495 = vpop.xlane.xlu0 %1494
      %v1496 = vsel %vm1458, %v1450, -inf
      %1497 = vmax.xlane.f32.xlu0 %v1496
      %v1498 = vpop.xlane.xlu0 %1497
      %v1499 = vsel %vm1458, %v1451, -inf
      %1500 = vmax.xlane.f32.xlu0 %v1499
      %v1501 = vpop.xlane.xlu0 %1500
      %v1502 = vsel %vm1471, %v1452, -inf
      %1503 = vmax.xlane.f32.xlu0 %v1502
      %v1504 = vpop.xlane.xlu0 %1503
      %v1505 = vsel %vm1458, %v1453, -inf
      %1506 = vmax.xlane.f32.xlu0 %v1505
      %v1507 = vpop.xlane.xlu0 %1506
      %v1508 = vsel %vm1458, %v1454, -inf
      %1509 = vmax.xlane.f32.xlu0 %v1508
      %v1510 = vpop.xlane.xlu0 %1509
      %v1511 = vsel %vm1458, %v1455, -inf
      %1512 = vmax.xlane.f32.xlu0 %v1511
      %v1513 = vpop.xlane.xlu0 %1512
      %v1514 = vsel %vm1458, %v1456, -inf
      %1515 = vmax.xlane.f32.xlu0 %v1514
      %v1516 = vpop.xlane.xlu0 %1515
      %v1517 = vsel %vm1471, %v1457, -inf
      %1518 = vmax.xlane.f32.xlu0 %v1517
      %v1519 = vpop.xlane.xlu0 %1518
      %v1520 = vsub.f32 %v1438, %v1461
      %v1521 = vsub.f32 %v1439, %v1464
      %v1522 = vsub.f32 %v1440, %v1467
      %v1523 = vsub.f32 %v1441, %v1470
      %v1524 = vsub.f32 %v1442, %v1474
      %v1525 = vsub.f32 %v1443, %v1477
      %v1526 = vsub.f32 %v1444, %v1480
      %v1527 = vsub.f32 %v1445, %v1483
      %v1528 = vsub.f32 %v1446, %v1486
      %v1529 = vsub.f32 %v1447, %v1489
      %v1530 = vsub.f32 %v1448, %v1492
      %v1531 = vsub.f32 %v1449, %v1495
      %v1532 = vsub.f32 %v1450, %v1498
      %v1533 = vsub.f32 %v1451, %v1501
      %v1534 = vsub.f32 %v1452, %v1504
      %v1535 = vsub.f32 %v1453, %v1507
      %v1536 = vsub.f32 %v1454, %v1510
      %v1537 = vsub.f32 %v1455, %v1513
      %v1538 = vsub.f32 %v1456, %v1516
      %v1539 = vsub.f32 %v1457, %v1519
      %v1540 = vmul.f32 %v1520, 1.442695
      %v1541 = vpow.pop %v1540
      %v1542 = vmul.f32 %v1521, 1.442695
      %v1543 = vpow.pop %v1542
      %v1544 = vmul.f32 %v1522, 1.442695
      %v1545 = vpow.pop %v1544
      %v1546 = vmul.f32 %v1523, 1.442695
      %v1547 = vpow.pop %v1546
      %v1548 = vmul.f32 %v1524, 1.442695
      %v1549 = vpow.pop %v1548
      %v1550 = vmul.f32 %v1525, 1.442695
      %v1551 = vpow.pop %v1550
      %v1552 = vmul.f32 %v1526, 1.442695
      %v1553 = vpow.pop %v1552
      %v1554 = vmul.f32 %v1527, 1.442695
      %v1555 = vpow.pop %v1554
      %v1556 = vmul.f32 %v1528, 1.442695
      %v1557 = vpow.pop %v1556
      %v1558 = vmul.f32 %v1529, 1.442695
      %v1559 = vpow.pop %v1558
      %v1560 = vmul.f32 %v1530, 1.442695
      %v1561 = vpow.pop %v1560
      %v1562 = vmul.f32 %v1531, 1.442695
      %v1563 = vpow.pop %v1562
      %v1564 = vmul.f32 %v1532, 1.442695
      %v1565 = vpow.pop %v1564
      %v1566 = vmul.f32 %v1533, 1.442695
      %v1567 = vpow.pop %v1566
      %v1568 = vmul.f32 %v1534, 1.442695
      %v1569 = vpow.pop %v1568
      %v1570 = vmul.f32 %v1535, 1.442695
      %v1571 = vpow.pop %v1570
      %v1572 = vmul.f32 %v1536, 1.442695
      %v1573 = vpow.pop %v1572
      %v1574 = vmul.f32 %v1537, 1.442695
      %v1575 = vpow.pop %v1574
      %v1576 = vmul.f32 %v1538, 1.442695
      %v1577 = vpow.pop %v1576
      %v1578 = vmul.f32 %v1539, 1.442695
      %v1579 = vpow.pop %v1578
      %v1580 = vsel %vm1458, %v1541, 0.0
      %1581 = vadd.xlane.f32.xlu0 %v1580
      %v1582 = vpop.xlane.xlu0 %1581
      %v1583 = vsel %vm1458, %v1543, 0.0
      %1584 = vadd.xlane.f32.xlu0 %v1583
      %v1585 = vpop.xlane.xlu0 %1584
      %v1586 = vsel %vm1458, %v1545, 0.0
      %1587 = vadd.xlane.f32.xlu0 %v1586
      %v1588 = vpop.xlane.xlu0 %1587
      %v1589 = vsel %vm1458, %v1547, 0.0
      %1590 = vadd.xlane.f32.xlu0 %v1589
      %v1591 = vpop.xlane.xlu0 %1590
      %v1592 = vsel %vm1471, %v1549, 0.0
      %1593 = vadd.xlane.f32.xlu0 %v1592
      %v1594 = vpop.xlane.xlu0 %1593
      %v1595 = vsel %vm1458, %v1551, 0.0
      %1596 = vadd.xlane.f32.xlu0 %v1595
      %v1597 = vpop.xlane.xlu0 %1596
      %v1598 = vsel %vm1458, %v1553, 0.0
      %1599 = vadd.xlane.f32.xlu0 %v1598
      %v1600 = vpop.xlane.xlu0 %1599
      %v1601 = vsel %vm1458, %v1555, 0.0
      %1602 = vadd.xlane.f32.xlu0 %v1601
      %v1603 = vpop.xlane.xlu0 %1602
      %v1604 = vsel %vm1458, %v1557, 0.0
      %1605 = vadd.xlane.f32.xlu0 %v1604
      %v1606 = vpop.xlane.xlu0 %1605
      %v1607 = vsel %vm1471, %v1559, 0.0
      %1608 = vadd.xlane.f32.xlu0 %v1607
      %v1609 = vpop.xlane.xlu0 %1608
      %v1610 = vsel %vm1458, %v1561, 0.0
      %1611 = vadd.xlane.f32.xlu0 %v1610
      %v1612 = vpop.xlane.xlu0 %1611
      %v1613 = vsel %vm1458, %v1563, 0.0
      %1614 = vadd.xlane.f32.xlu0 %v1613
      %v1615 = vpop.xlane.xlu0 %1614
      %v1616 = vsel %vm1458, %v1565, 0.0
      %1617 = vadd.xlane.f32.xlu0 %v1616
      %v1618 = vpop.xlane.xlu0 %1617
      %v1619 = vsel %vm1458, %v1567, 0.0
      %1620 = vadd.xlane.f32.xlu0 %v1619
      %v1621 = vpop.xlane.xlu0 %1620
      %v1622 = vsel %vm1471, %v1569, 0.0
      %1623 = vadd.xlane.f32.xlu0 %v1622
      %v1624 = vpop.xlane.xlu0 %1623
      %v1625 = vsel %vm1458, %v1571, 0.0
      %1626 = vadd.xlane.f32.xlu0 %v1625
      %v1627 = vpop.xlane.xlu0 %1626
      %v1628 = vsel %vm1458, %v1573, 0.0
      %1629 = vadd.xlane.f32.xlu0 %v1628
      %v1630 = vpop.xlane.xlu0 %1629
      %v1631 = vsel %vm1458, %v1575, 0.0
      %1632 = vadd.xlane.f32.xlu0 %v1631
      %v1633 = vpop.xlane.xlu0 %1632
      %v1634 = vsel %vm1458, %v1577, 0.0
      %1635 = vadd.xlane.f32.xlu0 %v1634
      %v1636 = vpop.xlane.xlu0 %1635
      %v1637 = vsel %vm1471, %v1579, 0.0
      %1638 = vadd.xlane.f32.xlu0 %v1637
      %v1639 = vpop.xlane.xlu0 %1638
      %v1640 = vrcp.pop %v1582
      %v1641 = vrcp.pop %v1585
      %v1642 = vrcp.pop %v1588
      %v1643 = vrcp.pop %v1591
      %v1644 = vrcp.pop %v1594
      %v1645 = vrcp.pop %v1597
      %v1646 = vrcp.pop %v1600
      %v1647 = vrcp.pop %v1603
      %v1648 = vrcp.pop %v1606
      %v1649 = vrcp.pop %v1609
      %v1650 = vrcp.pop %v1612
      %v1651 = vrcp.pop %v1615
      %v1652 = vrcp.pop %v1618
      %v1653 = vrcp.pop %v1621
      %v1654 = vrcp.pop %v1624
      %v1655 = vrcp.pop %v1627
      %v1656 = vrcp.pop %v1630
      %v1657 = vrcp.pop %v1633
      %v1658 = vrcp.pop %v1636
      %v1659 = vrcp.pop %v1639
      %v1660 = vmul.f32 %v1541, %v1640
      %v1661 = vmul.f32 %v1543, %v1641
      %v1662 = vmul.f32 %v1545, %v1642
      %v1663 = vmul.f32 %v1547, %v1643
      %v1664 = vmul.f32 %v1549, %v1644
      %v1665 = vmul.f32 %v1551, %v1645
      %v1666 = vmul.f32 %v1553, %v1646
      %v1667 = vmul.f32 %v1555, %v1647
      %v1668 = vmul.f32 %v1557, %v1648
      %v1669 = vmul.f32 %v1559, %v1649
      %v1670 = vmul.f32 %v1561, %v1650
      %v1671 = vmul.f32 %v1563, %v1651
      %v1672 = vmul.f32 %v1565, %v1652
      %v1673 = vmul.f32 %v1567, %v1653
      %v1674 = vmul.f32 %v1569, %v1654
      %v1675 = vmul.f32 %v1571, %v1655
      %v1676 = vmul.f32 %v1573, %v1656
      %v1677 = vmul.f32 %v1575, %v1657
      %v1678 = vmul.f32 %v1577, %v1658
      %v1679 = vmul.f32 %v1579, %v1659
      %v1680 = vpack.c.bf16 %v1660, %v1660
      %v1681 = vpack.c.bf16 %v1661, %v1661
      %v1682 = vpack.c.bf16 %v1662, %v1662
      %v1683 = vpack.c.bf16 %v1663, %v1663
      %v1684 = vpack.c.bf16 %v1664, %v1664
      %v1685 = vpack.c.bf16 %v1665, %v1665
      %v1686 = vpack.c.bf16 %v1666, %v1666
      %v1687 = vpack.c.bf16 %v1667, %v1667
      %v1688 = vpack.c.bf16 %v1668, %v1668
      %v1689 = vpack.c.bf16 %v1669, %v1669
      %v1690 = vpack.c.bf16 %v1670, %v1670
      %v1691 = vpack.c.bf16 %v1671, %v1671
      %v1692 = vpack.c.bf16 %v1672, %v1672
      %v1693 = vpack.c.bf16 %v1673, %v1673
      %v1694 = vpack.c.bf16 %v1674, %v1674
      %v1695 = vpack.c.bf16 %v1675, %v1675
      %v1696 = vpack.c.bf16 %v1676, %v1676
      %v1697 = vpack.c.bf16 %v1677, %v1677
      %v1698 = vpack.c.bf16 %v1678, %v1678
      %v1699 = vpack.c.bf16 %v1679, %v1679
      %v1700 = vpack.c.bf16 %v966, %v966
      %v1701 = vpack.c.bf16 %v968, %v968
      %v1702 = vpack.c.bf16 %v971, %v971
      %v1703 = vpack.c.bf16 %v973, %v973
      %v1704 = vpack.c.bf16 %v976, %v976
      %v1705 = vpack.c.bf16 %v1085, %v1085
      %v1706 = vpack.c.bf16 %v1087, %v1087
      %v1707 = vpack.c.bf16 %v1089, %v1089
      %v1708 = vpack.c.bf16 %v1091, %v1091
      %v1709 = vpack.c.bf16 %v1093, %v1093
      %v1710 = vpack.c.bf16 %v1100, %v1100
      %v1711 = vpack.c.bf16 %v1102, %v1102
      %v1712 = vpack.c.bf16 %v1104, %v1104
      %v1713 = vpack.c.bf16 %v1106, %v1106
      %v1714 = vpack.c.bf16 %v1108, %v1108
      %v1715 = vpack.c.bf16 %v1115, %v1115
      %v1716 = vpack.c.bf16 %v1117, %v1117
      %v1717 = vpack.c.bf16 %v1119, %v1119
      %v1718 = vpack.c.bf16 %v1121, %v1121
      %v1719 = vpack.c.bf16 %v1123, %v1123
      %v1725 = vunpack.c.l.b16 %v1680
      %v1726 = vunpack.c.l.b16 %v1681
      %v1727 = vunpack.c.l.b16 %v1682
      %v1728 = vunpack.c.l.b16 %v1683
      %v1729 = vunpack.c.l.b16 %v1684
      %v1730 = vpack.c.b16 %v1726, %v1725
      %v1731 = vpack.c.b16 %v1728, %v1727
      %v1732 = vpack.c.b16 %v1729, %v1729
      %v1738 = vunpack.c.l.b16 %v1700
      %v1739 = vunpack.c.l.b16 %v1701
      %v1740 = vunpack.c.l.b16 %v1702
      %v1741 = vunpack.c.l.b16 %v1703
      %v1742 = vunpack.c.l.b16 %v1704
      %v1743 = vpack.c.b16 %v1739, %v1738
      %v1744 = vpack.c.b16 %v1741, %v1740
      %v1745 = vpack.c.b16 %v1742, %v1742
      %v1749 = vsel %vm1458, %v1730, 0
      %v1752 = vsel %vm1458, %v1731, 0
      %v1755 = vsel %vm1458, %v1732, 0
      %vm1757 = vcmask 1040384
      %v1758 = vsel 0, 4294967295, 65535
      %v1759 = vsel %vm1757, %v1758, 0
      %v1761 = vand.u32 %v1745, %v1759
      %1763 = vmatpush.bf16.msra.mxu0 0
      %1764 = vmatpush.bf16.msra.mxu0 0
      %1765 = vmatpush.bf16.msra.mxu0 0
      %1766 = vmatpush.bf16.msra.mxu0 0
      %1767 = vmatpush.bf16.msra.mxu0 0
      %1768 = vmatpush.bf16.msra.mxu0 %v1761
      %1769 = vmatpush.bf16.msra.mxu0 %v1744
      %1770 = vmatpush.bf16.msra.mxu0 %v1743
      %1771 = vmatmul.bf16.gmra.mxu0 %v1749
      %v1772 = vpop.f32.mrf.mxu0
      %v1773 = vadd.f32 0.0, %v1772
      %v1774 = vpop.f32.mrf.mxu0
      %v1775 = vadd.f32 0.0, %v1774
      %1776 = vmatmul.bf16.gmra.mxu0 %v1752
      %v1777 = vpop.f32.mrf.mxu0
      %v1778 = vadd.f32 0.0, %v1777
      %v1779 = vpop.f32.mrf.mxu0
      %v1780 = vadd.f32 0.0, %v1779
      %1781 = vmatmul.bf16.gmra.mxu0 %v1755
      %v1782 = vpop.f32.mrf.mxu0
      %v1783 = vadd.f32 0.0, %v1782
      %v1784 = vpop.f32.mrf.mxu0
      %1785 = vdwg.mxu0
      %v1791 = vunpack.c.l.b16 %v1685
      %v1792 = vunpack.c.l.b16 %v1686
      %v1793 = vunpack.c.l.b16 %v1687
      %v1794 = vunpack.c.l.b16 %v1688
      %v1795 = vunpack.c.l.b16 %v1689
      %v1796 = vpack.c.b16 %v1792, %v1791
      %v1797 = vpack.c.b16 %v1794, %v1793
      %v1798 = vpack.c.b16 %v1795, %v1795
      %v1804 = vunpack.c.l.b16 %v1705
      %v1805 = vunpack.c.l.b16 %v1706
      %v1806 = vunpack.c.l.b16 %v1707
      %v1807 = vunpack.c.l.b16 %v1708
      %v1808 = vunpack.c.l.b16 %v1709
      %v1809 = vpack.c.b16 %v1805, %v1804
      %v1810 = vpack.c.b16 %v1807, %v1806
      %v1811 = vpack.c.b16 %v1808, %v1808
      %v1815 = vsel %vm1458, %v1796, 0
      %v1818 = vsel %vm1458, %v1797, 0
      %v1821 = vsel %vm1458, %v1798, 0
      %v1824 = vand.u32 %v1811, %v1759
      %1826 = vmatpush.bf16.msra.mxu0 0
      %1827 = vmatpush.bf16.msra.mxu0 0
      %1828 = vmatpush.bf16.msra.mxu0 0
      %1829 = vmatpush.bf16.msra.mxu0 0
      %1830 = vmatpush.bf16.msra.mxu0 0
      %1831 = vmatpush.bf16.msra.mxu0 %v1824
      %1832 = vmatpush.bf16.msra.mxu0 %v1810
      %1833 = vmatpush.bf16.msra.mxu0 %v1809
      %1834 = vmatmul.bf16.gmra.mxu0 %v1815
      %v1835 = vpop.f32.mrf.mxu0
      %v1836 = vadd.f32 0.0, %v1835
      %v1837 = vpop.f32.mrf.mxu0
      %v1838 = vadd.f32 0.0, %v1837
      %1839 = vmatmul.bf16.gmra.mxu0 %v1818
      %v1840 = vpop.f32.mrf.mxu0
      %v1841 = vadd.f32 0.0, %v1840
      %v1842 = vpop.f32.mrf.mxu0
      %v1843 = vadd.f32 0.0, %v1842
      %1844 = vmatmul.bf16.gmra.mxu0 %v1821
      %v1845 = vpop.f32.mrf.mxu0
      %v1846 = vadd.f32 0.0, %v1845
      %v1847 = vpop.f32.mrf.mxu0
      %1848 = vdwg.mxu0
      %v1854 = vunpack.c.l.b16 %v1690
      %v1855 = vunpack.c.l.b16 %v1691
      %v1856 = vunpack.c.l.b16 %v1692
      %v1857 = vunpack.c.l.b16 %v1693
      %v1858 = vunpack.c.l.b16 %v1694
      %v1859 = vpack.c.b16 %v1855, %v1854
      %v1860 = vpack.c.b16 %v1857, %v1856
      %v1861 = vpack.c.b16 %v1858, %v1858
      %v1867 = vunpack.c.l.b16 %v1710
      %v1868 = vunpack.c.l.b16 %v1711
      %v1869 = vunpack.c.l.b16 %v1712
      %v1870 = vunpack.c.l.b16 %v1713
      %v1871 = vunpack.c.l.b16 %v1714
      %v1872 = vpack.c.b16 %v1868, %v1867
      %v1873 = vpack.c.b16 %v1870, %v1869
      %v1874 = vpack.c.b16 %v1871, %v1871
      %v1878 = vsel %vm1458, %v1859, 0
      %v1881 = vsel %vm1458, %v1860, 0
      %v1884 = vsel %vm1458, %v1861, 0
      %v1887 = vand.u32 %v1874, %v1759
      %1889 = vmatpush.bf16.msra.mxu0 0
      %1890 = vmatpush.bf16.msra.mxu0 0
      %1891 = vmatpush.bf16.msra.mxu0 0
      %1892 = vmatpush.bf16.msra.mxu0 0
      %1893 = vmatpush.bf16.msra.mxu0 0
      %1894 = vmatpush.bf16.msra.mxu0 %v1887
      %1895 = vmatpush.bf16.msra.mxu0 %v1873
      %1896 = vmatpush.bf16.msra.mxu0 %v1872
      %1897 = vmatmul.bf16.gmra.mxu0 %v1878
      %v1898 = vpop.f32.mrf.mxu0
      %v1899 = vadd.f32 0.0, %v1898
      %v1900 = vpop.f32.mrf.mxu0
      %v1901 = vadd.f32 0.0, %v1900
      %1902 = vmatmul.bf16.gmra.mxu0 %v1881
      %v1903 = vpop.f32.mrf.mxu0
      %v1904 = vadd.f32 0.0, %v1903
      %v1905 = vpop.f32.mrf.mxu0
      %v1906 = vadd.f32 0.0, %v1905
      %1907 = vmatmul.bf16.gmra.mxu0 %v1884
      %v1908 = vpop.f32.mrf.mxu0
      %v1909 = vadd.f32 0.0, %v1908
      %v1910 = vpop.f32.mrf.mxu0
      %1911 = vdwg.mxu0
      %v1917 = vunpack.c.l.b16 %v1695
      %v1918 = vunpack.c.l.b16 %v1696
      %v1919 = vunpack.c.l.b16 %v1697
      %v1920 = vunpack.c.l.b16 %v1698
      %v1921 = vunpack.c.l.b16 %v1699
      %v1922 = vpack.c.b16 %v1918, %v1917
      %v1923 = vpack.c.b16 %v1920, %v1919
      %v1924 = vpack.c.b16 %v1921, %v1921
      %v1930 = vunpack.c.l.b16 %v1715
      %v1931 = vunpack.c.l.b16 %v1716
      %v1932 = vunpack.c.l.b16 %v1717
      %v1933 = vunpack.c.l.b16 %v1718
      %v1934 = vunpack.c.l.b16 %v1719
      %v1935 = vpack.c.b16 %v1931, %v1930
      %v1936 = vpack.c.b16 %v1933, %v1932
      %v1937 = vpack.c.b16 %v1934, %v1934
      %v1941 = vsel %vm1458, %v1922, 0
      %v1944 = vsel %vm1458, %v1923, 0
      %v1947 = vsel %vm1458, %v1924, 0
      %v1950 = vand.u32 %v1937, %v1759
      %1952 = vmatpush.bf16.msra.mxu0 0
      %1953 = vmatpush.bf16.msra.mxu0 0
      %1954 = vmatpush.bf16.msra.mxu0 0
      %1955 = vmatpush.bf16.msra.mxu0 0
      %1956 = vmatpush.bf16.msra.mxu0 0
      %1957 = vmatpush.bf16.msra.mxu0 %v1950
      %1958 = vmatpush.bf16.msra.mxu0 %v1936
      %1959 = vmatpush.bf16.msra.mxu0 %v1935
      %1960 = vmatmul.bf16.gmra.mxu0 %v1941
      %v1961 = vpop.f32.mrf.mxu0
      %v1962 = vadd.f32 0.0, %v1961
      %v1963 = vpop.f32.mrf.mxu0
      %v1964 = vadd.f32 0.0, %v1963
      %1965 = vmatmul.bf16.gmra.mxu0 %v1944
      %v1966 = vpop.f32.mrf.mxu0
      %v1967 = vadd.f32 0.0, %v1966
      %v1968 = vpop.f32.mrf.mxu0
      %v1969 = vadd.f32 0.0, %v1968
      %1970 = vmatmul.bf16.gmra.mxu0 %v1947
      %v1971 = vpop.f32.mrf.mxu0
      %v1972 = vadd.f32 0.0, %v1971
      %v1973 = vpop.f32.mrf.mxu0
      %1974 = vdwg.mxu0
      %1980 = vrot.lane.b32.xlu0 %v1836, 12
      %v1981 = vpop.permute.xlu0 %1980
      %1982 = vrot.lane.b32.xlu0 %v1838, 12
      %v1983 = vpop.permute.xlu0 %1982
      %1984 = vrot.lane.b32.xlu0 %v1841, 12
      %v1985 = vpop.permute.xlu0 %1984
      %1986 = vrot.lane.b32.xlu0 %v1843, 12
      %v1987 = vpop.permute.xlu0 %1986
      %1988 = vrot.lane.b32.xlu0 %v1846, 12
      %v1989 = vpop.permute.xlu0 %1988
      %2000 = vrot.lane.b32.xlu0 %v1899, 24
      %v2001 = vpop.permute.xlu0 %2000
      %2002 = vrot.lane.b32.xlu0 %v1901, 24
      %v2003 = vpop.permute.xlu0 %2002
      %2004 = vrot.lane.b32.xlu0 %v1904, 24
      %v2005 = vpop.permute.xlu0 %2004
      %2006 = vrot.lane.b32.xlu0 %v1906, 24
      %v2007 = vpop.permute.xlu0 %2006
      %2008 = vrot.lane.b32.xlu0 %v1909, 24
      %v2009 = vpop.permute.xlu0 %2008
      %2020 = vrot.lane.b32.xlu0 %v1962, 36
      %v2021 = vpop.permute.xlu0 %2020
      %2022 = vrot.lane.b32.xlu0 %v1964, 36
      %v2023 = vpop.permute.xlu0 %2022
      %2024 = vrot.lane.b32.xlu0 %v1967, 36
      %v2025 = vpop.permute.xlu0 %2024
      %2026 = vrot.lane.b32.xlu0 %v1969, 36
      %v2027 = vpop.permute.xlu0 %2026
      %2028 = vrot.lane.b32.xlu0 %v1972, 36
      %v2029 = vpop.permute.xlu0 %2028
      %v2035 = vsel %vm1195, %v1773, %v1981
      %v2036 = vsel %vm1195, %v1775, %v1983
      %v2037 = vsel %vm1195, %v1778, %v1985
      %v2038 = vsel %vm1195, %v1780, %v1987
      %v2039 = vsel %vm1195, %v1783, %v1989
      %vm2040 = vcmask 195584
      %v2041 = vsel %vm2040, %v2035, %v2001
      %v2042 = vsel %vm2040, %v2036, %v2003
      %v2043 = vsel %vm2040, %v2037, %v2005
      %v2044 = vsel %vm2040, %v2038, %v2007
      %v2045 = vsel %vm2040, %v2039, %v2009
      %vm2046 = vcmask 293888
      %v2047 = vsel %vm2046, %v2041, %v2021
      %v2048 = vsel %vm2046, %v2042, %v2023
      %v2049 = vsel %vm2046, %v2043, %v2025
      %v2050 = vsel %vm2046, %v2044, %v2027
      %v2051 = vsel %vm2046, %v2045, %v2029
      %v2052 = vld [vmem:[%s619] sm:$0xf]
      %v2053 = vld [vmem:[%s619 + $0x4] sm:$0xf]
      %v2054 = vld [vmem:[%s619 + $0x8] sm:$0xf]
      %v2055 = vld [vmem:[%s619 + $0xc] sm:$0xf]
      %v2056 = vld [vmem:[%s619 + $0x10] sm:$0xf]
      %v2057 = vld [vmem:[%s619 + $0x14] sm:$0xf]
      %v2058 = vpack.c.bf16 %v2048, %v2047
      %v2059 = vpack.c.bf16 %v2050, %v2049
      %v2060 = vpack.c.bf16 %v2051, %v2051
      %v2067 = vunpack.c.l.b16 %v2052
      %v2068 = vunpack.c.l.b16 %v2053
      %v2069 = vunpack.c.l.b16 %v2054
      %v2070 = vunpack.c.l.b16 %v2055
      %v2071 = vunpack.c.l.b16 %v2056
      %v2072 = vunpack.c.l.b16 %v2057
      %v2073 = vpack.c.b16 %v2068, %v2067
      %v2074 = vpack.c.b16 %v2070, %v2069
      %v2075 = vpack.c.b16 %v2072, %v2071
      %v2080 = vsel %vm675, %v2058, 0
      %v2083 = vsel %vm675, %v2059, 0
      %v2086 = vsel %vm675, %v2060, 0
      %2088 = vmatpush.bf16.msra.mxu0 0
      %2089 = vmatpush.bf16.msra.mxu0 0
      %2090 = vmatpush.bf16.msra.mxu0 0
      %2091 = vmatpush.bf16.msra.mxu0 0
      %2092 = vmatpush.bf16.msra.mxu0 0
      %2093 = vmatpush.bf16.msra.mxu0 %v2075
      %2094 = vmatpush.bf16.msra.mxu0 %v2074
      %2095 = vmatpush.bf16.msra.mxu0 %v2073
      %2096 = vmatmul.bf16.gmra.mxu0 %v2080
      %v2097 = vpop.f32.mrf.mxu0
      %v2098 = vadd.f32 0.0, %v2097
      %v2099 = vpop.f32.mrf.mxu0
      %v2100 = vadd.f32 0.0, %v2099
      %2101 = vmatmul.bf16.gmra.mxu0 %v2083
      %v2102 = vpop.f32.mrf.mxu0
      %v2103 = vadd.f32 0.0, %v2102
      %v2104 = vpop.f32.mrf.mxu0
      %v2105 = vadd.f32 0.0, %v2104
      %2106 = vmatmul.bf16.gmra.mxu0 %v2086
      %v2107 = vpop.f32.mrf.mxu0
      %v2108 = vadd.f32 0.0, %v2107
      %v2109 = vpop.f32.mrf.mxu0
      %2110 = vdwg.mxu0
      %v2111 = vadd.f32 %v668, %v2098
      %v2112 = vadd.f32 %v669, %v2100
      %v2113 = vadd.f32 %v670, %v2103
      %v2114 = vadd.f32 %v671, %v2105
      %v2115 = vadd.f32 %v672, %v2108
      %v2116 = vld [vmem:[%s622] sm:$0x1]
      %v2118 = vperm.slane %v2116, 0
      %v2120 = vadd.f32 %v2111, %v2118
      %v2121 = vadd.f32 %v2112, %v2118
      %v2122 = vadd.f32 %v2113, %v2118
      %v2123 = vadd.f32 %v2114, %v2118
      %v2124 = vadd.f32 %v2115, %v2118
      %v2125 = vld [vmem:[%s625] sm:$0x1]
      %v2126 = vld [vmem:[%s628] sm:$0x1]
      %v2127 = vsel %vm675, %v2120, 0.0
      %2128 = vadd.xlane.f32.xlu0 %v2127
      %v2129 = vpop.xlane.xlu0 %2128
      %v2130 = vsel %vm675, %v2121, 0.0
      %2131 = vadd.xlane.f32.xlu0 %v2130
      %v2132 = vpop.xlane.xlu0 %2131
      %v2133 = vsel %vm675, %v2122, 0.0
      %2134 = vadd.xlane.f32.xlu0 %v2133
      %v2135 = vpop.xlane.xlu0 %2134
      %v2136 = vsel %vm675, %v2123, 0.0
      %2137 = vadd.xlane.f32.xlu0 %v2136
      %v2138 = vpop.xlane.xlu0 %2137
      %v2139 = vsel %vm688, %v2124, 0.0
      %2140 = vadd.xlane.f32.xlu0 %v2139
      %v2141 = vpop.xlane.xlu0 %2140
      %v2142 = vmul.f32 %v2129, %v698
      %v2143 = vmul.f32 %v2132, %v698
      %v2144 = vmul.f32 %v2135, %v698
      %v2145 = vmul.f32 %v2138, %v698
      %v2146 = vmul.f32 %v2141, %v698
      %v2147 = vsub.f32 %v2120, %v2142
      %v2148 = vsub.f32 %v2121, %v2143
      %v2149 = vsub.f32 %v2122, %v2144
      %v2150 = vsub.f32 %v2123, %v2145
      %v2151 = vsub.f32 %v2124, %v2146
      %v2152 = vmul.f32 %v2147, %v2147
      %v2153 = vmul.f32 %v2148, %v2148
      %v2154 = vmul.f32 %v2149, %v2149
      %v2155 = vmul.f32 %v2150, %v2150
      %v2156 = vmul.f32 %v2151, %v2151
      %v2157 = vsel %vm675, %v2152, 0.0
      %2158 = vadd.xlane.f32.xlu0 %v2157
      %v2159 = vpop.xlane.xlu0 %2158
      %v2160 = vsel %vm675, %v2153, 0.0
      %2161 = vadd.xlane.f32.xlu0 %v2160
      %v2162 = vpop.xlane.xlu0 %2161
      %v2163 = vsel %vm675, %v2154, 0.0
      %2164 = vadd.xlane.f32.xlu0 %v2163
      %v2165 = vpop.xlane.xlu0 %2164
      %v2166 = vsel %vm675, %v2155, 0.0
      %2167 = vadd.xlane.f32.xlu0 %v2166
      %v2168 = vpop.xlane.xlu0 %2167
      %v2169 = vsel %vm688, %v2156, 0.0
      %2170 = vadd.xlane.f32.xlu0 %v2169
      %v2171 = vpop.xlane.xlu0 %2170
      %v2172 = vmul.f32 %v2159, %v698
      %v2173 = vmul.f32 %v2162, %v698
      %v2174 = vmul.f32 %v2165, %v698
      %v2175 = vmul.f32 %v2168, %v698
      %v2176 = vmul.f32 %v2171, %v698
      %v2177 = vadd.f32 %v2172, 1e-05
      %v2178 = vadd.f32 %v2173, 1e-05
      %v2179 = vadd.f32 %v2174, 1e-05
      %v2180 = vadd.f32 %v2175, 1e-05
      %v2181 = vadd.f32 %v2176, 1e-05
      %v2182 = vrsqrt.pop %v2177
      %v2183 = vmul.f32 %v2182, %v2177
      %v2184 = vmul.f32 %v2183, %v2182
      %v2185 = vmul.f32 0.5, %v2184
      %v2186 = vsub.f32 1.5, %v2185
      %v2187 = vmul.f32 %v2182, %v2186
      %vm2188 = vweird.f32 %v2177
      %vm2189 = vweird.f32 %v2182
      %vm2190 = vmor %vm2188, %vm2189
      %v2191 = vsel %vm2190, %v2182, %v2187
      %v2192 = vrsqrt.pop %v2178
      %v2193 = vmul.f32 %v2192, %v2178
      %v2194 = vmul.f32 %v2193, %v2192
      %v2195 = vmul.f32 0.5, %v2194
      %v2196 = vsub.f32 1.5, %v2195
      %v2197 = vmul.f32 %v2192, %v2196
      %vm2198 = vweird.f32 %v2178
      %vm2199 = vweird.f32 %v2192
      %vm2200 = vmor %vm2198, %vm2199
      %v2201 = vsel %vm2200, %v2192, %v2197
      %v2202 = vrsqrt.pop %v2179
      %v2203 = vmul.f32 %v2202, %v2179
      %v2204 = vmul.f32 %v2203, %v2202
      %v2205 = vmul.f32 0.5, %v2204
      %v2206 = vsub.f32 1.5, %v2205
      %v2207 = vmul.f32 %v2202, %v2206
      %vm2208 = vweird.f32 %v2179
      %vm2209 = vweird.f32 %v2202
      %vm2210 = vmor %vm2208, %vm2209
      %v2211 = vsel %vm2210, %v2202, %v2207
      %v2212 = vrsqrt.pop %v2180
      %v2213 = vmul.f32 %v2212, %v2180
      %v2214 = vmul.f32 %v2213, %v2212
      %v2215 = vmul.f32 0.5, %v2214
      %v2216 = vsub.f32 1.5, %v2215
      %v2217 = vmul.f32 %v2212, %v2216
      %vm2218 = vweird.f32 %v2180
      %vm2219 = vweird.f32 %v2212
      %vm2220 = vmor %vm2218, %vm2219
      %v2221 = vsel %vm2220, %v2212, %v2217
      %v2222 = vrsqrt.pop %v2181
      %v2223 = vmul.f32 %v2222, %v2181
      %v2224 = vmul.f32 %v2223, %v2222
      %v2225 = vmul.f32 0.5, %v2224
      %v2226 = vsub.f32 1.5, %v2225
      %v2227 = vmul.f32 %v2222, %v2226
      %vm2228 = vweird.f32 %v2181
      %vm2229 = vweird.f32 %v2222
      %vm2230 = vmor %vm2228, %vm2229
      %v2231 = vsel %vm2230, %v2222, %v2227
      %v2232 = vmul.f32 %v2147, %v2191
      %v2233 = vmul.f32 %v2148, %v2201
      %v2234 = vmul.f32 %v2149, %v2211
      %v2235 = vmul.f32 %v2150, %v2221
      %v2236 = vmul.f32 %v2151, %v2231
      %v2238 = vperm.slane %v2125, 0
      %v2240 = vmul.f32 %v2232, %v2238
      %v2241 = vmul.f32 %v2233, %v2238
      %v2242 = vmul.f32 %v2234, %v2238
      %v2243 = vmul.f32 %v2235, %v2238
      %v2244 = vmul.f32 %v2236, %v2238
      %v2246 = vperm.slane %v2126, 0
      %v2248 = vadd.f32 %v2240, %v2246
      %v2249 = vadd.f32 %v2241, %v2246
      %v2250 = vadd.f32 %v2242, %v2246
      %v2251 = vadd.f32 %v2243, %v2246
      %v2252 = vadd.f32 %v2244, %v2246
      %v2253 = vld [vmem:[%s633] sm:$0xff]
      %v2254 = vld [vmem:[%s633 + $0x8] sm:$0xff]
      %v2255 = vld [vmem:[%s633 + $0x10] sm:$0xff]
      %v2256 = vld [vmem:[%s633 + $0x18] sm:$0xff]
      %v2257 = vld [vmem:[%s633 + $0x20] sm:$0xff]
      %v2258 = vld [vmem:[%s633 + $0x28] sm:$0xff]
      %v2259 = vpack.c.bf16 %v2249, %v2248
      %v2260 = vpack.c.bf16 %v2251, %v2250
      %v2261 = vpack.c.bf16 %v2252, %v2252
      %v2262 = vld [vmem:[%s637] sm:$0x3]
      %v2264 = vperm.slane %v2262, 0
      %v2265 = vperm.slane %v2262, 1
      %v2274 = vunpack.c.l.b16 %v2253
      %v2275 = vunpack.c.h.b16 %v2253
      %v2276 = vunpack.c.l.b16 %v2254
      %v2277 = vunpack.c.h.b16 %v2254
      %v2278 = vunpack.c.l.b16 %v2255
      %v2279 = vunpack.c.h.b16 %v2255
      %v2280 = vunpack.c.l.b16 %v2256
      %v2281 = vunpack.c.h.b16 %v2256
      %v2282 = vunpack.c.l.b16 %v2257
      %v2283 = vunpack.c.h.b16 %v2257
      %v2284 = vunpack.c.l.b16 %v2258
      %v2285 = vunpack.c.h.b16 %v2258
      %v2286 = vpack.c.b16 %v2276, %v2274
      %v2287 = vpack.c.b16 %v2277, %v2275
      %v2288 = vpack.c.b16 %v2280, %v2278
      %v2289 = vpack.c.b16 %v2281, %v2279
      %v2290 = vpack.c.b16 %v2284, %v2282
      %v2291 = vpack.c.b16 %v2285, %v2283
      %v2299 = vsel %vm675, %v2259, 0
      %v2302 = vsel %vm675, %v2260, 0
      %v2305 = vsel %vm675, %v2261, 0
      %2307 = vmatpush.bf16.msra.mxu0 0
      %2308 = vmatpush.bf16.msra.mxu0 0
      %2309 = vmatpush.bf16.msra.mxu0 0
      %2310 = vmatpush.bf16.msra.mxu0 0
      %2311 = vmatpush.bf16.msra.mxu0 0
      %2312 = vmatpush.bf16.msra.mxu0 %v2290
      %2313 = vmatpush.bf16.msra.mxu0 %v2288
      %2314 = vmatpush.bf16.msra.mxu0 %v2286
      %2315 = vmatmul.bf16.gmra.mxu0 %v2299
      %v2316 = vpop.f32.mrf.mxu0
      %v2317 = vadd.f32 %v2264, %v2316
      %v2318 = vpop.f32.mrf.mxu0
      %v2319 = vadd.f32 %v2264, %v2318
      %2320 = vmatmul.bf16.gmra.mxu0 %v2302
      %v2321 = vpop.f32.mrf.mxu0
      %v2322 = vadd.f32 %v2264, %v2321
      %v2323 = vpop.f32.mrf.mxu0
      %v2324 = vadd.f32 %v2264, %v2323
      %2325 = vmatmul.bf16.gmra.mxu0 %v2305
      %v2326 = vpop.f32.mrf.mxu0
      %v2327 = vadd.f32 %v2264, %v2326
      %v2328 = vpop.f32.mrf.mxu0
      %2329 = vdwg.mxu0
      %2330 = vmatpush.bf16.msra.mxu0 0
      %2331 = vmatpush.bf16.msra.mxu0 0
      %2332 = vmatpush.bf16.msra.mxu0 0
      %2333 = vmatpush.bf16.msra.mxu0 0
      %2334 = vmatpush.bf16.msra.mxu0 0
      %2335 = vmatpush.bf16.msra.mxu0 %v2291
      %2336 = vmatpush.bf16.msra.mxu0 %v2289
      %2337 = vmatpush.bf16.msra.mxu0 %v2287
      %2338 = vmatmul.bf16.gmra.mxu0 %v2299
      %v2339 = vpop.f32.mrf.mxu0
      %v2340 = vadd.f32 %v2265, %v2339
      %v2341 = vpop.f32.mrf.mxu0
      %v2342 = vadd.f32 %v2265, %v2341
      %2343 = vmatmul.bf16.gmra.mxu0 %v2302
      %v2344 = vpop.f32.mrf.mxu0
      %v2345 = vadd.f32 %v2265, %v2344
      %v2346 = vpop.f32.mrf.mxu0
      %v2347 = vadd.f32 %v2265, %v2346
      %2348 = vmatmul.bf16.gmra.mxu0 %v2305
      %v2349 = vpop.f32.mrf.mxu0
      %v2350 = vadd.f32 %v2265, %v2349
      %v2351 = vpop.f32.mrf.mxu0
      %2352 = vdwg.mxu0
      %v2353 = vmul.f32 %v2317, 0.5
      %v2354 = vmul.f32 %v2340, 0.5
      %v2355 = vmul.f32 %v2319, 0.5
      %v2356 = vmul.f32 %v2342, 0.5
      %v2357 = vmul.f32 %v2322, 0.5
      %v2358 = vmul.f32 %v2345, 0.5
      %v2359 = vmul.f32 %v2324, 0.5
      %v2360 = vmul.f32 %v2347, 0.5
      %v2361 = vmul.f32 %v2327, 0.5
      %v2362 = vmul.f32 %v2350, 0.5
      %v2363 = vmul.f32 %v2317, 0.044715
      %v2364 = vmul.f32 %v2340, 0.044715
      %v2365 = vmul.f32 %v2319, 0.044715
      %v2366 = vmul.f32 %v2342, 0.044715
      %v2367 = vmul.f32 %v2322, 0.044715
      %v2368 = vmul.f32 %v2345, 0.044715
      %v2369 = vmul.f32 %v2324, 0.044715
      %v2370 = vmul.f32 %v2347, 0.044715
      %v2371 = vmul.f32 %v2327, 0.044715
      %v2372 = vmul.f32 %v2350, 0.044715
      %v2373 = vmul.f32 %v2363, %v2317
      %v2374 = vmul.f32 %v2364, %v2340
      %v2375 = vmul.f32 %v2365, %v2319
      %v2376 = vmul.f32 %v2366, %v2342
      %v2377 = vmul.f32 %v2367, %v2322
      %v2378 = vmul.f32 %v2368, %v2345
      %v2379 = vmul.f32 %v2369, %v2324
      %v2380 = vmul.f32 %v2370, %v2347
      %v2381 = vmul.f32 %v2371, %v2327
      %v2382 = vmul.f32 %v2372, %v2350
      %v2383 = vmul.f32 %v2373, %v2317
      %v2384 = vmul.f32 %v2374, %v2340
      %v2385 = vmul.f32 %v2375, %v2319
      %v2386 = vmul.f32 %v2376, %v2342
      %v2387 = vmul.f32 %v2377, %v2322
      %v2388 = vmul.f32 %v2378, %v2345
      %v2389 = vmul.f32 %v2379, %v2324
      %v2390 = vmul.f32 %v2380, %v2347
      %v2391 = vmul.f32 %v2381, %v2327
      %v2392 = vmul.f32 %v2382, %v2350
      %v2393 = vadd.f32 %v2317, %v2383
      %v2394 = vadd.f32 %v2340, %v2384
      %v2395 = vadd.f32 %v2319, %v2385
      %v2396 = vadd.f32 %v2342, %v2386
      %v2397 = vadd.f32 %v2322, %v2387
      %v2398 = vadd.f32 %v2345, %v2388
      %v2399 = vadd.f32 %v2324, %v2389
      %v2400 = vadd.f32 %v2347, %v2390
      %v2401 = vadd.f32 %v2327, %v2391
      %v2402 = vadd.f32 %v2350, %v2392
      %v2403 = vmul.f32 %v2393, 0.7978846
      %v2404 = vmul.f32 %v2394, 0.7978846
      %v2405 = vmul.f32 %v2395, 0.7978846
      %v2406 = vmul.f32 %v2396, 0.7978846
      %v2407 = vmul.f32 %v2397, 0.7978846
      %v2408 = vmul.f32 %v2398, 0.7978846
      %v2409 = vmul.f32 %v2399, 0.7978846
      %v2410 = vmul.f32 %v2400, 0.7978846
      %v2411 = vmul.f32 %v2401, 0.7978846
      %v2412 = vmul.f32 %v2402, 0.7978846
      %v2413 = vtanh.pop %v2403
      %v2414 = vtanh.pop %v2404
      %v2415 = vtanh.pop %v2405
      %v2416 = vtanh.pop %v2406
      %v2417 = vtanh.pop %v2407
      %v2418 = vtanh.pop %v2408
      %v2419 = vtanh.pop %v2409
      %v2420 = vtanh.pop %v2410
      %v2421 = vtanh.pop %v2411
      %v2422 = vtanh.pop %v2412
      %v2423 = vadd.f32 %v2413, 1.0
      %v2424 = vadd.f32 %v2414, 1.0
      %v2425 = vadd.f32 %v2415, 1.0
      %v2426 = vadd.f32 %v2416, 1.0
      %v2427 = vadd.f32 %v2417, 1.0
      %v2428 = vadd.f32 %v2418, 1.0
      %v2429 = vadd.f32 %v2419, 1.0
      %v2430 = vadd.f32 %v2420, 1.0
      %v2431 = vadd.f32 %v2421, 1.0
      %v2432 = vadd.f32 %v2422, 1.0
      %v2433 = vmul.f32 %v2353, %v2423
      %v2434 = vmul.f32 %v2354, %v2424
      %v2435 = vmul.f32 %v2355, %v2425
      %v2436 = vmul.f32 %v2356, %v2426
      %v2437 = vmul.f32 %v2357, %v2427
      %v2438 = vmul.f32 %v2358, %v2428
      %v2439 = vmul.f32 %v2359, %v2429
      %v2440 = vmul.f32 %v2360, %v2430
      %v2441 = vmul.f32 %v2361, %v2431
      %v2442 = vmul.f32 %v2362, %v2432
      %v2443 = vld [vmem:[%s642] sm:$0xf]
      %v2444 = vld [vmem:[%s642 + $0x4] sm:$0xf]
      %v2445 = vld [vmem:[%s642 + $0x8] sm:$0xf]
      %v2446 = vld [vmem:[%s642 + $0xc] sm:$0xf]
      %v2447 = vld [vmem:[%s642 + $0x10] sm:$0xf]
      %v2448 = vld [vmem:[%s642 + $0x14] sm:$0xf]
      %v2449 = vld [vmem:[%s642 + $0x18] sm:$0xf]
      %v2450 = vld [vmem:[%s642 + $0x1c] sm:$0xf]
      %v2451 = vld [vmem:[%s642 + $0x20] sm:$0xf]
      %v2452 = vld [vmem:[%s642 + $0x24] sm:$0xf]
      %v2453 = vld [vmem:[%s642 + $0x28] sm:$0xf]
      %v2454 = vld [vmem:[%s642 + $0x2c] sm:$0xf]
      %v2455 = vld [vmem:[%s642 + $0x30] sm:$0xf]
      %v2456 = vld [vmem:[%s642 + $0x34] sm:$0xf]
      %v2457 = vld [vmem:[%s642 + $0x38] sm:$0xf]
      %v2458 = vld [vmem:[%s642 + $0x3c] sm:$0xf]
      %v2459 = vld [vmem:[%s642 + $0x40] sm:$0xf]
      %v2460 = vld [vmem:[%s642 + $0x44] sm:$0xf]
      %v2461 = vld [vmem:[%s642 + $0x48] sm:$0xf]
      %v2462 = vld [vmem:[%s642 + $0x4c] sm:$0xf]
      %v2463 = vld [vmem:[%s642 + $0x50] sm:$0xf]
      %v2464 = vld [vmem:[%s642 + $0x54] sm:$0xf]
      %v2465 = vld [vmem:[%s642 + $0x58] sm:$0xf]
      %v2466 = vld [vmem:[%s642 + $0x5c] sm:$0xf]
      %v2467 = vpack.c.bf16 %v2435, %v2433
      %v2468 = vpack.c.bf16 %v2436, %v2434
      %v2469 = vpack.c.bf16 %v2439, %v2437
      %v2470 = vpack.c.bf16 %v2440, %v2438
      %v2471 = vpack.c.bf16 %v2441, %v2441
      %v2472 = vpack.c.bf16 %v2442, %v2442
      %v2497 = vunpack.c.l.b16 %v2443
      %v2498 = vunpack.c.l.b16 %v2444
      %v2499 = vunpack.c.l.b16 %v2445
      %v2500 = vunpack.c.l.b16 %v2446
      %v2501 = vunpack.c.l.b16 %v2447
      %v2502 = vunpack.c.l.b16 %v2448
      %v2503 = vunpack.c.l.b16 %v2449
      %v2504 = vunpack.c.l.b16 %v2450
      %v2505 = vunpack.c.l.b16 %v2451
      %v2506 = vunpack.c.l.b16 %v2452
      %v2507 = vunpack.c.l.b16 %v2453
      %v2508 = vunpack.c.l.b16 %v2454
      %v2509 = vunpack.c.l.b16 %v2455
      %v2510 = vunpack.c.l.b16 %v2456
      %v2511 = vunpack.c.l.b16 %v2457
      %v2512 = vunpack.c.l.b16 %v2458
      %v2513 = vunpack.c.l.b16 %v2459
      %v2514 = vunpack.c.l.b16 %v2460
      %v2515 = vunpack.c.l.b16 %v2461
      %v2516 = vunpack.c.l.b16 %v2462
      %v2517 = vunpack.c.l.b16 %v2463
      %v2518 = vunpack.c.l.b16 %v2464
      %v2519 = vunpack.c.l.b16 %v2465
      %v2520 = vunpack.c.l.b16 %v2466
      %v2521 = vpack.c.b16 %v2498, %v2497
      %v2522 = vpack.c.b16 %v2500, %v2499
      %v2523 = vpack.c.b16 %v2502, %v2501
      %v2524 = vpack.c.b16 %v2504, %v2503
      %v2525 = vpack.c.b16 %v2506, %v2505
      %v2526 = vpack.c.b16 %v2508, %v2507
      %v2527 = vpack.c.b16 %v2510, %v2509
      %v2528 = vpack.c.b16 %v2512, %v2511
      %v2529 = vpack.c.b16 %v2514, %v2513
      %v2530 = vpack.c.b16 %v2516, %v2515
      %v2531 = vpack.c.b16 %v2518, %v2517
      %v2532 = vpack.c.b16 %v2520, %v2519
      %vm2545 = vcmask 523264
      %v2547 = vsel %vm2545, %v2468, 0
      %v2550 = vsel %vm2545, %v2470, 0
      %v2553 = vsel %vm2545, %v2472, 0
      %2555 = vmatpush.bf16.msra.mxu0 %v2528
      %2556 = vmatpush.bf16.msra.mxu0 %v2527
      %2557 = vmatpush.bf16.msra.mxu0 %v2526
      %2558 = vmatpush.bf16.msra.mxu0 %v2525
      %2559 = vmatpush.bf16.msra.mxu0 %v2524
      %2560 = vmatpush.bf16.msra.mxu0 %v2523
      %2561 = vmatpush.bf16.msra.mxu0 %v2522
      %2562 = vmatpush.bf16.msra.mxu0 %v2521
      %2563 = vmatmul.bf16.gmra.mxu0 %v2467
      %v2564 = vpop.f32.mrf.mxu0
      %v2565 = vadd.f32 0.0, %v2564
      %v2566 = vpop.f32.mrf.mxu0
      %v2567 = vadd.f32 0.0, %v2566
      %2568 = vmatmul.bf16.gmra.mxu0 %v2469
      %v2569 = vpop.f32.mrf.mxu0
      %v2570 = vadd.f32 0.0, %v2569
      %v2571 = vpop.f32.mrf.mxu0
      %v2572 = vadd.f32 0.0, %v2571
      %2573 = vmatmul.bf16.gmra.mxu0 %v2471
      %v2574 = vpop.f32.mrf.mxu0
      %v2575 = vadd.f32 0.0, %v2574
      %v2576 = vpop.f32.mrf.mxu0
      %2577 = vdwg.mxu0
      %2578 = vmatpush.bf16.msra.mxu0 0
      %2579 = vmatpush.bf16.msra.mxu0 0
      %2580 = vmatpush.bf16.msra.mxu0 0
      %2581 = vmatpush.bf16.msra.mxu0 0
      %2582 = vmatpush.bf16.msra.mxu0 %v2532
      %2583 = vmatpush.bf16.msra.mxu0 %v2531
      %2584 = vmatpush.bf16.msra.mxu0 %v2530
      %2585 = vmatpush.bf16.msra.mxu0 %v2529
      %2586 = vmatmul.bf16.gmra.mxu0 %v2547
      %v2587 = vpop.f32.mrf.mxu0
      %v2588 = vadd.f32 %v2565, %v2587
      %v2589 = vpop.f32.mrf.mxu0
      %v2590 = vadd.f32 %v2567, %v2589
      %2591 = vmatmul.bf16.gmra.mxu0 %v2550
      %v2592 = vpop.f32.mrf.mxu0
      %v2593 = vadd.f32 %v2570, %v2592
      %v2594 = vpop.f32.mrf.mxu0
      %v2595 = vadd.f32 %v2572, %v2594
      %2596 = vmatmul.bf16.gmra.mxu0 %v2553
      %v2597 = vpop.f32.mrf.mxu0
      %v2598 = vadd.f32 %v2575, %v2597
      %v2599 = vpop.f32.mrf.mxu0
      %2600 = vdwg.mxu0
      %v2601 = vadd.f32 %v2120, %v2588
      %v2602 = vadd.f32 %v2121, %v2590
      %v2603 = vadd.f32 %v2122, %v2593
      %v2604 = vadd.f32 %v2123, %v2595
      %v2605 = vadd.f32 %v2124, %v2598
      %v2606 = vld [vmem:[%s645] sm:$0x1]
      %v2608 = vperm.slane %v2606, 0
      %v2610 = vadd.f32 %v2601, %v2608
      %v2611 = vadd.f32 %v2602, %v2608
      %v2612 = vadd.f32 %v2603, %v2608
      %v2613 = vadd.f32 %v2604, %v2608
      %v2614 = vadd.f32 %v2605, %v2608
      %2615 = vst.msk [vmem:[%s650] sm:$0xff] %vm675, %v2610
      %2616 = vst.msk [vmem:[%s650 + $0x8] sm:$0xff] %vm675, %v2611
      %2617 = vst.msk [vmem:[%s650 + $0x10] sm:$0xff] %vm675, %v2612
      %2618 = vst.msk [vmem:[%s650 + $0x18] sm:$0xff] %vm675, %v2613
      %2619 = vst.msk [vmem:[%s650 + $0x20] sm:$0x1] %vm688, %v2614
      %p2620 = scmp.lt.s32.totalorder %s28, 1
      %s2621 = scalar_select %p2620, %s28, 1
      %s2622 = smul.addr %s2621, 5
      %s2623 = smul.addr %s2622, 8
      %s2624 = scalar_lea.vmem %s13, %s2623
      // Predicated region
      $region77: #{mae_forward.8} parent=71 // pred_check
        %p2625 = pneg %p392
      $region78: #{mae_forward.8} parent=71 // pred_check_branch
        %2627 = sbr.rel (%p2625) target = $region80
      $region79: #{mae_forward.8} parent=71 // pred_region
        _
      $region80: #{mae_forward.8} parent=71 // pred_fallthru
        _
    $region72: #{mae_forward.8} parent=5 // pred_fallthru
      _
    %p2628 = scmp.le.s32.totalorder 2, %s19
    // Predicated region
    $region81: #{mae_forward.8} parent=5 // pred_check
      %p2629 = pneg %p2628
    $region82: #{mae_forward.8} parent=5 // pred_check_branch
      %2631 = sbr.rel (%p2629) target = $region84
    $region83: #{mae_forward.8} parent=5 // pred_region
      %s2632 = ssub.s32 %s19, 2
      // Predicated region
      $region85: #{mae_forward.8} parent=83 // pred_check
        %p2633 = pneg %p398
      $region86: #{mae_forward.8} parent=83 // pred_check_branch
        %2635 = sbr.rel (%p2633) target = $region88
      $region87: #{mae_forward.8} parent=83 // pred_region
        %p2636 = scmp.lt.s32.totalorder %s30, 1
        %s2637 = scalar_select %p2636, %s30, 1
        %s2638 = smul.addr %s2637, 5
        %s2639 = smul.addr %s2638, 8
        %s2640 = scalar_lea.vmem %s13, %s2639
      $region88: #{mae_forward.8} parent=83 // pred_fallthru
        _
    $region84: #{mae_forward.8} parent=5 // pred_fallthru
      _
  $region6: #{mae_forward.8} parent=0 // loop_footer
    %s23 = sadd.s32 1, %s19
  $region7: #{mae_forward.8} parent=0 // loop_footer_branch
    %18 = sbr.rel target = $region3
  $region8: #{mae_forward.8} parent=0 // loop_exit
    _

// kernel: mae_forward.9
$region0: #{mae_forward.9}
  #allocation0 [shape = 'u32[]', space=smem, size = 0x4, offset = 0x4, fixed_abs, tag = 'smem constant byte address 0x4 - core index']
  #allocation1 [shape = 'u32[72,128]{1,0:T(1,128)}', space=vmem, size = 0x9000, scoped, tag = 'internal scratch']
  %s0 = inlined_call_operand.vmem [shape: f32[2,33,48], index: 0, kind: input, shape index: {}]
  %s1 = inlined_call_operand.vmem [shape: f32[1,48], index: 1, kind: input, shape index: {}]
  %s2 = inlined_call_operand.vmem [shape: f32[1,48], index: 2, kind: input, shape index: {}]
  %s3 = inlined_call_operand.vmem [shape: bf16[48,48], index: 3, kind: input, shape index: {}]
  %s4 = inlined_call_operand.vmem [shape: f32[1,48], index: 4, kind: input, shape index: {}]
  %s5 = inlined_call_operand.vmem [shape: f32[2,32,48], index: 5, kind: input, shape index: {}]
  %s6 = inlined_call_operand.vmem [shape: f32[2,32], index: 6, kind: input, shape index: {}]
  %s7 = inlined_call_operand.hbm [shape: f32[2,32,48], index: 7, kind: output, shape index: {0}]
  %s8 = inlined_call_operand.hbm [shape: f32[1,1], index: 8, kind: output, shape index: {1}]
  %9 = xla_tuple %s7, %s8
  %s10 = sld [smem:[#allocation0]]
  $region46: #{mae_forward.9} parent=0
    _
  %s12 = ssub.s32 1, %s10
  %s13 = scalar_select 0, %s12, %s10
  $region1: #{mae_forward.9} parent=0
    #allocation2 [shape = 'u8[32768]{0}', space=vmem, size = 0x8000, scoped, tag = 'output window, operand 0, single buffered']
    #allocation3 [shape = 's32[1]{0}', space=sflag, size = 0x4, scoped, tag = 'scoped memory for mae_forward.9']
    #allocation4 [shape = 'u8[512]{0}', space=vmem, size = 0x400, scoped, tag = 'output window, operand 1, single buffered']
    #allocation5 [shape = 's32[1]{0}', space=sflag, size = 0x4, scoped, tag = 'scoped memory for mae_forward.9']
    %14 = vsyncpa [#allocation3], 0
    %15 = vsyncpa [#allocation5], 0
    // Predicated region
    $region2: #{mae_forward.9} parent=1 // pred_check
      _
    $region3: #{mae_forward.9} parent=1 // pred_check_branch
      %17 = sbr.rel (0) target = $region5
    $region4: #{mae_forward.9} parent=1 // pred_region
      _
    $region5: #{mae_forward.9} parent=1 // pred_fallthru
      _
    // Predicated region
    $region6: #{mae_forward.9} parent=1 // pred_check
      _
    $region7: #{mae_forward.9} parent=1 // pred_check_branch
      %19 = sbr.rel (0) target = $region9
    $region8: #{mae_forward.9} parent=1 // pred_region
      _
    $region9: #{mae_forward.9} parent=1 // pred_fallthru
      _
    // Predicated region
    $region10: #{mae_forward.9} parent=1 // pred_check
      _
    $region11: #{mae_forward.9} parent=1 // pred_check_branch
      %21 = sbr.rel (0) target = $region13
    $region12: #{mae_forward.9} parent=1 // pred_region
      _
    $region13: #{mae_forward.9} parent=1 // pred_fallthru
      _
    // Predicated region
    $region14: #{mae_forward.9} parent=1 // pred_check
      _
    $region15: #{mae_forward.9} parent=1 // pred_check_branch
      %23 = sbr.rel (0) target = $region17
    $region16: #{mae_forward.9} parent=1 // pred_region
      _
    $region17: #{mae_forward.9} parent=1 // pred_fallthru
      _
    // Predicated region
    $region18: #{mae_forward.9} parent=1 // pred_check
      _
    $region19: #{mae_forward.9} parent=1 // pred_check_branch
      %25 = sbr.rel (0) target = $region21
    $region20: #{mae_forward.9} parent=1 // pred_region
      _
    $region21: #{mae_forward.9} parent=1 // pred_fallthru
      _
    // Predicated region
    $region22: #{mae_forward.9} parent=1 // pred_check
      _
    $region23: #{mae_forward.9} parent=1 // pred_check_branch
      %27 = sbr.rel (0) target = $region25
    $region24: #{mae_forward.9} parent=1 // pred_region
      _
    $region25: #{mae_forward.9} parent=1 // pred_fallthru
      _
    // Predicated region
    $region26: #{mae_forward.9} parent=1 // pred_check
      _
    $region27: #{mae_forward.9} parent=1 // pred_check_branch
      %29 = sbr.rel (0) target = $region29
    $region28: #{mae_forward.9} parent=1 // pred_region
      _
    $region29: #{mae_forward.9} parent=1 // pred_fallthru
      _
    %v31 = vld [vmem:[%s0] sm:$0xff]
    %v32 = vld [vmem:[%s0 + $0x8] sm:$0xff]
    %v33 = vld [vmem:[%s0 + $0x10] sm:$0xff]
    %v34 = vld [vmem:[%s0 + $0x18] sm:$0xff]
    %v35 = vld [vmem:[%s0 + $0x20] sm:$0x1]
    %v36 = vld [vmem:[%s0 + $0x28] sm:$0xff]
    %v37 = vld [vmem:[%s0 + $0x30] sm:$0xff]
    %v38 = vld [vmem:[%s0 + $0x38] sm:$0xff]
    %v39 = vld [vmem:[%s0 + $0x40] sm:$0xff]
    %v40 = vld [vmem:[%s0 + $0x48] sm:$0x1]
    %v51 = vrot.slane %v31, 1
    %v52 = vrot.slane %v31, 2
    %v53 = vrot.slane %v31, 3
    %v54 = vrot.slane %v31, 4
    %v55 = vrot.slane %v31, 5
    %v56 = vrot.slane %v31, 6
    %v57 = vrot.slane %v31, 7
    %v58 = vrot.slane %v32, 1
    %v59 = vrot.slane %v32, 2
    %v60 = vrot.slane %v32, 3
    %v61 = vrot.slane %v32, 4
    %v62 = vrot.slane %v32, 5
    %v63 = vrot.slane %v32, 6
    %v64 = vrot.slane %v32, 7
    %v65 = vrot.slane %v33, 1
    %v66 = vrot.slane %v33, 2
    %v67 = vrot.slane %v33, 3
    %v68 = vrot.slane %v33, 4
    %v69 = vrot.slane %v33, 5
    %v70 = vrot.slane %v33, 6
    %v71 = vrot.slane %v33, 7
    %v72 = vrot.slane %v34, 1
    %v73 = vrot.slane %v34, 2
    %v74 = vrot.slane %v34, 3
    %v75 = vrot.slane %v34, 4
    %v76 = vrot.slane %v34, 5
    %v77 = vrot.slane %v34, 6
    %v78 = vrot.slane %v34, 7
    %v79 = vrot.slane %v36, 1
    %v80 = vrot.slane %v36, 2
    %v81 = vrot.slane %v36, 3
    %v82 = vrot.slane %v36, 4
    %v83 = vrot.slane %v36, 5
    %v84 = vrot.slane %v36, 6
    %v85 = vrot.slane %v36, 7
    %v86 = vrot.slane %v37, 1
    %v87 = vrot.slane %v37, 2
    %v88 = vrot.slane %v37, 3
    %v89 = vrot.slane %v37, 4
    %v90 = vrot.slane %v37, 5
    %v91 = vrot.slane %v37, 6
    %v92 = vrot.slane %v37, 7
    %v93 = vrot.slane %v38, 1
    %v94 = vrot.slane %v38, 2
    %v95 = vrot.slane %v38, 3
    %v96 = vrot.slane %v38, 4
    %v97 = vrot.slane %v38, 5
    %v98 = vrot.slane %v38, 6
    %v99 = vrot.slane %v38, 7
    %v100 = vrot.slane %v39, 1
    %v101 = vrot.slane %v39, 2
    %v102 = vrot.slane %v39, 3
    %v103 = vrot.slane %v39, 4
    %v104 = vrot.slane %v39, 5
    %v105 = vrot.slane %v39, 6
    %v106 = vrot.slane %v39, 7
    %v163 = vld [vmem:[%s1] sm:$0x1]
    %v164 = vld [vmem:[%s2] sm:$0x1]
    %165 = vst [vmem:[#allocation1] ss:$9 sm:$0xff] %v31
    %s166 = scalar_lea.vmem [#allocation1], 1
    %167 = vst [vmem:[%s166] ss:$9 sm:$0xff] %v51
    %s168 = scalar_lea.vmem [#allocation1], 2
    %169 = vst [vmem:[%s168] ss:$9 sm:$0xff] %v52
    %s170 = scalar_lea.vmem [#allocation1], 3
    %171 = vst [vmem:[%s170] ss:$9 sm:$0xff] %v53
    %s172 = scalar_lea.vmem [#allocation1], 4
    %173 = vst [vmem:[%s172] ss:$9 sm:$0xff] %v54
    %s174 = scalar_lea.vmem [#allocation1], 5
    %175 = vst [vmem:[%s174] ss:$9 sm:$0xff] %v55
    %s176 = scalar_lea.vmem [#allocation1], 6
    %177 = vst [vmem:[%s176] ss:$9 sm:$0xff] %v56
    %s178 = scalar_lea.vmem [#allocation1], 7
    %179 = vst [vmem:[%s178] ss:$9 sm:$0xff] %v57
    %v180 = vld [vmem:[#allocation1] sm:$0xff]
    %181 = vst [vmem:[#allocation1] ss:$9 sm:$0xff] %v32
    %182 = vst [vmem:[%s166] ss:$9 sm:$0xff] %v58
    %183 = vst [vmem:[%s168] ss:$9 sm:$0xff] %v59
    %184 = vst [vmem:[%s170] ss:$9 sm:$0xff] %v60
    %185 = vst [vmem:[%s172] ss:$9 sm:$0xff] %v61
    %186 = vst [vmem:[%s174] ss:$9 sm:$0xff] %v62
    %187 = vst [vmem:[%s176] ss:$9 sm:$0xff] %v63
    %188 = vst [vmem:[%s178] ss:$9 sm:$0xff] %v64
    %v189 = vld [vmem:[#allocation1] sm:$0xff]
    %190 = vst [vmem:[#allocation1] ss:$9 sm:$0xff] %v33
    %191 = vst [vmem:[%s166] ss:$9 sm:$0xff] %v65
    %192 = vst [vmem:[%s168] ss:$9 sm:$0xff] %v66
    %193 = vst [vmem:[%s170] ss:$9 sm:$0xff] %v67
    %194 = vst [vmem:[%s172] ss:$9 sm:$0xff] %v68
    %195 = vst [vmem:[%s174] ss:$9 sm:$0xff] %v69
    %196 = vst [vmem:[%s176] ss:$9 sm:$0xff] %v70
    %197 = vst [vmem:[%s178] ss:$9 sm:$0xff] %v71
    %v198 = vld [vmem:[#allocation1] sm:$0xff]
    %199 = vst [vmem:[#allocation1] ss:$9 sm:$0xff] %v34
    %200 = vst [vmem:[%s166] ss:$9 sm:$0xff] %v72
    %201 = vst [vmem:[%s168] ss:$9 sm:$0xff] %v73
    %202 = vst [vmem:[%s170] ss:$9 sm:$0xff] %v74
    %203 = vst [vmem:[%s172] ss:$9 sm:$0xff] %v75
    %204 = vst [vmem:[%s174] ss:$9 sm:$0xff] %v76
    %205 = vst [vmem:[%s176] ss:$9 sm:$0xff] %v77
    %206 = vst [vmem:[%s178] ss:$9 sm:$0xff] %v78
    %v207 = vld [vmem:[#allocation1] sm:$0xff]
    %208 = vst [vmem:[#allocation1] ss:$9 sm:$0xff] %v35
    %209 = vst [vmem:[%s166] ss:$9 sm:$0xff] %v36
    %210 = vst [vmem:[%s168] ss:$9 sm:$0xff] %v79
    %211 = vst [vmem:[%s170] ss:$9 sm:$0xff] %v80
    %212 = vst [vmem:[%s172] ss:$9 sm:$0xff] %v81
    %213 = vst [vmem:[%s174] ss:$9 sm:$0xff] %v82
    %214 = vst [vmem:[%s176] ss:$9 sm:$0xff] %v83
    %215 = vst [vmem:[%s178] ss:$9 sm:$0xff] %v84
    %v216 = vld [vmem:[#allocation1] sm:$0xff]
    %217 = vst [vmem:[#allocation1] ss:$9 sm:$0xff] %v85
    %218 = vst [vmem:[%s166] ss:$9 sm:$0xff] %v37
    %219 = vst [vmem:[%s168] ss:$9 sm:$0xff] %v86
    %220 = vst [vmem:[%s170] ss:$9 sm:$0xff] %v87
    %221 = vst [vmem:[%s172] ss:$9 sm:$0xff] %v88
    %222 = vst [vmem:[%s174] ss:$9 sm:$0xff] %v89
    %223 = vst [vmem:[%s176] ss:$9 sm:$0xff] %v90
    %224 = vst [vmem:[%s178] ss:$9 sm:$0xff] %v91
    %v225 = vld [vmem:[#allocation1] sm:$0xff]
    %226 = vst [vmem:[#allocation1] ss:$9 sm:$0xff] %v92
    %227 = vst [vmem:[%s166] ss:$9 sm:$0xff] %v38
    %228 = vst [vmem:[%s168] ss:$9 sm:$0xff] %v93
    %229 = vst [vmem:[%s170] ss:$9 sm:$0xff] %v94
    %230 = vst [vmem:[%s172] ss:$9 sm:$0xff] %v95
    %231 = vst [vmem:[%s174] ss:$9 sm:$0xff] %v96
    %232 = vst [vmem:[%s176] ss:$9 sm:$0xff] %v97
    %233 = vst [vmem:[%s178] ss:$9 sm:$0xff] %v98
    %v234 = vld [vmem:[#allocation1] sm:$0xff]
    %235 = vst [vmem:[#allocation1] ss:$9 sm:$0xff] %v99
    %236 = vst [vmem:[%s166] ss:$9 sm:$0xff] %v39
    %237 = vst [vmem:[%s168] ss:$9 sm:$0xff] %v100
    %238 = vst [vmem:[%s170] ss:$9 sm:$0xff] %v101
    %239 = vst [vmem:[%s172] ss:$9 sm:$0xff] %v102
    %240 = vst [vmem:[%s174] ss:$9 sm:$0xff] %v103
    %241 = vst [vmem:[%s176] ss:$9 sm:$0xff] %v104
    %242 = vst [vmem:[%s178] ss:$9 sm:$0xff] %v105
    %v243 = vld [vmem:[#allocation1] sm:$0xff]
    %244 = vst [vmem:[#allocation1] ss:$9 sm:$0xff] %v106
    %245 = vst [vmem:[%s166] ss:$9 sm:$0xff] %v40
    %v246 = vld [vmem:[#allocation1] sm:$0xff]
    %vm256 = vcmask 392192
    %v257 = vsel %vm256, %v180, 0.0
    %258 = vadd.xlane.f32.xlu0 %v257
    %v259 = vpop.xlane.xlu0 %258
    %v260 = vsel %vm256, %v189, 0.0
    %261 = vadd.xlane.f32.xlu0 %v260
    %v262 = vpop.xlane.xlu0 %261
    %v263 = vsel %vm256, %v198, 0.0
    %264 = vadd.xlane.f32.xlu0 %v263
    %v265 = vpop.xlane.xlu0 %264
    %v266 = vsel %vm256, %v207, 0.0
    %267 = vadd.xlane.f32.xlu0 %v266
    %v268 = vpop.xlane.xlu0 %267
    %v269 = vsel %vm256, %v216, 0.0
    %270 = vadd.xlane.f32.xlu0 %v269
    %v271 = vpop.xlane.xlu0 %270
    %v272 = vsel %vm256, %v225, 0.0
    %273 = vadd.xlane.f32.xlu0 %v272
    %v274 = vpop.xlane.xlu0 %273
    %v275 = vsel %vm256, %v234, 0.0
    %276 = vadd.xlane.f32.xlu0 %v275
    %v277 = vpop.xlane.xlu0 %276
    %v278 = vsel %vm256, %v243, 0.0
    %279 = vadd.xlane.f32.xlu0 %v278
    %v280 = vpop.xlane.xlu0 %279
    %vm281 = vcmask 386048
    %v282 = vsel %vm281, %v246, 0.0
    %283 = vadd.xlane.f32.xlu0 %v282
    %v284 = vpop.xlane.xlu0 %283
    %v285 = vrcp.pop 48.0
    %v286 = vmul.f32 48.0, %v285
    %v287 = vsub.f32 1.0, %v286
    %v288 = vmul.f32 %v285, %v287
    %v289 = vadd.f32 %v285, %v288
    %vm290 = vweird.f32 %v285
    %v291 = vsel %vm290, %v285, %v289
    %v292 = vmul.f32 %v259, %v291
    %v293 = vmul.f32 %v262, %v291
    %v294 = vmul.f32 %v265, %v291
    %v295 = vmul.f32 %v268, %v291
    %v296 = vmul.f32 %v271, %v291
    %v297 = vmul.f32 %v274, %v291
    %v298 = vmul.f32 %v277, %v291
    %v299 = vmul.f32 %v280, %v291
    %v300 = vmul.f32 %v284, %v291
    %v310 = vperm.slane %v292, 0
    %v311 = vperm.slane %v292, 1
    %v312 = vperm.slane %v292, 2
    %v313 = vperm.slane %v292, 3
    %v314 = vperm.slane %v292, 4
    %v315 = vperm.slane %v292, 5
    %v316 = vperm.slane %v292, 6
    %v317 = vperm.slane %v292, 7
    %v318 = vperm.slane %v293, 0
    %v319 = vperm.slane %v293, 1
    %v320 = vperm.slane %v293, 2
    %v321 = vperm.slane %v293, 3
    %v322 = vperm.slane %v293, 4
    %v323 = vperm.slane %v293, 5
    %v324 = vperm.slane %v293, 6
    %v325 = vperm.slane %v293, 7
    %v326 = vperm.slane %v294, 0
    %v327 = vperm.slane %v294, 1
    %v328 = vperm.slane %v294, 2
    %v329 = vperm.slane %v294, 3
    %v330 = vperm.slane %v294, 4
    %v331 = vperm.slane %v294, 5
    %v332 = vperm.slane %v294, 6
    %v333 = vperm.slane %v294, 7
    %v334 = vperm.slane %v295, 0
    %v335 = vperm.slane %v295, 1
    %v336 = vperm.slane %v295, 2
    %v337 = vperm.slane %v295, 3
    %v338 = vperm.slane %v295, 4
    %v339 = vperm.slane %v295, 5
    %v340 = vperm.slane %v295, 6
    %v341 = vperm.slane %v295, 7
    %v342 = vperm.slane %v296, 0
    %v343 = vperm.slane %v296, 1
    %v344 = vperm.slane %v296, 2
    %v345 = vperm.slane %v296, 3
    %v346 = vperm.slane %v296, 4
    %v347 = vperm.slane %v296, 5
    %v348 = vperm.slane %v296, 6
    %v349 = vperm.slane %v296, 7
    %v350 = vperm.slane %v297, 0
    %v351 = vperm.slane %v297, 1
    %v352 = vperm.slane %v297, 2
    %v353 = vperm.slane %v297, 3
    %v354 = vperm.slane %v297, 4
    %v355 = vperm.slane %v297, 5
    %v356 = vperm.slane %v297, 6
    %v357 = vperm.slane %v297, 7
    %v358 = vperm.slane %v298, 0
    %v359 = vperm.slane %v298, 1
    %v360 = vperm.slane %v298, 2
    %v361 = vperm.slane %v298, 3
    %v362 = vperm.slane %v298, 4
    %v363 = vperm.slane %v298, 5
    %v364 = vperm.slane %v298, 6
    %v365 = vperm.slane %v298, 7
    %v366 = vperm.slane %v299, 0
    %v367 = vperm.slane %v299, 1
    %v368 = vperm.slane %v299, 2
    %v369 = vperm.slane %v299, 3
    %v370 = vperm.slane %v299, 4
    %v371 = vperm.slane %v299, 5
    %v372 = vperm.slane %v299, 6
    %v373 = vperm.slane %v299, 7
    %v374 = vperm.slane %v300, 0
    %v375 = vperm.slane %v300, 1
    %v442 = vsub.f32 %v31, %v310
    %v443 = vsub.f32 %v51, %v311
    %v444 = vsub.f32 %v52, %v312
    %v445 = vsub.f32 %v53, %v313
    %v446 = vsub.f32 %v54, %v314
    %v447 = vsub.f32 %v55, %v315
    %v448 = vsub.f32 %v56, %v316
    %v449 = vsub.f32 %v57, %v317
    %v450 = vsub.f32 %v32, %v318
    %v451 = vsub.f32 %v58, %v319
    %v452 = vsub.f32 %v59, %v320
    %v453 = vsub.f32 %v60, %v321
    %v454 = vsub.f32 %v61, %v322
    %v455 = vsub.f32 %v62, %v323
    %v456 = vsub.f32 %v63, %v324
    %v457 = vsub.f32 %v64, %v325
    %v458 = vsub.f32 %v33, %v326
    %v459 = vsub.f32 %v65, %v327
    %v460 = vsub.f32 %v66, %v328
    %v461 = vsub.f32 %v67, %v329
    %v462 = vsub.f32 %v68, %v330
    %v463 = vsub.f32 %v69, %v331
    %v464 = vsub.f32 %v70, %v332
    %v465 = vsub.f32 %v71, %v333
    %v466 = vsub.f32 %v34, %v334
    %v467 = vsub.f32 %v72, %v335
    %v468 = vsub.f32 %v73, %v336
    %v469 = vsub.f32 %v74, %v337
    %v470 = vsub.f32 %v75, %v338
    %v471 = vsub.f32 %v76, %v339
    %v472 = vsub.f32 %v77, %v340
    %v473 = vsub.f32 %v78, %v341
    %v474 = vsub.f32 %v35, %v342
    %v475 = vsub.f32 %v36, %v343
    %v476 = vsub.f32 %v79, %v344
    %v477 = vsub.f32 %v80, %v345
    %v478 = vsub.f32 %v81, %v346
    %v479 = vsub.f32 %v82, %v347
    %v480 = vsub.f32 %v83, %v348
    %v481 = vsub.f32 %v84, %v349
    %v482 = vsub.f32 %v85, %v350
    %v483 = vsub.f32 %v37, %v351
    %v484 = vsub.f32 %v86, %v352
    %v485 = vsub.f32 %v87, %v353
    %v486 = vsub.f32 %v88, %v354
    %v487 = vsub.f32 %v89, %v355
    %v488 = vsub.f32 %v90, %v356
    %v489 = vsub.f32 %v91, %v357
    %v490 = vsub.f32 %v92, %v358
    %v491 = vsub.f32 %v38, %v359
    %v492 = vsub.f32 %v93, %v360
    %v493 = vsub.f32 %v94, %v361
    %v494 = vsub.f32 %v95, %v362
    %v495 = vsub.f32 %v96, %v363
    %v496 = vsub.f32 %v97, %v364
    %v497 = vsub.f32 %v98, %v365
    %v498 = vsub.f32 %v99, %v366
    %v499 = vsub.f32 %v39, %v367
    %v500 = vsub.f32 %v100, %v368
    %v501 = vsub.f32 %v101, %v369
    %v502 = vsub.f32 %v102, %v370
    %v503 = vsub.f32 %v103, %v371
    %v504 = vsub.f32 %v104, %v372
    %v505 = vsub.f32 %v105, %v373
    %v506 = vsub.f32 %v106, %v374
    %v507 = vsub.f32 %v40, %v375
    %v508 = vmul.f32 %v442, %v442
    %v509 = vmul.f32 %v443, %v443
    %v510 = vmul.f32 %v444, %v444
    %v511 = vmul.f32 %v445, %v445
    %v512 = vmul.f32 %v446, %v446
    %v513 = vmul.f32 %v447, %v447
    %v514 = vmul.f32 %v448, %v448
    %v515 = vmul.f32 %v449, %v449
    %v516 = vmul.f32 %v450, %v450
    %v517 = vmul.f32 %v451, %v451
    %v518 = vmul.f32 %v452, %v452
    %v519 = vmul.f32 %v453, %v453
    %v520 = vmul.f32 %v454, %v454
    %v521 = vmul.f32 %v455, %v455
    %v522 = vmul.f32 %v456, %v456
    %v523 = vmul.f32 %v457, %v457
    %v524 = vmul.f32 %v458, %v458
    %v525 = vmul.f32 %v459, %v459
    %v526 = vmul.f32 %v460, %v460
    %v527 = vmul.f32 %v461, %v461
    %v528 = vmul.f32 %v462, %v462
    %v529 = vmul.f32 %v463, %v463
    %v530 = vmul.f32 %v464, %v464
    %v531 = vmul.f32 %v465, %v465
    %v532 = vmul.f32 %v466, %v466
    %v533 = vmul.f32 %v467, %v467
    %v534 = vmul.f32 %v468, %v468
    %v535 = vmul.f32 %v469, %v469
    %v536 = vmul.f32 %v470, %v470
    %v537 = vmul.f32 %v471, %v471
    %v538 = vmul.f32 %v472, %v472
    %v539 = vmul.f32 %v473, %v473
    %v540 = vmul.f32 %v474, %v474
    %v541 = vmul.f32 %v475, %v475
    %v542 = vmul.f32 %v476, %v476
    %v543 = vmul.f32 %v477, %v477
    %v544 = vmul.f32 %v478, %v478
    %v545 = vmul.f32 %v479, %v479
    %v546 = vmul.f32 %v480, %v480
    %v547 = vmul.f32 %v481, %v481
    %v548 = vmul.f32 %v482, %v482
    %v549 = vmul.f32 %v483, %v483
    %v550 = vmul.f32 %v484, %v484
    %v551 = vmul.f32 %v485, %v485
    %v552 = vmul.f32 %v486, %v486
    %v553 = vmul.f32 %v487, %v487
    %v554 = vmul.f32 %v488, %v488
    %v555 = vmul.f32 %v489, %v489
    %v556 = vmul.f32 %v490, %v490
    %v557 = vmul.f32 %v491, %v491
    %v558 = vmul.f32 %v492, %v492
    %v559 = vmul.f32 %v493, %v493
    %v560 = vmul.f32 %v494, %v494
    %v561 = vmul.f32 %v495, %v495
    %v562 = vmul.f32 %v496, %v496
    %v563 = vmul.f32 %v497, %v497
    %v564 = vmul.f32 %v498, %v498
    %v565 = vmul.f32 %v499, %v499
    %v566 = vmul.f32 %v500, %v500
    %v567 = vmul.f32 %v501, %v501
    %v568 = vmul.f32 %v502, %v502
    %v569 = vmul.f32 %v503, %v503
    %v570 = vmul.f32 %v504, %v504
    %v571 = vmul.f32 %v505, %v505
    %v572 = vmul.f32 %v506, %v506
    %v573 = vmul.f32 %v507, %v507
    %640 = vst [vmem:[#allocation1] ss:$9 sm:$0xff] %v508
    %s641 = scalar_lea.vmem [#allocation1], 1
    %642 = vst [vmem:[%s641] ss:$9 sm:$0xff] %v509
    %s643 = scalar_lea.vmem [#allocation1], 2
    %644 = vst [vmem:[%s643] ss:$9 sm:$0xff] %v510
    %s645 = scalar_lea.vmem [#allocation1], 3
    %646 = vst [vmem:[%s645] ss:$9 sm:$0xff] %v511
    %s647 = scalar_lea.vmem [#allocation1], 4
    %648 = vst [vmem:[%s647] ss:$9 sm:$0xff] %v512
    %s649 = scalar_lea.vmem [#allocation1], 5
    %650 = vst [vmem:[%s649] ss:$9 sm:$0xff] %v513
    %s651 = scalar_lea.vmem [#allocation1], 6
    %652 = vst [vmem:[%s651] ss:$9 sm:$0xff] %v514
    %s653 = scalar_lea.vmem [#allocation1], 7
    %654 = vst [vmem:[%s653] ss:$9 sm:$0xff] %v515
    %v655 = vld [vmem:[#allocation1] sm:$0xff]
    %656 = vst [vmem:[#allocation1] ss:$9 sm:$0xff] %v516
    %657 = vst [vmem:[%s641] ss:$9 sm:$0xff] %v517
    %658 = vst [vmem:[%s643] ss:$9 sm:$0xff] %v518
    %659 = vst [vmem:[%s645] ss:$9 sm:$0xff] %v519
    %660 = vst [vmem:[%s647] ss:$9 sm:$0xff] %v520
    %661 = vst [vmem:[%s649] ss:$9 sm:$0xff] %v521
    %662 = vst [vmem:[%s651] ss:$9 sm:$0xff] %v522
    %663 = vst [vmem:[%s653] ss:$9 sm:$0xff] %v523
    %v664 = vld [vmem:[#allocation1] sm:$0xff]
    %665 = vst [vmem:[#allocation1] ss:$9 sm:$0xff] %v524
    %666 = vst [vmem:[%s641] ss:$9 sm:$0xff] %v525
    %667 = vst [vmem:[%s643] ss:$9 sm:$0xff] %v526
    %668 = vst [vmem:[%s645] ss:$9 sm:$0xff] %v527
    %669 = vst [vmem:[%s647] ss:$9 sm:$0xff] %v528
    %670 = vst [vmem:[%s649] ss:$9 sm:$0xff] %v529
    %671 = vst [vmem:[%s651] ss:$9 sm:$0xff] %v530
    %672 = vst [vmem:[%s653] ss:$9 sm:$0xff] %v531
    %v673 = vld [vmem:[#allocation1] sm:$0xff]
    %674 = vst [vmem:[#allocation1] ss:$9 sm:$0xff] %v532
    %675 = vst [vmem:[%s641] ss:$9 sm:$0xff] %v533
    %676 = vst [vmem:[%s643] ss:$9 sm:$0xff] %v534
    %677 = vst [vmem:[%s645] ss:$9 sm:$0xff] %v535
    %678 = vst [vmem:[%s647] ss:$9 sm:$0xff] %v536
    %679 = vst [vmem:[%s649] ss:$9 sm:$0xff] %v537
    %680 = vst [vmem:[%s651] ss:$9 sm:$0xff] %v538
    %681 = vst [vmem:[%s653] ss:$9 sm:$0xff] %v539
    %v682 = vld [vmem:[#allocation1] sm:$0xff]
    %683 = vst [vmem:[#allocation1] ss:$9 sm:$0xff] %v540
    %684 = vst [vmem:[%s641] ss:$9 sm:$0xff] %v541
    %685 = vst [vmem:[%s643] ss:$9 sm:$0xff] %v542
    %686 = vst [vmem:[%s645] ss:$9 sm:$0xff] %v543
    %687 = vst [vmem:[%s647] ss:$9 sm:$0xff] %v544
    %688 = vst [vmem:[%s649] ss:$9 sm:$0xff] %v545
    %689 = vst [vmem:[%s651] ss:$9 sm:$0xff] %v546
    %690 = vst [vmem:[%s653] ss:$9 sm:$0xff] %v547
    %v691 = vld [vmem:[#allocation1] sm:$0xff]
    %692 = vst [vmem:[#allocation1] ss:$9 sm:$0xff] %v548
    %693 = vst [vmem:[%s641] ss:$9 sm:$0xff] %v549
    %694 = vst [vmem:[%s643] ss:$9 sm:$0xff] %v550
    %695 = vst [vmem:[%s645] ss:$9 sm:$0xff] %v551
    %696 = vst [vmem:[%s647] ss:$9 sm:$0xff] %v552
    %697 = vst [vmem:[%s649] ss:$9 sm:$0xff] %v553
    %698 = vst [vmem:[%s651] ss:$9 sm:$0xff] %v554
    %699 = vst [vmem:[%s653] ss:$9 sm:$0xff] %v555
    %v700 = vld [vmem:[#allocation1] sm:$0xff]
    %701 = vst [vmem:[#allocation1] ss:$9 sm:$0xff] %v556
    %702 = vst [vmem:[%s641] ss:$9 sm:$0xff] %v557
    %703 = vst [vmem:[%s643] ss:$9 sm:$0xff] %v558
    %704 = vst [vmem:[%s645] ss:$9 sm:$0xff] %v559
    %705 = vst [vmem:[%s647] ss:$9 sm:$0xff] %v560
    %706 = vst [vmem:[%s649] ss:$9 sm:$0xff] %v561
    %707 = vst [vmem:[%s651] ss:$9 sm:$0xff] %v562
    %708 = vst [vmem:[%s653] ss:$9 sm:$0xff] %v563
    %v709 = vld [vmem:[#allocation1] sm:$0xff]
    %710 = vst [vmem:[#allocation1] ss:$9 sm:$0xff] %v564
    %711 = vst [vmem:[%s641] ss:$9 sm:$0xff] %v565
    %712 = vst [vmem:[%s643] ss:$9 sm:$0xff] %v566
    %713 = vst [vmem:[%s645] ss:$9 sm:$0xff] %v567
    %714 = vst [vmem:[%s647] ss:$9 sm:$0xff] %v568
    %715 = vst [vmem:[%s649] ss:$9 sm:$0xff] %v569
    %716 = vst [vmem:[%s651] ss:$9 sm:$0xff] %v570
    %717 = vst [vmem:[%s653] ss:$9 sm:$0xff] %v571
    %v718 = vld [vmem:[#allocation1] sm:$0xff]
    %719 = vst [vmem:[#allocation1] ss:$9 sm:$0xff] %v572
    %720 = vst [vmem:[%s641] ss:$9 sm:$0xff] %v573
    %v721 = vld [vmem:[#allocation1] sm:$0xff]
    %v731 = vsel %vm256, %v655, 0.0
    %732 = vadd.xlane.f32.xlu0 %v731
    %v733 = vpop.xlane.xlu0 %732
    %v734 = vsel %vm256, %v664, 0.0
    %735 = vadd.xlane.f32.xlu0 %v734
    %v736 = vpop.xlane.xlu0 %735
    %v737 = vsel %vm256, %v673, 0.0
    %738 = vadd.xlane.f32.xlu0 %v737
    %v739 = vpop.xlane.xlu0 %738
    %v740 = vsel %vm256, %v682, 0.0
    %741 = vadd.xlane.f32.xlu0 %v740
    %v742 = vpop.xlane.xlu0 %741
    %v743 = vsel %vm256, %v691, 0.0
    %744 = vadd.xlane.f32.xlu0 %v743
    %v745 = vpop.xlane.xlu0 %744
    %v746 = vsel %vm256, %v700, 0.0
    %747 = vadd.xlane.f32.xlu0 %v746
    %v748 = vpop.xlane.xlu0 %747
    %v749 = vsel %vm256, %v709, 0.0
    %750 = vadd.xlane.f32.xlu0 %v749
    %v751 = vpop.xlane.xlu0 %750
    %v752 = vsel %vm256, %v718, 0.0
    %753 = vadd.xlane.f32.xlu0 %v752
    %v754 = vpop.xlane.xlu0 %753
    %v755 = vsel %vm281, %v721, 0.0
    %756 = vadd.xlane.f32.xlu0 %v755
    %v757 = vpop.xlane.xlu0 %756
    %v758 = vmul.f32 %v733, %v291
    %v759 = vmul.f32 %v736, %v291
    %v760 = vmul.f32 %v739, %v291
    %v761 = vmul.f32 %v742, %v291
    %v762 = vmul.f32 %v745, %v291
    %v763 = vmul.f32 %v748, %v291
    %v764 = vmul.f32 %v751, %v291
    %v765 = vmul.f32 %v754, %v291
    %v766 = vmul.f32 %v757, %v291
    %v767 = vadd.f32 %v758, 1e-05
    %v768 = vadd.f32 %v759, 1e-05
    %v769 = vadd.f32 %v760, 1e-05
    %v770 = vadd.f32 %v761, 1e-05
    %v771 = vadd.f32 %v762, 1e-05
    %v772 = vadd.f32 %v763, 1e-05
    %v773 = vadd.f32 %v764, 1e-05
    %v774 = vadd.f32 %v765, 1e-05
    %v775 = vadd.f32 %v766, 1e-05
    %v776 = vrsqrt.pop %v767
    %v777 = vmul.f32 %v776, %v767
    %v778 = vmul.f32 %v777, %v776
    %v779 = vmul.f32 0.5, %v778
    %v780 = vsub.f32 1.5, %v779
    %v781 = vmul.f32 %v776, %v780
    %vm782 = vweird.f32 %v767
    %vm783 = vweird.f32 %v776
    %vm784 = vmor %vm782, %vm783
    %v785 = vsel %vm784, %v776, %v781
    %v786 = vrsqrt.pop %v768
    %v787 = vmul.f32 %v786, %v768
    %v788 = vmul.f32 %v787, %v786
    %v789 = vmul.f32 0.5, %v788
    %v790 = vsub.f32 1.5, %v789
    %v791 = vmul.f32 %v786, %v790
    %vm792 = vweird.f32 %v768
    %vm793 = vweird.f32 %v786
    %vm794 = vmor %vm792, %vm793
    %v795 = vsel %vm794, %v786, %v791
    %v796 = vrsqrt.pop %v769
    %v797 = vmul.f32 %v796, %v769
    %v798 = vmul.f32 %v797, %v796
    %v799 = vmul.f32 0.5, %v798
    %v800 = vsub.f32 1.5, %v799
    %v801 = vmul.f32 %v796, %v800
    %vm802 = vweird.f32 %v769
    %vm803 = vweird.f32 %v796
    %vm804 = vmor %vm802, %vm803
    %v805 = vsel %vm804, %v796, %v801
    %v806 = vrsqrt.pop %v770
    %v807 = vmul.f32 %v806, %v770
    %v808 = vmul.f32 %v807, %v806
    %v809 = vmul.f32 0.5, %v808
    %v810 = vsub.f32 1.5, %v809
    %v811 = vmul.f32 %v806, %v810
    %vm812 = vweird.f32 %v770
    %vm813 = vweird.f32 %v806
    %vm814 = vmor %vm812, %vm813
    %v815 = vsel %vm814, %v806, %v811
    %v816 = vrsqrt.pop %v771
    %v817 = vmul.f32 %v816, %v771
    %v818 = vmul.f32 %v817, %v816
    %v819 = vmul.f32 0.5, %v818
    %v820 = vsub.f32 1.5, %v819
    %v821 = vmul.f32 %v816, %v820
    %vm822 = vweird.f32 %v771
    %vm823 = vweird.f32 %v816
    %vm824 = vmor %vm822, %vm823
    %v825 = vsel %vm824, %v816, %v821
    %v826 = vrsqrt.pop %v772
    %v827 = vmul.f32 %v826, %v772
    %v828 = vmul.f32 %v827, %v826
    %v829 = vmul.f32 0.5, %v828
    %v830 = vsub.f32 1.5, %v829
    %v831 = vmul.f32 %v826, %v830
    %vm832 = vweird.f32 %v772
    %vm833 = vweird.f32 %v826
    %vm834 = vmor %vm832, %vm833
    %v835 = vsel %vm834, %v826, %v831
    %v836 = vrsqrt.pop %v773
    %v837 = vmul.f32 %v836, %v773
    %v838 = vmul.f32 %v837, %v836
    %v839 = vmul.f32 0.5, %v838
    %v840 = vsub.f32 1.5, %v839
    %v841 = vmul.f32 %v836, %v840
    %vm842 = vweird.f32 %v773
    %vm843 = vweird.f32 %v836
    %vm844 = vmor %vm842, %vm843
    %v845 = vsel %vm844, %v836, %v841
    %v846 = vrsqrt.pop %v774
    %v847 = vmul.f32 %v846, %v774
    %v848 = vmul.f32 %v847, %v846
    %v849 = vmul.f32 0.5, %v848
    %v850 = vsub.f32 1.5, %v849
    %v851 = vmul.f32 %v846, %v850
    %vm852 = vweird.f32 %v774
    %vm853 = vweird.f32 %v846
    %vm854 = vmor %vm852, %vm853
    %v855 = vsel %vm854, %v846, %v851
    %v856 = vrsqrt.pop %v775
    %v857 = vmul.f32 %v856, %v775
    %v858 = vmul.f32 %v857, %v856
    %v859 = vmul.f32 0.5, %v858
    %v860 = vsub.f32 1.5, %v859
    %v861 = vmul.f32 %v856, %v860
    %vm862 = vweird.f32 %v775
    %vm863 = vweird.f32 %v856
    %vm864 = vmor %vm862, %vm863
    %v865 = vsel %vm864, %v856, %v861
    %v875 = vperm.slane %v785, 0
    %v876 = vperm.slane %v785, 1
    %v877 = vperm.slane %v785, 2
    %v878 = vperm.slane %v785, 3
    %v879 = vperm.slane %v785, 4
    %v880 = vperm.slane %v785, 5
    %v881 = vperm.slane %v785, 6
    %v882 = vperm.slane %v785, 7
    %v883 = vperm.slane %v795, 0
    %v884 = vperm.slane %v795, 1
    %v885 = vperm.slane %v795, 2
    %v886 = vperm.slane %v795, 3
    %v887 = vperm.slane %v795, 4
    %v888 = vperm.slane %v795, 5
    %v889 = vperm.slane %v795, 6
    %v890 = vperm.slane %v795, 7
    %v891 = vperm.slane %v805, 0
    %v892 = vperm.slane %v805, 1
    %v893 = vperm.slane %v805, 2
    %v894 = vperm.slane %v805, 3
    %v895 = vperm.slane %v805, 4
    %v896 = vperm.slane %v805, 5
    %v897 = vperm.slane %v805, 6
    %v898 = vperm.slane %v805, 7
    %v899 = vperm.slane %v815, 0
    %v900 = vperm.slane %v815, 1
    %v901 = vperm.slane %v815, 2
    %v902 = vperm.slane %v815, 3
    %v903 = vperm.slane %v815, 4
    %v904 = vperm.slane %v815, 5
    %v905 = vperm.slane %v815, 6
    %v906 = vperm.slane %v815, 7
    %v907 = vperm.slane %v825, 0
    %v908 = vperm.slane %v825, 1
    %v909 = vperm.slane %v825, 2
    %v910 = vperm.slane %v825, 3
    %v911 = vperm.slane %v825, 4
    %v912 = vperm.slane %v825, 5
    %v913 = vperm.slane %v825, 6
    %v914 = vperm.slane %v825, 7
    %v915 = vperm.slane %v835, 0
    %v916 = vperm.slane %v835, 1
    %v917 = vperm.slane %v835, 2
    %v918 = vperm.slane %v835, 3
    %v919 = vperm.slane %v835, 4
    %v920 = vperm.slane %v835, 5
    %v921 = vperm.slane %v835, 6
    %v922 = vperm.slane %v835, 7
    %v923 = vperm.slane %v845, 0
    %v924 = vperm.slane %v845, 1
    %v925 = vperm.slane %v845, 2
    %v926 = vperm.slane %v845, 3
    %v927 = vperm.slane %v845, 4
    %v928 = vperm.slane %v845, 5
    %v929 = vperm.slane %v845, 6
    %v930 = vperm.slane %v845, 7
    %v931 = vperm.slane %v855, 0
    %v932 = vperm.slane %v855, 1
    %v933 = vperm.slane %v855, 2
    %v934 = vperm.slane %v855, 3
    %v935 = vperm.slane %v855, 4
    %v936 = vperm.slane %v855, 5
    %v937 = vperm.slane %v855, 6
    %v938 = vperm.slane %v855, 7
    %v939 = vperm.slane %v865, 0
    %v940 = vperm.slane %v865, 1
    %v1007 = vmul.f32 %v442, %v875
    %v1008 = vmul.f32 %v443, %v876
    %v1009 = vmul.f32 %v444, %v877
    %v1010 = vmul.f32 %v445, %v878
    %v1011 = vmul.f32 %v446, %v879
    %v1012 = vmul.f32 %v447, %v880
    %v1013 = vmul.f32 %v448, %v881
    %v1014 = vmul.f32 %v449, %v882
    %v1015 = vmul.f32 %v450, %v883
    %v1016 = vmul.f32 %v451, %v884
    %v1017 = vmul.f32 %v452, %v885
    %v1018 = vmul.f32 %v453, %v886
    %v1019 = vmul.f32 %v454, %v887
    %v1020 = vmul.f32 %v455, %v888
    %v1021 = vmul.f32 %v456, %v889
    %v1022 = vmul.f32 %v457, %v890
    %v1023 = vmul.f32 %v458, %v891
    %v1024 = vmul.f32 %v459, %v892
    %v1025 = vmul.f32 %v460, %v893
    %v1026 = vmul.f32 %v461, %v894
    %v1027 = vmul.f32 %v462, %v895
    %v1028 = vmul.f32 %v463, %v896
    %v1029 = vmul.f32 %v464, %v897
    %v1030 = vmul.f32 %v465, %v898
    %v1031 = vmul.f32 %v466, %v899
    %v1032 = vmul.f32 %v467, %v900
    %v1033 = vmul.f32 %v468, %v901
    %v1034 = vmul.f32 %v469, %v902
    %v1035 = vmul.f32 %v470, %v903
    %v1036 = vmul.f32 %v471, %v904
    %v1037 = vmul.f32 %v472, %v905
    %v1038 = vmul.f32 %v473, %v906
    %v1039 = vmul.f32 %v474, %v907
    %v1040 = vmul.f32 %v475, %v908
    %v1041 = vmul.f32 %v476, %v909
    %v1042 = vmul.f32 %v477, %v910
    %v1043 = vmul.f32 %v478, %v911
    %v1044 = vmul.f32 %v479, %v912
    %v1045 = vmul.f32 %v480, %v913
    %v1046 = vmul.f32 %v481, %v914
    %v1047 = vmul.f32 %v482, %v915
    %v1048 = vmul.f32 %v483, %v916
    %v1049 = vmul.f32 %v484, %v917
    %v1050 = vmul.f32 %v485, %v918
    %v1051 = vmul.f32 %v486, %v919
    %v1052 = vmul.f32 %v487, %v920
    %v1053 = vmul.f32 %v488, %v921
    %v1054 = vmul.f32 %v489, %v922
    %v1055 = vmul.f32 %v490, %v923
    %v1056 = vmul.f32 %v491, %v924
    %v1057 = vmul.f32 %v492, %v925
    %v1058 = vmul.f32 %v493, %v926
    %v1059 = vmul.f32 %v494, %v927
    %v1060 = vmul.f32 %v495, %v928
    %v1061 = vmul.f32 %v496, %v929
    %v1062 = vmul.f32 %v497, %v930
    %v1063 = vmul.f32 %v498, %v931
    %v1064 = vmul.f32 %v499, %v932
    %v1065 = vmul.f32 %v500, %v933
    %v1066 = vmul.f32 %v501, %v934
    %v1067 = vmul.f32 %v502, %v935
    %v1068 = vmul.f32 %v503, %v936
    %v1069 = vmul.f32 %v504, %v937
    %v1070 = vmul.f32 %v505, %v938
    %v1071 = vmul.f32 %v506, %v939
    %v1072 = vmul.f32 %v507, %v940
    %v1074 = vperm.slane %v163, 0
    %v1076 = vrot.slane %v1074, 1
    %v1077 = vrot.slane %v1074, 2
    %v1078 = vrot.slane %v1074, 3
    %v1079 = vrot.slane %v1074, 4
    %v1080 = vrot.slane %v1074, 5
    %v1081 = vrot.slane %v1074, 6
    %v1082 = vrot.slane %v1074, 7
    %v1090 = vmul.f32 %v1007, %v1074
    %v1091 = vmul.f32 %v1008, %v1076
    %v1092 = vmul.f32 %v1009, %v1077
    %v1093 = vmul.f32 %v1010, %v1078
    %v1094 = vmul.f32 %v1011, %v1079
    %v1095 = vmul.f32 %v1012, %v1080
    %v1096 = vmul.f32 %v1013, %v1081
    %v1097 = vmul.f32 %v1014, %v1082
    %v1098 = vmul.f32 %v1015, %v1074
    %v1099 = vmul.f32 %v1016, %v1076
    %v1100 = vmul.f32 %v1017, %v1077
    %v1101 = vmul.f32 %v1018, %v1078
    %v1102 = vmul.f32 %v1019, %v1079
    %v1103 = vmul.f32 %v1020, %v1080
    %v1104 = vmul.f32 %v1021, %v1081
    %v1105 = vmul.f32 %v1022, %v1082
    %v1106 = vmul.f32 %v1023, %v1074
    %v1107 = vmul.f32 %v1024, %v1076
    %v1108 = vmul.f32 %v1025, %v1077
    %v1109 = vmul.f32 %v1026, %v1078
    %v1110 = vmul.f32 %v1027, %v1079
    %v1111 = vmul.f32 %v1028, %v1080
    %v1112 = vmul.f32 %v1029, %v1081
    %v1113 = vmul.f32 %v1030, %v1082
    %v1114 = vmul.f32 %v1031, %v1074
    %v1115 = vmul.f32 %v1032, %v1076
    %v1116 = vmul.f32 %v1033, %v1077
    %v1117 = vmul.f32 %v1034, %v1078
    %v1118 = vmul.f32 %v1035, %v1079
    %v1119 = vmul.f32 %v1036, %v1080
    %v1120 = vmul.f32 %v1037, %v1081
    %v1121 = vmul.f32 %v1038, %v1082
    %v1122 = vmul.f32 %v1039, %v1074
    %v1123 = vmul.f32 %v1040, %v1076
    %v1124 = vmul.f32 %v1041, %v1077
    %v1125 = vmul.f32 %v1042, %v1078
    %v1126 = vmul.f32 %v1043, %v1079
    %v1127 = vmul.f32 %v1044, %v1080
    %v1128 = vmul.f32 %v1045, %v1081
    %v1129 = vmul.f32 %v1046, %v1082
    %v1130 = vmul.f32 %v1047, %v1074
    %v1131 = vmul.f32 %v1048, %v1076
    %v1132 = vmul.f32 %v1049, %v1077
    %v1133 = vmul.f32 %v1050, %v1078
    %v1134 = vmul.f32 %v1051, %v1079
    %v1135 = vmul.f32 %v1052, %v1080
    %v1136 = vmul.f32 %v1053, %v1081
    %v1137 = vmul.f32 %v1054, %v1082
    %v1138 = vmul.f32 %v1055, %v1074
    %v1139 = vmul.f32 %v1056, %v1076
    %v1140 = vmul.f32 %v1057, %v1077
    %v1141 = vmul.f32 %v1058, %v1078
    %v1142 = vmul.f32 %v1059, %v1079
    %v1143 = vmul.f32 %v1060, %v1080
    %v1144 = vmul.f32 %v1061, %v1081
    %v1145 = vmul.f32 %v1062, %v1082
    %v1146 = vmul.f32 %v1063, %v1074
    %v1147 = vmul.f32 %v1064, %v1076
    %v1148 = vmul.f32 %v1065, %v1077
    %v1149 = vmul.f32 %v1066, %v1078
    %v1150 = vmul.f32 %v1067, %v1079
    %v1151 = vmul.f32 %v1068, %v1080
    %v1152 = vmul.f32 %v1069, %v1081
    %v1153 = vmul.f32 %v1070, %v1082
    %v1154 = vmul.f32 %v1071, %v1074
    %v1155 = vmul.f32 %v1072, %v1076
    %v1157 = vperm.slane %v164, 0
    %v1159 = vrot.slane %v1157, 1
    %v1160 = vrot.slane %v1157, 2
    %v1161 = vrot.slane %v1157, 3
    %v1162 = vrot.slane %v1157, 4
    %v1163 = vrot.slane %v1157, 5
    %v1164 = vrot.slane %v1157, 6
    %v1165 = vrot.slane %v1157, 7
    %v1173 = vadd.f32 %v1090, %v1157
    %v1174 = vadd.f32 %v1091, %v1159
    %v1175 = vadd.f32 %v1092, %v1160
    %v1176 = vadd.f32 %v1093, %v1161
    %v1177 = vadd.f32 %v1094, %v1162
    %v1178 = vadd.f32 %v1095, %v1163
    %v1179 = vadd.f32 %v1096, %v1164
    %v1180 = vadd.f32 %v1097, %v1165
    %v1181 = vadd.f32 %v1098, %v1157
    %v1182 = vadd.f32 %v1099, %v1159
    %v1183 = vadd.f32 %v1100, %v1160
    %v1184 = vadd.f32 %v1101, %v1161
    %v1185 = vadd.f32 %v1102, %v1162
    %v1186 = vadd.f32 %v1103, %v1163
    %v1187 = vadd.f32 %v1104, %v1164
    %v1188 = vadd.f32 %v1105, %v1165
    %v1189 = vadd.f32 %v1106, %v1157
    %v1190 = vadd.f32 %v1107, %v1159
    %v1191 = vadd.f32 %v1108, %v1160
    %v1192 = vadd.f32 %v1109, %v1161
    %v1193 = vadd.f32 %v1110, %v1162
    %v1194 = vadd.f32 %v1111, %v1163
    %v1195 = vadd.f32 %v1112, %v1164
    %v1196 = vadd.f32 %v1113, %v1165
    %v1197 = vadd.f32 %v1114, %v1157
    %v1198 = vadd.f32 %v1115, %v1159
    %v1199 = vadd.f32 %v1116, %v1160
    %v1200 = vadd.f32 %v1117, %v1161
    %v1201 = vadd.f32 %v1118, %v1162
    %v1202 = vadd.f32 %v1119, %v1163
    %v1203 = vadd.f32 %v1120, %v1164
    %v1204 = vadd.f32 %v1121, %v1165
    %v1205 = vadd.f32 %v1122, %v1157
    %v1206 = vadd.f32 %v1123, %v1159
    %v1207 = vadd.f32 %v1124, %v1160
    %v1208 = vadd.f32 %v1125, %v1161
    %v1209 = vadd.f32 %v1126, %v1162
    %v1210 = vadd.f32 %v1127, %v1163
    %v1211 = vadd.f32 %v1128, %v1164
    %v1212 = vadd.f32 %v1129, %v1165
    %v1213 = vadd.f32 %v1130, %v1157
    %v1214 = vadd.f32 %v1131, %v1159
    %v1215 = vadd.f32 %v1132, %v1160
    %v1216 = vadd.f32 %v1133, %v1161
    %v1217 = vadd.f32 %v1134, %v1162
    %v1218 = vadd.f32 %v1135, %v1163
    %v1219 = vadd.f32 %v1136, %v1164
    %v1220 = vadd.f32 %v1137, %v1165
    %v1221 = vadd.f32 %v1138, %v1157
    %v1222 = vadd.f32 %v1139, %v1159
    %v1223 = vadd.f32 %v1140, %v1160
    %v1224 = vadd.f32 %v1141, %v1161
    %v1225 = vadd.f32 %v1142, %v1162
    %v1226 = vadd.f32 %v1143, %v1163
    %v1227 = vadd.f32 %v1144, %v1164
    %v1228 = vadd.f32 %v1145, %v1165
    %v1229 = vadd.f32 %v1146, %v1157
    %v1230 = vadd.f32 %v1147, %v1159
    %v1231 = vadd.f32 %v1148, %v1160
    %v1232 = vadd.f32 %v1149, %v1161
    %v1233 = vadd.f32 %v1150, %v1162
    %v1234 = vadd.f32 %v1151, %v1163
    %v1235 = vadd.f32 %v1152, %v1164
    %v1236 = vadd.f32 %v1153, %v1165
    %v1237 = vadd.f32 %v1154, %v1157
    %v1238 = vadd.f32 %v1155, %v1159
    %v1239 = vld [vmem:[%s3] sm:$0xf]
    %v1240 = vld [vmem:[%s3 + $0x4] sm:$0xf]
    %v1241 = vld [vmem:[%s3 + $0x8] sm:$0xf]
    %v1242 = vld [vmem:[%s3 + $0xc] sm:$0xf]
    %v1243 = vld [vmem:[%s3 + $0x10] sm:$0xf]
    %v1244 = vld [vmem:[%s3 + $0x14] sm:$0xf]
    %1311 = vst [vmem:[#allocation1] ss:$9 sm:$0xff] %v1173
    %s1312 = scalar_lea.vmem [#allocation1], 1
    %1313 = vst [vmem:[%s1312] ss:$9 sm:$0xff] %v1174
    %s1314 = scalar_lea.vmem [#allocation1], 2
    %1315 = vst [vmem:[%s1314] ss:$9 sm:$0xff] %v1175
    %s1316 = scalar_lea.vmem [#allocation1], 3
    %1317 = vst [vmem:[%s1316] ss:$9 sm:$0xff] %v1176
    %s1318 = scalar_lea.vmem [#allocation1], 4
    %1319 = vst [vmem:[%s1318] ss:$9 sm:$0xff] %v1177
    %s1320 = scalar_lea.vmem [#allocation1], 5
    %1321 = vst [vmem:[%s1320] ss:$9 sm:$0xff] %v1178
    %s1322 = scalar_lea.vmem [#allocation1], 6
    %1323 = vst [vmem:[%s1322] ss:$9 sm:$0xff] %v1179
    %s1324 = scalar_lea.vmem [#allocation1], 7
    %1325 = vst [vmem:[%s1324] ss:$9 sm:$0xff] %v1180
    %v1326 = vld [vmem:[#allocation1] sm:$0xff]
    %1327 = vst [vmem:[#allocation1] ss:$9 sm:$0xff] %v1181
    %1328 = vst [vmem:[%s1312] ss:$9 sm:$0xff] %v1182
    %1329 = vst [vmem:[%s1314] ss:$9 sm:$0xff] %v1183
    %1330 = vst [vmem:[%s1316] ss:$9 sm:$0xff] %v1184
    %1331 = vst [vmem:[%s1318] ss:$9 sm:$0xff] %v1185
    %1332 = vst [vmem:[%s1320] ss:$9 sm:$0xff] %v1186
    %1333 = vst [vmem:[%s1322] ss:$9 sm:$0xff] %v1187
    %1334 = vst [vmem:[%s1324] ss:$9 sm:$0xff] %v1188
    %v1335 = vld [vmem:[#allocation1] sm:$0xff]
    %1336 = vst [vmem:[#allocation1] ss:$9 sm:$0xff] %v1189
    %1337 = vst [vmem:[%s1312] ss:$9 sm:$0xff] %v1190
    %1338 = vst [vmem:[%s1314] ss:$9 sm:$0xff] %v1191
    %1339 = vst [vmem:[%s1316] ss:$9 sm:$0xff] %v1192
    %1340 = vst [vmem:[%s1318] ss:$9 sm:$0xff] %v1193
    %1341 = vst [vmem:[%s1320] ss:$9 sm:$0xff] %v1194
    %1342 = vst [vmem:[%s1322] ss:$9 sm:$0xff] %v1195
    %1343 = vst [vmem:[%s1324] ss:$9 sm:$0xff] %v1196
    %v1344 = vld [vmem:[#allocation1] sm:$0xff]
    %1345 = vst [vmem:[#allocation1] ss:$9 sm:$0xff] %v1197
    %1346 = vst [vmem:[%s1312] ss:$9 sm:$0xff] %v1198
    %1347 = vst [vmem:[%s1314] ss:$9 sm:$0xff] %v1199
    %1348 = vst [vmem:[%s1316] ss:$9 sm:$0xff] %v1200
    %1349 = vst [vmem:[%s1318] ss:$9 sm:$0xff] %v1201
    %1350 = vst [vmem:[%s1320] ss:$9 sm:$0xff] %v1202
    %1351 = vst [vmem:[%s1322] ss:$9 sm:$0xff] %v1203
    %1352 = vst [vmem:[%s1324] ss:$9 sm:$0xff] %v1204
    %v1353 = vld [vmem:[#allocation1] sm:$0xff]
    %1354 = vst [vmem:[#allocation1] ss:$9 sm:$0xff] %v1205
    %1355 = vst [vmem:[%s1312] ss:$9 sm:$0xff] %v1206
    %1356 = vst [vmem:[%s1314] ss:$9 sm:$0xff] %v1207
    %1357 = vst [vmem:[%s1316] ss:$9 sm:$0xff] %v1208
    %1358 = vst [vmem:[%s1318] ss:$9 sm:$0xff] %v1209
    %1359 = vst [vmem:[%s1320] ss:$9 sm:$0xff] %v1210
    %1360 = vst [vmem:[%s1322] ss:$9 sm:$0xff] %v1211
    %1361 = vst [vmem:[%s1324] ss:$9 sm:$0xff] %v1212
    %v1362 = vld [vmem:[#allocation1] sm:$0xff]
    %1363 = vst [vmem:[#allocation1] ss:$9 sm:$0xff] %v1213
    %1364 = vst [vmem:[%s1312] ss:$9 sm:$0xff] %v1214
    %1365 = vst [vmem:[%s1314] ss:$9 sm:$0xff] %v1215
    %1366 = vst [vmem:[%s1316] ss:$9 sm:$0xff] %v1216
    %1367 = vst [vmem:[%s1318] ss:$9 sm:$0xff] %v1217
    %1368 = vst [vmem:[%s1320] ss:$9 sm:$0xff] %v1218
    %1369 = vst [vmem:[%s1322] ss:$9 sm:$0xff] %v1219
    %1370 = vst [vmem:[%s1324] ss:$9 sm:$0xff] %v1220
    %v1371 = vld [vmem:[#allocation1] sm:$0xff]
    %1372 = vst [vmem:[#allocation1] ss:$9 sm:$0xff] %v1221
    %1373 = vst [vmem:[%s1312] ss:$9 sm:$0xff] %v1222
    %1374 = vst [vmem:[%s1314] ss:$9 sm:$0xff] %v1223
    %1375 = vst [vmem:[%s1316] ss:$9 sm:$0xff] %v1224
    %1376 = vst [vmem:[%s1318] ss:$9 sm:$0xff] %v1225
    %1377 = vst [vmem:[%s1320] ss:$9 sm:$0xff] %v1226
    %1378 = vst [vmem:[%s1322] ss:$9 sm:$0xff] %v1227
    %1379 = vst [vmem:[%s1324] ss:$9 sm:$0xff] %v1228
    %v1380 = vld [vmem:[#allocation1] sm:$0xff]
    %1381 = vst [vmem:[#allocation1] ss:$9 sm:$0xff] %v1229
    %1382 = vst [vmem:[%s1312] ss:$9 sm:$0xff] %v1230
    %1383 = vst [vmem:[%s1314] ss:$9 sm:$0xff] %v1231
    %1384 = vst [vmem:[%s1316] ss:$9 sm:$0xff] %v1232
    %1385 = vst [vmem:[%s1318] ss:$9 sm:$0xff] %v1233
    %1386 = vst [vmem:[%s1320] ss:$9 sm:$0xff] %v1234
    %1387 = vst [vmem:[%s1322] ss:$9 sm:$0xff] %v1235
    %1388 = vst [vmem:[%s1324] ss:$9 sm:$0xff] %v1236
    %v1389 = vld [vmem:[#allocation1] sm:$0xff]
    %1390 = vst [vmem:[#allocation1] ss:$9 sm:$0xff] %v1237
    %1391 = vst [vmem:[%s1312] ss:$9 sm:$0xff] %v1238
    %v1392 = vld [vmem:[#allocation1] sm:$0xff]
    %v1402 = vpack.c.bf16 %v1335, %v1326
    %v1403 = vpack.c.bf16 %v1353, %v1344
    %v1404 = vpack.c.bf16 %v1371, %v1362
    %v1405 = vpack.c.bf16 %v1389, %v1380
    %v1406 = vpack.c.bf16 %v1392, %v1392
    %v1407 = vld [vmem:[%s4] sm:$0x1]
    %v1409 = vperm.slane %v1407, 0
    %v1417 = vunpack.c.l.b16 %v1239
    %v1418 = vunpack.c.l.b16 %v1240
    %v1419 = vunpack.c.l.b16 %v1241
    %v1420 = vunpack.c.l.b16 %v1242
    %v1421 = vunpack.c.l.b16 %v1243
    %v1422 = vunpack.c.l.b16 %v1244
    %v1423 = vpack.c.b16 %v1418, %v1417
    %v1424 = vpack.c.b16 %v1420, %v1419
    %v1425 = vpack.c.b16 %v1422, %v1421
    %v1430 = vsel %vm256, %v1402, 0
    %v1433 = vsel %vm256, %v1403, 0
    %v1436 = vsel %vm256, %v1404, 0
    %v1439 = vsel %vm256, %v1405, 0
    %v1442 = vsel %vm256, %v1406, 0
    %1444 = vmatpush.bf16.msra.mxu0 0
    %1445 = vmatpush.bf16.msra.mxu0 0
    %1446 = vmatpush.bf16.msra.mxu0 0
    %1447 = vmatpush.bf16.msra.mxu0 0
    %1448 = vmatpush.bf16.msra.mxu0 0
    %1449 = vmatpush.bf16.msra.mxu0 %v1425
    %1450 = vmatpush.bf16.msra.mxu0 %v1424
    %1451 = vmatpush.bf16.msra.mxu0 %v1423
    %1452 = vmatmul.bf16.gmra.mxu0 %v1430
    %v1453 = vpop.f32.mrf.mxu0
    %v1454 = vadd.f32 %v1409, %v1453
    %v1455 = vpop.f32.mrf.mxu0
    %v1456 = vadd.f32 %v1409, %v1455
    %1457 = vmatmul.bf16.gmra.mxu0 %v1433
    %v1458 = vpop.f32.mrf.mxu0
    %v1459 = vadd.f32 %v1409, %v1458
    %v1460 = vpop.f32.mrf.mxu0
    %v1461 = vadd.f32 %v1409, %v1460
    %1462 = vmatmul.bf16.gmra.mxu0 %v1436
    %v1463 = vpop.f32.mrf.mxu0
    %v1464 = vadd.f32 %v1409, %v1463
    %v1465 = vpop.f32.mrf.mxu0
    %v1466 = vadd.f32 %v1409, %v1465
    %1467 = vmatmul.bf16.gmra.mxu0 %v1439
    %v1468 = vpop.f32.mrf.mxu0
    %v1469 = vadd.f32 %v1409, %v1468
    %v1470 = vpop.f32.mrf.mxu0
    %v1471 = vadd.f32 %v1409, %v1470
    %1472 = vmatmul.bf16.gmra.mxu0 %v1442
    %v1473 = vpop.f32.mrf.mxu0
    %v1474 = vadd.f32 %v1409, %v1473
    %v1475 = vpop.f32.mrf.mxu0
    %1476 = vdwg.mxu0
    %v1486 = vrot.slane %v1454, 1
    %v1487 = vrot.slane %v1454, 2
    %v1488 = vrot.slane %v1454, 3
    %v1489 = vrot.slane %v1454, 4
    %v1490 = vrot.slane %v1454, 5
    %v1491 = vrot.slane %v1454, 6
    %v1492 = vrot.slane %v1454, 7
    %v1493 = vrot.slane %v1456, 1
    %v1494 = vrot.slane %v1456, 2
    %v1495 = vrot.slane %v1456, 3
    %v1496 = vrot.slane %v1456, 4
    %v1497 = vrot.slane %v1456, 5
    %v1498 = vrot.slane %v1456, 6
    %v1499 = vrot.slane %v1456, 7
    %v1500 = vrot.slane %v1459, 1
    %v1501 = vrot.slane %v1459, 2
    %v1502 = vrot.slane %v1459, 3
    %v1503 = vrot.slane %v1459, 4
    %v1504 = vrot.slane %v1459, 5
    %v1505 = vrot.slane %v1459, 6
    %v1506 = vrot.slane %v1459, 7
    %v1507 = vrot.slane %v1461, 1
    %v1508 = vrot.slane %v1461, 2
    %v1509 = vrot.slane %v1461, 3
    %v1510 = vrot.slane %v1461, 4
    %v1511 = vrot.slane %v1461, 5
    %v1512 = vrot.slane %v1461, 6
    %v1513 = vrot.slane %v1461, 7
    %v1514 = vrot.slane %v1464, 2
    %v1515 = vrot.slane %v1464, 3
    %v1516 = vrot.slane %v1464, 4
    %v1517 = vrot.slane %v1464, 5
    %v1518 = vrot.slane %v1464, 6
    %v1519 = vrot.slane %v1464, 7
    %v1520 = vrot.slane %v1466, 1
    %v1521 = vrot.slane %v1466, 2
    %v1522 = vrot.slane %v1466, 3
    %v1523 = vrot.slane %v1466, 4
    %v1524 = vrot.slane %v1466, 5
    %v1525 = vrot.slane %v1466, 6
    %v1526 = vrot.slane %v1466, 7
    %v1527 = vrot.slane %v1469, 1
    %v1528 = vrot.slane %v1469, 2
    %v1529 = vrot.slane %v1469, 3
    %v1530 = vrot.slane %v1469, 4
    %v1531 = vrot.slane %v1469, 5
    %v1532 = vrot.slane %v1469, 6
    %v1533 = vrot.slane %v1469, 7
    %v1534 = vrot.slane %v1471, 1
    %v1535 = vrot.slane %v1471, 2
    %v1536 = vrot.slane %v1471, 3
    %v1537 = vrot.slane %v1471, 4
    %v1538 = vrot.slane %v1471, 5
    %v1539 = vrot.slane %v1471, 6
    %v1540 = vrot.slane %v1471, 7
    %v1541 = vrot.slane %v1474, 1
    %1598 = vst [vmem:[#allocation1] ss:$9 sm:$0xff] %v1486
    %s1599 = scalar_lea.vmem [#allocation1], 1
    %1600 = vst [vmem:[%s1599] ss:$9 sm:$0xff] %v1487
    %s1601 = scalar_lea.vmem [#allocation1], 2
    %1602 = vst [vmem:[%s1601] ss:$9 sm:$0xff] %v1488
    %s1603 = scalar_lea.vmem [#allocation1], 3
    %1604 = vst [vmem:[%s1603] ss:$9 sm:$0xff] %v1489
    %s1605 = scalar_lea.vmem [#allocation1], 4
    %1606 = vst [vmem:[%s1605] ss:$9 sm:$0xff] %v1490
    %s1607 = scalar_lea.vmem [#allocation1], 5
    %1608 = vst [vmem:[%s1607] ss:$9 sm:$0xff] %v1491
    %s1609 = scalar_lea.vmem [#allocation1], 6
    %1610 = vst [vmem:[%s1609] ss:$9 sm:$0xff] %v1492
    %s1611 = scalar_lea.vmem [#allocation1], 7
    %1612 = vst [vmem:[%s1611] ss:$9 sm:$0xff] %v1456
    %v1613 = vld [vmem:[#allocation1] sm:$0xff]
    %1614 = vst [vmem:[#allocation1] ss:$9 sm:$0xff] %v1493
    %1615 = vst [vmem:[%s1599] ss:$9 sm:$0xff] %v1494
    %1616 = vst [vmem:[%s1601] ss:$9 sm:$0xff] %v1495
    %1617 = vst [vmem:[%s1603] ss:$9 sm:$0xff] %v1496
    %1618 = vst [vmem:[%s1605] ss:$9 sm:$0xff] %v1497
    %1619 = vst [vmem:[%s1607] ss:$9 sm:$0xff] %v1498
    %1620 = vst [vmem:[%s1609] ss:$9 sm:$0xff] %v1499
    %1621 = vst [vmem:[%s1611] ss:$9 sm:$0xff] %v1459
    %v1622 = vld [vmem:[#allocation1] sm:$0xff]
    %1623 = vst [vmem:[#allocation1] ss:$9 sm:$0xff] %v1500
    %1624 = vst [vmem:[%s1599] ss:$9 sm:$0xff] %v1501
    %1625 = vst [vmem:[%s1601] ss:$9 sm:$0xff] %v1502
    %1626 = vst [vmem:[%s1603] ss:$9 sm:$0xff] %v1503
    %1627 = vst [vmem:[%s1605] ss:$9 sm:$0xff] %v1504
    %1628 = vst [vmem:[%s1607] ss:$9 sm:$0xff] %v1505
    %1629 = vst [vmem:[%s1609] ss:$9 sm:$0xff] %v1506
    %1630 = vst [vmem:[%s1611] ss:$9 sm:$0xff] %v1461
    %v1631 = vld [vmem:[#allocation1] sm:$0xff]
    %1632 = vst [vmem:[#allocation1] ss:$9 sm:$0xff] %v1507
    %1633 = vst [vmem:[%s1599] ss:$9 sm:$0xff] %v1508
    %1634 = vst [vmem:[%s1601] ss:$9 sm:$0xff] %v1509
    %1635 = vst [vmem:[%s1603] ss:$9 sm:$0xff] %v1510
    %1636 = vst [vmem:[%s1605] ss:$9 sm:$0xff] %v1511
    %1637 = vst [vmem:[%s1607] ss:$9 sm:$0xff] %v1512
    %1638 = vst [vmem:[%s1609] ss:$9 sm:$0xff] %v1513
    %1639 = vst [vmem:[%s1611] ss:$9 sm:$0xff] %v1464
    %v1640 = vld [vmem:[#allocation1] sm:$0xff]
    %1641 = vst [vmem:[#allocation1] ss:$9 sm:$0xff] %v1514
    %1642 = vst [vmem:[%s1599] ss:$9 sm:$0xff] %v1515
    %1643 = vst [vmem:[%s1601] ss:$9 sm:$0xff] %v1516
    %1644 = vst [vmem:[%s1603] ss:$9 sm:$0xff] %v1517
    %1645 = vst [vmem:[%s1605] ss:$9 sm:$0xff] %v1518
    %1646 = vst [vmem:[%s1607] ss:$9 sm:$0xff] %v1519
    %1647 = vst [vmem:[%s1609] ss:$9 sm:$0xff] %v1466
    %1648 = vst [vmem:[%s1611] ss:$9 sm:$0xff] %v1520
    %v1649 = vld [vmem:[#allocation1] sm:$0xff]
    %1650 = vst [vmem:[#allocation1] ss:$9 sm:$0xff] %v1521
    %1651 = vst [vmem:[%s1599] ss:$9 sm:$0xff] %v1522
    %1652 = vst [vmem:[%s1601] ss:$9 sm:$0xff] %v1523
    %1653 = vst [vmem:[%s1603] ss:$9 sm:$0xff] %v1524
    %1654 = vst [vmem:[%s1605] ss:$9 sm:$0xff] %v1525
    %1655 = vst [vmem:[%s1607] ss:$9 sm:$0xff] %v1526
    %1656 = vst [vmem:[%s1609] ss:$9 sm:$0xff] %v1469
    %1657 = vst [vmem:[%s1611] ss:$9 sm:$0xff] %v1527
    %v1658 = vld [vmem:[#allocation1] sm:$0xff]
    %1659 = vst [vmem:[#allocation1] ss:$9 sm:$0xff] %v1528
    %1660 = vst [vmem:[%s1599] ss:$9 sm:$0xff] %v1529
    %1661 = vst [vmem:[%s1601] ss:$9 sm:$0xff] %v1530
    %1662 = vst [vmem:[%s1603] ss:$9 sm:$0xff] %v1531
    %1663 = vst [vmem:[%s1605] ss:$9 sm:$0xff] %v1532
    %1664 = vst [vmem:[%s1607] ss:$9 sm:$0xff] %v1533
    %1665 = vst [vmem:[%s1609] ss:$9 sm:$0xff] %v1471
    %1666 = vst [vmem:[%s1611] ss:$9 sm:$0xff] %v1534
    %v1667 = vld [vmem:[#allocation1] sm:$0xff]
    %1668 = vst [vmem:[#allocation1] ss:$9 sm:$0xff] %v1535
    %1669 = vst [vmem:[%s1599] ss:$9 sm:$0xff] %v1536
    %1670 = vst [vmem:[%s1601] ss:$9 sm:$0xff] %v1537
    %1671 = vst [vmem:[%s1603] ss:$9 sm:$0xff] %v1538
    %1672 = vst [vmem:[%s1605] ss:$9 sm:$0xff] %v1539
    %1673 = vst [vmem:[%s1607] ss:$9 sm:$0xff] %v1540
    %1674 = vst [vmem:[%s1609] ss:$9 sm:$0xff] %v1474
    %1675 = vst [vmem:[%s1611] ss:$9 sm:$0xff] %v1541
    %v1676 = vld [vmem:[#allocation1] sm:$0xff]
    %1685 = vst.msk [vmem:[#allocation2] sm:$0xff] %vm256, %v1613
    %1686 = vst.msk [vmem:[#allocation2 + $0x8] sm:$0xff] %vm256, %v1622
    %1687 = vst.msk [vmem:[#allocation2 + $0x10] sm:$0xff] %vm256, %v1631
    %1688 = vst.msk [vmem:[#allocation2 + $0x18] sm:$0xff] %vm256, %v1640
    %1689 = vst.msk [vmem:[#allocation2 + $0x20] sm:$0xff] %vm256, %v1649
    %1690 = vst.msk [vmem:[#allocation2 + $0x28] sm:$0xff] %vm256, %v1658
    %1691 = vst.msk [vmem:[#allocation2 + $0x30] sm:$0xff] %vm256, %v1667
    %1692 = vst.msk [vmem:[#allocation2 + $0x38] sm:$0xff] %vm256, %v1676
    %v1693 = vld [vmem:[%s5] sm:$0xff]
    %v1694 = vld [vmem:[%s5 + $0x8] sm:$0xff]
    %v1695 = vld [vmem:[%s5 + $0x10] sm:$0xff]
    %v1696 = vld [vmem:[%s5 + $0x18] sm:$0xff]
    %v1697 = vld [vmem:[%s5 + $0x20] sm:$0xff]
    %v1698 = vld [vmem:[%s5 + $0x28] sm:$0xff]
    %v1699 = vld [vmem:[%s5 + $0x30] sm:$0xff]
    %v1700 = vld [vmem:[%s5 + $0x38] sm:$0xff]
    %v1709 = vrot.slane %v1693, 1
    %v1710 = vrot.slane %v1693, 2
    %v1711 = vrot.slane %v1693, 3
    %v1712 = vrot.slane %v1693, 4
    %v1713 = vrot.slane %v1693, 5
    %v1714 = vrot.slane %v1693, 6
    %v1715 = vrot.slane %v1693, 7
    %v1716 = vrot.slane %v1694, 1
    %v1717 = vrot.slane %v1694, 2
    %v1718 = vrot.slane %v1694, 3
    %v1719 = vrot.slane %v1694, 4
    %v1720 = vrot.slane %v1694, 5
    %v1721 = vrot.slane %v1694, 6
    %v1722 = vrot.slane %v1694, 7
    %v1723 = vrot.slane %v1695, 1
    %v1724 = vrot.slane %v1695, 2
    %v1725 = vrot.slane %v1695, 3
    %v1726 = vrot.slane %v1695, 4
    %v1727 = vrot.slane %v1695, 5
    %v1728 = vrot.slane %v1695, 6
    %v1729 = vrot.slane %v1695, 7
    %v1730 = vrot.slane %v1696, 1
    %v1731 = vrot.slane %v1696, 2
    %v1732 = vrot.slane %v1696, 3
    %v1733 = vrot.slane %v1696, 4
    %v1734 = vrot.slane %v1696, 5
    %v1735 = vrot.slane %v1696, 6
    %v1736 = vrot.slane %v1696, 7
    %v1737 = vrot.slane %v1697, 1
    %v1738 = vrot.slane %v1697, 2
    %v1739 = vrot.slane %v1697, 3
    %v1740 = vrot.slane %v1697, 4
    %v1741 = vrot.slane %v1697, 5
    %v1742 = vrot.slane %v1697, 6
    %v1743 = vrot.slane %v1697, 7
    %v1744 = vrot.slane %v1698, 1
    %v1745 = vrot.slane %v1698, 2
    %v1746 = vrot.slane %v1698, 3
    %v1747 = vrot.slane %v1698, 4
    %v1748 = vrot.slane %v1698, 5
    %v1749 = vrot.slane %v1698, 6
    %v1750 = vrot.slane %v1698, 7
    %v1751 = vrot.slane %v1699, 1
    %v1752 = vrot.slane %v1699, 2
    %v1753 = vrot.slane %v1699, 3
    %v1754 = vrot.slane %v1699, 4
    %v1755 = vrot.slane %v1699, 5
    %v1756 = vrot.slane %v1699, 6
    %v1757 = vrot.slane %v1699, 7
    %v1758 = vrot.slane %v1700, 1
    %v1759 = vrot.slane %v1700, 2
    %v1760 = vrot.slane %v1700, 3
    %v1761 = vrot.slane %v1700, 4
    %v1762 = vrot.slane %v1700, 5
    %v1763 = vrot.slane %v1700, 6
    %v1764 = vrot.slane %v1700, 7
    %v1821 = vsub.f32 %v1486, %v1693
    %v1822 = vsub.f32 %v1487, %v1709
    %v1823 = vsub.f32 %v1488, %v1710
    %v1824 = vsub.f32 %v1489, %v1711
    %v1825 = vsub.f32 %v1490, %v1712
    %v1826 = vsub.f32 %v1491, %v1713
    %v1827 = vsub.f32 %v1492, %v1714
    %v1828 = vsub.f32 %v1456, %v1715
    %v1829 = vsub.f32 %v1493, %v1694
    %v1830 = vsub.f32 %v1494, %v1716
    %v1831 = vsub.f32 %v1495, %v1717
    %v1832 = vsub.f32 %v1496, %v1718
    %v1833 = vsub.f32 %v1497, %v1719
    %v1834 = vsub.f32 %v1498, %v1720
    %v1835 = vsub.f32 %v1499, %v1721
    %v1836 = vsub.f32 %v1459, %v1722
    %v1837 = vsub.f32 %v1500, %v1695
    %v1838 = vsub.f32 %v1501, %v1723
    %v1839 = vsub.f32 %v1502, %v1724
    %v1840 = vsub.f32 %v1503, %v1725
    %v1841 = vsub.f32 %v1504, %v1726
    %v1842 = vsub.f32 %v1505, %v1727
    %v1843 = vsub.f32 %v1506, %v1728
    %v1844 = vsub.f32 %v1461, %v1729
    %v1845 = vsub.f32 %v1507, %v1696
    %v1846 = vsub.f32 %v1508, %v1730
    %v1847 = vsub.f32 %v1509, %v1731
    %v1848 = vsub.f32 %v1510, %v1732
    %v1849 = vsub.f32 %v1511, %v1733
    %v1850 = vsub.f32 %v1512, %v1734
    %v1851 = vsub.f32 %v1513, %v1735
    %v1852 = vsub.f32 %v1464, %v1736
    %v1853 = vsub.f32 %v1514, %v1697
    %v1854 = vsub.f32 %v1515, %v1737
    %v1855 = vsub.f32 %v1516, %v1738
    %v1856 = vsub.f32 %v1517, %v1739
    %v1857 = vsub.f32 %v1518, %v1740
    %v1858 = vsub.f32 %v1519, %v1741
    %v1859 = vsub.f32 %v1466, %v1742
    %v1860 = vsub.f32 %v1520, %v1743
    %v1861 = vsub.f32 %v1521, %v1698
    %v1862 = vsub.f32 %v1522, %v1744
    %v1863 = vsub.f32 %v1523, %v1745
    %v1864 = vsub.f32 %v1524, %v1746
    %v1865 = vsub.f32 %v1525, %v1747
    %v1866 = vsub.f32 %v1526, %v1748
    %v1867 = vsub.f32 %v1469, %v1749
    %v1868 = vsub.f32 %v1527, %v1750
    %v1869 = vsub.f32 %v1528, %v1699
    %v1870 = vsub.f32 %v1529, %v1751
    %v1871 = vsub.f32 %v1530, %v1752
    %v1872 = vsub.f32 %v1531, %v1753
    %v1873 = vsub.f32 %v1532, %v1754
    %v1874 = vsub.f32 %v1533, %v1755
    %v1875 = vsub.f32 %v1471, %v1756
    %v1876 = vsub.f32 %v1534, %v1757
    %v1877 = vsub.f32 %v1535, %v1700
    %v1878 = vsub.f32 %v1536, %v1758
    %v1879 = vsub.f32 %v1537, %v1759
    %v1880 = vsub.f32 %v1538, %v1760
    %v1881 = vsub.f32 %v1539, %v1761
    %v1882 = vsub.f32 %v1540, %v1762
    %v1883 = vsub.f32 %v1474, %v1763
    %v1884 = vsub.f32 %v1541, %v1764
    %v1885 = vmul.f32 %v1821, %v1821
    %v1886 = vmul.f32 %v1822, %v1822
    %v1887 = vmul.f32 %v1823, %v1823
    %v1888 = vmul.f32 %v1824, %v1824
    %v1889 = vmul.f32 %v1825, %v1825
    %v1890 = vmul.f32 %v1826, %v1826
    %v1891 = vmul.f32 %v1827, %v1827
    %v1892 = vmul.f32 %v1828, %v1828
    %v1893 = vmul.f32 %v1829, %v1829
    %v1894 = vmul.f32 %v1830, %v1830
    %v1895 = vmul.f32 %v1831, %v1831
    %v1896 = vmul.f32 %v1832, %v1832
    %v1897 = vmul.f32 %v1833, %v1833
    %v1898 = vmul.f32 %v1834, %v1834
    %v1899 = vmul.f32 %v1835, %v1835
    %v1900 = vmul.f32 %v1836, %v1836
    %v1901 = vmul.f32 %v1837, %v1837
    %v1902 = vmul.f32 %v1838, %v1838
    %v1903 = vmul.f32 %v1839, %v1839
    %v1904 = vmul.f32 %v1840, %v1840
    %v1905 = vmul.f32 %v1841, %v1841
    %v1906 = vmul.f32 %v1842, %v1842
    %v1907 = vmul.f32 %v1843, %v1843
    %v1908 = vmul.f32 %v1844, %v1844
    %v1909 = vmul.f32 %v1845, %v1845
    %v1910 = vmul.f32 %v1846, %v1846
    %v1911 = vmul.f32 %v1847, %v1847
    %v1912 = vmul.f32 %v1848, %v1848
    %v1913 = vmul.f32 %v1849, %v1849
    %v1914 = vmul.f32 %v1850, %v1850
    %v1915 = vmul.f32 %v1851, %v1851
    %v1916 = vmul.f32 %v1852, %v1852
    %v1917 = vmul.f32 %v1853, %v1853
    %v1918 = vmul.f32 %v1854, %v1854
    %v1919 = vmul.f32 %v1855, %v1855
    %v1920 = vmul.f32 %v1856, %v1856
    %v1921 = vmul.f32 %v1857, %v1857
    %v1922 = vmul.f32 %v1858, %v1858
    %v1923 = vmul.f32 %v1859, %v1859
    %v1924 = vmul.f32 %v1860, %v1860
    %v1925 = vmul.f32 %v1861, %v1861
    %v1926 = vmul.f32 %v1862, %v1862
    %v1927 = vmul.f32 %v1863, %v1863
    %v1928 = vmul.f32 %v1864, %v1864
    %v1929 = vmul.f32 %v1865, %v1865
    %v1930 = vmul.f32 %v1866, %v1866
    %v1931 = vmul.f32 %v1867, %v1867
    %v1932 = vmul.f32 %v1868, %v1868
    %v1933 = vmul.f32 %v1869, %v1869
    %v1934 = vmul.f32 %v1870, %v1870
    %v1935 = vmul.f32 %v1871, %v1871
    %v1936 = vmul.f32 %v1872, %v1872
    %v1937 = vmul.f32 %v1873, %v1873
    %v1938 = vmul.f32 %v1874, %v1874
    %v1939 = vmul.f32 %v1875, %v1875
    %v1940 = vmul.f32 %v1876, %v1876
    %v1941 = vmul.f32 %v1877, %v1877
    %v1942 = vmul.f32 %v1878, %v1878
    %v1943 = vmul.f32 %v1879, %v1879
    %v1944 = vmul.f32 %v1880, %v1880
    %v1945 = vmul.f32 %v1881, %v1881
    %v1946 = vmul.f32 %v1882, %v1882
    %v1947 = vmul.f32 %v1883, %v1883
    %v1948 = vmul.f32 %v1884, %v1884
    %2013 = vst [vmem:[#allocation1] ss:$9 sm:$0xff] %v1885
    %s2014 = scalar_lea.vmem [#allocation1], 1
    %2015 = vst [vmem:[%s2014] ss:$9 sm:$0xff] %v1886
    %s2016 = scalar_lea.vmem [#allocation1], 2
    %2017 = vst [vmem:[%s2016] ss:$9 sm:$0xff] %v1887
    %s2018 = scalar_lea.vmem [#allocation1], 3
    %2019 = vst [vmem:[%s2018] ss:$9 sm:$0xff] %v1888
    %s2020 = scalar_lea.vmem [#allocation1], 4
    %2021 = vst [vmem:[%s2020] ss:$9 sm:$0xff] %v1889
    %s2022 = scalar_lea.vmem [#allocation1], 5
    %2023 = vst [vmem:[%s2022] ss:$9 sm:$0xff] %v1890
    %s2024 = scalar_lea.vmem [#allocation1], 6
    %2025 = vst [vmem:[%s2024] ss:$9 sm:$0xff] %v1891
    %s2026 = scalar_lea.vmem [#allocation1], 7
    %2027 = vst [vmem:[%s2026] ss:$9 sm:$0xff] %v1892
    %v2028 = vld [vmem:[#allocation1] sm:$0xff]
    %2029 = vst [vmem:[#allocation1] ss:$9 sm:$0xff] %v1893
    %2030 = vst [vmem:[%s2014] ss:$9 sm:$0xff] %v1894
    %2031 = vst [vmem:[%s2016] ss:$9 sm:$0xff] %v1895
    %2032 = vst [vmem:[%s2018] ss:$9 sm:$0xff] %v1896
    %2033 = vst [vmem:[%s2020] ss:$9 sm:$0xff] %v1897
    %2034 = vst [vmem:[%s2022] ss:$9 sm:$0xff] %v1898
    %2035 = vst [vmem:[%s2024] ss:$9 sm:$0xff] %v1899
    %2036 = vst [vmem:[%s2026] ss:$9 sm:$0xff] %v1900
    %v2037 = vld [vmem:[#allocation1] sm:$0xff]
    %2038 = vst [vmem:[#allocation1] ss:$9 sm:$0xff] %v1901
    %2039 = vst [vmem:[%s2014] ss:$9 sm:$0xff] %v1902
    %2040 = vst [vmem:[%s2016] ss:$9 sm:$0xff] %v1903
    %2041 = vst [vmem:[%s2018] ss:$9 sm:$0xff] %v1904
    %2042 = vst [vmem:[%s2020] ss:$9 sm:$0xff] %v1905
    %2043 = vst [vmem:[%s2022] ss:$9 sm:$0xff] %v1906
    %2044 = vst [vmem:[%s2024] ss:$9 sm:$0xff] %v1907
    %2045 = vst [vmem:[%s2026] ss:$9 sm:$0xff] %v1908
    %v2046 = vld [vmem:[#allocation1] sm:$0xff]
    %2047 = vst [vmem:[#allocation1] ss:$9 sm:$0xff] %v1909
    %2048 = vst [vmem:[%s2014] ss:$9 sm:$0xff] %v1910
    %2049 = vst [vmem:[%s2016] ss:$9 sm:$0xff] %v1911
    %2050 = vst [vmem:[%s2018] ss:$9 sm:$0xff] %v1912
    %2051 = vst [vmem:[%s2020] ss:$9 sm:$0xff] %v1913
    %2052 = vst [vmem:[%s2022] ss:$9 sm:$0xff] %v1914
    %2053 = vst [vmem:[%s2024] ss:$9 sm:$0xff] %v1915
    %2054 = vst [vmem:[%s2026] ss:$9 sm:$0xff] %v1916
    %v2055 = vld [vmem:[#allocation1] sm:$0xff]
    %2056 = vst [vmem:[#allocation1] ss:$9 sm:$0xff] %v1917
    %2057 = vst [vmem:[%s2014] ss:$9 sm:$0xff] %v1918
    %2058 = vst [vmem:[%s2016] ss:$9 sm:$0xff] %v1919
    %2059 = vst [vmem:[%s2018] ss:$9 sm:$0xff] %v1920
    %2060 = vst [vmem:[%s2020] ss:$9 sm:$0xff] %v1921
    %2061 = vst [vmem:[%s2022] ss:$9 sm:$0xff] %v1922
    %2062 = vst [vmem:[%s2024] ss:$9 sm:$0xff] %v1923
    %2063 = vst [vmem:[%s2026] ss:$9 sm:$0xff] %v1924
    %v2064 = vld [vmem:[#allocation1] sm:$0xff]
    %2065 = vst [vmem:[#allocation1] ss:$9 sm:$0xff] %v1925
    %2066 = vst [vmem:[%s2014] ss:$9 sm:$0xff] %v1926
    %2067 = vst [vmem:[%s2016] ss:$9 sm:$0xff] %v1927
    %2068 = vst [vmem:[%s2018] ss:$9 sm:$0xff] %v1928
    %2069 = vst [vmem:[%s2020] ss:$9 sm:$0xff] %v1929
    %2070 = vst [vmem:[%s2022] ss:$9 sm:$0xff] %v1930
    %2071 = vst [vmem:[%s2024] ss:$9 sm:$0xff] %v1931
    %2072 = vst [vmem:[%s2026] ss:$9 sm:$0xff] %v1932
    %v2073 = vld [vmem:[#allocation1] sm:$0xff]
    %2074 = vst [vmem:[#allocation1] ss:$9 sm:$0xff] %v1933
    %2075 = vst [vmem:[%s2014] ss:$9 sm:$0xff] %v1934
    %2076 = vst [vmem:[%s2016] ss:$9 sm:$0xff] %v1935
    %2077 = vst [vmem:[%s2018] ss:$9 sm:$0xff] %v1936
    %2078 = vst [vmem:[%s2020] ss:$9 sm:$0xff] %v1937
    %2079 = vst [vmem:[%s2022] ss:$9 sm:$0xff] %v1938
    %2080 = vst [vmem:[%s2024] ss:$9 sm:$0xff] %v1939
    %2081 = vst [vmem:[%s2026] ss:$9 sm:$0xff] %v1940
    %v2082 = vld [vmem:[#allocation1] sm:$0xff]
    %2083 = vst [vmem:[#allocation1] ss:$9 sm:$0xff] %v1941
    %2084 = vst [vmem:[%s2014] ss:$9 sm:$0xff] %v1942
    %2085 = vst [vmem:[%s2016] ss:$9 sm:$0xff] %v1943
    %2086 = vst [vmem:[%s2018] ss:$9 sm:$0xff] %v1944
    %2087 = vst [vmem:[%s2020] ss:$9 sm:$0xff] %v1945
    %2088 = vst [vmem:[%s2022] ss:$9 sm:$0xff] %v1946
    %2089 = vst [vmem:[%s2024] ss:$9 sm:$0xff] %v1947
    %2090 = vst [vmem:[%s2026] ss:$9 sm:$0xff] %v1948
    %v2091 = vld [vmem:[#allocation1] sm:$0xff]
    %v2100 = vsel %vm256, %v2028, 0.0
    %2101 = vadd.xlane.f32.xlu0 %v2100
    %v2102 = vpop.xlane.xlu0 %2101
    %v2103 = vsel %vm256, %v2037, 0.0
    %2104 = vadd.xlane.f32.xlu0 %v2103
    %v2105 = vpop.xlane.xlu0 %2104
    %v2106 = vsel %vm256, %v2046, 0.0
    %2107 = vadd.xlane.f32.xlu0 %v2106
    %v2108 = vpop.xlane.xlu0 %2107
    %v2109 = vsel %vm256, %v2055, 0.0
    %2110 = vadd.xlane.f32.xlu0 %v2109
    %v2111 = vpop.xlane.xlu0 %2110
    %v2112 = vsel %vm256, %v2064, 0.0
    %2113 = vadd.xlane.f32.xlu0 %v2112
    %v2114 = vpop.xlane.xlu0 %2113
    %v2115 = vsel %vm256, %v2073, 0.0
    %2116 = vadd.xlane.f32.xlu0 %v2115
    %v2117 = vpop.xlane.xlu0 %2116
    %v2118 = vsel %vm256, %v2082, 0.0
    %2119 = vadd.xlane.f32.xlu0 %v2118
    %v2120 = vpop.xlane.xlu0 %2119
    %v2121 = vsel %vm256, %v2091, 0.0
    %2122 = vadd.xlane.f32.xlu0 %v2121
    %v2123 = vpop.xlane.xlu0 %2122
    %v2124 = vmul.f32 %v2102, %v291
    %v2125 = vmul.f32 %v2105, %v291
    %v2126 = vmul.f32 %v2108, %v291
    %v2127 = vmul.f32 %v2111, %v291
    %v2128 = vmul.f32 %v2114, %v291
    %v2129 = vmul.f32 %v2117, %v291
    %v2130 = vmul.f32 %v2120, %v291
    %v2131 = vmul.f32 %v2123, %v291
    %v2132 = vld [vmem:[%s6] sm:$0x3]
    %v2134 = vperm.slane %v2132, 0
    %v2135 = vlaneseq
    %v2136 = vshrl.u32 %v2135, 7
    %2138 = vset.pattern.permute.xlu0 %v2136
    %2139 = vperm.xlu0 %2138, %v2134
    %v2140 = vpop.permute.xlu0 %2139
    %v2141 = vlaneseq
    %v2142 = vshrl.u32 %v2141, 7
    %v2143 = vadd.s32 %v2142, 8
    %2144 = vset.pattern.permute.xlu0 %v2143
    %2145 = vperm.xlu0 %2144, %v2134
    %v2146 = vpop.permute.xlu0 %2145
    %v2147 = vlaneseq
    %v2148 = vshrl.u32 %v2147, 7
    %v2149 = vadd.s32 %v2148, 16
    %2150 = vset.pattern.permute.xlu0 %v2149
    %2151 = vperm.xlu0 %2150, %v2134
    %v2152 = vpop.permute.xlu0 %2151
    %v2153 = vlaneseq
    %v2154 = vshrl.u32 %v2153, 7
    %v2155 = vadd.s32 %v2154, 24
    %2156 = vset.pattern.permute.xlu0 %v2155
    %2157 = vperm.xlu0 %2156, %v2134
    %v2158 = vpop.permute.xlu0 %2157
    %v2159 = vperm.slane %v2132, 1
    %v2160 = vlaneseq
    %v2161 = vshrl.u32 %v2160, 7
    %2163 = vset.pattern.permute.xlu0 %v2161
    %2164 = vperm.xlu0 %2163, %v2159
    %v2165 = vpop.permute.xlu0 %2164
    %v2166 = vlaneseq
    %v2167 = vshrl.u32 %v2166, 7
    %v2168 = vadd.s32 %v2167, 8
    %2169 = vset.pattern.permute.xlu0 %v2168
    %2170 = vperm.xlu0 %2169, %v2159
    %v2171 = vpop.permute.xlu0 %2170
    %v2172 = vlaneseq
    %v2173 = vshrl.u32 %v2172, 7
    %v2174 = vadd.s32 %v2173, 16
    %2175 = vset.pattern.permute.xlu0 %v2174
    %2176 = vperm.xlu0 %2175, %v2159
    %v2177 = vpop.permute.xlu0 %2176
    %v2178 = vlaneseq
    %v2179 = vshrl.u32 %v2178, 7
    %v2180 = vadd.s32 %v2179, 24
    %2181 = vset.pattern.permute.xlu0 %v2180
    %2182 = vperm.xlu0 %2181, %v2159
    %v2183 = vpop.permute.xlu0 %2182
    %v2192 = vmul.f32 %v2124, %v2140
    %v2193 = vmul.f32 %v2125, %v2146
    %v2194 = vmul.f32 %v2126, %v2152
    %v2195 = vmul.f32 %v2127, %v2158
    %v2196 = vmul.f32 %v2128, %v2165
    %v2197 = vmul.f32 %v2129, %v2171
    %v2198 = vmul.f32 %v2130, %v2177
    %v2199 = vmul.f32 %v2131, %v2183
    %2208 = vset.pattern.permute.xlu0 0
    %2209 = vperm.xlu0 %2208, %v2192
    %v2210 = vpop.permute.xlu0 %2209
    %2211 = vset.pattern.permute.xlu0 0
    %2212 = vperm.xlu0 %2211, %v2193
    %v2213 = vpop.permute.xlu0 %2212
    %2214 = vset.pattern.permute.xlu0 0
    %2215 = vperm.xlu0 %2214, %v2194
    %v2216 = vpop.permute.xlu0 %2215
    %2217 = vset.pattern.permute.xlu0 0
    %2218 = vperm.xlu0 %2217, %v2195
    %v2219 = vpop.permute.xlu0 %2218
    %2220 = vset.pattern.permute.xlu0 0
    %2221 = vperm.xlu0 %2220, %v2196
    %v2222 = vpop.permute.xlu0 %2221
    %2223 = vset.pattern.permute.xlu0 0
    %2224 = vperm.xlu0 %2223, %v2197
    %v2225 = vpop.permute.xlu0 %2224
    %2226 = vset.pattern.permute.xlu0 0
    %2227 = vperm.xlu0 %2226, %v2198
    %v2228 = vpop.permute.xlu0 %2227
    %2229 = vset.pattern.permute.xlu0 0
    %2230 = vperm.xlu0 %2229, %v2199
    %v2231 = vpop.permute.xlu0 %2230
    %v2232 = vlaneseq
    %v2233 = vand.u32 %v2232, 127
    %v2234 = vperm.slane %v2210, %v2233
    %v2235 = vadd.s32 %v2233, 4294967288
    %v2236 = vperm.slane %v2213, %v2235
    %vm2237 = vcmask 130112
    %v2238 = vsel %vm2237, %v2236, %v2234
    %v2239 = vadd.s32 %v2233, 4294967280
    %v2240 = vperm.slane %v2216, %v2239
    %vm2241 = vcmask 195712
    %v2242 = vsel %vm2241, %v2240, %v2238
    %v2243 = vadd.s32 %v2233, 4294967272
    %v2244 = vperm.slane %v2219, %v2243
    %vm2245 = vcmask 261312
    %v2246 = vsel %vm2245, %v2244, %v2242
    %v2247 = vperm.slane %v2222, %v2233
    %v2248 = vperm.slane %v2225, %v2235
    %v2249 = vsel %vm2237, %v2248, %v2247
    %v2250 = vperm.slane %v2228, %v2239
    %v2251 = vsel %vm2241, %v2250, %v2249
    %v2252 = vperm.slane %v2231, %v2243
    %v2253 = vsel %vm2245, %v2252, %v2251
    %vm2254 = vcmask 1041409
    %v2255 = vsel %vm2254, %v2253, %v2246
    %vm2257 = vcmask 254976
    %v2258 = vsel %vm2257, %v2255, 0.0
    %2259 = vadd.xlane.f32.xlu0 %v2258
    %v2260 = vpop.xlane.xlu0 %2259
    %v2261 = vrot.slane %v2260, 4
    %v2262 = vadd.f32 %v2260, %v2261
    %v2263 = vrot.slane %v2262, 2
    %v2264 = vadd.f32 %v2262, %v2263
    %v2265 = vrot.slane %v2264, 1
    %v2266 = vadd.f32 %v2264, %v2265
    %s2267 = vtos %v2266
    %v2268 = vsel %vm2257, %v2132, 0.0
    %2269 = vadd.xlane.f32.xlu0 %v2268
    %v2270 = vpop.xlane.xlu0 %2269
    %v2271 = vrot.slane %v2270, 4
    %v2272 = vadd.f32 %v2270, %v2271
    %v2273 = vrot.slane %v2272, 2
    %v2274 = vadd.f32 %v2272, %v2273
    %v2275 = vrot.slane %v2274, 1
    %v2276 = vadd.f32 %v2274, %v2275
    %s2277 = vtos %v2276
    %s2278 = smax.f32 %s2277, 1.0
    %v2279 = vstv %s2278
    %v2280 = vrcp.pop %v2279
    %v2281 = vmul.f32 %v2279, %v2280
    %v2282 = vsub.f32 1.0, %v2281
    %v2283 = vmul.f32 %v2280, %v2282
    %v2284 = vadd.f32 %v2280, %v2283
    %vm2285 = vweird.f32 %v2279
    %vm2286 = vweird.f32 %v2280
    %vm2287 = vmor %vm2285, %vm2286
    %v2288 = vsel %vm2287, %v2280, %v2284
    %v2289 = vand.u32 2147483647, %v2279
    %vm2290 = vcmp.eq.f32.partialorder %v2289, 8.507059e+37
    %v2291 = vand.u32 %v2279, 2147483648
    %v2292 = vor.u32 1.1754944e-38, %v2291
    %v2293 = vsel %vm2290, %v2292, %v2288
    %s2294 = vtos %v2293
    %s2295 = smul.f32 %s2267, %s2294
    %v2296 = vstv %s2295
    %vm2297 = vcmask 0
    %2298 = vst.msk [vmem:[#allocation4] sm:$0x1] %vm2297, %v2296
    // Predicated region
    $region30: #{mae_forward.9} parent=1 // pred_check
      _
    $region31: #{mae_forward.9} parent=1 // pred_check_branch
      %2300 = sbr.rel (0) target = $region33
    $region32: #{mae_forward.9} parent=1 // pred_region
      %2302 = vsyncadd [#allocation3], 0
      %s2303 = sshll.u32 [#allocation2], 4
      %s2304 = int_to_ptr.vmem [resolvable:$true] %s2303
      %s2305 = sshll.u32 %s7, 4
      %s2306 = int_to_ptr.hbm [resolvable:$true] %s2305
      %2311 = dma.vmem_to_hbm [thread:$0]  %s2304, 1024, %s2306, [#allocation3], 128, 128, 8
    $region33: #{mae_forward.9} parent=1 // pred_fallthru
      _
    // Predicated region
    $region34: #{mae_forward.9} parent=1 // pred_check
      _
    $region35: #{mae_forward.9} parent=1 // pred_check_branch
      %2313 = sbr.rel (0) target = $region37
    $region36: #{mae_forward.9} parent=1 // pred_region
      %2315 = vsyncadd [#allocation5], 0
      %s2317 = sshll.u32 [#allocation4], 4
      %s2318 = int_to_ptr.vmem [resolvable:$true] %s2317
      %s2319 = sshll.u32 %s8, 4
      %s2320 = int_to_ptr.hbm [resolvable:$true] %s2319
      %2322 = dma.vmem_to_hbm [thread:$0]  %s2318, 16, %s2320, [#allocation5]
    $region37: #{mae_forward.9} parent=1 // pred_fallthru
      _
    // Predicated region
    $region38: #{mae_forward.9} parent=1 // pred_check
      _
    $region39: #{mae_forward.9} parent=1 // pred_check_branch
      %2324 = sbr.rel (0) target = $region41
    $region40: #{mae_forward.9} parent=1 // pred_region
      %2326 = dma.done [#allocation3], 1024
    $region41: #{mae_forward.9} parent=1 // pred_fallthru
      _
    // Predicated region
    $region42: #{mae_forward.9} parent=1 // pred_check
      _
    $region43: #{mae_forward.9} parent=1 // pred_check_branch
      %2328 = sbr.rel (0) target = $region45
    $region44: #{mae_forward.9} parent=1 // pred_region
      %2330 = dma.done [#allocation5], 16
    $region45: #{mae_forward.9} parent=1 // pred_fallthru
      _
    %2331 = vsyncpa [#allocation3], 1
    %2332 = vsyncpa [#allocation5], 1

</llo_original>
